<compile_context>
chip_gen: v7x
topology: tpu7x:2x2x1
jax: 0.10.0
libtpu: 0.0.40
codegen_flags: <defaults>
</compile_context>

<pallas_src>
import jax
import jax.numpy as jnp
from jax.experimental import pallas as pl
from jax.experimental.pallas import tpu as pltpu

# ----------------------------------------------------------------------------
# Model constants (small synthetic sizes consistent with the module).
# ----------------------------------------------------------------------------
WORD_EMBEDDING_LENGTH = 32          # D
SLICE_SIZE = 32                     # event embedding length (== D here)
HIDDEN = 32                         # hidden width (== SLICE_SIZE, required by packing)
MT_DAYS = 7
NDAYS = 30                          # LT window (endPeriod - 29 .. endPeriod)
NDAYS_PAD = 32                      # padded to a sublane-friendly size
NH = 6                              # headlines per sample (synthetic)
NH_PAD = 8
NW = 8                              # words per (subject / verb / object) sentence
OUT_CLASSES = 2
OUT_PAD = 128                       # lane-dense padded output width
SAMPLES_PER_BLOCK = 16              # samples per grid step (16*NH_PAD = 128 MXU rows)

D = WORD_EMBEDDING_LENGTH
F32 = jnp.float32
WORDS_FEAT = 3 * NW * D             # 768 = (role, word, dim) flattened

# Row offsets inside the packed 32-wide parameter slab (all multiples of 8).
OFF_WBIG = 0                                    # (768, 32) word-mean-folded event weight
OFF_BE = OFF_WBIG + WORDS_FEAT                  # 768  event bias (1 row)
OFF_WLT = OFF_BE + 8                            # 776  LT conv taps (3 x 32 rows)
OFF_WMT = OFF_WLT + 3 * SLICE_SIZE              # 872  MT conv taps
OFF_WH = OFF_WMT + 3 * SLICE_SIZE               # 968  hidden weights (v_lt / v_mt / st)
OFF_BH = OFF_WH + 3 * SLICE_SIZE                # 1064 hidden bias (1 row)
P32_ROWS = OFF_BH + 8                           # 1072
POUT_ROWS = 40                                  # 32 rows Wout(pad 128) + 1 row bias + pad


# ----------------------------------------------------------------------------
# Fused kernel: one grid step processes SAMPLES_PER_BLOCK independent samples.
# ----------------------------------------------------------------------------
def _model_kernel(words_ref, dmean_ref, p32_ref, pout_ref, out_ref):
    BB = SAMPLES_PER_BLOCK
    S = SLICE_SIZE

    # --- EventEmbedding.  The per-role word mean is folded into the weight
    #     (the mean is linear), so a single (BB*NH_PAD, 768) @ (768, 32) MXU
    #     pass does: word mean + [s;v;o] concat + the three role matmuls.
    ev = jnp.tanh(
        jnp.dot(words_ref[...], p32_ref[OFF_WBIG:OFF_WBIG + WORDS_FEAT, :],
                preferred_element_type=F32)
        + p32_ref[OFF_BE:OFF_BE + 1, :])                         # (BB*NH_PAD, S)
    ev3 = ev.reshape(BB, NH_PAD, S)

    # --- Per-day mean of event embeddings (newest day first, zero rows for
    #     empty days) plus the day+1 / day+2 shifted copies needed by the
    #     width-3 conv.  The shifts live in the pre-shifted day-mean matrices,
    #     so every slice below starts on a 32-row boundary (no pltpu.roll /
    #     unaligned sublane slices needed).
    dall = jnp.einsum('bnh,bhd->bnd', dmean_ref[...], ev3,
                      preferred_element_type=F32)                # (BB, 3*32, S)
    d0 = dall[:, 0 * NDAYS_PAD:1 * NDAYS_PAD, :].reshape(BB * NDAYS_PAD, S)  # daily[t]
    d1 = dall[:, 1 * NDAYS_PAD:2 * NDAYS_PAD, :].reshape(BB * NDAYS_PAD, S)  # daily[t+1]
    d2 = dall[:, 2 * NDAYS_PAD:3 * NDAYS_PAD, :].reshape(BB * NDAYS_PAD, S)  # daily[t+2]

    def day_conv(off):   # width-3 conv over days, all BB samples in one matmul
        return (jnp.dot(d0, p32_ref[off:off + S, :], preferred_element_type=F32)
                + jnp.dot(d1, p32_ref[off + S:off + 2 * S, :], preferred_element_type=F32)
                + jnp.dot(d2, p32_ref[off + 2 * S:off + 3 * S, :], preferred_element_type=F32))

    c_lt = jnp.tanh(day_conv(OFF_WLT)).reshape(BB, NDAYS_PAD, S)
    c_mt = jnp.tanh(day_conv(OFF_WMT)).reshape(BB, NDAYS_PAD, S)

    # --- masked max-pool over the valid conv positions of each window.
    t = jax.lax.broadcasted_iota(jnp.int32, (BB, NDAYS_PAD, S), 1)
    neg = jnp.float32(-2.0)                       # tanh(x) > -1, so -2 never wins
    v_lt = jnp.max(jnp.where(t < NDAYS - 2, c_lt, neg), axis=1)             # (BB, S)
    # NOTE: the MT window deliberately matches the PyTorch loop (i >= mtPeriod):
    # it is the OLDEST MT_DAYS days of the 30-day window (rows 23..29).
    v_mt = jnp.max(jnp.where((t >= NDAYS - MT_DAYS) & (t < NDAYS - 2), c_mt, neg),
                   axis=1)                                                   # (BB, S)
    st = dall[:, 0, :]                            # newest day == eventEmbeddings[endPeriod]

    # --- hidden layer over concat([v_lt, v_mt, st]) (weights kept split) ----
    h = jnp.tanh(
        jnp.dot(v_lt, p32_ref[OFF_WH:OFF_WH + S, :], preferred_element_type=F32)
        + jnp.dot(v_mt, p32_ref[OFF_WH + S:OFF_WH + 2 * S, :], preferred_element_type=F32)
        + jnp.dot(st, p32_ref[OFF_WH + 2 * S:OFF_WH + 3 * S, :], preferred_element_type=F32)
        + p32_ref[OFF_BH:OFF_BH + 1, :])                                    # (BB, HIDDEN)

    # --- 2-way softmax, written lane-dense: classes live in lanes 0..1; the
    #     126 dummy lanes carry a -1e30 bias so their softmax mass is 0.
    logits = (jnp.dot(h, pout_ref[0:HIDDEN, :], preferred_element_type=F32)
              + pout_ref[HIDDEN:HIDDEN + 1, :])                             # (BB, 128)
    m = jnp.max(logits, axis=-1, keepdims=True)
    e = jnp.exp(logits - m)
    out_ref[...] = e * pl.reciprocal(jnp.sum(e, axis=-1, keepdims=True), approx=True)


# ----------------------------------------------------------------------------
# Host-side packing (pure layout / parameter folding, done once per call).
# ----------------------------------------------------------------------------
def _pack_params(params):
    """Fold the word mean into the event weight and pack all parameters into
    two contiguous slabs (one 32-wide, one 128-wide) -> 2 DMAs instead of 8."""
    w_big = (jnp.broadcast_to(params["wsvo"][:, None, :, :],
                              (3, NW, D, SLICE_SIZE)) / NW).reshape(WORDS_FEAT, SLICE_SIZE)

    def rows8(x):  # pad a (1, 32) bias to an 8-row aligned region
        return jnp.pad(x, ((0, 8 - x.shape[0]), (0, 0)))

    p32 = jnp.concatenate([
        w_big,                                               # rows    0: 768
        rows8(params["be"]),                                 # rows  768: 776
        params["wlt"].reshape(3 * SLICE_SIZE, SLICE_SIZE),   # rows  776: 872
        params["wmt"].reshape(3 * SLICE_SIZE, SLICE_SIZE),   # rows  872: 968
        params["wh"].reshape(3 * SLICE_SIZE, HIDDEN),        # rows  968:1064
        rows8(params["bh"]),                                 # rows 1064:1072
    ], axis=0).astype(F32)
    assert p32.shape == (P32_ROWS, SLICE_SIZE)

    w_out = jnp.pad(params["wout"], ((0, 0), (0, OUT_PAD - OUT_CLASSES)))
    b_out = jnp.concatenate(
        [params["bout"], jnp.full((1, OUT_PAD - OUT_CLASSES), -1e30, F32)], axis=1)
    pout = jnp.concatenate(
        [w_out, b_out, jnp.zeros((POUT_ROWS - HIDDEN - 1, OUT_PAD), F32)], axis=0).astype(F32)
    assert pout.shape == (POUT_ROWS, OUT_PAD)
    return p32, pout


def _day_mean_matrices(day_offsets):
    """(B, 3*NDAYS_PAD, NH_PAD): rows 0..31 = per-day averaging matrix (row d =
    mean over headlines whose offset == d, newest day first, zero rows for
    empty/pad days), rows 32..63 / 64..95 = the same matrix shifted up by 1 / 2
    days (zero-filled) -> the two extra taps of the width-3 day conv."""
    onehot = (jnp.arange(NDAYS)[None, :, None] == day_offsets[:, None, :]).astype(F32)
    cnt = onehot.sum(axis=2, keepdims=True)
    m = jnp.where(cnt > 0, onehot / jnp.maximum(cnt, 1.0), 0.0)        # (B, 30, NH)
    m = jnp.pad(m, ((0, 0), (0, NDAYS_PAD - NDAYS), (0, NH_PAD - day_offsets.shape[1])))
    mp = jnp.pad(m, ((0, 0), (0, 2), (0, 0)))                          # (B, 34, 8)
    return jnp.concatenate([m, mp[:, 1:1 + NDAYS_PAD], mp[:, 2:2 + NDAYS_PAD]], axis=1)


def model_forward(words_s, words_v, words_o, day_offsets, params):
    """Batched forward: B independent predictions -> (B, 1, 2) softmax probs."""
    if words_s.size == 0:
        # "No data provided" / "No events could be embedded" fallback.
        return jnp.full((1, 1, OUT_CLASSES), 0.5, F32)

    B, nh = words_s.shape[0], words_s.shape[1]
    BB = SAMPLES_PER_BLOCK
    b_pad = pl.cdiv(B, BB) * BB

    # TODO(synk): the word mean divides by NW (exactly NW real words per role);
    # zero-padded words would bias it, exactly as in the original .mean(1).
    words = jnp.stack([words_s, words_v, words_o], axis=2)       # (B, NH, 3, NW, D)
    words = jnp.pad(words, ((0, b_pad - B), (0, NH_PAD - nh), (0, 0), (0, 0), (0, 0)))
    words = words.reshape(b_pad * NH_PAD, WORDS_FEAT).astype(F32)

    dmean = _day_mean_matrices(day_offsets)                      # (B, 96, 8)
    dmean = jnp.pad(dmean, ((0, b_pad - B), (0, 0), (0, 0))).astype(F32)

    p32, pout = _pack_params(params)

    n_blocks = b_pad // BB
    out = pl.pallas_call(
        _model_kernel,
        out_shape=jax.ShapeDtypeStruct((b_pad, OUT_PAD), F32),
        grid=(n_blocks,),
        in_specs=[
            pl.BlockSpec((BB * NH_PAD, WORDS_FEAT), lambda b: (b, 0)),
            pl.BlockSpec((BB, 3 * NDAYS_PAD, NH_PAD), lambda b: (b, 0, 0)),
            pl.BlockSpec((P32_ROWS, SLICE_SIZE), lambda b: (0, 0)),
            pl.BlockSpec((POUT_ROWS, OUT_PAD), lambda b: (0, 0)),
        ],
        out_specs=pl.BlockSpec((BB, OUT_PAD), lambda b: (b, 0)),
        compiler_params=pltpu.CompilerParams(
            dimension_semantics=("parallel",)),   # v7x: both TensorCores split the batch
    )(words, dmean, p32, pout)

    # TODO(synk): PyTorch returns a DoubleTensor; f64 is not practical in a TPU
    # kernel, so the result stays float32.
    return out[:B, :OUT_CLASSES].reshape(B, 1, OUT_CLASSES)


# ----------------------------------------------------------------------------
# Pure-JAX reference (unbatched math, vectorized over B) for self-checking.
# ----------------------------------------------------------------------------
def _reference_forward(words_s, words_v, words_o, day_offsets, params):
    s = words_s.mean(axis=2)
    v = words_v.mean(axis=2)
    o = words_o.mean(axis=2)                                              # (B, NH, D)
    ev = jnp.tanh(jnp.einsum('bhd,de->bhe', s, params['wsvo'][0])
                  + jnp.einsum('bhd,de->bhe', v, params['wsvo'][1])
                  + jnp.einsum('bhd,de->bhe', o, params['wsvo'][2])
                  + params['be'])                                         # (B, NH, S)
    onehot = (jnp.arange(NDAYS)[None, :, None] == day_offsets[:, None, :]).astype(F32)
    cnt = onehot.sum(axis=2, keepdims=True)
    dmean = jnp.where(cnt > 0, onehot / jnp.maximum(cnt, 1.0), 0.0)
    daily = jnp.einsum('bnh,bhe->bne', dmean, ev)                         # (B, 30, S)
    lt, mt, st = daily, daily[:, NDAYS - MT_DAYS:, :], daily[:, 0, :]

    def conv(x, w):
        return (jnp.einsum('bts,se->bte', x[:, :-2], w[0])
                + jnp.einsum('bts,se->bte', x[:, 1:-1], w[1])
                + jnp.einsum('bts,se->bte', x[:, 2:], w[2]))

    v_lt = jnp.tanh(conv(lt, params['wlt'])).max(axis=1)
    v_mt = jnp.tanh(conv(mt, params['wmt'])).max(axis=1)
    h = jnp.tanh(v_lt @ params['wh'][0] + v_mt @ params['wh'][1]
                 + st @ params['wh'][2] + params['bh'])
    logits = h @ params['wout'] + params['bout']
    return jax.nn.softmax(logits, axis=-1)                                # (B, 2)


def _init_params(key):
    ks = jax.random.split(key, 8)
    scale = 0.1
    return {
        "wsvo": scale * jax.random.normal(ks[0], (3, D, SLICE_SIZE), F32),
        "be":   scale * jax.random.normal(ks[1], (1, SLICE_SIZE), F32),
        "wlt":  scale * jax.random.normal(ks[2], (3, SLICE_SIZE, SLICE_SIZE), F32),
        "wmt":  scale * jax.random.normal(ks[3], (3, SLICE_SIZE, SLICE_SIZE), F32),
        "wh":   scale * jax.random.normal(ks[4], (3, SLICE_SIZE, HIDDEN), F32),
        "bh":   scale * jax.random.normal(ks[5], (1, HIDDEN), F32),
        "wout": scale * jax.random.normal(ks[6], (HIDDEN, OUT_CLASSES), F32),
        "bout": scale * jax.random.normal(ks[7], (1, OUT_CLASSES), F32),
    }


if __name__ == "__main__":
    key = jax.random.PRNGKey(0)
    k_ws, k_wv, k_wo, k_dates, k_params = jax.random.split(key, 5)

    B = 32   # 2 grid blocks of 16 samples; raise to 128+ to fill the MXU on v6e

    # Synthetic stand-ins for the NLP front-end: per-headline word embeddings
    # for the (subject, verb, object) structured tuple, per sample.
    words_s = jax.random.normal(k_ws, (B, NH, NW, D), F32)
    words_v = jax.random.normal(k_wv, (B, NH, NW, D), F32)
    words_o = jax.random.normal(k_wo, (B, NH, NW, D), F32)

    # Days-before-endPeriod for each headline; endPeriod (offset 0) is
    # guaranteed to have at least one headline (it is max(keys) originally).
    day_offsets = jax.random.randint(k_dates, (B, NH), 0, NDAYS)
    day_offsets = day_offsets.at[:, 0].set(0)

    params = _init_params(k_params)

    out = model_forward(words_s, words_v, words_o, day_offsets, params)
    out = jax.block_until_ready(out)

    ref = _reference_forward(words_s, words_v, words_o, day_offsets, params)

    assert out.shape == (B, 1, OUT_CLASSES)
    assert bool(jnp.isfinite(out).all())
    # approx reciprocal + MXU rounding: keep a loose but meaningful tolerance.
    assert bool(jnp.max(jnp.abs(out[:, 0, :] - ref)) < 1e-2)
    assert bool(jnp.max(jnp.abs(out.sum(axis=-1) - 1.0)) < 5e-3)
    print("KERNEL_OK")
</pallas_src>

<mosaic_0001>
module attributes {stable_mosaic.version = 11 : i64} {
  func.func @_model_kernel(%arg0: i32, %arg1: memref<128x768xf32, #tpu.memory_space<vmem>>, %arg2: memref<16x96x8xf32, #tpu.memory_space<vmem>>, %arg3: memref<1072x32xf32, #tpu.memory_space<vmem>>, %arg4: memref<40x128xf32, #tpu.memory_space<vmem>>, %arg5: memref<16x128xf32, #tpu.memory_space<vmem>>) attributes {dimension_semantics = [#tpu.dimension_semantics<parallel>], iteration_bounds = array<i64: 2>, scalar_prefetch = 0 : i64, scratch_operands = 0 : i64, tpu.core_type = #tpu.core_type<tc>, window_params = [{transform_indices = @transform_0, window_bounds = array<i64: 128, 768>}, {transform_indices = @transform_1, window_bounds = array<i64: 16, 96, 8>}, {pipeline_mode = #tpu.pipeline_mode<synchronous>, transform_indices = @transform_2, window_bounds = array<i64: 1072, 32>}, {pipeline_mode = #tpu.pipeline_mode<synchronous>, transform_indices = @transform_3, window_bounds = array<i64: 40, 128>}, {transform_indices = @transform_4, window_bounds = array<i64: 16, 128>}]} {
    %c0 = arith.constant 0 : index
    %c0_0 = arith.constant 0 : index
    %0 = vector.load %arg1[%c0, %c0_0] : memref<128x768xf32, #tpu.memory_space<vmem>>, vector<128x768xf32>
    %c0_1 = arith.constant 0 : index
    %c0_2 = arith.constant 0 : index
    %1 = vector.load %arg3[%c0_1, %c0_2] : memref<1072x32xf32, #tpu.memory_space<vmem>>, vector<768x32xf32>
    %cst = arith.constant dense<0.000000e+00> : vector<128x32xf32>
    %2 = tpu.matmul %0, %1, %cst {dimension_numbers = #tpu.dot_dimension_numbers<[1], [0], [0], [1], [0, 0, 1, 1], [], []>} : vector<128x768xf32>, vector<768x32xf32>, vector<128x32xf32> -> vector<128x32xf32>
    %c768 = arith.constant 768 : index
    %c0_3 = arith.constant 0 : index
    %3 = vector.load %arg3[%c768, %c0_3] : memref<1072x32xf32, #tpu.memory_space<vmem>>, vector<1x32xf32>
    %4 = vector.broadcast %3 : vector<1x32xf32> to vector<128x32xf32>
    %5 = arith.addf %2, %4 : vector<128x32xf32>
    %6 = math.tanh %5 : vector<128x32xf32>
    %7 = vector.shape_cast %6 : vector<128x32xf32> to vector<16x8x32xf32>
    %c0_4 = arith.constant 0 : index
    %c0_5 = arith.constant 0 : index
    %c0_6 = arith.constant 0 : index
    %8 = vector.load %arg2[%c0_4, %c0_5, %c0_6] : memref<16x96x8xf32, #tpu.memory_space<vmem>>, vector<16x96x8xf32>
    "tpu.trace_start"() <{level = 10 : i32, message = "bnh,bhd->bnd"}> : () -> ()
    %cst_7 = arith.constant dense<0.000000e+00> : vector<16x96x32xf32>
    %9 = tpu.matmul %8, %7, %cst_7 {dimension_numbers = #tpu.dot_dimension_numbers<[2], [1], [1], [2], [0, 0, 0, 1, 1, 2], [0], [0]>} : vector<16x96x8xf32>, vector<16x8x32xf32>, vector<16x96x32xf32> -> vector<16x96x32xf32>
    "tpu.trace_stop"() : () -> ()
    %10 = vector.extract_strided_slice %9 {offsets = [0, 0, 0], sizes = [16, 32, 32], strides = [1, 1, 1]} : vector<16x96x32xf32> to vector<16x32x32xf32>
    %11 = vector.shape_cast %10 : vector<16x32x32xf32> to vector<512x32xf32>
    %12 = vector.extract_strided_slice %9 {offsets = [0, 32, 0], sizes = [16, 32, 32], strides = [1, 1, 1]} : vector<16x96x32xf32> to vector<16x32x32xf32>
    %13 = vector.shape_cast %12 : vector<16x32x32xf32> to vector<512x32xf32>
    %14 = vector.extract_strided_slice %9 {offsets = [0, 64, 0], sizes = [16, 32, 32], strides = [1, 1, 1]} : vector<16x96x32xf32> to vector<16x32x32xf32>
    %15 = vector.shape_cast %14 : vector<16x32x32xf32> to vector<512x32xf32>
    %c776 = arith.constant 776 : index
    %c0_8 = arith.constant 0 : index
    %16 = vector.load %arg3[%c776, %c0_8] : memref<1072x32xf32, #tpu.memory_space<vmem>>, vector<32x32xf32>
    %cst_9 = arith.constant dense<0.000000e+00> : vector<512x32xf32>
    %17 = tpu.matmul %11, %16, %cst_9 {dimension_numbers = #tpu.dot_dimension_numbers<[1], [0], [0], [1], [0, 0, 1, 1], [], []>} : vector<512x32xf32>, vector<32x32xf32>, vector<512x32xf32> -> vector<512x32xf32>
    %c808 = arith.constant 808 : index
    %c0_10 = arith.constant 0 : index
    %18 = vector.load %arg3[%c808, %c0_10] : memref<1072x32xf32, #tpu.memory_space<vmem>>, vector<32x32xf32>
    %cst_11 = arith.constant dense<0.000000e+00> : vector<512x32xf32>
    %19 = tpu.matmul %13, %18, %cst_11 {dimension_numbers = #tpu.dot_dimension_numbers<[1], [0], [0], [1], [0, 0, 1, 1], [], []>} : vector<512x32xf32>, vector<32x32xf32>, vector<512x32xf32> -> vector<512x32xf32>
    %20 = arith.addf %17, %19 : vector<512x32xf32>
    %c840 = arith.constant 840 : index
    %c0_12 = arith.constant 0 : index
    %21 = vector.load %arg3[%c840, %c0_12] : memref<1072x32xf32, #tpu.memory_space<vmem>>, vector<32x32xf32>
    %cst_13 = arith.constant dense<0.000000e+00> : vector<512x32xf32>
    %22 = tpu.matmul %15, %21, %cst_13 {dimension_numbers = #tpu.dot_dimension_numbers<[1], [0], [0], [1], [0, 0, 1, 1], [], []>} : vector<512x32xf32>, vector<32x32xf32>, vector<512x32xf32> -> vector<512x32xf32>
    %23 = arith.addf %20, %22 : vector<512x32xf32>
    %24 = math.tanh %23 : vector<512x32xf32>
    %25 = vector.shape_cast %24 : vector<512x32xf32> to vector<16x32x32xf32>
    %c872 = arith.constant 872 : index
    %c0_14 = arith.constant 0 : index
    %26 = vector.load %arg3[%c872, %c0_14] : memref<1072x32xf32, #tpu.memory_space<vmem>>, vector<32x32xf32>
    %cst_15 = arith.constant dense<0.000000e+00> : vector<512x32xf32>
    %27 = tpu.matmul %11, %26, %cst_15 {dimension_numbers = #tpu.dot_dimension_numbers<[1], [0], [0], [1], [0, 0, 1, 1], [], []>} : vector<512x32xf32>, vector<32x32xf32>, vector<512x32xf32> -> vector<512x32xf32>
    %c904 = arith.constant 904 : index
    %c0_16 = arith.constant 0 : index
    %28 = vector.load %arg3[%c904, %c0_16] : memref<1072x32xf32, #tpu.memory_space<vmem>>, vector<32x32xf32>
    %cst_17 = arith.constant dense<0.000000e+00> : vector<512x32xf32>
    %29 = tpu.matmul %13, %28, %cst_17 {dimension_numbers = #tpu.dot_dimension_numbers<[1], [0], [0], [1], [0, 0, 1, 1], [], []>} : vector<512x32xf32>, vector<32x32xf32>, vector<512x32xf32> -> vector<512x32xf32>
    %30 = arith.addf %27, %29 : vector<512x32xf32>
    %c936 = arith.constant 936 : index
    %c0_18 = arith.constant 0 : index
    %31 = vector.load %arg3[%c936, %c0_18] : memref<1072x32xf32, #tpu.memory_space<vmem>>, vector<32x32xf32>
    %cst_19 = arith.constant dense<0.000000e+00> : vector<512x32xf32>
    %32 = tpu.matmul %15, %31, %cst_19 {dimension_numbers = #tpu.dot_dimension_numbers<[1], [0], [0], [1], [0, 0, 1, 1], [], []>} : vector<512x32xf32>, vector<32x32xf32>, vector<512x32xf32> -> vector<512x32xf32>
    %33 = arith.addf %30, %32 : vector<512x32xf32>
    %34 = math.tanh %33 : vector<512x32xf32>
    %35 = vector.shape_cast %34 : vector<512x32xf32> to vector<16x32x32xf32>
    %36 = tpu.iota {dimensions = array<i32: 1>} : vector<16x32x32xi32>
    %c28_i32 = arith.constant 28 : i32
    %37 = vector.broadcast %c28_i32 : i32 to vector<16x32x32xi32>
    %38 = arith.cmpi slt, %36, %37 : vector<16x32x32xi32>
    %cst_20 = arith.constant -2.000000e+00 : f32
    %39 = vector.broadcast %cst_20 : f32 to vector<16x32x32xf32>
    %40 = arith.select %38, %25, %39 : vector<16x32x32xi1>, vector<16x32x32xf32>
    %cst_21 = arith.constant dense<0xFF800000> : vector<16x32xf32>
    %41 = vector.multi_reduction <maximumf>, %40, %cst_21 [1] : vector<16x32x32xf32> to vector<16x32xf32>
    %c23_i32 = arith.constant 23 : i32
    %42 = vector.broadcast %c23_i32 : i32 to vector<16x32x32xi32>
    %43 = arith.cmpi sge, %36, %42 : vector<16x32x32xi32>
    %c28_i32_22 = arith.constant 28 : i32
    %44 = vector.broadcast %c28_i32_22 : i32 to vector<16x32x32xi32>
    %45 = arith.cmpi slt, %36, %44 : vector<16x32x32xi32>
    %46 = arith.andi %43, %45 : vector<16x32x32xi1>
    %cst_23 = arith.constant -2.000000e+00 : f32
    %47 = vector.broadcast %cst_23 : f32 to vector<16x32x32xf32>
    %48 = arith.select %46, %35, %47 : vector<16x32x32xi1>, vector<16x32x32xf32>
    %cst_24 = arith.constant dense<0xFF800000> : vector<16x32xf32>
    %49 = vector.multi_reduction <maximumf>, %48, %cst_24 [1] : vector<16x32x32xf32> to vector<16x32xf32>
    %50 = vector.extract_strided_slice %9 {offsets = [0, 0, 0], sizes = [16, 1, 32], strides = [1, 1, 1]} : vector<16x96x32xf32> to vector<16x1x32xf32>
    %51 = vector.shape_cast %50 : vector<16x1x32xf32> to vector<16x32xf32>
    %c968 = arith.constant 968 : index
    %c0_25 = arith.constant 0 : index
    %52 = vector.load %arg3[%c968, %c0_25] : memref<1072x32xf32, #tpu.memory_space<vmem>>, vector<32x32xf32>
    %cst_26 = arith.constant dense<0.000000e+00> : vector<16x32xf32>
    %53 = tpu.matmul %41, %52, %cst_26 {dimension_numbers = #tpu.dot_dimension_numbers<[1], [0], [0], [1], [0, 0, 1, 1], [], []>} : vector<16x32xf32>, vector<32x32xf32>, vector<16x32xf32> -> vector<16x32xf32>
    %c1000 = arith.constant 1000 : index
    %c0_27 = arith.constant 0 : index
    %54 = vector.load %arg3[%c1000, %c0_27] : memref<1072x32xf32, #tpu.memory_space<vmem>>, vector<32x32xf32>
    %cst_28 = arith.constant dense<0.000000e+00> : vector<16x32xf32>
    %55 = tpu.matmul %49, %54, %cst_28 {dimension_numbers = #tpu.dot_dimension_numbers<[1], [0], [0], [1], [0, 0, 1, 1], [], []>} : vector<16x32xf32>, vector<32x32xf32>, vector<16x32xf32> -> vector<16x32xf32>
    %56 = arith.addf %53, %55 : vector<16x32xf32>
    %c1032 = arith.constant 1032 : index
    %c0_29 = arith.constant 0 : index
    %57 = vector.load %arg3[%c1032, %c0_29] : memref<1072x32xf32, #tpu.memory_space<vmem>>, vector<32x32xf32>
    %cst_30 = arith.constant dense<0.000000e+00> : vector<16x32xf32>
    %58 = tpu.matmul %51, %57, %cst_30 {dimension_numbers = #tpu.dot_dimension_numbers<[1], [0], [0], [1], [0, 0, 1, 1], [], []>} : vector<16x32xf32>, vector<32x32xf32>, vector<16x32xf32> -> vector<16x32xf32>
    %59 = arith.addf %56, %58 : vector<16x32xf32>
    %c1064 = arith.constant 1064 : index
    %c0_31 = arith.constant 0 : index
    %60 = vector.load %arg3[%c1064, %c0_31] : memref<1072x32xf32, #tpu.memory_space<vmem>>, vector<1x32xf32>
    %61 = vector.broadcast %60 : vector<1x32xf32> to vector<16x32xf32>
    %62 = arith.addf %59, %61 : vector<16x32xf32>
    %63 = math.tanh %62 : vector<16x32xf32>
    %c0_32 = arith.constant 0 : index
    %c0_33 = arith.constant 0 : index
    %64 = vector.load %arg4[%c0_32, %c0_33] : memref<40x128xf32, #tpu.memory_space<vmem>>, vector<32x128xf32>
    %cst_34 = arith.constant dense<0.000000e+00> : vector<16x128xf32>
    %65 = tpu.matmul %63, %64, %cst_34 {dimension_numbers = #tpu.dot_dimension_numbers<[1], [0], [0], [1], [0, 0, 1, 1], [], []>} : vector<16x32xf32>, vector<32x128xf32>, vector<16x128xf32> -> vector<16x128xf32>
    %c32 = arith.constant 32 : index
    %c0_35 = arith.constant 0 : index
    %66 = vector.load %arg4[%c32, %c0_35] : memref<40x128xf32, #tpu.memory_space<vmem>>, vector<1x128xf32>
    %67 = vector.broadcast %66 : vector<1x128xf32> to vector<16x128xf32>
    %68 = arith.addf %65, %67 : vector<16x128xf32>
    %cst_36 = arith.constant dense<0xFF800000> : vector<16xf32>
    %69 = vector.multi_reduction <maximumf>, %68, %cst_36 [1] : vector<16x128xf32> to vector<16xf32>
    %70 = vector.shape_cast %69 : vector<16xf32> to vector<16x1xf32>
    %71 = vector.broadcast %70 : vector<16x1xf32> to vector<16x128xf32>
    %72 = arith.subf %68, %71 : vector<16x128xf32>
    %73 = math.exp %72 : vector<16x128xf32>
    %cst_37 = arith.constant dense<0.000000e+00> : vector<16xf32>
    %74 = vector.multi_reduction <add>, %73, %cst_37 [1] : vector<16x128xf32> to vector<16xf32>
    %75 = vector.shape_cast %74 : vector<16xf32> to vector<16x1xf32>
    %76 = tpu.reciprocal %75 {approx = true} : vector<16x1xf32> -> vector<16x1xf32>
    %77 = vector.broadcast %76 : vector<16x1xf32> to vector<16x128xf32>
    %78 = arith.mulf %73, %77 : vector<16x128xf32>
    %c0_38 = arith.constant 0 : index
    %c0_39 = arith.constant 0 : index
    %79 = vector.load %arg5[%c0_38, %c0_39] : memref<16x128xf32, #tpu.memory_space<vmem>>, vector<16x128xf32>
    tpu.vector_store %arg5[%c0_38, %c0_39], %78 {strides = array<i32>} : memref<16x128xf32, #tpu.memory_space<vmem>>, vector<16x128xf32>,
    return
  }
  func.func @transform_0(%arg0: i32) -> (i32, i32) {
    %c0_i32 = arith.constant 0 : i32
    %c0_i32_0 = arith.constant 0 : i32
    return %arg0, %c0_i32 : i32, i32
  }
  func.func @transform_1(%arg0: i32) -> (i32, i32, i32) {
    %c0_i32 = arith.constant 0 : i32
    %c0_i32_0 = arith.constant 0 : i32
    %c0_i32_1 = arith.constant 0 : i32
    return %arg0, %c0_i32, %c0_i32_0 : i32, i32, i32
  }
  func.func @transform_2(%arg0: i32) -> (i32, i32) {
    %c0_i32 = arith.constant 0 : i32
    %c0_i32_0 = arith.constant 0 : i32
    %c0_i32_1 = arith.constant 0 : i32
    return %c0_i32, %c0_i32_0 : i32, i32
  }
  func.func @transform_3(%arg0: i32) -> (i32, i32) {
    %c0_i32 = arith.constant 0 : i32
    %c0_i32_0 = arith.constant 0 : i32
    %c0_i32_1 = arith.constant 0 : i32
    return %c0_i32, %c0_i32_0 : i32, i32
  }
  func.func @transform_4(%arg0: i32) -> (i32, i32) {
    %c0_i32 = arith.constant 0 : i32
    %c0_i32_0 = arith.constant 0 : i32
    return %arg0, %c0_i32 : i32, i32
  }
}

</mosaic_0001>

<llo_original>
// kernel: tpu_custom_call.1
$region0: #{tpu_custom_call.1}
  #allocation0 [shape = 'u32[]', space=smem, size = 0x4, offset = 0x4, fixed_abs, tag = 'smem constant byte address 0x4 - core index']
  #allocation1 [shape = 'u32[144,128]{1,0:T(1,128)}', space=vmem, size = 0x12000, scoped, tag = 'internal scratch']
  %s0 = inlined_call_operand.vmem [shape: f32[256,768], index: 0, kind: input, shape index: {}]
  %s1 = inlined_call_operand.vmem [shape: f32[32,96,8], index: 1, kind: input, shape index: {}]
  %s2 = inlined_call_operand.vmem [shape: f32[1072,32], index: 2, kind: input, shape index: {}]
  %s3 = inlined_call_operand.vmem [shape: f32[40,128], index: 3, kind: input, shape index: {}]
  %s4 = inlined_call_operand.hbm [shape: f32[32,128], index: 4, kind: output, shape index: {}]
  %s5 = sld [smem:[#allocation0]]
  $region49: #{tpu_custom_call.1} parent=0
    _
  %s7 = ssub.s32 1, %s5
  %s8 = scalar_select 0, %s7, %s5
  $region1: #{tpu_custom_call.1} parent=0
    #allocation2 [shape = 'u8[16384]{0}', space=vmem, size = 0x4000, scoped, tag = 'output window, operand 0']
    #allocation3 [shape = 's32[2]{0}', space=sflag, size = 0x8, scoped, tag = 'scoped memory for tpu_custom_call.1']
    %9 = vsyncpa [#allocation3], 0
    %s10 = scalar_lea.sflag [#allocation3], 1
    %11 = vsyncpa %s10, 0
    loop: start=0, step=1, limit=4
    $region2: #{tpu_custom_call.1} parent=1 // loop_pre_header
      _
    $region3: #{tpu_custom_call.1} parent=1 // loop_header
      %s13 = sphi 0, %s17
      %p14 = scmp.ge.s32.totalorder %s13, 4
      %s23 = sphi 0, %s25
      %s26 = sphi 0, %s23
      %s27 = sphi 0, %s26
      %s43 = sphi 0, %s27
      %s49 = sphi 0, %s51
      %s52 = sphi 0, %s49
      %s53 = sphi 0, %s52
      %s69 = sphi 0, %s53
      %s73 = sphi 0, %s73
      %s75 = sphi 0, %s73
      %s76 = sphi 0, %s75
      %s90 = sphi 0, %s76
      %s94 = sphi 0, %s94
      %s96 = sphi 0, %s94
      %s97 = sphi 0, %s96
      %s111 = sphi 0, %s97
      %s117 = sphi 0, %s119
      %s120 = sphi 0, %s117
      %s121 = sphi 0, %s120
      %s137 = sphi 0, %s121
    $region4: #{tpu_custom_call.1} parent=1 // loop_header_branch
      %16 = sbr.rel (%p14) target = $region8
    $region5: #{tpu_custom_call.1} parent=1 // loop_body
      %s18 = ssub.s32 %s13, 1
      %s19 = ssub.s32 %s13, 2
      %s20 = sadd.s32 %s13, 1
      %s21 = ssub.s32 %s13, %s20
      %p22 = scmp.eq.s32.totalorder %s21, 0
      %s24 = sadd.s32 %s23, 1
      %s25 = scalar_select %p22, %s23, %s24
      %p28 = pneg %p22
      %p29 = scmp.eq.s32.totalorder %s13, 1
      %p30 = por %p28, %p29
      %p31 = scmp.ne.s32.totalorder %s23, %s26
      %p32 = scmp.eq.s32.totalorder %s13, 0
      %p33 = por %p31, %p32
      %p34 = scmp.ne.s32.totalorder %s23, %s26
      %p35 = scmp.eq.s32.totalorder %s18, 1
      %p36 = por %p34, %p35
      %p37 = scmp.ne.s32.totalorder %s26, %s27
      %p38 = scmp.eq.s32.totalorder %s18, 0
      %p39 = por %p37, %p38
      %p40 = scmp.ne.s32.totalorder %s26, %s27
      %p41 = scmp.eq.s32.totalorder %s19, 1
      %p42 = por %p40, %p41
      %p44 = scmp.ne.s32.totalorder %s27, %s43
      %p45 = scmp.eq.s32.totalorder %s19, 0
      %p46 = por %p44, %p45
      %s47 = ssub.s32 %s13, %s20
      %p48 = scmp.eq.s32.totalorder %s47, 0
      %s50 = sadd.s32 %s49, 1
      %s51 = scalar_select %p48, %s49, %s50
      %p54 = pneg %p48
      %p55 = scmp.eq.s32.totalorder %s13, 1
      %p56 = por %p54, %p55
      %p57 = scmp.ne.s32.totalorder %s49, %s52
      %p58 = scmp.eq.s32.totalorder %s13, 0
      %p59 = por %p57, %p58
      %p60 = scmp.ne.s32.totalorder %s49, %s52
      %p61 = scmp.eq.s32.totalorder %s18, 1
      %p62 = por %p60, %p61
      %p63 = scmp.ne.s32.totalorder %s52, %s53
      %p64 = scmp.eq.s32.totalorder %s18, 0
      %p65 = por %p63, %p64
      %p66 = scmp.ne.s32.totalorder %s52, %s53
      %p67 = scmp.eq.s32.totalorder %s19, 1
      %p68 = por %p66, %p67
      %p70 = scmp.ne.s32.totalorder %s53, %s69
      %p71 = scmp.eq.s32.totalorder %s19, 0
      %p72 = por %p70, %p71
      %s74 = sadd.s32 %s73, 1
      %p77 = scmp.eq.s32.totalorder %s13, 1
      %p78 = scmp.ne.s32.totalorder %s73, %s75
      %p79 = scmp.eq.s32.totalorder %s13, 0
      %p80 = por %p78, %p79
      %p81 = scmp.ne.s32.totalorder %s73, %s75
      %p82 = scmp.eq.s32.totalorder %s18, 1
      %p83 = por %p81, %p82
      %p84 = scmp.ne.s32.totalorder %s75, %s76
      %p85 = scmp.eq.s32.totalorder %s18, 0
      %p86 = por %p84, %p85
      %p87 = scmp.ne.s32.totalorder %s75, %s76
      %p88 = scmp.eq.s32.totalorder %s19, 1
      %p89 = por %p87, %p88
      %p91 = scmp.ne.s32.totalorder %s76, %s90
      %p92 = scmp.eq.s32.totalorder %s19, 0
      %p93 = por %p91, %p92
      %s95 = sadd.s32 %s94, 1
      %p98 = scmp.eq.s32.totalorder %s13, 1
      %p99 = scmp.ne.s32.totalorder %s94, %s96
      %p100 = scmp.eq.s32.totalorder %s13, 0
      %p101 = por %p99, %p100
      %p102 = scmp.ne.s32.totalorder %s94, %s96
      %p103 = scmp.eq.s32.totalorder %s18, 1
      %p104 = por %p102, %p103
      %p105 = scmp.ne.s32.totalorder %s96, %s97
      %p106 = scmp.eq.s32.totalorder %s18, 0
      %p107 = por %p105, %p106
      %p108 = scmp.ne.s32.totalorder %s96, %s97
      %p109 = scmp.eq.s32.totalorder %s19, 1
      %p110 = por %p108, %p109
      %p112 = scmp.ne.s32.totalorder %s97, %s111
      %p113 = scmp.eq.s32.totalorder %s19, 0
      %p114 = por %p112, %p113
      %s115 = ssub.s32 %s13, %s20
      %p116 = scmp.eq.s32.totalorder %s115, 0
      %s118 = sadd.s32 %s117, 1
      %s119 = scalar_select %p116, %s117, %s118
      %p122 = pneg %p116
      %p123 = scmp.eq.s32.totalorder %s13, 1
      %p124 = por %p122, %p123
      %p125 = scmp.ne.s32.totalorder %s117, %s120
      %p126 = scmp.eq.s32.totalorder %s13, 0
      %p127 = por %p125, %p126
      %p128 = scmp.ne.s32.totalorder %s117, %s120
      %p129 = scmp.eq.s32.totalorder %s18, 1
      %p130 = por %p128, %p129
      %p131 = scmp.ne.s32.totalorder %s120, %s121
      %p132 = scmp.eq.s32.totalorder %s18, 0
      %p133 = por %p131, %p132
      %p134 = scmp.ne.s32.totalorder %s120, %s121
      %p135 = scmp.eq.s32.totalorder %s19, 1
      %p136 = por %p134, %p135
      %p138 = scmp.ne.s32.totalorder %s121, %s137
      %p139 = scmp.eq.s32.totalorder %s19, 0
      %p140 = por %p138, %p139
      %p141 = scmp.le.s32.totalorder 1, %s13
      %p142 = scmp.lt.s32.totalorder %s13, 3
      %p143 = pnand %p141, %p142
      %p144 = pneg %p143
      // Predicated region
      $region9: #{tpu_custom_call.1} parent=5 // pred_check
        _
      $region10: #{tpu_custom_call.1} parent=5 // pred_check_branch
        %146 = sbr.rel (%p143) target = $region12
      $region11: #{tpu_custom_call.1} parent=5 // pred_region
        %s147 = ssub.s32 %s13, 1
        // Predicated region
        $region13: #{tpu_custom_call.1} parent=11 // pred_check
          %p148 = pneg %p86
        $region14: #{tpu_custom_call.1} parent=11 // pred_check_branch
          %150 = sbr.rel (%p148) target = $region16
        $region15: #{tpu_custom_call.1} parent=11 // pred_region
          _
        $region16: #{tpu_custom_call.1} parent=11 // pred_fallthru
          _
        // Predicated region
        $region17: #{tpu_custom_call.1} parent=11 // pred_check
          %p151 = pneg %p107
        $region18: #{tpu_custom_call.1} parent=11 // pred_check_branch
          %153 = sbr.rel (%p151) target = $region20
        $region19: #{tpu_custom_call.1} parent=11 // pred_region
          _
        $region20: #{tpu_custom_call.1} parent=11 // pred_fallthru
          _
      $region12: #{tpu_custom_call.1} parent=5 // pred_fallthru
        _
      %p154 = scmp.lt.s32.totalorder %s13, 2
      // Predicated region
      $region21: #{tpu_custom_call.1} parent=5 // pred_check
        %p155 = pneg %p154
      $region22: #{tpu_custom_call.1} parent=5 // pred_check_branch
        %157 = sbr.rel (%p155) target = $region24
      $region23: #{tpu_custom_call.1} parent=5 // pred_region
        // Predicated region
        $region25: #{tpu_custom_call.1} parent=23 // pred_check
          %p158 = pneg %p33
        $region26: #{tpu_custom_call.1} parent=23 // pred_check_branch
          %160 = sbr.rel (%p158) target = $region28
        $region27: #{tpu_custom_call.1} parent=23 // pred_region
          %s161 = smul.u32 16, %s13
          %p162 = scmp.lt.s32.totalorder %s161, 31
          %s163 = scalar_select %p162, %s161, 31
          %s164 = smul.addr %s163, 6
          %s165 = smul.addr %s164, 8
          %s166 = scalar_lea.vmem %s0, %s165
          %s167 = smul.u32 16, %s13
        $region28: #{tpu_custom_call.1} parent=23 // pred_fallthru
          _
        // Predicated region
        $region29: #{tpu_custom_call.1} parent=23 // pred_check
          %p168 = pneg %p59
        $region30: #{tpu_custom_call.1} parent=23 // pred_check_branch
          %170 = sbr.rel (%p168) target = $region32
        $region31: #{tpu_custom_call.1} parent=23 // pred_region
          %s171 = smul.u32 16, %s13
          %p172 = scmp.lt.s32.totalorder %s171, 31
          %s173 = scalar_select %p172, %s171, 31
          %s174 = smul.addr %s173, 12
          %s175 = smul.addr %s174, 8
          %s176 = scalar_lea.vmem %s1, %s175
          %s177 = smul.u32 16, %s13
        $region32: #{tpu_custom_call.1} parent=23 // pred_fallthru
          _
      $region24: #{tpu_custom_call.1} parent=5 // pred_fallthru
        _
      %p178 = scmp.le.s32.totalorder 1, %s13
      %p179 = scmp.lt.s32.totalorder %s13, 3
      %p180 = pnand %p178, %p179
      %p181 = pneg %p180
      // Predicated region
      $region33: #{tpu_custom_call.1} parent=5 // pred_check
        _
      $region34: #{tpu_custom_call.1} parent=5 // pred_check_branch
        %183 = sbr.rel (%p180) target = $region36
      $region35: #{tpu_custom_call.1} parent=5 // pred_region
        %s184 = ssub.s32 %s13, 1
        %s185 = smul.u32 16, %s18
        %p186 = scmp.lt.s32.totalorder %s185, 31
        %s187 = scalar_select %p186, %s185, 31
        %s188 = smul.addr %s187, 6
        %s189 = smul.addr %s188, 8
        %s190 = scalar_lea.vmem %s0, %s189
        %p191 = pneg %p39
        %p192 = pneg %p36
        %s193 = smul.u32 16, %s18
        %p194 = scmp.lt.s32.totalorder %s193, 31
        %s195 = scalar_select %p194, %s193, 31
        %s196 = smul.addr %s195, 12
        %s197 = smul.addr %s196, 8
        %s198 = scalar_lea.vmem %s1, %s197
        %p199 = pneg %p65
        %p200 = pneg %p62
        %p201 = pneg %p86
        %p202 = pneg %p83
        %p203 = pneg %p107
        %p204 = pneg %p104
        %p205 = pneg %p133
        %p206 = pneg %p130
        %s207 = sand.u32 %s120, 1
        %s208 = scalar_lea.sflag [#allocation3], %s207
        %s209 = sand.u32 %s120, 1
        %s210 = smul.addr %s209, 16
        %s211 = scalar_lea.vmem [#allocation2], %s210
        %s212 = smul.u32 16, %s18
        %p213 = scmp.lt.s32.totalorder %s212, 31
        %s214 = scalar_select %p213, %s212, 31
        %s215 = smul.addr %s214, 6
        %s216 = smul.addr %s215, 8
        %s217 = scalar_lea.vmem %s0, %s216
        %s218 = smul.u32 16, %s18
        %s219 = smul.u32 16, %s18
        %p220 = scmp.lt.s32.totalorder %s219, 31
        %s221 = scalar_select %p220, %s219, 31
        %s222 = smul.addr %s221, 12
        %s223 = smul.addr %s222, 8
        %s224 = scalar_lea.vmem %s1, %s223
        %s225 = smul.u32 16, %s18
        %s226 = smul.u32 2, %s18
        %v227 = vld [vmem:[%s217] sm:$0xff]
        %v228 = vld [vmem:[%s217 + $0x8] sm:$0xff]
        %v229 = vld [vmem:[%s217 + $0x10] sm:$0xff]
        %v230 = vld [vmem:[%s217 + $0x18] sm:$0xff]
        %v231 = vld [vmem:[%s217 + $0x20] sm:$0xff]
        %v232 = vld [vmem:[%s217 + $0x28] sm:$0xff]
        %v233 = vld [vmem:[%s217 + $0x30] sm:$0xff]
        %v234 = vld [vmem:[%s217 + $0x38] sm:$0xff]
        %v235 = vld [vmem:[%s217 + $0x40] sm:$0xff]
        %v236 = vld [vmem:[%s217 + $0x48] sm:$0xff]
        %v237 = vld [vmem:[%s217 + $0x50] sm:$0xff]
        %v238 = vld [vmem:[%s217 + $0x58] sm:$0xff]
        %v239 = vld [vmem:[%s217 + $0x60] sm:$0xff]
        %v240 = vld [vmem:[%s217 + $0x68] sm:$0xff]
        %v241 = vld [vmem:[%s217 + $0x70] sm:$0xff]
        %v242 = vld [vmem:[%s217 + $0x78] sm:$0xff]
        %v243 = vld [vmem:[%s217 + $0x80] sm:$0xff]
        %v244 = vld [vmem:[%s217 + $0x88] sm:$0xff]
        %v245 = vld [vmem:[%s217 + $0x90] sm:$0xff]
        %v246 = vld [vmem:[%s217 + $0x98] sm:$0xff]
        %v247 = vld [vmem:[%s217 + $0xa0] sm:$0xff]
        %v248 = vld [vmem:[%s217 + $0xa8] sm:$0xff]
        %v249 = vld [vmem:[%s217 + $0xb0] sm:$0xff]
        %v250 = vld [vmem:[%s217 + $0xb8] sm:$0xff]
        %v251 = vld [vmem:[%s217 + $0xc0] sm:$0xff]
        %v252 = vld [vmem:[%s217 + $0xc8] sm:$0xff]
        %v253 = vld [vmem:[%s217 + $0xd0] sm:$0xff]
        %v254 = vld [vmem:[%s217 + $0xd8] sm:$0xff]
        %v255 = vld [vmem:[%s217 + $0xe0] sm:$0xff]
        %v256 = vld [vmem:[%s217 + $0xe8] sm:$0xff]
        %v257 = vld [vmem:[%s217 + $0xf0] sm:$0xff]
        %v258 = vld [vmem:[%s217 + $0xf8] sm:$0xff]
        %v259 = vld [vmem:[%s217 + $0x100] sm:$0xff]
        %v260 = vld [vmem:[%s217 + $0x108] sm:$0xff]
        %v261 = vld [vmem:[%s217 + $0x110] sm:$0xff]
        %v262 = vld [vmem:[%s217 + $0x118] sm:$0xff]
        %v263 = vld [vmem:[%s217 + $0x120] sm:$0xff]
        %v264 = vld [vmem:[%s217 + $0x128] sm:$0xff]
        %v265 = vld [vmem:[%s217 + $0x130] sm:$0xff]
        %v266 = vld [vmem:[%s217 + $0x138] sm:$0xff]
        %v267 = vld [vmem:[%s217 + $0x140] sm:$0xff]
        %v268 = vld [vmem:[%s217 + $0x148] sm:$0xff]
        %v269 = vld [vmem:[%s217 + $0x150] sm:$0xff]
        %v270 = vld [vmem:[%s217 + $0x158] sm:$0xff]
        %v271 = vld [vmem:[%s217 + $0x160] sm:$0xff]
        %v272 = vld [vmem:[%s217 + $0x168] sm:$0xff]
        %v273 = vld [vmem:[%s217 + $0x170] sm:$0xff]
        %v274 = vld [vmem:[%s217 + $0x178] sm:$0xff]
        %v275 = vld [vmem:[%s217 + $0x180] sm:$0xff]
        %v276 = vld [vmem:[%s217 + $0x188] sm:$0xff]
        %v277 = vld [vmem:[%s217 + $0x190] sm:$0xff]
        %v278 = vld [vmem:[%s217 + $0x198] sm:$0xff]
        %v279 = vld [vmem:[%s217 + $0x1a0] sm:$0xff]
        %v280 = vld [vmem:[%s217 + $0x1a8] sm:$0xff]
        %v281 = vld [vmem:[%s217 + $0x1b0] sm:$0xff]
        %v282 = vld [vmem:[%s217 + $0x1b8] sm:$0xff]
        %v283 = vld [vmem:[%s217 + $0x1c0] sm:$0xff]
        %v284 = vld [vmem:[%s217 + $0x1c8] sm:$0xff]
        %v285 = vld [vmem:[%s217 + $0x1d0] sm:$0xff]
        %v286 = vld [vmem:[%s217 + $0x1d8] sm:$0xff]
        %v287 = vld [vmem:[%s217 + $0x1e0] sm:$0xff]
        %v288 = vld [vmem:[%s217 + $0x1e8] sm:$0xff]
        %v289 = vld [vmem:[%s217 + $0x1f0] sm:$0xff]
        %v290 = vld [vmem:[%s217 + $0x1f8] sm:$0xff]
        %v291 = vld [vmem:[%s217 + $0x200] sm:$0xff]
        %v292 = vld [vmem:[%s217 + $0x208] sm:$0xff]
        %v293 = vld [vmem:[%s217 + $0x210] sm:$0xff]
        %v294 = vld [vmem:[%s217 + $0x218] sm:$0xff]
        %v295 = vld [vmem:[%s217 + $0x220] sm:$0xff]
        %v296 = vld [vmem:[%s217 + $0x228] sm:$0xff]
        %v297 = vld [vmem:[%s217 + $0x230] sm:$0xff]
        %v298 = vld [vmem:[%s217 + $0x238] sm:$0xff]
        %v299 = vld [vmem:[%s217 + $0x240] sm:$0xff]
        %v300 = vld [vmem:[%s217 + $0x248] sm:$0xff]
        %v301 = vld [vmem:[%s217 + $0x250] sm:$0xff]
        %v302 = vld [vmem:[%s217 + $0x258] sm:$0xff]
        %v303 = vld [vmem:[%s217 + $0x260] sm:$0xff]
        %v304 = vld [vmem:[%s217 + $0x268] sm:$0xff]
        %v305 = vld [vmem:[%s217 + $0x270] sm:$0xff]
        %v306 = vld [vmem:[%s217 + $0x278] sm:$0xff]
        %v307 = vld [vmem:[%s217 + $0x280] sm:$0xff]
        %v308 = vld [vmem:[%s217 + $0x288] sm:$0xff]
        %v309 = vld [vmem:[%s217 + $0x290] sm:$0xff]
        %v310 = vld [vmem:[%s217 + $0x298] sm:$0xff]
        %v311 = vld [vmem:[%s217 + $0x2a0] sm:$0xff]
        %v312 = vld [vmem:[%s217 + $0x2a8] sm:$0xff]
        %v313 = vld [vmem:[%s217 + $0x2b0] sm:$0xff]
        %v314 = vld [vmem:[%s217 + $0x2b8] sm:$0xff]
        %v315 = vld [vmem:[%s217 + $0x2c0] sm:$0xff]
        %v316 = vld [vmem:[%s217 + $0x2c8] sm:$0xff]
        %v317 = vld [vmem:[%s217 + $0x2d0] sm:$0xff]
        %v318 = vld [vmem:[%s217 + $0x2d8] sm:$0xff]
        %v319 = vld [vmem:[%s217 + $0x2e0] sm:$0xff]
        %v320 = vld [vmem:[%s217 + $0x2e8] sm:$0xff]
        %v321 = vld [vmem:[%s217 + $0x2f0] sm:$0xff]
        %v322 = vld [vmem:[%s217 + $0x2f8] sm:$0xff]
        %v323 = vld [vmem:[%s2] sm:$0xff]
        %v324 = vld [vmem:[%s2 + $0x8] sm:$0xff]
        %v325 = vld [vmem:[%s2 + $0x10] sm:$0xff]
        %v326 = vld [vmem:[%s2 + $0x18] sm:$0xff]
        %v327 = vld [vmem:[%s2 + $0x20] sm:$0xff]
        %v328 = vld [vmem:[%s2 + $0x28] sm:$0xff]
        %v329 = vld [vmem:[%s2 + $0x30] sm:$0xff]
        %v330 = vld [vmem:[%s2 + $0x38] sm:$0xff]
        %v331 = vld [vmem:[%s2 + $0x40] sm:$0xff]
        %v332 = vld [vmem:[%s2 + $0x48] sm:$0xff]
        %v333 = vld [vmem:[%s2 + $0x50] sm:$0xff]
        %v334 = vld [vmem:[%s2 + $0x58] sm:$0xff]
        %v335 = vld [vmem:[%s2 + $0x60] sm:$0xff]
        %v336 = vld [vmem:[%s2 + $0x68] sm:$0xff]
        %v337 = vld [vmem:[%s2 + $0x70] sm:$0xff]
        %v338 = vld [vmem:[%s2 + $0x78] sm:$0xff]
        %v339 = vld [vmem:[%s2 + $0x80] sm:$0xff]
        %v340 = vld [vmem:[%s2 + $0x88] sm:$0xff]
        %v341 = vld [vmem:[%s2 + $0x90] sm:$0xff]
        %v342 = vld [vmem:[%s2 + $0x98] sm:$0xff]
        %v343 = vld [vmem:[%s2 + $0xa0] sm:$0xff]
        %v344 = vld [vmem:[%s2 + $0xa8] sm:$0xff]
        %v345 = vld [vmem:[%s2 + $0xb0] sm:$0xff]
        %v346 = vld [vmem:[%s2 + $0xb8] sm:$0xff]
        %v347 = vld [vmem:[%s2 + $0xc0] sm:$0xff]
        %v348 = vld [vmem:[%s2 + $0xc8] sm:$0xff]
        %v349 = vld [vmem:[%s2 + $0xd0] sm:$0xff]
        %v350 = vld [vmem:[%s2 + $0xd8] sm:$0xff]
        %v351 = vld [vmem:[%s2 + $0xe0] sm:$0xff]
        %v352 = vld [vmem:[%s2 + $0xe8] sm:$0xff]
        %v353 = vld [vmem:[%s2 + $0xf0] sm:$0xff]
        %v354 = vld [vmem:[%s2 + $0xf8] sm:$0xff]
        %v355 = vld [vmem:[%s2 + $0x100] sm:$0xff]
        %v356 = vld [vmem:[%s2 + $0x108] sm:$0xff]
        %v357 = vld [vmem:[%s2 + $0x110] sm:$0xff]
        %v358 = vld [vmem:[%s2 + $0x118] sm:$0xff]
        %v359 = vld [vmem:[%s2 + $0x120] sm:$0xff]
        %v360 = vld [vmem:[%s2 + $0x128] sm:$0xff]
        %v361 = vld [vmem:[%s2 + $0x130] sm:$0xff]
        %v362 = vld [vmem:[%s2 + $0x138] sm:$0xff]
        %v363 = vld [vmem:[%s2 + $0x140] sm:$0xff]
        %v364 = vld [vmem:[%s2 + $0x148] sm:$0xff]
        %v365 = vld [vmem:[%s2 + $0x150] sm:$0xff]
        %v366 = vld [vmem:[%s2 + $0x158] sm:$0xff]
        %v367 = vld [vmem:[%s2 + $0x160] sm:$0xff]
        %v368 = vld [vmem:[%s2 + $0x168] sm:$0xff]
        %v369 = vld [vmem:[%s2 + $0x170] sm:$0xff]
        %v370 = vld [vmem:[%s2 + $0x178] sm:$0xff]
        %v371 = vld [vmem:[%s2 + $0x180] sm:$0xff]
        %v372 = vld [vmem:[%s2 + $0x188] sm:$0xff]
        %v373 = vld [vmem:[%s2 + $0x190] sm:$0xff]
        %v374 = vld [vmem:[%s2 + $0x198] sm:$0xff]
        %v375 = vld [vmem:[%s2 + $0x1a0] sm:$0xff]
        %v376 = vld [vmem:[%s2 + $0x1a8] sm:$0xff]
        %v377 = vld [vmem:[%s2 + $0x1b0] sm:$0xff]
        %v378 = vld [vmem:[%s2 + $0x1b8] sm:$0xff]
        %v379 = vld [vmem:[%s2 + $0x1c0] sm:$0xff]
        %v380 = vld [vmem:[%s2 + $0x1c8] sm:$0xff]
        %v381 = vld [vmem:[%s2 + $0x1d0] sm:$0xff]
        %v382 = vld [vmem:[%s2 + $0x1d8] sm:$0xff]
        %v383 = vld [vmem:[%s2 + $0x1e0] sm:$0xff]
        %v384 = vld [vmem:[%s2 + $0x1e8] sm:$0xff]
        %v385 = vld [vmem:[%s2 + $0x1f0] sm:$0xff]
        %v386 = vld [vmem:[%s2 + $0x1f8] sm:$0xff]
        %v387 = vld [vmem:[%s2 + $0x200] sm:$0xff]
        %v388 = vld [vmem:[%s2 + $0x208] sm:$0xff]
        %v389 = vld [vmem:[%s2 + $0x210] sm:$0xff]
        %v390 = vld [vmem:[%s2 + $0x218] sm:$0xff]
        %v391 = vld [vmem:[%s2 + $0x220] sm:$0xff]
        %v392 = vld [vmem:[%s2 + $0x228] sm:$0xff]
        %v393 = vld [vmem:[%s2 + $0x230] sm:$0xff]
        %v394 = vld [vmem:[%s2 + $0x238] sm:$0xff]
        %v395 = vld [vmem:[%s2 + $0x240] sm:$0xff]
        %v396 = vld [vmem:[%s2 + $0x248] sm:$0xff]
        %v397 = vld [vmem:[%s2 + $0x250] sm:$0xff]
        %v398 = vld [vmem:[%s2 + $0x258] sm:$0xff]
        %v399 = vld [vmem:[%s2 + $0x260] sm:$0xff]
        %v400 = vld [vmem:[%s2 + $0x268] sm:$0xff]
        %v401 = vld [vmem:[%s2 + $0x270] sm:$0xff]
        %v402 = vld [vmem:[%s2 + $0x278] sm:$0xff]
        %v403 = vld [vmem:[%s2 + $0x280] sm:$0xff]
        %v404 = vld [vmem:[%s2 + $0x288] sm:$0xff]
        %v405 = vld [vmem:[%s2 + $0x290] sm:$0xff]
        %v406 = vld [vmem:[%s2 + $0x298] sm:$0xff]
        %v407 = vld [vmem:[%s2 + $0x2a0] sm:$0xff]
        %v408 = vld [vmem:[%s2 + $0x2a8] sm:$0xff]
        %v409 = vld [vmem:[%s2 + $0x2b0] sm:$0xff]
        %v410 = vld [vmem:[%s2 + $0x2b8] sm:$0xff]
        %v411 = vld [vmem:[%s2 + $0x2c0] sm:$0xff]
        %v412 = vld [vmem:[%s2 + $0x2c8] sm:$0xff]
        %v413 = vld [vmem:[%s2 + $0x2d0] sm:$0xff]
        %v414 = vld [vmem:[%s2 + $0x2d8] sm:$0xff]
        %v415 = vld [vmem:[%s2 + $0x2e0] sm:$0xff]
        %v416 = vld [vmem:[%s2 + $0x2e8] sm:$0xff]
        %v417 = vld [vmem:[%s2 + $0x2f0] sm:$0xff]
        %v418 = vld [vmem:[%s2 + $0x2f8] sm:$0xff]
        %v419 = vld [vmem:[%s2 + $0x300] sm:$0x1]
        %v420 = vlaneseq
        %v421 = vshrl.u32 %v420, 7
        %v422 = vsub.s32 0, %v421
        %v423 = vrot.slane %v419, %v422
        %424 = vmatprep.subr.mxu0 0.0
        %425 = vmatpush1.msra.mxu0 %v323
        %426 = vmatprep.subr.mxu0 0.0
        %427 = vmatpush1.msra.mxu0 %v324
        %428 = vmatprep.subr.mxu0 0.0
        %429 = vmatpush1.msra.mxu0 %v325
        %430 = vmatprep.subr.mxu0 0.0
        %431 = vmatpush1.msra.mxu0 %v326
        %432 = vmatprep.subr.mxu0 0.0
        %433 = vmatpush1.msra.mxu0 %v327
        %434 = vmatprep.subr.mxu0 0.0
        %435 = vmatpush1.msra.mxu0 %v328
        %436 = vmatprep.subr.mxu0 0.0
        %437 = vmatpush1.msra.mxu0 %v329
        %438 = vmatprep.subr.mxu0 0.0
        %439 = vmatpush1.msra.mxu0 %v330
        %440 = vmatprep.subr.mxu0 0.0
        %441 = vmatpush1.msra.mxu0 %v331
        %442 = vmatprep.subr.mxu0 0.0
        %443 = vmatpush1.msra.mxu0 %v332
        %444 = vmatprep.subr.mxu0 0.0
        %445 = vmatpush1.msra.mxu0 %v333
        %446 = vmatprep.subr.mxu0 0.0
        %447 = vmatpush1.msra.mxu0 %v334
        %448 = vmatprep.subr.mxu0 0.0
        %449 = vmatpush1.msra.mxu0 %v335
        %450 = vmatprep.subr.mxu0 0.0
        %451 = vmatpush1.msra.mxu0 %v336
        %452 = vmatprep.subr.mxu0 0.0
        %453 = vmatpush1.msra.mxu0 %v337
        %454 = vmatprep.subr.mxu0 0.0
        %455 = vmatpush1.msra.mxu0 %v338
        %456 = vmatprep.subr.mxu0 0.0
        %457 = vmatpush1.msra.mxu0 %v339
        %458 = vmatprep.subr.mxu0 0.0
        %459 = vmatpush1.msra.mxu0 %v340
        %460 = vmatprep.subr.mxu0 0.0
        %461 = vmatpush1.msra.mxu0 %v341
        %462 = vmatprep.subr.mxu0 0.0
        %463 = vmatpush1.msra.mxu0 %v342
        %464 = vmatprep.subr.mxu0 0.0
        %465 = vmatpush1.msra.mxu0 %v343
        %466 = vmatprep.subr.mxu0 0.0
        %467 = vmatpush1.msra.mxu0 %v344
        %468 = vmatprep.subr.mxu0 0.0
        %469 = vmatpush1.msra.mxu0 %v345
        %470 = vmatprep.subr.mxu0 0.0
        %471 = vmatpush1.msra.mxu0 %v346
        %472 = vmatprep.subr.mxu0 0.0
        %473 = vmatpush1.msra.mxu0 %v347
        %474 = vmatprep.subr.mxu0 0.0
        %475 = vmatpush1.msra.mxu0 %v348
        %476 = vmatprep.subr.mxu0 0.0
        %477 = vmatpush1.msra.mxu0 %v349
        %478 = vmatprep.subr.mxu0 0.0
        %479 = vmatpush1.msra.mxu0 %v350
        %480 = vmatprep.subr.mxu0 0.0
        %481 = vmatpush1.msra.mxu0 %v351
        %482 = vmatprep.subr.mxu0 0.0
        %483 = vmatpush1.msra.mxu0 %v352
        %484 = vmatprep.subr.mxu0 0.0
        %485 = vmatpush1.msra.mxu0 %v353
        %486 = vmatprep.subr.mxu0 0.0
        %487 = vmatpush1.msra.mxu0 %v354
        %488 = vmatprep.mubr.f32.mxu0 %v228
        %489 = vmatmul.mubr.f32.gmra.mrb[0].mxu0 %v227
        %v490 = vpop.f32.mrb[0].mxu0
        %v491 = vadd.f32 %v423, %v490
        %v492 = vpop.f32.mrb[0].mxu0
        %493 = vmatprep.mubr.f32.mxu0 %v234
        %494 = vmatmul.mubr.f32.gmra.mrb[0].mxu0 %v233
        %v495 = vpop.f32.mrb[0].mxu0
        %v496 = vadd.f32 %v423, %v495
        %v497 = vpop.f32.mrb[0].mxu0
        %498 = vmatprep.mubr.f32.mxu0 %v240
        %499 = vmatmul.mubr.f32.gmra.mrb[0].mxu0 %v239
        %v500 = vpop.f32.mrb[0].mxu0
        %v501 = vadd.f32 %v423, %v500
        %v502 = vpop.f32.mrb[0].mxu0
        %503 = vmatprep.mubr.f32.mxu0 %v246
        %504 = vmatmul.mubr.f32.gmra.mrb[0].mxu0 %v245
        %v505 = vpop.f32.mrb[0].mxu0
        %v506 = vadd.f32 %v423, %v505
        %v507 = vpop.f32.mrb[0].mxu0
        %508 = vmatprep.mubr.f32.mxu0 %v252
        %509 = vmatmul.mubr.f32.gmra.mrb[0].mxu0 %v251
        %v510 = vpop.f32.mrb[0].mxu0
        %v511 = vadd.f32 %v423, %v510
        %v512 = vpop.f32.mrb[0].mxu0
        %513 = vmatprep.mubr.f32.mxu0 %v258
        %514 = vmatmul.mubr.f32.gmra.mrb[0].mxu0 %v257
        %v515 = vpop.f32.mrb[0].mxu0
        %v516 = vadd.f32 %v423, %v515
        %v517 = vpop.f32.mrb[0].mxu0
        %518 = vmatprep.mubr.f32.mxu0 %v264
        %519 = vmatmul.mubr.f32.gmra.mrb[0].mxu0 %v263
        %v520 = vpop.f32.mrb[0].mxu0
        %v521 = vadd.f32 %v423, %v520
        %v522 = vpop.f32.mrb[0].mxu0
        %523 = vmatprep.mubr.f32.mxu0 %v270
        %524 = vmatmul.mubr.f32.gmra.mrb[0].mxu0 %v269
        %v525 = vpop.f32.mrb[0].mxu0
        %v526 = vadd.f32 %v423, %v525
        %v527 = vpop.f32.mrb[0].mxu0
        %528 = vmatprep.mubr.f32.mxu0 %v276
        %529 = vmatmul.mubr.f32.gmra.mrb[0].mxu0 %v275
        %v530 = vpop.f32.mrb[0].mxu0
        %v531 = vadd.f32 %v423, %v530
        %v532 = vpop.f32.mrb[0].mxu0
        %533 = vmatprep.mubr.f32.mxu0 %v282
        %534 = vmatmul.mubr.f32.gmra.mrb[0].mxu0 %v281
        %v535 = vpop.f32.mrb[0].mxu0
        %v536 = vadd.f32 %v423, %v535
        %v537 = vpop.f32.mrb[0].mxu0
        %538 = vmatprep.mubr.f32.mxu0 %v288
        %539 = vmatmul.mubr.f32.gmra.mrb[0].mxu0 %v287
        %v540 = vpop.f32.mrb[0].mxu0
        %v541 = vadd.f32 %v423, %v540
        %v542 = vpop.f32.mrb[0].mxu0
        %543 = vmatprep.mubr.f32.mxu0 %v294
        %544 = vmatmul.mubr.f32.gmra.mrb[0].mxu0 %v293
        %v545 = vpop.f32.mrb[0].mxu0
        %v546 = vadd.f32 %v423, %v545
        %v547 = vpop.f32.mrb[0].mxu0
        %548 = vmatprep.mubr.f32.mxu0 %v300
        %549 = vmatmul.mubr.f32.gmra.mrb[0].mxu0 %v299
        %v550 = vpop.f32.mrb[0].mxu0
        %v551 = vadd.f32 %v423, %v550
        %v552 = vpop.f32.mrb[0].mxu0
        %553 = vmatprep.mubr.f32.mxu0 %v306
        %554 = vmatmul.mubr.f32.gmra.mrb[0].mxu0 %v305
        %v555 = vpop.f32.mrb[0].mxu0
        %v556 = vadd.f32 %v423, %v555
        %v557 = vpop.f32.mrb[0].mxu0
        %558 = vmatprep.mubr.f32.mxu0 %v312
        %559 = vmatmul.mubr.f32.gmra.mrb[0].mxu0 %v311
        %v560 = vpop.f32.mrb[0].mxu0
        %v561 = vadd.f32 %v423, %v560
        %v562 = vpop.f32.mrb[0].mxu0
        %563 = vmatprep.mubr.f32.mxu0 %v318
        %564 = vmatmul.mubr.f32.gmra.mrb[0].mxu0 %v317
        %v565 = vpop.f32.mrb[0].mxu0
        %v566 = vadd.f32 %v423, %v565
        %v567 = vpop.f32.mrb[0].mxu0
        %568 = vdwg.mxu0
        %569 = vmatprep.subr.mxu0 0.0
        %570 = vmatpush1.msra.mxu0 %v355
        %571 = vmatprep.subr.mxu0 0.0
        %572 = vmatpush1.msra.mxu0 %v356
        %573 = vmatprep.subr.mxu0 0.0
        %574 = vmatpush1.msra.mxu0 %v357
        %575 = vmatprep.subr.mxu0 0.0
        %576 = vmatpush1.msra.mxu0 %v358
        %577 = vmatprep.subr.mxu0 0.0
        %578 = vmatpush1.msra.mxu0 %v359
        %579 = vmatprep.subr.mxu0 0.0
        %580 = vmatpush1.msra.mxu0 %v360
        %581 = vmatprep.subr.mxu0 0.0
        %582 = vmatpush1.msra.mxu0 %v361
        %583 = vmatprep.subr.mxu0 0.0
        %584 = vmatpush1.msra.mxu0 %v362
        %585 = vmatprep.subr.mxu0 0.0
        %586 = vmatpush1.msra.mxu0 %v363
        %587 = vmatprep.subr.mxu0 0.0
        %588 = vmatpush1.msra.mxu0 %v364
        %589 = vmatprep.subr.mxu0 0.0
        %590 = vmatpush1.msra.mxu0 %v365
        %591 = vmatprep.subr.mxu0 0.0
        %592 = vmatpush1.msra.mxu0 %v366
        %593 = vmatprep.subr.mxu0 0.0
        %594 = vmatpush1.msra.mxu0 %v367
        %595 = vmatprep.subr.mxu0 0.0
        %596 = vmatpush1.msra.mxu0 %v368
        %597 = vmatprep.subr.mxu0 0.0
        %598 = vmatpush1.msra.mxu0 %v369
        %599 = vmatprep.subr.mxu0 0.0
        %600 = vmatpush1.msra.mxu0 %v370
        %601 = vmatprep.subr.mxu0 0.0
        %602 = vmatpush1.msra.mxu0 %v371
        %603 = vmatprep.subr.mxu0 0.0
        %604 = vmatpush1.msra.mxu0 %v372
        %605 = vmatprep.subr.mxu0 0.0
        %606 = vmatpush1.msra.mxu0 %v373
        %607 = vmatprep.subr.mxu0 0.0
        %608 = vmatpush1.msra.mxu0 %v374
        %609 = vmatprep.subr.mxu0 0.0
        %610 = vmatpush1.msra.mxu0 %v375
        %611 = vmatprep.subr.mxu0 0.0
        %612 = vmatpush1.msra.mxu0 %v376
        %613 = vmatprep.subr.mxu0 0.0
        %614 = vmatpush1.msra.mxu0 %v377
        %615 = vmatprep.subr.mxu0 0.0
        %616 = vmatpush1.msra.mxu0 %v378
        %617 = vmatprep.subr.mxu0 0.0
        %618 = vmatpush1.msra.mxu0 %v379
        %619 = vmatprep.subr.mxu0 0.0
        %620 = vmatpush1.msra.mxu0 %v380
        %621 = vmatprep.subr.mxu0 0.0
        %622 = vmatpush1.msra.mxu0 %v381
        %623 = vmatprep.subr.mxu0 0.0
        %624 = vmatpush1.msra.mxu0 %v382
        %625 = vmatprep.subr.mxu0 0.0
        %626 = vmatpush1.msra.mxu0 %v383
        %627 = vmatprep.subr.mxu0 0.0
        %628 = vmatpush1.msra.mxu0 %v384
        %629 = vmatprep.subr.mxu0 0.0
        %630 = vmatpush1.msra.mxu0 %v385
        %631 = vmatprep.subr.mxu0 0.0
        %632 = vmatpush1.msra.mxu0 %v386
        %633 = vmatprep.mubr.f32.mxu0 %v230
        %634 = vmatmul.mubr.f32.gmra.mrb[0].mxu0 %v229
        %v635 = vpop.f32.mrb[0].mxu0
        %v636 = vadd.f32 %v491, %v635
        %v637 = vpop.f32.mrb[0].mxu0
        %638 = vmatprep.mubr.f32.mxu0 %v236
        %639 = vmatmul.mubr.f32.gmra.mrb[0].mxu0 %v235
        %v640 = vpop.f32.mrb[0].mxu0
        %v641 = vadd.f32 %v496, %v640
        %v642 = vpop.f32.mrb[0].mxu0
        %643 = vmatprep.mubr.f32.mxu0 %v242
        %644 = vmatmul.mubr.f32.gmra.mrb[0].mxu0 %v241
        %v645 = vpop.f32.mrb[0].mxu0
        %v646 = vadd.f32 %v501, %v645
        %v647 = vpop.f32.mrb[0].mxu0
        %648 = vmatprep.mubr.f32.mxu0 %v248
        %649 = vmatmul.mubr.f32.gmra.mrb[0].mxu0 %v247
        %v650 = vpop.f32.mrb[0].mxu0
        %v651 = vadd.f32 %v506, %v650
        %v652 = vpop.f32.mrb[0].mxu0
        %653 = vmatprep.mubr.f32.mxu0 %v254
        %654 = vmatmul.mubr.f32.gmra.mrb[0].mxu0 %v253
        %v655 = vpop.f32.mrb[0].mxu0
        %v656 = vadd.f32 %v511, %v655
        %v657 = vpop.f32.mrb[0].mxu0
        %658 = vmatprep.mubr.f32.mxu0 %v260
        %659 = vmatmul.mubr.f32.gmra.mrb[0].mxu0 %v259
        %v660 = vpop.f32.mrb[0].mxu0
        %v661 = vadd.f32 %v516, %v660
        %v662 = vpop.f32.mrb[0].mxu0
        %663 = vmatprep.mubr.f32.mxu0 %v266
        %664 = vmatmul.mubr.f32.gmra.mrb[0].mxu0 %v265
        %v665 = vpop.f32.mrb[0].mxu0
        %v666 = vadd.f32 %v521, %v665
        %v667 = vpop.f32.mrb[0].mxu0
        %668 = vmatprep.mubr.f32.mxu0 %v272
        %669 = vmatmul.mubr.f32.gmra.mrb[0].mxu0 %v271
        %v670 = vpop.f32.mrb[0].mxu0
        %v671 = vadd.f32 %v526, %v670
        %v672 = vpop.f32.mrb[0].mxu0
        %673 = vmatprep.mubr.f32.mxu0 %v278
        %674 = vmatmul.mubr.f32.gmra.mrb[0].mxu0 %v277
        %v675 = vpop.f32.mrb[0].mxu0
        %v676 = vadd.f32 %v531, %v675
        %v677 = vpop.f32.mrb[0].mxu0
        %678 = vmatprep.mubr.f32.mxu0 %v284
        %679 = vmatmul.mubr.f32.gmra.mrb[0].mxu0 %v283
        %v680 = vpop.f32.mrb[0].mxu0
        %v681 = vadd.f32 %v536, %v680
        %v682 = vpop.f32.mrb[0].mxu0
        %683 = vmatprep.mubr.f32.mxu0 %v290
        %684 = vmatmul.mubr.f32.gmra.mrb[0].mxu0 %v289
        %v685 = vpop.f32.mrb[0].mxu0
        %v686 = vadd.f32 %v541, %v685
        %v687 = vpop.f32.mrb[0].mxu0
        %688 = vmatprep.mubr.f32.mxu0 %v296
        %689 = vmatmul.mubr.f32.gmra.mrb[0].mxu0 %v295
        %v690 = vpop.f32.mrb[0].mxu0
        %v691 = vadd.f32 %v546, %v690
        %v692 = vpop.f32.mrb[0].mxu0
        %693 = vmatprep.mubr.f32.mxu0 %v302
        %694 = vmatmul.mubr.f32.gmra.mrb[0].mxu0 %v301
        %v695 = vpop.f32.mrb[0].mxu0
        %v696 = vadd.f32 %v551, %v695
        %v697 = vpop.f32.mrb[0].mxu0
        %698 = vmatprep.mubr.f32.mxu0 %v308
        %699 = vmatmul.mubr.f32.gmra.mrb[0].mxu0 %v307
        %v700 = vpop.f32.mrb[0].mxu0
        %v701 = vadd.f32 %v556, %v700
        %v702 = vpop.f32.mrb[0].mxu0
        %703 = vmatprep.mubr.f32.mxu0 %v314
        %704 = vmatmul.mubr.f32.gmra.mrb[0].mxu0 %v313
        %v705 = vpop.f32.mrb[0].mxu0
        %v706 = vadd.f32 %v561, %v705
        %v707 = vpop.f32.mrb[0].mxu0
        %708 = vmatprep.mubr.f32.mxu0 %v320
        %709 = vmatmul.mubr.f32.gmra.mrb[0].mxu0 %v319
        %v710 = vpop.f32.mrb[0].mxu0
        %v711 = vadd.f32 %v566, %v710
        %v712 = vpop.f32.mrb[0].mxu0
        %713 = vdwg.mxu0
        %714 = vmatprep.subr.mxu0 0.0
        %715 = vmatpush1.msra.mxu0 %v387
        %716 = vmatprep.subr.mxu0 0.0
        %717 = vmatpush1.msra.mxu0 %v388
        %718 = vmatprep.subr.mxu0 0.0
        %719 = vmatpush1.msra.mxu0 %v389
        %720 = vmatprep.subr.mxu0 0.0
        %721 = vmatpush1.msra.mxu0 %v390
        %722 = vmatprep.subr.mxu0 0.0
        %723 = vmatpush1.msra.mxu0 %v391
        %724 = vmatprep.subr.mxu0 0.0
        %725 = vmatpush1.msra.mxu0 %v392
        %726 = vmatprep.subr.mxu0 0.0
        %727 = vmatpush1.msra.mxu0 %v393
        %728 = vmatprep.subr.mxu0 0.0
        %729 = vmatpush1.msra.mxu0 %v394
        %730 = vmatprep.subr.mxu0 0.0
        %731 = vmatpush1.msra.mxu0 %v395
        %732 = vmatprep.subr.mxu0 0.0
        %733 = vmatpush1.msra.mxu0 %v396
        %734 = vmatprep.subr.mxu0 0.0
        %735 = vmatpush1.msra.mxu0 %v397
        %736 = vmatprep.subr.mxu0 0.0
        %737 = vmatpush1.msra.mxu0 %v398
        %738 = vmatprep.subr.mxu0 0.0
        %739 = vmatpush1.msra.mxu0 %v399
        %740 = vmatprep.subr.mxu0 0.0
        %741 = vmatpush1.msra.mxu0 %v400
        %742 = vmatprep.subr.mxu0 0.0
        %743 = vmatpush1.msra.mxu0 %v401
        %744 = vmatprep.subr.mxu0 0.0
        %745 = vmatpush1.msra.mxu0 %v402
        %746 = vmatprep.subr.mxu0 0.0
        %747 = vmatpush1.msra.mxu0 %v403
        %748 = vmatprep.subr.mxu0 0.0
        %749 = vmatpush1.msra.mxu0 %v404
        %750 = vmatprep.subr.mxu0 0.0
        %751 = vmatpush1.msra.mxu0 %v405
        %752 = vmatprep.subr.mxu0 0.0
        %753 = vmatpush1.msra.mxu0 %v406
        %754 = vmatprep.subr.mxu0 0.0
        %755 = vmatpush1.msra.mxu0 %v407
        %756 = vmatprep.subr.mxu0 0.0
        %757 = vmatpush1.msra.mxu0 %v408
        %758 = vmatprep.subr.mxu0 0.0
        %759 = vmatpush1.msra.mxu0 %v409
        %760 = vmatprep.subr.mxu0 0.0
        %761 = vmatpush1.msra.mxu0 %v410
        %762 = vmatprep.subr.mxu0 0.0
        %763 = vmatpush1.msra.mxu0 %v411
        %764 = vmatprep.subr.mxu0 0.0
        %765 = vmatpush1.msra.mxu0 %v412
        %766 = vmatprep.subr.mxu0 0.0
        %767 = vmatpush1.msra.mxu0 %v413
        %768 = vmatprep.subr.mxu0 0.0
        %769 = vmatpush1.msra.mxu0 %v414
        %770 = vmatprep.subr.mxu0 0.0
        %771 = vmatpush1.msra.mxu0 %v415
        %772 = vmatprep.subr.mxu0 0.0
        %773 = vmatpush1.msra.mxu0 %v416
        %774 = vmatprep.subr.mxu0 0.0
        %775 = vmatpush1.msra.mxu0 %v417
        %776 = vmatprep.subr.mxu0 0.0
        %777 = vmatpush1.msra.mxu0 %v418
        %778 = vmatprep.mubr.f32.mxu0 %v232
        %779 = vmatmul.mubr.f32.gmra.mrb[0].mxu0 %v231
        %v780 = vpop.f32.mrb[0].mxu0
        %v781 = vadd.f32 %v636, %v780
        %v782 = vpop.f32.mrb[0].mxu0
        %783 = vmatprep.mubr.f32.mxu0 %v238
        %784 = vmatmul.mubr.f32.gmra.mrb[0].mxu0 %v237
        %v785 = vpop.f32.mrb[0].mxu0
        %v786 = vadd.f32 %v641, %v785
        %v787 = vpop.f32.mrb[0].mxu0
        %788 = vmatprep.mubr.f32.mxu0 %v244
        %789 = vmatmul.mubr.f32.gmra.mrb[0].mxu0 %v243
        %v790 = vpop.f32.mrb[0].mxu0
        %v791 = vadd.f32 %v646, %v790
        %v792 = vpop.f32.mrb[0].mxu0
        %793 = vmatprep.mubr.f32.mxu0 %v250
        %794 = vmatmul.mubr.f32.gmra.mrb[0].mxu0 %v249
        %v795 = vpop.f32.mrb[0].mxu0
        %v796 = vadd.f32 %v651, %v795
        %v797 = vpop.f32.mrb[0].mxu0
        %798 = vmatprep.mubr.f32.mxu0 %v256
        %799 = vmatmul.mubr.f32.gmra.mrb[0].mxu0 %v255
        %v800 = vpop.f32.mrb[0].mxu0
        %v801 = vadd.f32 %v656, %v800
        %v802 = vpop.f32.mrb[0].mxu0
        %803 = vmatprep.mubr.f32.mxu0 %v262
        %804 = vmatmul.mubr.f32.gmra.mrb[0].mxu0 %v261
        %v805 = vpop.f32.mrb[0].mxu0
        %v806 = vadd.f32 %v661, %v805
        %v807 = vpop.f32.mrb[0].mxu0
        %808 = vmatprep.mubr.f32.mxu0 %v268
        %809 = vmatmul.mubr.f32.gmra.mrb[0].mxu0 %v267
        %v810 = vpop.f32.mrb[0].mxu0
        %v811 = vadd.f32 %v666, %v810
        %v812 = vpop.f32.mrb[0].mxu0
        %813 = vmatprep.mubr.f32.mxu0 %v274
        %814 = vmatmul.mubr.f32.gmra.mrb[0].mxu0 %v273
        %v815 = vpop.f32.mrb[0].mxu0
        %v816 = vadd.f32 %v671, %v815
        %v817 = vpop.f32.mrb[0].mxu0
        %818 = vmatprep.mubr.f32.mxu0 %v280
        %819 = vmatmul.mubr.f32.gmra.mrb[0].mxu0 %v279
        %v820 = vpop.f32.mrb[0].mxu0
        %v821 = vadd.f32 %v676, %v820
        %v822 = vpop.f32.mrb[0].mxu0
        %823 = vmatprep.mubr.f32.mxu0 %v286
        %824 = vmatmul.mubr.f32.gmra.mrb[0].mxu0 %v285
        %v825 = vpop.f32.mrb[0].mxu0
        %v826 = vadd.f32 %v681, %v825
        %v827 = vpop.f32.mrb[0].mxu0
        %828 = vmatprep.mubr.f32.mxu0 %v292
        %829 = vmatmul.mubr.f32.gmra.mrb[0].mxu0 %v291
        %v830 = vpop.f32.mrb[0].mxu0
        %v831 = vadd.f32 %v686, %v830
        %v832 = vpop.f32.mrb[0].mxu0
        %833 = vmatprep.mubr.f32.mxu0 %v298
        %834 = vmatmul.mubr.f32.gmra.mrb[0].mxu0 %v297
        %v835 = vpop.f32.mrb[0].mxu0
        %v836 = vadd.f32 %v691, %v835
        %v837 = vpop.f32.mrb[0].mxu0
        %838 = vmatprep.mubr.f32.mxu0 %v304
        %839 = vmatmul.mubr.f32.gmra.mrb[0].mxu0 %v303
        %v840 = vpop.f32.mrb[0].mxu0
        %v841 = vadd.f32 %v696, %v840
        %v842 = vpop.f32.mrb[0].mxu0
        %843 = vmatprep.mubr.f32.mxu0 %v310
        %844 = vmatmul.mubr.f32.gmra.mrb[0].mxu0 %v309
        %v845 = vpop.f32.mrb[0].mxu0
        %v846 = vadd.f32 %v701, %v845
        %v847 = vpop.f32.mrb[0].mxu0
        %848 = vmatprep.mubr.f32.mxu0 %v316
        %849 = vmatmul.mubr.f32.gmra.mrb[0].mxu0 %v315
        %v850 = vpop.f32.mrb[0].mxu0
        %v851 = vadd.f32 %v706, %v850
        %v852 = vpop.f32.mrb[0].mxu0
        %853 = vmatprep.mubr.f32.mxu0 %v322
        %854 = vmatmul.mubr.f32.gmra.mrb[0].mxu0 %v321
        %v855 = vpop.f32.mrb[0].mxu0
        %v856 = vadd.f32 %v711, %v855
        %v857 = vpop.f32.mrb[0].mxu0
        %858 = vdwg.mxu0
        %v859 = vtanh.pop %v781
        %v860 = vtanh.pop %v786
        %v861 = vtanh.pop %v791
        %v862 = vtanh.pop %v796
        %v863 = vtanh.pop %v801
        %v864 = vtanh.pop %v806
        %v865 = vtanh.pop %v811
        %v866 = vtanh.pop %v816
        %v867 = vtanh.pop %v821
        %v868 = vtanh.pop %v826
        %v869 = vtanh.pop %v831
        %v870 = vtanh.pop %v836
        %v871 = vtanh.pop %v841
        %v872 = vtanh.pop %v846
        %v873 = vtanh.pop %v851
        %v874 = vtanh.pop %v856
        %v875 = vld [vmem:[%s224] sm:$0xff]
        %v876 = vld [vmem:[%s224 + $0x8] sm:$0xff]
        %v877 = vld [vmem:[%s224 + $0x10] sm:$0xff]
        %v878 = vld [vmem:[%s224 + $0x18] sm:$0xff]
        %v879 = vld [vmem:[%s224 + $0x20] sm:$0xff]
        %v880 = vld [vmem:[%s224 + $0x28] sm:$0xff]
        %v881 = vld [vmem:[%s224 + $0x30] sm:$0xff]
        %v882 = vld [vmem:[%s224 + $0x38] sm:$0xff]
        %v883 = vld [vmem:[%s224 + $0x40] sm:$0xff]
        %v884 = vld [vmem:[%s224 + $0x48] sm:$0xff]
        %v885 = vld [vmem:[%s224 + $0x50] sm:$0xff]
        %v886 = vld [vmem:[%s224 + $0x58] sm:$0xff]
        %v887 = vld [vmem:[%s224 + $0x60] sm:$0xff]
        %v888 = vld [vmem:[%s224 + $0x68] sm:$0xff]
        %v889 = vld [vmem:[%s224 + $0x70] sm:$0xff]
        %v890 = vld [vmem:[%s224 + $0x78] sm:$0xff]
        %v891 = vld [vmem:[%s224 + $0x80] sm:$0xff]
        %v892 = vld [vmem:[%s224 + $0x88] sm:$0xff]
        %v893 = vld [vmem:[%s224 + $0x90] sm:$0xff]
        %v894 = vld [vmem:[%s224 + $0x98] sm:$0xff]
        %v895 = vld [vmem:[%s224 + $0xa0] sm:$0xff]
        %v896 = vld [vmem:[%s224 + $0xa8] sm:$0xff]
        %v897 = vld [vmem:[%s224 + $0xb0] sm:$0xff]
        %v898 = vld [vmem:[%s224 + $0xb8] sm:$0xff]
        %v899 = vld [vmem:[%s224 + $0xc0] sm:$0xff]
        %v900 = vld [vmem:[%s224 + $0xc8] sm:$0xff]
        %v901 = vld [vmem:[%s224 + $0xd0] sm:$0xff]
        %v902 = vld [vmem:[%s224 + $0xd8] sm:$0xff]
        %v903 = vld [vmem:[%s224 + $0xe0] sm:$0xff]
        %v904 = vld [vmem:[%s224 + $0xe8] sm:$0xff]
        %v905 = vld [vmem:[%s224 + $0xf0] sm:$0xff]
        %v906 = vld [vmem:[%s224 + $0xf8] sm:$0xff]
        %v907 = vld [vmem:[%s224 + $0x100] sm:$0xff]
        %v908 = vld [vmem:[%s224 + $0x108] sm:$0xff]
        %v909 = vld [vmem:[%s224 + $0x110] sm:$0xff]
        %v910 = vld [vmem:[%s224 + $0x118] sm:$0xff]
        %v911 = vld [vmem:[%s224 + $0x120] sm:$0xff]
        %v912 = vld [vmem:[%s224 + $0x128] sm:$0xff]
        %v913 = vld [vmem:[%s224 + $0x130] sm:$0xff]
        %v914 = vld [vmem:[%s224 + $0x138] sm:$0xff]
        %v915 = vld [vmem:[%s224 + $0x140] sm:$0xff]
        %v916 = vld [vmem:[%s224 + $0x148] sm:$0xff]
        %v917 = vld [vmem:[%s224 + $0x150] sm:$0xff]
        %v918 = vld [vmem:[%s224 + $0x158] sm:$0xff]
        %v919 = vld [vmem:[%s224 + $0x160] sm:$0xff]
        %v920 = vld [vmem:[%s224 + $0x168] sm:$0xff]
        %v921 = vld [vmem:[%s224 + $0x170] sm:$0xff]
        %v922 = vld [vmem:[%s224 + $0x178] sm:$0xff]
        %v923 = vld [vmem:[%s224 + $0x180] sm:$0xff]
        %v924 = vld [vmem:[%s224 + $0x188] sm:$0xff]
        %v925 = vld [vmem:[%s224 + $0x190] sm:$0xff]
        %v926 = vld [vmem:[%s224 + $0x198] sm:$0xff]
        %v927 = vld [vmem:[%s224 + $0x1a0] sm:$0xff]
        %v928 = vld [vmem:[%s224 + $0x1a8] sm:$0xff]
        %v929 = vld [vmem:[%s224 + $0x1b0] sm:$0xff]
        %v930 = vld [vmem:[%s224 + $0x1b8] sm:$0xff]
        %v931 = vld [vmem:[%s224 + $0x1c0] sm:$0xff]
        %v932 = vld [vmem:[%s224 + $0x1c8] sm:$0xff]
        %v933 = vld [vmem:[%s224 + $0x1d0] sm:$0xff]
        %v934 = vld [vmem:[%s224 + $0x1d8] sm:$0xff]
        %v935 = vld [vmem:[%s224 + $0x1e0] sm:$0xff]
        %v936 = vld [vmem:[%s224 + $0x1e8] sm:$0xff]
        %v937 = vld [vmem:[%s224 + $0x1f0] sm:$0xff]
        %v938 = vld [vmem:[%s224 + $0x1f8] sm:$0xff]
        %v939 = vld [vmem:[%s224 + $0x200] sm:$0xff]
        %v940 = vld [vmem:[%s224 + $0x208] sm:$0xff]
        %v941 = vld [vmem:[%s224 + $0x210] sm:$0xff]
        %v942 = vld [vmem:[%s224 + $0x218] sm:$0xff]
        %v943 = vld [vmem:[%s224 + $0x220] sm:$0xff]
        %v944 = vld [vmem:[%s224 + $0x228] sm:$0xff]
        %v945 = vld [vmem:[%s224 + $0x230] sm:$0xff]
        %v946 = vld [vmem:[%s224 + $0x238] sm:$0xff]
        %v947 = vld [vmem:[%s224 + $0x240] sm:$0xff]
        %v948 = vld [vmem:[%s224 + $0x248] sm:$0xff]
        %v949 = vld [vmem:[%s224 + $0x250] sm:$0xff]
        %v950 = vld [vmem:[%s224 + $0x258] sm:$0xff]
        %v951 = vld [vmem:[%s224 + $0x260] sm:$0xff]
        %v952 = vld [vmem:[%s224 + $0x268] sm:$0xff]
        %v953 = vld [vmem:[%s224 + $0x270] sm:$0xff]
        %v954 = vld [vmem:[%s224 + $0x278] sm:$0xff]
        %v955 = vld [vmem:[%s224 + $0x280] sm:$0xff]
        %v956 = vld [vmem:[%s224 + $0x288] sm:$0xff]
        %v957 = vld [vmem:[%s224 + $0x290] sm:$0xff]
        %v958 = vld [vmem:[%s224 + $0x298] sm:$0xff]
        %v959 = vld [vmem:[%s224 + $0x2a0] sm:$0xff]
        %v960 = vld [vmem:[%s224 + $0x2a8] sm:$0xff]
        %v961 = vld [vmem:[%s224 + $0x2b0] sm:$0xff]
        %v962 = vld [vmem:[%s224 + $0x2b8] sm:$0xff]
        %v963 = vld [vmem:[%s224 + $0x2c0] sm:$0xff]
        %v964 = vld [vmem:[%s224 + $0x2c8] sm:$0xff]
        %v965 = vld [vmem:[%s224 + $0x2d0] sm:$0xff]
        %v966 = vld [vmem:[%s224 + $0x2d8] sm:$0xff]
        %v967 = vld [vmem:[%s224 + $0x2e0] sm:$0xff]
        %v968 = vld [vmem:[%s224 + $0x2e8] sm:$0xff]
        %v969 = vld [vmem:[%s224 + $0x2f0] sm:$0xff]
        %v970 = vld [vmem:[%s224 + $0x2f8] sm:$0xff]
        %v971 = vld [vmem:[%s224 + $0x300] sm:$0xff]
        %v972 = vld [vmem:[%s224 + $0x308] sm:$0xff]
        %v973 = vld [vmem:[%s224 + $0x310] sm:$0xff]
        %v974 = vld [vmem:[%s224 + $0x318] sm:$0xff]
        %v975 = vld [vmem:[%s224 + $0x320] sm:$0xff]
        %v976 = vld [vmem:[%s224 + $0x328] sm:$0xff]
        %v977 = vld [vmem:[%s224 + $0x330] sm:$0xff]
        %v978 = vld [vmem:[%s224 + $0x338] sm:$0xff]
        %v979 = vld [vmem:[%s224 + $0x340] sm:$0xff]
        %v980 = vld [vmem:[%s224 + $0x348] sm:$0xff]
        %v981 = vld [vmem:[%s224 + $0x350] sm:$0xff]
        %v982 = vld [vmem:[%s224 + $0x358] sm:$0xff]
        %v983 = vld [vmem:[%s224 + $0x360] sm:$0xff]
        %v984 = vld [vmem:[%s224 + $0x368] sm:$0xff]
        %v985 = vld [vmem:[%s224 + $0x370] sm:$0xff]
        %v986 = vld [vmem:[%s224 + $0x378] sm:$0xff]
        %v987 = vld [vmem:[%s224 + $0x380] sm:$0xff]
        %v988 = vld [vmem:[%s224 + $0x388] sm:$0xff]
        %v989 = vld [vmem:[%s224 + $0x390] sm:$0xff]
        %v990 = vld [vmem:[%s224 + $0x398] sm:$0xff]
        %v991 = vld [vmem:[%s224 + $0x3a0] sm:$0xff]
        %v992 = vld [vmem:[%s224 + $0x3a8] sm:$0xff]
        %v993 = vld [vmem:[%s224 + $0x3b0] sm:$0xff]
        %v994 = vld [vmem:[%s224 + $0x3b8] sm:$0xff]
        %v995 = vld [vmem:[%s224 + $0x3c0] sm:$0xff]
        %v996 = vld [vmem:[%s224 + $0x3c8] sm:$0xff]
        %v997 = vld [vmem:[%s224 + $0x3d0] sm:$0xff]
        %v998 = vld [vmem:[%s224 + $0x3d8] sm:$0xff]
        %v999 = vld [vmem:[%s224 + $0x3e0] sm:$0xff]
        %v1000 = vld [vmem:[%s224 + $0x3e8] sm:$0xff]
        %v1001 = vld [vmem:[%s224 + $0x3f0] sm:$0xff]
        %v1002 = vld [vmem:[%s224 + $0x3f8] sm:$0xff]
        %v1003 = vld [vmem:[%s224 + $0x400] sm:$0xff]
        %v1004 = vld [vmem:[%s224 + $0x408] sm:$0xff]
        %v1005 = vld [vmem:[%s224 + $0x410] sm:$0xff]
        %v1006 = vld [vmem:[%s224 + $0x418] sm:$0xff]
        %v1007 = vld [vmem:[%s224 + $0x420] sm:$0xff]
        %v1008 = vld [vmem:[%s224 + $0x428] sm:$0xff]
        %v1009 = vld [vmem:[%s224 + $0x430] sm:$0xff]
        %v1010 = vld [vmem:[%s224 + $0x438] sm:$0xff]
        %v1011 = vld [vmem:[%s224 + $0x440] sm:$0xff]
        %v1012 = vld [vmem:[%s224 + $0x448] sm:$0xff]
        %v1013 = vld [vmem:[%s224 + $0x450] sm:$0xff]
        %v1014 = vld [vmem:[%s224 + $0x458] sm:$0xff]
        %v1015 = vld [vmem:[%s224 + $0x460] sm:$0xff]
        %v1016 = vld [vmem:[%s224 + $0x468] sm:$0xff]
        %v1017 = vld [vmem:[%s224 + $0x470] sm:$0xff]
        %v1018 = vld [vmem:[%s224 + $0x478] sm:$0xff]
        %v1019 = vld [vmem:[%s224 + $0x480] sm:$0xff]
        %v1020 = vld [vmem:[%s224 + $0x488] sm:$0xff]
        %v1021 = vld [vmem:[%s224 + $0x490] sm:$0xff]
        %v1022 = vld [vmem:[%s224 + $0x498] sm:$0xff]
        %v1023 = vld [vmem:[%s224 + $0x4a0] sm:$0xff]
        %v1024 = vld [vmem:[%s224 + $0x4a8] sm:$0xff]
        %v1025 = vld [vmem:[%s224 + $0x4b0] sm:$0xff]
        %v1026 = vld [vmem:[%s224 + $0x4b8] sm:$0xff]
        %v1027 = vld [vmem:[%s224 + $0x4c0] sm:$0xff]
        %v1028 = vld [vmem:[%s224 + $0x4c8] sm:$0xff]
        %v1029 = vld [vmem:[%s224 + $0x4d0] sm:$0xff]
        %v1030 = vld [vmem:[%s224 + $0x4d8] sm:$0xff]
        %v1031 = vld [vmem:[%s224 + $0x4e0] sm:$0xff]
        %v1032 = vld [vmem:[%s224 + $0x4e8] sm:$0xff]
        %v1033 = vld [vmem:[%s224 + $0x4f0] sm:$0xff]
        %v1034 = vld [vmem:[%s224 + $0x4f8] sm:$0xff]
        %v1035 = vld [vmem:[%s224 + $0x500] sm:$0xff]
        %v1036 = vld [vmem:[%s224 + $0x508] sm:$0xff]
        %v1037 = vld [vmem:[%s224 + $0x510] sm:$0xff]
        %v1038 = vld [vmem:[%s224 + $0x518] sm:$0xff]
        %v1039 = vld [vmem:[%s224 + $0x520] sm:$0xff]
        %v1040 = vld [vmem:[%s224 + $0x528] sm:$0xff]
        %v1041 = vld [vmem:[%s224 + $0x530] sm:$0xff]
        %v1042 = vld [vmem:[%s224 + $0x538] sm:$0xff]
        %v1043 = vld [vmem:[%s224 + $0x540] sm:$0xff]
        %v1044 = vld [vmem:[%s224 + $0x548] sm:$0xff]
        %v1045 = vld [vmem:[%s224 + $0x550] sm:$0xff]
        %v1046 = vld [vmem:[%s224 + $0x558] sm:$0xff]
        %v1047 = vld [vmem:[%s224 + $0x560] sm:$0xff]
        %v1048 = vld [vmem:[%s224 + $0x568] sm:$0xff]
        %v1049 = vld [vmem:[%s224 + $0x570] sm:$0xff]
        %v1050 = vld [vmem:[%s224 + $0x578] sm:$0xff]
        %v1051 = vld [vmem:[%s224 + $0x580] sm:$0xff]
        %v1052 = vld [vmem:[%s224 + $0x588] sm:$0xff]
        %v1053 = vld [vmem:[%s224 + $0x590] sm:$0xff]
        %v1054 = vld [vmem:[%s224 + $0x598] sm:$0xff]
        %v1055 = vld [vmem:[%s224 + $0x5a0] sm:$0xff]
        %v1056 = vld [vmem:[%s224 + $0x5a8] sm:$0xff]
        %v1057 = vld [vmem:[%s224 + $0x5b0] sm:$0xff]
        %v1058 = vld [vmem:[%s224 + $0x5b8] sm:$0xff]
        %v1059 = vld [vmem:[%s224 + $0x5c0] sm:$0xff]
        %v1060 = vld [vmem:[%s224 + $0x5c8] sm:$0xff]
        %v1061 = vld [vmem:[%s224 + $0x5d0] sm:$0xff]
        %v1062 = vld [vmem:[%s224 + $0x5d8] sm:$0xff]
        %v1063 = vld [vmem:[%s224 + $0x5e0] sm:$0xff]
        %v1064 = vld [vmem:[%s224 + $0x5e8] sm:$0xff]
        %v1065 = vld [vmem:[%s224 + $0x5f0] sm:$0xff]
        %v1066 = vld [vmem:[%s224 + $0x5f8] sm:$0xff]
        %vm1067 = vcmask 64512
        %v1069 = vsel %vm1067, %v875, 0
        %v1072 = vsel %vm1067, %v876, 0
        %v1075 = vsel %vm1067, %v877, 0
        %v1078 = vsel %vm1067, %v878, 0
        %v1081 = vsel %vm1067, %v879, 0
        %v1084 = vsel %vm1067, %v880, 0
        %v1087 = vsel %vm1067, %v881, 0
        %v1090 = vsel %vm1067, %v882, 0
        %v1093 = vsel %vm1067, %v883, 0
        %v1096 = vsel %vm1067, %v884, 0
        %v1099 = vsel %vm1067, %v885, 0
        %v1102 = vsel %vm1067, %v886, 0
        %1104 = vmatprep.subr.mxu0 0.0
        %1105 = vmatpush1.msra.mxu0 %v859
        %1106 = vmatprep.subr.mxu0 0.0
        %1107 = vmatpush1.msra.mxu0 0.0
        %1108 = vmatprep.subr.mxu0 0.0
        %1109 = vmatpush1.msra.mxu0 0.0
        %1110 = vmatprep.subr.mxu0 0.0
        %1111 = vmatpush1.msra.mxu0 0.0
        %1112 = vmatprep.subr.mxu0 0.0
        %1113 = vmatpush1.msra.mxu0 0.0
        %1114 = vmatprep.subr.mxu0 0.0
        %1115 = vmatpush1.msra.mxu0 0.0
        %1116 = vmatprep.subr.mxu0 0.0
        %1117 = vmatpush1.msra.mxu0 0.0
        %1118 = vmatprep.subr.mxu0 0.0
        %1119 = vmatpush1.msra.mxu0 0.0
        %1120 = vmatprep.subr.mxu0 0.0
        %1121 = vmatpush1.msra.mxu0 0.0
        %1122 = vmatprep.subr.mxu0 0.0
        %1123 = vmatpush1.msra.mxu0 0.0
        %1124 = vmatprep.subr.mxu0 0.0
        %1125 = vmatpush1.msra.mxu0 0.0
        %1126 = vmatprep.subr.mxu0 0.0
        %1127 = vmatpush1.msra.mxu0 0.0
        %1128 = vmatprep.subr.mxu0 0.0
        %1129 = vmatpush1.msra.mxu0 0.0
        %1130 = vmatprep.subr.mxu0 0.0
        %1131 = vmatpush1.msra.mxu0 0.0
        %1132 = vmatprep.subr.mxu0 0.0
        %1133 = vmatpush1.msra.mxu0 0.0
        %1134 = vmatprep.subr.mxu0 0.0
        %1135 = vmatpush1.msra.mxu0 0.0
        %1136 = vmatprep.subr.mxu0 0.0
        %1137 = vmatpush1.msra.mxu0 0.0
        %1138 = vmatprep.subr.mxu0 0.0
        %1139 = vmatpush1.msra.mxu0 0.0
        %1140 = vmatprep.subr.mxu0 0.0
        %1141 = vmatpush1.msra.mxu0 0.0
        %1142 = vmatprep.subr.mxu0 0.0
        %1143 = vmatpush1.msra.mxu0 0.0
        %1144 = vmatprep.subr.mxu0 0.0
        %1145 = vmatpush1.msra.mxu0 0.0
        %1146 = vmatprep.subr.mxu0 0.0
        %1147 = vmatpush1.msra.mxu0 0.0
        %1148 = vmatprep.subr.mxu0 0.0
        %1149 = vmatpush1.msra.mxu0 0.0
        %1150 = vmatprep.subr.mxu0 0.0
        %1151 = vmatpush1.msra.mxu0 0.0
        %1152 = vmatprep.subr.mxu0 0.0
        %1153 = vmatpush1.msra.mxu0 0.0
        %1154 = vmatprep.subr.mxu0 0.0
        %1155 = vmatpush1.msra.mxu0 0.0
        %1156 = vmatprep.subr.mxu0 0.0
        %1157 = vmatpush1.msra.mxu0 0.0
        %1158 = vmatprep.subr.mxu0 0.0
        %1159 = vmatpush1.msra.mxu0 0.0
        %1160 = vmatprep.subr.mxu0 0.0
        %1161 = vmatpush1.msra.mxu0 0.0
        %1162 = vmatprep.subr.mxu0 0.0
        %1163 = vmatpush1.msra.mxu0 0.0
        %1164 = vmatprep.subr.mxu0 0.0
        %1165 = vmatpush1.msra.mxu0 0.0
        %1166 = vmatprep.subr.mxu0 0.0
        %1167 = vmatpush1.msra.mxu0 0.0
        %1168 = vmatprep.mubr.f32.mxu0 0.0
        %1169 = vmatmul.mubr.f32.gmra.mrb[0].mxu0 %v1069
        %v1170 = vpop.f32.mrb[0].mxu0
        %v1171 = vadd.f32 0.0, %v1170
        %v1172 = vpop.f32.mrb[0].mxu0
        %1173 = vmatprep.mubr.f32.mxu0 0.0
        %1174 = vmatmul.mubr.f32.gmra.mrb[0].mxu0 %v1072
        %v1175 = vpop.f32.mrb[0].mxu0
        %v1176 = vadd.f32 0.0, %v1175
        %v1177 = vpop.f32.mrb[0].mxu0
        %1178 = vmatprep.mubr.f32.mxu0 0.0
        %1179 = vmatmul.mubr.f32.gmra.mrb[0].mxu0 %v1075
        %v1180 = vpop.f32.mrb[0].mxu0
        %v1181 = vadd.f32 0.0, %v1180
        %v1182 = vpop.f32.mrb[0].mxu0
        %1183 = vmatprep.mubr.f32.mxu0 0.0
        %1184 = vmatmul.mubr.f32.gmra.mrb[0].mxu0 %v1078
        %v1185 = vpop.f32.mrb[0].mxu0
        %v1186 = vadd.f32 0.0, %v1185
        %v1187 = vpop.f32.mrb[0].mxu0
        %1188 = vmatprep.mubr.f32.mxu0 0.0
        %1189 = vmatmul.mubr.f32.gmra.mrb[0].mxu0 %v1081
        %v1190 = vpop.f32.mrb[0].mxu0
        %v1191 = vadd.f32 0.0, %v1190
        %v1192 = vpop.f32.mrb[0].mxu0
        %1193 = vmatprep.mubr.f32.mxu0 0.0
        %1194 = vmatmul.mubr.f32.gmra.mrb[0].mxu0 %v1084
        %v1195 = vpop.f32.mrb[0].mxu0
        %v1196 = vadd.f32 0.0, %v1195
        %v1197 = vpop.f32.mrb[0].mxu0
        %1198 = vmatprep.mubr.f32.mxu0 0.0
        %1199 = vmatmul.mubr.f32.gmra.mrb[0].mxu0 %v1087
        %v1200 = vpop.f32.mrb[0].mxu0
        %v1201 = vadd.f32 0.0, %v1200
        %v1202 = vpop.f32.mrb[0].mxu0
        %1203 = vmatprep.mubr.f32.mxu0 0.0
        %1204 = vmatmul.mubr.f32.gmra.mrb[0].mxu0 %v1090
        %v1205 = vpop.f32.mrb[0].mxu0
        %v1206 = vadd.f32 0.0, %v1205
        %v1207 = vpop.f32.mrb[0].mxu0
        %1208 = vmatprep.mubr.f32.mxu0 0.0
        %1209 = vmatmul.mubr.f32.gmra.mrb[0].mxu0 %v1093
        %v1210 = vpop.f32.mrb[0].mxu0
        %v1211 = vadd.f32 0.0, %v1210
        %v1212 = vpop.f32.mrb[0].mxu0
        %1213 = vmatprep.mubr.f32.mxu0 0.0
        %1214 = vmatmul.mubr.f32.gmra.mrb[0].mxu0 %v1096
        %v1215 = vpop.f32.mrb[0].mxu0
        %v1216 = vadd.f32 0.0, %v1215
        %v1217 = vpop.f32.mrb[0].mxu0
        %1218 = vmatprep.mubr.f32.mxu0 0.0
        %1219 = vmatmul.mubr.f32.gmra.mrb[0].mxu0 %v1099
        %v1220 = vpop.f32.mrb[0].mxu0
        %v1221 = vadd.f32 0.0, %v1220
        %v1222 = vpop.f32.mrb[0].mxu0
        %1223 = vmatprep.mubr.f32.mxu0 0.0
        %1224 = vmatmul.mubr.f32.gmra.mrb[0].mxu0 %v1102
        %v1225 = vpop.f32.mrb[0].mxu0
        %v1226 = vadd.f32 0.0, %v1225
        %v1227 = vpop.f32.mrb[0].mxu0
        %1228 = vdwg.mxu0
        %v1230 = vsel %vm1067, %v887, 0
        %v1233 = vsel %vm1067, %v888, 0
        %v1236 = vsel %vm1067, %v889, 0
        %v1239 = vsel %vm1067, %v890, 0
        %v1242 = vsel %vm1067, %v891, 0
        %v1245 = vsel %vm1067, %v892, 0
        %v1248 = vsel %vm1067, %v893, 0
        %v1251 = vsel %vm1067, %v894, 0
        %v1254 = vsel %vm1067, %v895, 0
        %v1257 = vsel %vm1067, %v896, 0
        %v1260 = vsel %vm1067, %v897, 0
        %v1263 = vsel %vm1067, %v898, 0
        %1265 = vmatprep.subr.mxu0 0.0
        %1266 = vmatpush1.msra.mxu0 %v860
        %1267 = vmatprep.subr.mxu0 0.0
        %1268 = vmatpush1.msra.mxu0 0.0
        %1269 = vmatprep.subr.mxu0 0.0
        %1270 = vmatpush1.msra.mxu0 0.0
        %1271 = vmatprep.subr.mxu0 0.0
        %1272 = vmatpush1.msra.mxu0 0.0
        %1273 = vmatprep.subr.mxu0 0.0
        %1274 = vmatpush1.msra.mxu0 0.0
        %1275 = vmatprep.subr.mxu0 0.0
        %1276 = vmatpush1.msra.mxu0 0.0
        %1277 = vmatprep.subr.mxu0 0.0
        %1278 = vmatpush1.msra.mxu0 0.0
        %1279 = vmatprep.subr.mxu0 0.0
        %1280 = vmatpush1.msra.mxu0 0.0
        %1281 = vmatprep.subr.mxu0 0.0
        %1282 = vmatpush1.msra.mxu0 0.0
        %1283 = vmatprep.subr.mxu0 0.0
        %1284 = vmatpush1.msra.mxu0 0.0
        %1285 = vmatprep.subr.mxu0 0.0
        %1286 = vmatpush1.msra.mxu0 0.0
        %1287 = vmatprep.subr.mxu0 0.0
        %1288 = vmatpush1.msra.mxu0 0.0
        %1289 = vmatprep.subr.mxu0 0.0
        %1290 = vmatpush1.msra.mxu0 0.0
        %1291 = vmatprep.subr.mxu0 0.0
        %1292 = vmatpush1.msra.mxu0 0.0
        %1293 = vmatprep.subr.mxu0 0.0
        %1294 = vmatpush1.msra.mxu0 0.0
        %1295 = vmatprep.subr.mxu0 0.0
        %1296 = vmatpush1.msra.mxu0 0.0
        %1297 = vmatprep.subr.mxu0 0.0
        %1298 = vmatpush1.msra.mxu0 0.0
        %1299 = vmatprep.subr.mxu0 0.0
        %1300 = vmatpush1.msra.mxu0 0.0
        %1301 = vmatprep.subr.mxu0 0.0
        %1302 = vmatpush1.msra.mxu0 0.0
        %1303 = vmatprep.subr.mxu0 0.0
        %1304 = vmatpush1.msra.mxu0 0.0
        %1305 = vmatprep.subr.mxu0 0.0
        %1306 = vmatpush1.msra.mxu0 0.0
        %1307 = vmatprep.subr.mxu0 0.0
        %1308 = vmatpush1.msra.mxu0 0.0
        %1309 = vmatprep.subr.mxu0 0.0
        %1310 = vmatpush1.msra.mxu0 0.0
        %1311 = vmatprep.subr.mxu0 0.0
        %1312 = vmatpush1.msra.mxu0 0.0
        %1313 = vmatprep.subr.mxu0 0.0
        %1314 = vmatpush1.msra.mxu0 0.0
        %1315 = vmatprep.subr.mxu0 0.0
        %1316 = vmatpush1.msra.mxu0 0.0
        %1317 = vmatprep.subr.mxu0 0.0
        %1318 = vmatpush1.msra.mxu0 0.0
        %1319 = vmatprep.subr.mxu0 0.0
        %1320 = vmatpush1.msra.mxu0 0.0
        %1321 = vmatprep.subr.mxu0 0.0
        %1322 = vmatpush1.msra.mxu0 0.0
        %1323 = vmatprep.subr.mxu0 0.0
        %1324 = vmatpush1.msra.mxu0 0.0
        %1325 = vmatprep.subr.mxu0 0.0
        %1326 = vmatpush1.msra.mxu0 0.0
        %1327 = vmatprep.subr.mxu0 0.0
        %1328 = vmatpush1.msra.mxu0 0.0
        %1329 = vmatprep.mubr.f32.mxu0 0.0
        %1330 = vmatmul.mubr.f32.gmra.mrb[0].mxu0 %v1230
        %v1331 = vpop.f32.mrb[0].mxu0
        %v1332 = vadd.f32 0.0, %v1331
        %v1333 = vpop.f32.mrb[0].mxu0
        %1334 = vmatprep.mubr.f32.mxu0 0.0
        %1335 = vmatmul.mubr.f32.gmra.mrb[0].mxu0 %v1233
        %v1336 = vpop.f32.mrb[0].mxu0
        %v1337 = vadd.f32 0.0, %v1336
        %v1338 = vpop.f32.mrb[0].mxu0
        %1339 = vmatprep.mubr.f32.mxu0 0.0
        %1340 = vmatmul.mubr.f32.gmra.mrb[0].mxu0 %v1236
        %v1341 = vpop.f32.mrb[0].mxu0
        %v1342 = vadd.f32 0.0, %v1341
        %v1343 = vpop.f32.mrb[0].mxu0
        %1344 = vmatprep.mubr.f32.mxu0 0.0
        %1345 = vmatmul.mubr.f32.gmra.mrb[0].mxu0 %v1239
        %v1346 = vpop.f32.mrb[0].mxu0
        %v1347 = vadd.f32 0.0, %v1346
        %v1348 = vpop.f32.mrb[0].mxu0
        %1349 = vmatprep.mubr.f32.mxu0 0.0
        %1350 = vmatmul.mubr.f32.gmra.mrb[0].mxu0 %v1242
        %v1351 = vpop.f32.mrb[0].mxu0
        %v1352 = vadd.f32 0.0, %v1351
        %v1353 = vpop.f32.mrb[0].mxu0
        %1354 = vmatprep.mubr.f32.mxu0 0.0
        %1355 = vmatmul.mubr.f32.gmra.mrb[0].mxu0 %v1245
        %v1356 = vpop.f32.mrb[0].mxu0
        %v1357 = vadd.f32 0.0, %v1356
        %v1358 = vpop.f32.mrb[0].mxu0
        %1359 = vmatprep.mubr.f32.mxu0 0.0
        %1360 = vmatmul.mubr.f32.gmra.mrb[0].mxu0 %v1248
        %v1361 = vpop.f32.mrb[0].mxu0
        %v1362 = vadd.f32 0.0, %v1361
        %v1363 = vpop.f32.mrb[0].mxu0
        %1364 = vmatprep.mubr.f32.mxu0 0.0
        %1365 = vmatmul.mubr.f32.gmra.mrb[0].mxu0 %v1251
        %v1366 = vpop.f32.mrb[0].mxu0
        %v1367 = vadd.f32 0.0, %v1366
        %v1368 = vpop.f32.mrb[0].mxu0
        %1369 = vmatprep.mubr.f32.mxu0 0.0
        %1370 = vmatmul.mubr.f32.gmra.mrb[0].mxu0 %v1254
        %v1371 = vpop.f32.mrb[0].mxu0
        %v1372 = vadd.f32 0.0, %v1371
        %v1373 = vpop.f32.mrb[0].mxu0
        %1374 = vmatprep.mubr.f32.mxu0 0.0
        %1375 = vmatmul.mubr.f32.gmra.mrb[0].mxu0 %v1257
        %v1376 = vpop.f32.mrb[0].mxu0
        %v1377 = vadd.f32 0.0, %v1376
        %v1378 = vpop.f32.mrb[0].mxu0
        %1379 = vmatprep.mubr.f32.mxu0 0.0
        %1380 = vmatmul.mubr.f32.gmra.mrb[0].mxu0 %v1260
        %v1381 = vpop.f32.mrb[0].mxu0
        %v1382 = vadd.f32 0.0, %v1381
        %v1383 = vpop.f32.mrb[0].mxu0
        %1384 = vmatprep.mubr.f32.mxu0 0.0
        %1385 = vmatmul.mubr.f32.gmra.mrb[0].mxu0 %v1263
        %v1386 = vpop.f32.mrb[0].mxu0
        %v1387 = vadd.f32 0.0, %v1386
        %v1388 = vpop.f32.mrb[0].mxu0
        %1389 = vdwg.mxu0
        %v1391 = vsel %vm1067, %v899, 0
        %v1394 = vsel %vm1067, %v900, 0
        %v1397 = vsel %vm1067, %v901, 0
        %v1400 = vsel %vm1067, %v902, 0
        %v1403 = vsel %vm1067, %v903, 0
        %v1406 = vsel %vm1067, %v904, 0
        %v1409 = vsel %vm1067, %v905, 0
        %v1412 = vsel %vm1067, %v906, 0
        %v1415 = vsel %vm1067, %v907, 0
        %v1418 = vsel %vm1067, %v908, 0
        %v1421 = vsel %vm1067, %v909, 0
        %v1424 = vsel %vm1067, %v910, 0
        %1426 = vmatprep.subr.mxu0 0.0
        %1427 = vmatpush1.msra.mxu0 %v861
        %1428 = vmatprep.subr.mxu0 0.0
        %1429 = vmatpush1.msra.mxu0 0.0
        %1430 = vmatprep.subr.mxu0 0.0
        %1431 = vmatpush1.msra.mxu0 0.0
        %1432 = vmatprep.subr.mxu0 0.0
        %1433 = vmatpush1.msra.mxu0 0.0
        %1434 = vmatprep.subr.mxu0 0.0
        %1435 = vmatpush1.msra.mxu0 0.0
        %1436 = vmatprep.subr.mxu0 0.0
        %1437 = vmatpush1.msra.mxu0 0.0
        %1438 = vmatprep.subr.mxu0 0.0
        %1439 = vmatpush1.msra.mxu0 0.0
        %1440 = vmatprep.subr.mxu0 0.0
        %1441 = vmatpush1.msra.mxu0 0.0
        %1442 = vmatprep.subr.mxu0 0.0
        %1443 = vmatpush1.msra.mxu0 0.0
        %1444 = vmatprep.subr.mxu0 0.0
        %1445 = vmatpush1.msra.mxu0 0.0
        %1446 = vmatprep.subr.mxu0 0.0
        %1447 = vmatpush1.msra.mxu0 0.0
        %1448 = vmatprep.subr.mxu0 0.0
        %1449 = vmatpush1.msra.mxu0 0.0
        %1450 = vmatprep.subr.mxu0 0.0
        %1451 = vmatpush1.msra.mxu0 0.0
        %1452 = vmatprep.subr.mxu0 0.0
        %1453 = vmatpush1.msra.mxu0 0.0
        %1454 = vmatprep.subr.mxu0 0.0
        %1455 = vmatpush1.msra.mxu0 0.0
        %1456 = vmatprep.subr.mxu0 0.0
        %1457 = vmatpush1.msra.mxu0 0.0
        %1458 = vmatprep.subr.mxu0 0.0
        %1459 = vmatpush1.msra.mxu0 0.0
        %1460 = vmatprep.subr.mxu0 0.0
        %1461 = vmatpush1.msra.mxu0 0.0
        %1462 = vmatprep.subr.mxu0 0.0
        %1463 = vmatpush1.msra.mxu0 0.0
        %1464 = vmatprep.subr.mxu0 0.0
        %1465 = vmatpush1.msra.mxu0 0.0
        %1466 = vmatprep.subr.mxu0 0.0
        %1467 = vmatpush1.msra.mxu0 0.0
        %1468 = vmatprep.subr.mxu0 0.0
        %1469 = vmatpush1.msra.mxu0 0.0
        %1470 = vmatprep.subr.mxu0 0.0
        %1471 = vmatpush1.msra.mxu0 0.0
        %1472 = vmatprep.subr.mxu0 0.0
        %1473 = vmatpush1.msra.mxu0 0.0
        %1474 = vmatprep.subr.mxu0 0.0
        %1475 = vmatpush1.msra.mxu0 0.0
        %1476 = vmatprep.subr.mxu0 0.0
        %1477 = vmatpush1.msra.mxu0 0.0
        %1478 = vmatprep.subr.mxu0 0.0
        %1479 = vmatpush1.msra.mxu0 0.0
        %1480 = vmatprep.subr.mxu0 0.0
        %1481 = vmatpush1.msra.mxu0 0.0
        %1482 = vmatprep.subr.mxu0 0.0
        %1483 = vmatpush1.msra.mxu0 0.0
        %1484 = vmatprep.subr.mxu0 0.0
        %1485 = vmatpush1.msra.mxu0 0.0
        %1486 = vmatprep.subr.mxu0 0.0
        %1487 = vmatpush1.msra.mxu0 0.0
        %1488 = vmatprep.subr.mxu0 0.0
        %1489 = vmatpush1.msra.mxu0 0.0
        %1490 = vmatprep.mubr.f32.mxu0 0.0
        %1491 = vmatmul.mubr.f32.gmra.mrb[0].mxu0 %v1391
        %v1492 = vpop.f32.mrb[0].mxu0
        %v1493 = vadd.f32 0.0, %v1492
        %v1494 = vpop.f32.mrb[0].mxu0
        %1495 = vmatprep.mubr.f32.mxu0 0.0
        %1496 = vmatmul.mubr.f32.gmra.mrb[0].mxu0 %v1394
        %v1497 = vpop.f32.mrb[0].mxu0
        %v1498 = vadd.f32 0.0, %v1497
        %v1499 = vpop.f32.mrb[0].mxu0
        %1500 = vmatprep.mubr.f32.mxu0 0.0
        %1501 = vmatmul.mubr.f32.gmra.mrb[0].mxu0 %v1397
        %v1502 = vpop.f32.mrb[0].mxu0
        %v1503 = vadd.f32 0.0, %v1502
        %v1504 = vpop.f32.mrb[0].mxu0
        %1505 = vmatprep.mubr.f32.mxu0 0.0
        %1506 = vmatmul.mubr.f32.gmra.mrb[0].mxu0 %v1400
        %v1507 = vpop.f32.mrb[0].mxu0
        %v1508 = vadd.f32 0.0, %v1507
        %v1509 = vpop.f32.mrb[0].mxu0
        %1510 = vmatprep.mubr.f32.mxu0 0.0
        %1511 = vmatmul.mubr.f32.gmra.mrb[0].mxu0 %v1403
        %v1512 = vpop.f32.mrb[0].mxu0
        %v1513 = vadd.f32 0.0, %v1512
        %v1514 = vpop.f32.mrb[0].mxu0
        %1515 = vmatprep.mubr.f32.mxu0 0.0
        %1516 = vmatmul.mubr.f32.gmra.mrb[0].mxu0 %v1406
        %v1517 = vpop.f32.mrb[0].mxu0
        %v1518 = vadd.f32 0.0, %v1517
        %v1519 = vpop.f32.mrb[0].mxu0
        %1520 = vmatprep.mubr.f32.mxu0 0.0
        %1521 = vmatmul.mubr.f32.gmra.mrb[0].mxu0 %v1409
        %v1522 = vpop.f32.mrb[0].mxu0
        %v1523 = vadd.f32 0.0, %v1522
        %v1524 = vpop.f32.mrb[0].mxu0
        %1525 = vmatprep.mubr.f32.mxu0 0.0
        %1526 = vmatmul.mubr.f32.gmra.mrb[0].mxu0 %v1412
        %v1527 = vpop.f32.mrb[0].mxu0
        %v1528 = vadd.f32 0.0, %v1527
        %v1529 = vpop.f32.mrb[0].mxu0
        %1530 = vmatprep.mubr.f32.mxu0 0.0
        %1531 = vmatmul.mubr.f32.gmra.mrb[0].mxu0 %v1415
        %v1532 = vpop.f32.mrb[0].mxu0
        %v1533 = vadd.f32 0.0, %v1532
        %v1534 = vpop.f32.mrb[0].mxu0
        %1535 = vmatprep.mubr.f32.mxu0 0.0
        %1536 = vmatmul.mubr.f32.gmra.mrb[0].mxu0 %v1418
        %v1537 = vpop.f32.mrb[0].mxu0
        %v1538 = vadd.f32 0.0, %v1537
        %v1539 = vpop.f32.mrb[0].mxu0
        %1540 = vmatprep.mubr.f32.mxu0 0.0
        %1541 = vmatmul.mubr.f32.gmra.mrb[0].mxu0 %v1421
        %v1542 = vpop.f32.mrb[0].mxu0
        %v1543 = vadd.f32 0.0, %v1542
        %v1544 = vpop.f32.mrb[0].mxu0
        %1545 = vmatprep.mubr.f32.mxu0 0.0
        %1546 = vmatmul.mubr.f32.gmra.mrb[0].mxu0 %v1424
        %v1547 = vpop.f32.mrb[0].mxu0
        %v1548 = vadd.f32 0.0, %v1547
        %v1549 = vpop.f32.mrb[0].mxu0
        %1550 = vdwg.mxu0
        %v1552 = vsel %vm1067, %v911, 0
        %v1555 = vsel %vm1067, %v912, 0
        %v1558 = vsel %vm1067, %v913, 0
        %v1561 = vsel %vm1067, %v914, 0
        %v1564 = vsel %vm1067, %v915, 0
        %v1567 = vsel %vm1067, %v916, 0
        %v1570 = vsel %vm1067, %v917, 0
        %v1573 = vsel %vm1067, %v918, 0
        %v1576 = vsel %vm1067, %v919, 0
        %v1579 = vsel %vm1067, %v920, 0
        %v1582 = vsel %vm1067, %v921, 0
        %v1585 = vsel %vm1067, %v922, 0
        %1587 = vmatprep.subr.mxu0 0.0
        %1588 = vmatpush1.msra.mxu0 %v862
        %1589 = vmatprep.subr.mxu0 0.0
        %1590 = vmatpush1.msra.mxu0 0.0
        %1591 = vmatprep.subr.mxu0 0.0
        %1592 = vmatpush1.msra.mxu0 0.0
        %1593 = vmatprep.subr.mxu0 0.0
        %1594 = vmatpush1.msra.mxu0 0.0
        %1595 = vmatprep.subr.mxu0 0.0
        %1596 = vmatpush1.msra.mxu0 0.0
        %1597 = vmatprep.subr.mxu0 0.0
        %1598 = vmatpush1.msra.mxu0 0.0
        %1599 = vmatprep.subr.mxu0 0.0
        %1600 = vmatpush1.msra.mxu0 0.0
        %1601 = vmatprep.subr.mxu0 0.0
        %1602 = vmatpush1.msra.mxu0 0.0
        %1603 = vmatprep.subr.mxu0 0.0
        %1604 = vmatpush1.msra.mxu0 0.0
        %1605 = vmatprep.subr.mxu0 0.0
        %1606 = vmatpush1.msra.mxu0 0.0
        %1607 = vmatprep.subr.mxu0 0.0
        %1608 = vmatpush1.msra.mxu0 0.0
        %1609 = vmatprep.subr.mxu0 0.0
        %1610 = vmatpush1.msra.mxu0 0.0
        %1611 = vmatprep.subr.mxu0 0.0
        %1612 = vmatpush1.msra.mxu0 0.0
        %1613 = vmatprep.subr.mxu0 0.0
        %1614 = vmatpush1.msra.mxu0 0.0
        %1615 = vmatprep.subr.mxu0 0.0
        %1616 = vmatpush1.msra.mxu0 0.0
        %1617 = vmatprep.subr.mxu0 0.0
        %1618 = vmatpush1.msra.mxu0 0.0
        %1619 = vmatprep.subr.mxu0 0.0
        %1620 = vmatpush1.msra.mxu0 0.0
        %1621 = vmatprep.subr.mxu0 0.0
        %1622 = vmatpush1.msra.mxu0 0.0
        %1623 = vmatprep.subr.mxu0 0.0
        %1624 = vmatpush1.msra.mxu0 0.0
        %1625 = vmatprep.subr.mxu0 0.0
        %1626 = vmatpush1.msra.mxu0 0.0
        %1627 = vmatprep.subr.mxu0 0.0
        %1628 = vmatpush1.msra.mxu0 0.0
        %1629 = vmatprep.subr.mxu0 0.0
        %1630 = vmatpush1.msra.mxu0 0.0
        %1631 = vmatprep.subr.mxu0 0.0
        %1632 = vmatpush1.msra.mxu0 0.0
        %1633 = vmatprep.subr.mxu0 0.0
        %1634 = vmatpush1.msra.mxu0 0.0
        %1635 = vmatprep.subr.mxu0 0.0
        %1636 = vmatpush1.msra.mxu0 0.0
        %1637 = vmatprep.subr.mxu0 0.0
        %1638 = vmatpush1.msra.mxu0 0.0
        %1639 = vmatprep.subr.mxu0 0.0
        %1640 = vmatpush1.msra.mxu0 0.0
        %1641 = vmatprep.subr.mxu0 0.0
        %1642 = vmatpush1.msra.mxu0 0.0
        %1643 = vmatprep.subr.mxu0 0.0
        %1644 = vmatpush1.msra.mxu0 0.0
        %1645 = vmatprep.subr.mxu0 0.0
        %1646 = vmatpush1.msra.mxu0 0.0
        %1647 = vmatprep.subr.mxu0 0.0
        %1648 = vmatpush1.msra.mxu0 0.0
        %1649 = vmatprep.subr.mxu0 0.0
        %1650 = vmatpush1.msra.mxu0 0.0
        %1651 = vmatprep.mubr.f32.mxu0 0.0
        %1652 = vmatmul.mubr.f32.gmra.mrb[0].mxu0 %v1552
        %v1653 = vpop.f32.mrb[0].mxu0
        %v1654 = vadd.f32 0.0, %v1653
        %v1655 = vpop.f32.mrb[0].mxu0
        %1656 = vmatprep.mubr.f32.mxu0 0.0
        %1657 = vmatmul.mubr.f32.gmra.mrb[0].mxu0 %v1555
        %v1658 = vpop.f32.mrb[0].mxu0
        %v1659 = vadd.f32 0.0, %v1658
        %v1660 = vpop.f32.mrb[0].mxu0
        %1661 = vmatprep.mubr.f32.mxu0 0.0
        %1662 = vmatmul.mubr.f32.gmra.mrb[0].mxu0 %v1558
        %v1663 = vpop.f32.mrb[0].mxu0
        %v1664 = vadd.f32 0.0, %v1663
        %v1665 = vpop.f32.mrb[0].mxu0
        %1666 = vmatprep.mubr.f32.mxu0 0.0
        %1667 = vmatmul.mubr.f32.gmra.mrb[0].mxu0 %v1561
        %v1668 = vpop.f32.mrb[0].mxu0
        %v1669 = vadd.f32 0.0, %v1668
        %v1670 = vpop.f32.mrb[0].mxu0
        %1671 = vmatprep.mubr.f32.mxu0 0.0
        %1672 = vmatmul.mubr.f32.gmra.mrb[0].mxu0 %v1564
        %v1673 = vpop.f32.mrb[0].mxu0
        %v1674 = vadd.f32 0.0, %v1673
        %v1675 = vpop.f32.mrb[0].mxu0
        %1676 = vmatprep.mubr.f32.mxu0 0.0
        %1677 = vmatmul.mubr.f32.gmra.mrb[0].mxu0 %v1567
        %v1678 = vpop.f32.mrb[0].mxu0
        %v1679 = vadd.f32 0.0, %v1678
        %v1680 = vpop.f32.mrb[0].mxu0
        %1681 = vmatprep.mubr.f32.mxu0 0.0
        %1682 = vmatmul.mubr.f32.gmra.mrb[0].mxu0 %v1570
        %v1683 = vpop.f32.mrb[0].mxu0
        %v1684 = vadd.f32 0.0, %v1683
        %v1685 = vpop.f32.mrb[0].mxu0
        %1686 = vmatprep.mubr.f32.mxu0 0.0
        %1687 = vmatmul.mubr.f32.gmra.mrb[0].mxu0 %v1573
        %v1688 = vpop.f32.mrb[0].mxu0
        %v1689 = vadd.f32 0.0, %v1688
        %v1690 = vpop.f32.mrb[0].mxu0
        %1691 = vmatprep.mubr.f32.mxu0 0.0
        %1692 = vmatmul.mubr.f32.gmra.mrb[0].mxu0 %v1576
        %v1693 = vpop.f32.mrb[0].mxu0
        %v1694 = vadd.f32 0.0, %v1693
        %v1695 = vpop.f32.mrb[0].mxu0
        %1696 = vmatprep.mubr.f32.mxu0 0.0
        %1697 = vmatmul.mubr.f32.gmra.mrb[0].mxu0 %v1579
        %v1698 = vpop.f32.mrb[0].mxu0
        %v1699 = vadd.f32 0.0, %v1698
        %v1700 = vpop.f32.mrb[0].mxu0
        %1701 = vmatprep.mubr.f32.mxu0 0.0
        %1702 = vmatmul.mubr.f32.gmra.mrb[0].mxu0 %v1582
        %v1703 = vpop.f32.mrb[0].mxu0
        %v1704 = vadd.f32 0.0, %v1703
        %v1705 = vpop.f32.mrb[0].mxu0
        %1706 = vmatprep.mubr.f32.mxu0 0.0
        %1707 = vmatmul.mubr.f32.gmra.mrb[0].mxu0 %v1585
        %v1708 = vpop.f32.mrb[0].mxu0
        %v1709 = vadd.f32 0.0, %v1708
        %v1710 = vpop.f32.mrb[0].mxu0
        %1711 = vdwg.mxu0
        %v1713 = vsel %vm1067, %v923, 0
        %v1716 = vsel %vm1067, %v924, 0
        %v1719 = vsel %vm1067, %v925, 0
        %v1722 = vsel %vm1067, %v926, 0
        %v1725 = vsel %vm1067, %v927, 0
        %v1728 = vsel %vm1067, %v928, 0
        %v1731 = vsel %vm1067, %v929, 0
        %v1734 = vsel %vm1067, %v930, 0
        %v1737 = vsel %vm1067, %v931, 0
        %v1740 = vsel %vm1067, %v932, 0
        %v1743 = vsel %vm1067, %v933, 0
        %v1746 = vsel %vm1067, %v934, 0
        %1748 = vmatprep.subr.mxu0 0.0
        %1749 = vmatpush1.msra.mxu0 %v863
        %1750 = vmatprep.subr.mxu0 0.0
        %1751 = vmatpush1.msra.mxu0 0.0
        %1752 = vmatprep.subr.mxu0 0.0
        %1753 = vmatpush1.msra.mxu0 0.0
        %1754 = vmatprep.subr.mxu0 0.0
        %1755 = vmatpush1.msra.mxu0 0.0
        %1756 = vmatprep.subr.mxu0 0.0
        %1757 = vmatpush1.msra.mxu0 0.0
        %1758 = vmatprep.subr.mxu0 0.0
        %1759 = vmatpush1.msra.mxu0 0.0
        %1760 = vmatprep.subr.mxu0 0.0
        %1761 = vmatpush1.msra.mxu0 0.0
        %1762 = vmatprep.subr.mxu0 0.0
        %1763 = vmatpush1.msra.mxu0 0.0
        %1764 = vmatprep.subr.mxu0 0.0
        %1765 = vmatpush1.msra.mxu0 0.0
        %1766 = vmatprep.subr.mxu0 0.0
        %1767 = vmatpush1.msra.mxu0 0.0
        %1768 = vmatprep.subr.mxu0 0.0
        %1769 = vmatpush1.msra.mxu0 0.0
        %1770 = vmatprep.subr.mxu0 0.0
        %1771 = vmatpush1.msra.mxu0 0.0
        %1772 = vmatprep.subr.mxu0 0.0
        %1773 = vmatpush1.msra.mxu0 0.0
        %1774 = vmatprep.subr.mxu0 0.0
        %1775 = vmatpush1.msra.mxu0 0.0
        %1776 = vmatprep.subr.mxu0 0.0
        %1777 = vmatpush1.msra.mxu0 0.0
        %1778 = vmatprep.subr.mxu0 0.0
        %1779 = vmatpush1.msra.mxu0 0.0
        %1780 = vmatprep.subr.mxu0 0.0
        %1781 = vmatpush1.msra.mxu0 0.0
        %1782 = vmatprep.subr.mxu0 0.0
        %1783 = vmatpush1.msra.mxu0 0.0
        %1784 = vmatprep.subr.mxu0 0.0
        %1785 = vmatpush1.msra.mxu0 0.0
        %1786 = vmatprep.subr.mxu0 0.0
        %1787 = vmatpush1.msra.mxu0 0.0
        %1788 = vmatprep.subr.mxu0 0.0
        %1789 = vmatpush1.msra.mxu0 0.0
        %1790 = vmatprep.subr.mxu0 0.0
        %1791 = vmatpush1.msra.mxu0 0.0
        %1792 = vmatprep.subr.mxu0 0.0
        %1793 = vmatpush1.msra.mxu0 0.0
        %1794 = vmatprep.subr.mxu0 0.0
        %1795 = vmatpush1.msra.mxu0 0.0
        %1796 = vmatprep.subr.mxu0 0.0
        %1797 = vmatpush1.msra.mxu0 0.0
        %1798 = vmatprep.subr.mxu0 0.0
        %1799 = vmatpush1.msra.mxu0 0.0
        %1800 = vmatprep.subr.mxu0 0.0
        %1801 = vmatpush1.msra.mxu0 0.0
        %1802 = vmatprep.subr.mxu0 0.0
        %1803 = vmatpush1.msra.mxu0 0.0
        %1804 = vmatprep.subr.mxu0 0.0
        %1805 = vmatpush1.msra.mxu0 0.0
        %1806 = vmatprep.subr.mxu0 0.0
        %1807 = vmatpush1.msra.mxu0 0.0
        %1808 = vmatprep.subr.mxu0 0.0
        %1809 = vmatpush1.msra.mxu0 0.0
        %1810 = vmatprep.subr.mxu0 0.0
        %1811 = vmatpush1.msra.mxu0 0.0
        %1812 = vmatprep.mubr.f32.mxu0 0.0
        %1813 = vmatmul.mubr.f32.gmra.mrb[0].mxu0 %v1713
        %v1814 = vpop.f32.mrb[0].mxu0
        %v1815 = vadd.f32 0.0, %v1814
        %v1816 = vpop.f32.mrb[0].mxu0
        %1817 = vmatprep.mubr.f32.mxu0 0.0
        %1818 = vmatmul.mubr.f32.gmra.mrb[0].mxu0 %v1716
        %v1819 = vpop.f32.mrb[0].mxu0
        %v1820 = vadd.f32 0.0, %v1819
        %v1821 = vpop.f32.mrb[0].mxu0
        %1822 = vmatprep.mubr.f32.mxu0 0.0
        %1823 = vmatmul.mubr.f32.gmra.mrb[0].mxu0 %v1719
        %v1824 = vpop.f32.mrb[0].mxu0
        %v1825 = vadd.f32 0.0, %v1824
        %v1826 = vpop.f32.mrb[0].mxu0
        %1827 = vmatprep.mubr.f32.mxu0 0.0
        %1828 = vmatmul.mubr.f32.gmra.mrb[0].mxu0 %v1722
        %v1829 = vpop.f32.mrb[0].mxu0
        %v1830 = vadd.f32 0.0, %v1829
        %v1831 = vpop.f32.mrb[0].mxu0
        %1832 = vmatprep.mubr.f32.mxu0 0.0
        %1833 = vmatmul.mubr.f32.gmra.mrb[0].mxu0 %v1725
        %v1834 = vpop.f32.mrb[0].mxu0
        %v1835 = vadd.f32 0.0, %v1834
        %v1836 = vpop.f32.mrb[0].mxu0
        %1837 = vmatprep.mubr.f32.mxu0 0.0
        %1838 = vmatmul.mubr.f32.gmra.mrb[0].mxu0 %v1728
        %v1839 = vpop.f32.mrb[0].mxu0
        %v1840 = vadd.f32 0.0, %v1839
        %v1841 = vpop.f32.mrb[0].mxu0
        %1842 = vmatprep.mubr.f32.mxu0 0.0
        %1843 = vmatmul.mubr.f32.gmra.mrb[0].mxu0 %v1731
        %v1844 = vpop.f32.mrb[0].mxu0
        %v1845 = vadd.f32 0.0, %v1844
        %v1846 = vpop.f32.mrb[0].mxu0
        %1847 = vmatprep.mubr.f32.mxu0 0.0
        %1848 = vmatmul.mubr.f32.gmra.mrb[0].mxu0 %v1734
        %v1849 = vpop.f32.mrb[0].mxu0
        %v1850 = vadd.f32 0.0, %v1849
        %v1851 = vpop.f32.mrb[0].mxu0
        %1852 = vmatprep.mubr.f32.mxu0 0.0
        %1853 = vmatmul.mubr.f32.gmra.mrb[0].mxu0 %v1737
        %v1854 = vpop.f32.mrb[0].mxu0
        %v1855 = vadd.f32 0.0, %v1854
        %v1856 = vpop.f32.mrb[0].mxu0
        %1857 = vmatprep.mubr.f32.mxu0 0.0
        %1858 = vmatmul.mubr.f32.gmra.mrb[0].mxu0 %v1740
        %v1859 = vpop.f32.mrb[0].mxu0
        %v1860 = vadd.f32 0.0, %v1859
        %v1861 = vpop.f32.mrb[0].mxu0
        %1862 = vmatprep.mubr.f32.mxu0 0.0
        %1863 = vmatmul.mubr.f32.gmra.mrb[0].mxu0 %v1743
        %v1864 = vpop.f32.mrb[0].mxu0
        %v1865 = vadd.f32 0.0, %v1864
        %v1866 = vpop.f32.mrb[0].mxu0
        %1867 = vmatprep.mubr.f32.mxu0 0.0
        %1868 = vmatmul.mubr.f32.gmra.mrb[0].mxu0 %v1746
        %v1869 = vpop.f32.mrb[0].mxu0
        %v1870 = vadd.f32 0.0, %v1869
        %v1871 = vpop.f32.mrb[0].mxu0
        %1872 = vdwg.mxu0
        %v1874 = vsel %vm1067, %v935, 0
        %v1877 = vsel %vm1067, %v936, 0
        %v1880 = vsel %vm1067, %v937, 0
        %v1883 = vsel %vm1067, %v938, 0
        %v1886 = vsel %vm1067, %v939, 0
        %v1889 = vsel %vm1067, %v940, 0
        %v1892 = vsel %vm1067, %v941, 0
        %v1895 = vsel %vm1067, %v942, 0
        %v1898 = vsel %vm1067, %v943, 0
        %v1901 = vsel %vm1067, %v944, 0
        %v1904 = vsel %vm1067, %v945, 0
        %v1907 = vsel %vm1067, %v946, 0
        %1909 = vmatprep.subr.mxu0 0.0
        %1910 = vmatpush1.msra.mxu0 %v864
        %1911 = vmatprep.subr.mxu0 0.0
        %1912 = vmatpush1.msra.mxu0 0.0
        %1913 = vmatprep.subr.mxu0 0.0
        %1914 = vmatpush1.msra.mxu0 0.0
        %1915 = vmatprep.subr.mxu0 0.0
        %1916 = vmatpush1.msra.mxu0 0.0
        %1917 = vmatprep.subr.mxu0 0.0
        %1918 = vmatpush1.msra.mxu0 0.0
        %1919 = vmatprep.subr.mxu0 0.0
        %1920 = vmatpush1.msra.mxu0 0.0
        %1921 = vmatprep.subr.mxu0 0.0
        %1922 = vmatpush1.msra.mxu0 0.0
        %1923 = vmatprep.subr.mxu0 0.0
        %1924 = vmatpush1.msra.mxu0 0.0
        %1925 = vmatprep.subr.mxu0 0.0
        %1926 = vmatpush1.msra.mxu0 0.0
        %1927 = vmatprep.subr.mxu0 0.0
        %1928 = vmatpush1.msra.mxu0 0.0
        %1929 = vmatprep.subr.mxu0 0.0
        %1930 = vmatpush1.msra.mxu0 0.0
        %1931 = vmatprep.subr.mxu0 0.0
        %1932 = vmatpush1.msra.mxu0 0.0
        %1933 = vmatprep.subr.mxu0 0.0
        %1934 = vmatpush1.msra.mxu0 0.0
        %1935 = vmatprep.subr.mxu0 0.0
        %1936 = vmatpush1.msra.mxu0 0.0
        %1937 = vmatprep.subr.mxu0 0.0
        %1938 = vmatpush1.msra.mxu0 0.0
        %1939 = vmatprep.subr.mxu0 0.0
        %1940 = vmatpush1.msra.mxu0 0.0
        %1941 = vmatprep.subr.mxu0 0.0
        %1942 = vmatpush1.msra.mxu0 0.0
        %1943 = vmatprep.subr.mxu0 0.0
        %1944 = vmatpush1.msra.mxu0 0.0
        %1945 = vmatprep.subr.mxu0 0.0
        %1946 = vmatpush1.msra.mxu0 0.0
        %1947 = vmatprep.subr.mxu0 0.0
        %1948 = vmatpush1.msra.mxu0 0.0
        %1949 = vmatprep.subr.mxu0 0.0
        %1950 = vmatpush1.msra.mxu0 0.0
        %1951 = vmatprep.subr.mxu0 0.0
        %1952 = vmatpush1.msra.mxu0 0.0
        %1953 = vmatprep.subr.mxu0 0.0
        %1954 = vmatpush1.msra.mxu0 0.0
        %1955 = vmatprep.subr.mxu0 0.0
        %1956 = vmatpush1.msra.mxu0 0.0
        %1957 = vmatprep.subr.mxu0 0.0
        %1958 = vmatpush1.msra.mxu0 0.0
        %1959 = vmatprep.subr.mxu0 0.0
        %1960 = vmatpush1.msra.mxu0 0.0
        %1961 = vmatprep.subr.mxu0 0.0
        %1962 = vmatpush1.msra.mxu0 0.0
        %1963 = vmatprep.subr.mxu0 0.0
        %1964 = vmatpush1.msra.mxu0 0.0
        %1965 = vmatprep.subr.mxu0 0.0
        %1966 = vmatpush1.msra.mxu0 0.0
        %1967 = vmatprep.subr.mxu0 0.0
        %1968 = vmatpush1.msra.mxu0 0.0
        %1969 = vmatprep.subr.mxu0 0.0
        %1970 = vmatpush1.msra.mxu0 0.0
        %1971 = vmatprep.subr.mxu0 0.0
        %1972 = vmatpush1.msra.mxu0 0.0
        %1973 = vmatprep.mubr.f32.mxu0 0.0
        %1974 = vmatmul.mubr.f32.gmra.mrb[0].mxu0 %v1874
        %v1975 = vpop.f32.mrb[0].mxu0
        %v1976 = vadd.f32 0.0, %v1975
        %v1977 = vpop.f32.mrb[0].mxu0
        %1978 = vmatprep.mubr.f32.mxu0 0.0
        %1979 = vmatmul.mubr.f32.gmra.mrb[0].mxu0 %v1877
        %v1980 = vpop.f32.mrb[0].mxu0
        %v1981 = vadd.f32 0.0, %v1980
        %v1982 = vpop.f32.mrb[0].mxu0
        %1983 = vmatprep.mubr.f32.mxu0 0.0
        %1984 = vmatmul.mubr.f32.gmra.mrb[0].mxu0 %v1880
        %v1985 = vpop.f32.mrb[0].mxu0
        %v1986 = vadd.f32 0.0, %v1985
        %v1987 = vpop.f32.mrb[0].mxu0
        %1988 = vmatprep.mubr.f32.mxu0 0.0
        %1989 = vmatmul.mubr.f32.gmra.mrb[0].mxu0 %v1883
        %v1990 = vpop.f32.mrb[0].mxu0
        %v1991 = vadd.f32 0.0, %v1990
        %v1992 = vpop.f32.mrb[0].mxu0
        %1993 = vmatprep.mubr.f32.mxu0 0.0
        %1994 = vmatmul.mubr.f32.gmra.mrb[0].mxu0 %v1886
        %v1995 = vpop.f32.mrb[0].mxu0
        %v1996 = vadd.f32 0.0, %v1995
        %v1997 = vpop.f32.mrb[0].mxu0
        %1998 = vmatprep.mubr.f32.mxu0 0.0
        %1999 = vmatmul.mubr.f32.gmra.mrb[0].mxu0 %v1889
        %v2000 = vpop.f32.mrb[0].mxu0
        %v2001 = vadd.f32 0.0, %v2000
        %v2002 = vpop.f32.mrb[0].mxu0
        %2003 = vmatprep.mubr.f32.mxu0 0.0
        %2004 = vmatmul.mubr.f32.gmra.mrb[0].mxu0 %v1892
        %v2005 = vpop.f32.mrb[0].mxu0
        %v2006 = vadd.f32 0.0, %v2005
        %v2007 = vpop.f32.mrb[0].mxu0
        %2008 = vmatprep.mubr.f32.mxu0 0.0
        %2009 = vmatmul.mubr.f32.gmra.mrb[0].mxu0 %v1895
        %v2010 = vpop.f32.mrb[0].mxu0
        %v2011 = vadd.f32 0.0, %v2010
        %v2012 = vpop.f32.mrb[0].mxu0
        %2013 = vmatprep.mubr.f32.mxu0 0.0
        %2014 = vmatmul.mubr.f32.gmra.mrb[0].mxu0 %v1898
        %v2015 = vpop.f32.mrb[0].mxu0
        %v2016 = vadd.f32 0.0, %v2015
        %v2017 = vpop.f32.mrb[0].mxu0
        %2018 = vmatprep.mubr.f32.mxu0 0.0
        %2019 = vmatmul.mubr.f32.gmra.mrb[0].mxu0 %v1901
        %v2020 = vpop.f32.mrb[0].mxu0
        %v2021 = vadd.f32 0.0, %v2020
        %v2022 = vpop.f32.mrb[0].mxu0
        %2023 = vmatprep.mubr.f32.mxu0 0.0
        %2024 = vmatmul.mubr.f32.gmra.mrb[0].mxu0 %v1904
        %v2025 = vpop.f32.mrb[0].mxu0
        %v2026 = vadd.f32 0.0, %v2025
        %v2027 = vpop.f32.mrb[0].mxu0
        %2028 = vmatprep.mubr.f32.mxu0 0.0
        %2029 = vmatmul.mubr.f32.gmra.mrb[0].mxu0 %v1907
        %v2030 = vpop.f32.mrb[0].mxu0
        %v2031 = vadd.f32 0.0, %v2030
        %v2032 = vpop.f32.mrb[0].mxu0
        %2033 = vdwg.mxu0
        %v2035 = vsel %vm1067, %v947, 0
        %v2038 = vsel %vm1067, %v948, 0
        %v2041 = vsel %vm1067, %v949, 0
        %v2044 = vsel %vm1067, %v950, 0
        %v2047 = vsel %vm1067, %v951, 0
        %v2050 = vsel %vm1067, %v952, 0
        %v2053 = vsel %vm1067, %v953, 0
        %v2056 = vsel %vm1067, %v954, 0
        %v2059 = vsel %vm1067, %v955, 0
        %v2062 = vsel %vm1067, %v956, 0
        %v2065 = vsel %vm1067, %v957, 0
        %v2068 = vsel %vm1067, %v958, 0
        %2070 = vmatprep.subr.mxu0 0.0
        %2071 = vmatpush1.msra.mxu0 %v865
        %2072 = vmatprep.subr.mxu0 0.0
        %2073 = vmatpush1.msra.mxu0 0.0
        %2074 = vmatprep.subr.mxu0 0.0
        %2075 = vmatpush1.msra.mxu0 0.0
        %2076 = vmatprep.subr.mxu0 0.0
        %2077 = vmatpush1.msra.mxu0 0.0
        %2078 = vmatprep.subr.mxu0 0.0
        %2079 = vmatpush1.msra.mxu0 0.0
        %2080 = vmatprep.subr.mxu0 0.0
        %2081 = vmatpush1.msra.mxu0 0.0
        %2082 = vmatprep.subr.mxu0 0.0
        %2083 = vmatpush1.msra.mxu0 0.0
        %2084 = vmatprep.subr.mxu0 0.0
        %2085 = vmatpush1.msra.mxu0 0.0
        %2086 = vmatprep.subr.mxu0 0.0
        %2087 = vmatpush1.msra.mxu0 0.0
        %2088 = vmatprep.subr.mxu0 0.0
        %2089 = vmatpush1.msra.mxu0 0.0
        %2090 = vmatprep.subr.mxu0 0.0
        %2091 = vmatpush1.msra.mxu0 0.0
        %2092 = vmatprep.subr.mxu0 0.0
        %2093 = vmatpush1.msra.mxu0 0.0
        %2094 = vmatprep.subr.mxu0 0.0
        %2095 = vmatpush1.msra.mxu0 0.0
        %2096 = vmatprep.subr.mxu0 0.0
        %2097 = vmatpush1.msra.mxu0 0.0
        %2098 = vmatprep.subr.mxu0 0.0
        %2099 = vmatpush1.msra.mxu0 0.0
        %2100 = vmatprep.subr.mxu0 0.0
        %2101 = vmatpush1.msra.mxu0 0.0
        %2102 = vmatprep.subr.mxu0 0.0
        %2103 = vmatpush1.msra.mxu0 0.0
        %2104 = vmatprep.subr.mxu0 0.0
        %2105 = vmatpush1.msra.mxu0 0.0
        %2106 = vmatprep.subr.mxu0 0.0
        %2107 = vmatpush1.msra.mxu0 0.0
        %2108 = vmatprep.subr.mxu0 0.0
        %2109 = vmatpush1.msra.mxu0 0.0
        %2110 = vmatprep.subr.mxu0 0.0
        %2111 = vmatpush1.msra.mxu0 0.0
        %2112 = vmatprep.subr.mxu0 0.0
        %2113 = vmatpush1.msra.mxu0 0.0
        %2114 = vmatprep.subr.mxu0 0.0
        %2115 = vmatpush1.msra.mxu0 0.0
        %2116 = vmatprep.subr.mxu0 0.0
        %2117 = vmatpush1.msra.mxu0 0.0
        %2118 = vmatprep.subr.mxu0 0.0
        %2119 = vmatpush1.msra.mxu0 0.0
        %2120 = vmatprep.subr.mxu0 0.0
        %2121 = vmatpush1.msra.mxu0 0.0
        %2122 = vmatprep.subr.mxu0 0.0
        %2123 = vmatpush1.msra.mxu0 0.0
        %2124 = vmatprep.subr.mxu0 0.0
        %2125 = vmatpush1.msra.mxu0 0.0
        %2126 = vmatprep.subr.mxu0 0.0
        %2127 = vmatpush1.msra.mxu0 0.0
        %2128 = vmatprep.subr.mxu0 0.0
        %2129 = vmatpush1.msra.mxu0 0.0
        %2130 = vmatprep.subr.mxu0 0.0
        %2131 = vmatpush1.msra.mxu0 0.0
        %2132 = vmatprep.subr.mxu0 0.0
        %2133 = vmatpush1.msra.mxu0 0.0
        %2134 = vmatprep.mubr.f32.mxu0 0.0
        %2135 = vmatmul.mubr.f32.gmra.mrb[0].mxu0 %v2035
        %v2136 = vpop.f32.mrb[0].mxu0
        %v2137 = vadd.f32 0.0, %v2136
        %v2138 = vpop.f32.mrb[0].mxu0
        %2139 = vmatprep.mubr.f32.mxu0 0.0
        %2140 = vmatmul.mubr.f32.gmra.mrb[0].mxu0 %v2038
        %v2141 = vpop.f32.mrb[0].mxu0
        %v2142 = vadd.f32 0.0, %v2141
        %v2143 = vpop.f32.mrb[0].mxu0
        %2144 = vmatprep.mubr.f32.mxu0 0.0
        %2145 = vmatmul.mubr.f32.gmra.mrb[0].mxu0 %v2041
        %v2146 = vpop.f32.mrb[0].mxu0
        %v2147 = vadd.f32 0.0, %v2146
        %v2148 = vpop.f32.mrb[0].mxu0
        %2149 = vmatprep.mubr.f32.mxu0 0.0
        %2150 = vmatmul.mubr.f32.gmra.mrb[0].mxu0 %v2044
        %v2151 = vpop.f32.mrb[0].mxu0
        %v2152 = vadd.f32 0.0, %v2151
        %v2153 = vpop.f32.mrb[0].mxu0
        %2154 = vmatprep.mubr.f32.mxu0 0.0
        %2155 = vmatmul.mubr.f32.gmra.mrb[0].mxu0 %v2047
        %v2156 = vpop.f32.mrb[0].mxu0
        %v2157 = vadd.f32 0.0, %v2156
        %v2158 = vpop.f32.mrb[0].mxu0
        %2159 = vmatprep.mubr.f32.mxu0 0.0
        %2160 = vmatmul.mubr.f32.gmra.mrb[0].mxu0 %v2050
        %v2161 = vpop.f32.mrb[0].mxu0
        %v2162 = vadd.f32 0.0, %v2161
        %v2163 = vpop.f32.mrb[0].mxu0
        %2164 = vmatprep.mubr.f32.mxu0 0.0
        %2165 = vmatmul.mubr.f32.gmra.mrb[0].mxu0 %v2053
        %v2166 = vpop.f32.mrb[0].mxu0
        %v2167 = vadd.f32 0.0, %v2166
        %v2168 = vpop.f32.mrb[0].mxu0
        %2169 = vmatprep.mubr.f32.mxu0 0.0
        %2170 = vmatmul.mubr.f32.gmra.mrb[0].mxu0 %v2056
        %v2171 = vpop.f32.mrb[0].mxu0
        %v2172 = vadd.f32 0.0, %v2171
        %v2173 = vpop.f32.mrb[0].mxu0
        %2174 = vmatprep.mubr.f32.mxu0 0.0
        %2175 = vmatmul.mubr.f32.gmra.mrb[0].mxu0 %v2059
        %v2176 = vpop.f32.mrb[0].mxu0
        %v2177 = vadd.f32 0.0, %v2176
        %v2178 = vpop.f32.mrb[0].mxu0
        %2179 = vmatprep.mubr.f32.mxu0 0.0
        %2180 = vmatmul.mubr.f32.gmra.mrb[0].mxu0 %v2062
        %v2181 = vpop.f32.mrb[0].mxu0
        %v2182 = vadd.f32 0.0, %v2181
        %v2183 = vpop.f32.mrb[0].mxu0
        %2184 = vmatprep.mubr.f32.mxu0 0.0
        %2185 = vmatmul.mubr.f32.gmra.mrb[0].mxu0 %v2065
        %v2186 = vpop.f32.mrb[0].mxu0
        %v2187 = vadd.f32 0.0, %v2186
        %v2188 = vpop.f32.mrb[0].mxu0
        %2189 = vmatprep.mubr.f32.mxu0 0.0
        %2190 = vmatmul.mubr.f32.gmra.mrb[0].mxu0 %v2068
        %v2191 = vpop.f32.mrb[0].mxu0
        %v2192 = vadd.f32 0.0, %v2191
        %v2193 = vpop.f32.mrb[0].mxu0
        %2194 = vdwg.mxu0
        %v2196 = vsel %vm1067, %v959, 0
        %v2199 = vsel %vm1067, %v960, 0
        %v2202 = vsel %vm1067, %v961, 0
        %v2205 = vsel %vm1067, %v962, 0
        %v2208 = vsel %vm1067, %v963, 0
        %v2211 = vsel %vm1067, %v964, 0
        %v2214 = vsel %vm1067, %v965, 0
        %v2217 = vsel %vm1067, %v966, 0
        %v2220 = vsel %vm1067, %v967, 0
        %v2223 = vsel %vm1067, %v968, 0
        %v2226 = vsel %vm1067, %v969, 0
        %v2229 = vsel %vm1067, %v970, 0
        %2231 = vmatprep.subr.mxu0 0.0
        %2232 = vmatpush1.msra.mxu0 %v866
        %2233 = vmatprep.subr.mxu0 0.0
        %2234 = vmatpush1.msra.mxu0 0.0
        %2235 = vmatprep.subr.mxu0 0.0
        %2236 = vmatpush1.msra.mxu0 0.0
        %2237 = vmatprep.subr.mxu0 0.0
        %2238 = vmatpush1.msra.mxu0 0.0
        %2239 = vmatprep.subr.mxu0 0.0
        %2240 = vmatpush1.msra.mxu0 0.0
        %2241 = vmatprep.subr.mxu0 0.0
        %2242 = vmatpush1.msra.mxu0 0.0
        %2243 = vmatprep.subr.mxu0 0.0
        %2244 = vmatpush1.msra.mxu0 0.0
        %2245 = vmatprep.subr.mxu0 0.0
        %2246 = vmatpush1.msra.mxu0 0.0
        %2247 = vmatprep.subr.mxu0 0.0
        %2248 = vmatpush1.msra.mxu0 0.0
        %2249 = vmatprep.subr.mxu0 0.0
        %2250 = vmatpush1.msra.mxu0 0.0
        %2251 = vmatprep.subr.mxu0 0.0
        %2252 = vmatpush1.msra.mxu0 0.0
        %2253 = vmatprep.subr.mxu0 0.0
        %2254 = vmatpush1.msra.mxu0 0.0
        %2255 = vmatprep.subr.mxu0 0.0
        %2256 = vmatpush1.msra.mxu0 0.0
        %2257 = vmatprep.subr.mxu0 0.0
        %2258 = vmatpush1.msra.mxu0 0.0
        %2259 = vmatprep.subr.mxu0 0.0
        %2260 = vmatpush1.msra.mxu0 0.0
        %2261 = vmatprep.subr.mxu0 0.0
        %2262 = vmatpush1.msra.mxu0 0.0
        %2263 = vmatprep.subr.mxu0 0.0
        %2264 = vmatpush1.msra.mxu0 0.0
        %2265 = vmatprep.subr.mxu0 0.0
        %2266 = vmatpush1.msra.mxu0 0.0
        %2267 = vmatprep.subr.mxu0 0.0
        %2268 = vmatpush1.msra.mxu0 0.0
        %2269 = vmatprep.subr.mxu0 0.0
        %2270 = vmatpush1.msra.mxu0 0.0
        %2271 = vmatprep.subr.mxu0 0.0
        %2272 = vmatpush1.msra.mxu0 0.0
        %2273 = vmatprep.subr.mxu0 0.0
        %2274 = vmatpush1.msra.mxu0 0.0
        %2275 = vmatprep.subr.mxu0 0.0
        %2276 = vmatpush1.msra.mxu0 0.0
        %2277 = vmatprep.subr.mxu0 0.0
        %2278 = vmatpush1.msra.mxu0 0.0
        %2279 = vmatprep.subr.mxu0 0.0
        %2280 = vmatpush1.msra.mxu0 0.0
        %2281 = vmatprep.subr.mxu0 0.0
        %2282 = vmatpush1.msra.mxu0 0.0
        %2283 = vmatprep.subr.mxu0 0.0
        %2284 = vmatpush1.msra.mxu0 0.0
        %2285 = vmatprep.subr.mxu0 0.0
        %2286 = vmatpush1.msra.mxu0 0.0
        %2287 = vmatprep.subr.mxu0 0.0
        %2288 = vmatpush1.msra.mxu0 0.0
        %2289 = vmatprep.subr.mxu0 0.0
        %2290 = vmatpush1.msra.mxu0 0.0
        %2291 = vmatprep.subr.mxu0 0.0
        %2292 = vmatpush1.msra.mxu0 0.0
        %2293 = vmatprep.subr.mxu0 0.0
        %2294 = vmatpush1.msra.mxu0 0.0
        %2295 = vmatprep.mubr.f32.mxu0 0.0
        %2296 = vmatmul.mubr.f32.gmra.mrb[0].mxu0 %v2196
        %v2297 = vpop.f32.mrb[0].mxu0
        %v2298 = vadd.f32 0.0, %v2297
        %v2299 = vpop.f32.mrb[0].mxu0
        %2300 = vmatprep.mubr.f32.mxu0 0.0
        %2301 = vmatmul.mubr.f32.gmra.mrb[0].mxu0 %v2199
        %v2302 = vpop.f32.mrb[0].mxu0
        %v2303 = vadd.f32 0.0, %v2302
        %v2304 = vpop.f32.mrb[0].mxu0
        %2305 = vmatprep.mubr.f32.mxu0 0.0
        %2306 = vmatmul.mubr.f32.gmra.mrb[0].mxu0 %v2202
        %v2307 = vpop.f32.mrb[0].mxu0
        %v2308 = vadd.f32 0.0, %v2307
        %v2309 = vpop.f32.mrb[0].mxu0
        %2310 = vmatprep.mubr.f32.mxu0 0.0
        %2311 = vmatmul.mubr.f32.gmra.mrb[0].mxu0 %v2205
        %v2312 = vpop.f32.mrb[0].mxu0
        %v2313 = vadd.f32 0.0, %v2312
        %v2314 = vpop.f32.mrb[0].mxu0
        %2315 = vmatprep.mubr.f32.mxu0 0.0
        %2316 = vmatmul.mubr.f32.gmra.mrb[0].mxu0 %v2208
        %v2317 = vpop.f32.mrb[0].mxu0
        %v2318 = vadd.f32 0.0, %v2317
        %v2319 = vpop.f32.mrb[0].mxu0
        %2320 = vmatprep.mubr.f32.mxu0 0.0
        %2321 = vmatmul.mubr.f32.gmra.mrb[0].mxu0 %v2211
        %v2322 = vpop.f32.mrb[0].mxu0
        %v2323 = vadd.f32 0.0, %v2322
        %v2324 = vpop.f32.mrb[0].mxu0
        %2325 = vmatprep.mubr.f32.mxu0 0.0
        %2326 = vmatmul.mubr.f32.gmra.mrb[0].mxu0 %v2214
        %v2327 = vpop.f32.mrb[0].mxu0
        %v2328 = vadd.f32 0.0, %v2327
        %v2329 = vpop.f32.mrb[0].mxu0
        %2330 = vmatprep.mubr.f32.mxu0 0.0
        %2331 = vmatmul.mubr.f32.gmra.mrb[0].mxu0 %v2217
        %v2332 = vpop.f32.mrb[0].mxu0
        %v2333 = vadd.f32 0.0, %v2332
        %v2334 = vpop.f32.mrb[0].mxu0
        %2335 = vmatprep.mubr.f32.mxu0 0.0
        %2336 = vmatmul.mubr.f32.gmra.mrb[0].mxu0 %v2220
        %v2337 = vpop.f32.mrb[0].mxu0
        %v2338 = vadd.f32 0.0, %v2337
        %v2339 = vpop.f32.mrb[0].mxu0
        %2340 = vmatprep.mubr.f32.mxu0 0.0
        %2341 = vmatmul.mubr.f32.gmra.mrb[0].mxu0 %v2223
        %v2342 = vpop.f32.mrb[0].mxu0
        %v2343 = vadd.f32 0.0, %v2342
        %v2344 = vpop.f32.mrb[0].mxu0
        %2345 = vmatprep.mubr.f32.mxu0 0.0
        %2346 = vmatmul.mubr.f32.gmra.mrb[0].mxu0 %v2226
        %v2347 = vpop.f32.mrb[0].mxu0
        %v2348 = vadd.f32 0.0, %v2347
        %v2349 = vpop.f32.mrb[0].mxu0
        %2350 = vmatprep.mubr.f32.mxu0 0.0
        %2351 = vmatmul.mubr.f32.gmra.mrb[0].mxu0 %v2229
        %v2352 = vpop.f32.mrb[0].mxu0
        %v2353 = vadd.f32 0.0, %v2352
        %v2354 = vpop.f32.mrb[0].mxu0
        %2355 = vdwg.mxu0
        %v2357 = vsel %vm1067, %v971, 0
        %v2360 = vsel %vm1067, %v972, 0
        %v2363 = vsel %vm1067, %v973, 0
        %v2366 = vsel %vm1067, %v974, 0
        %v2369 = vsel %vm1067, %v975, 0
        %v2372 = vsel %vm1067, %v976, 0
        %v2375 = vsel %vm1067, %v977, 0
        %v2378 = vsel %vm1067, %v978, 0
        %v2381 = vsel %vm1067, %v979, 0
        %v2384 = vsel %vm1067, %v980, 0
        %v2387 = vsel %vm1067, %v981, 0
        %v2390 = vsel %vm1067, %v982, 0
        %2392 = vmatprep.subr.mxu0 0.0
        %2393 = vmatpush1.msra.mxu0 %v867
        %2394 = vmatprep.subr.mxu0 0.0
        %2395 = vmatpush1.msra.mxu0 0.0
        %2396 = vmatprep.subr.mxu0 0.0
        %2397 = vmatpush1.msra.mxu0 0.0
        %2398 = vmatprep.subr.mxu0 0.0
        %2399 = vmatpush1.msra.mxu0 0.0
        %2400 = vmatprep.subr.mxu0 0.0
        %2401 = vmatpush1.msra.mxu0 0.0
        %2402 = vmatprep.subr.mxu0 0.0
        %2403 = vmatpush1.msra.mxu0 0.0
        %2404 = vmatprep.subr.mxu0 0.0
        %2405 = vmatpush1.msra.mxu0 0.0
        %2406 = vmatprep.subr.mxu0 0.0
        %2407 = vmatpush1.msra.mxu0 0.0
        %2408 = vmatprep.subr.mxu0 0.0
        %2409 = vmatpush1.msra.mxu0 0.0
        %2410 = vmatprep.subr.mxu0 0.0
        %2411 = vmatpush1.msra.mxu0 0.0
        %2412 = vmatprep.subr.mxu0 0.0
        %2413 = vmatpush1.msra.mxu0 0.0
        %2414 = vmatprep.subr.mxu0 0.0
        %2415 = vmatpush1.msra.mxu0 0.0
        %2416 = vmatprep.subr.mxu0 0.0
        %2417 = vmatpush1.msra.mxu0 0.0
        %2418 = vmatprep.subr.mxu0 0.0
        %2419 = vmatpush1.msra.mxu0 0.0
        %2420 = vmatprep.subr.mxu0 0.0
        %2421 = vmatpush1.msra.mxu0 0.0
        %2422 = vmatprep.subr.mxu0 0.0
        %2423 = vmatpush1.msra.mxu0 0.0
        %2424 = vmatprep.subr.mxu0 0.0
        %2425 = vmatpush1.msra.mxu0 0.0
        %2426 = vmatprep.subr.mxu0 0.0
        %2427 = vmatpush1.msra.mxu0 0.0
        %2428 = vmatprep.subr.mxu0 0.0
        %2429 = vmatpush1.msra.mxu0 0.0
        %2430 = vmatprep.subr.mxu0 0.0
        %2431 = vmatpush1.msra.mxu0 0.0
        %2432 = vmatprep.subr.mxu0 0.0
        %2433 = vmatpush1.msra.mxu0 0.0
        %2434 = vmatprep.subr.mxu0 0.0
        %2435 = vmatpush1.msra.mxu0 0.0
        %2436 = vmatprep.subr.mxu0 0.0
        %2437 = vmatpush1.msra.mxu0 0.0
        %2438 = vmatprep.subr.mxu0 0.0
        %2439 = vmatpush1.msra.mxu0 0.0
        %2440 = vmatprep.subr.mxu0 0.0
        %2441 = vmatpush1.msra.mxu0 0.0
        %2442 = vmatprep.subr.mxu0 0.0
        %2443 = vmatpush1.msra.mxu0 0.0
        %2444 = vmatprep.subr.mxu0 0.0
        %2445 = vmatpush1.msra.mxu0 0.0
        %2446 = vmatprep.subr.mxu0 0.0
        %2447 = vmatpush1.msra.mxu0 0.0
        %2448 = vmatprep.subr.mxu0 0.0
        %2449 = vmatpush1.msra.mxu0 0.0
        %2450 = vmatprep.subr.mxu0 0.0
        %2451 = vmatpush1.msra.mxu0 0.0
        %2452 = vmatprep.subr.mxu0 0.0
        %2453 = vmatpush1.msra.mxu0 0.0
        %2454 = vmatprep.subr.mxu0 0.0
        %2455 = vmatpush1.msra.mxu0 0.0
        %2456 = vmatprep.mubr.f32.mxu0 0.0
        %2457 = vmatmul.mubr.f32.gmra.mrb[0].mxu0 %v2357
        %v2458 = vpop.f32.mrb[0].mxu0
        %v2459 = vadd.f32 0.0, %v2458
        %v2460 = vpop.f32.mrb[0].mxu0
        %2461 = vmatprep.mubr.f32.mxu0 0.0
        %2462 = vmatmul.mubr.f32.gmra.mrb[0].mxu0 %v2360
        %v2463 = vpop.f32.mrb[0].mxu0
        %v2464 = vadd.f32 0.0, %v2463
        %v2465 = vpop.f32.mrb[0].mxu0
        %2466 = vmatprep.mubr.f32.mxu0 0.0
        %2467 = vmatmul.mubr.f32.gmra.mrb[0].mxu0 %v2363
        %v2468 = vpop.f32.mrb[0].mxu0
        %v2469 = vadd.f32 0.0, %v2468
        %v2470 = vpop.f32.mrb[0].mxu0
        %2471 = vmatprep.mubr.f32.mxu0 0.0
        %2472 = vmatmul.mubr.f32.gmra.mrb[0].mxu0 %v2366
        %v2473 = vpop.f32.mrb[0].mxu0
        %v2474 = vadd.f32 0.0, %v2473
        %v2475 = vpop.f32.mrb[0].mxu0
        %2476 = vmatprep.mubr.f32.mxu0 0.0
        %2477 = vmatmul.mubr.f32.gmra.mrb[0].mxu0 %v2369
        %v2478 = vpop.f32.mrb[0].mxu0
        %v2479 = vadd.f32 0.0, %v2478
        %v2480 = vpop.f32.mrb[0].mxu0
        %2481 = vmatprep.mubr.f32.mxu0 0.0
        %2482 = vmatmul.mubr.f32.gmra.mrb[0].mxu0 %v2372
        %v2483 = vpop.f32.mrb[0].mxu0
        %v2484 = vadd.f32 0.0, %v2483
        %v2485 = vpop.f32.mrb[0].mxu0
        %2486 = vmatprep.mubr.f32.mxu0 0.0
        %2487 = vmatmul.mubr.f32.gmra.mrb[0].mxu0 %v2375
        %v2488 = vpop.f32.mrb[0].mxu0
        %v2489 = vadd.f32 0.0, %v2488
        %v2490 = vpop.f32.mrb[0].mxu0
        %2491 = vmatprep.mubr.f32.mxu0 0.0
        %2492 = vmatmul.mubr.f32.gmra.mrb[0].mxu0 %v2378
        %v2493 = vpop.f32.mrb[0].mxu0
        %v2494 = vadd.f32 0.0, %v2493
        %v2495 = vpop.f32.mrb[0].mxu0
        %2496 = vmatprep.mubr.f32.mxu0 0.0
        %2497 = vmatmul.mubr.f32.gmra.mrb[0].mxu0 %v2381
        %v2498 = vpop.f32.mrb[0].mxu0
        %v2499 = vadd.f32 0.0, %v2498
        %v2500 = vpop.f32.mrb[0].mxu0
        %2501 = vmatprep.mubr.f32.mxu0 0.0
        %2502 = vmatmul.mubr.f32.gmra.mrb[0].mxu0 %v2384
        %v2503 = vpop.f32.mrb[0].mxu0
        %v2504 = vadd.f32 0.0, %v2503
        %v2505 = vpop.f32.mrb[0].mxu0
        %2506 = vmatprep.mubr.f32.mxu0 0.0
        %2507 = vmatmul.mubr.f32.gmra.mrb[0].mxu0 %v2387
        %v2508 = vpop.f32.mrb[0].mxu0
        %v2509 = vadd.f32 0.0, %v2508
        %v2510 = vpop.f32.mrb[0].mxu0
        %2511 = vmatprep.mubr.f32.mxu0 0.0
        %2512 = vmatmul.mubr.f32.gmra.mrb[0].mxu0 %v2390
        %v2513 = vpop.f32.mrb[0].mxu0
        %v2514 = vadd.f32 0.0, %v2513
        %v2515 = vpop.f32.mrb[0].mxu0
        %2516 = vdwg.mxu0
        %v2518 = vsel %vm1067, %v983, 0
        %v2521 = vsel %vm1067, %v984, 0
        %v2524 = vsel %vm1067, %v985, 0
        %v2527 = vsel %vm1067, %v986, 0
        %v2530 = vsel %vm1067, %v987, 0
        %v2533 = vsel %vm1067, %v988, 0
        %v2536 = vsel %vm1067, %v989, 0
        %v2539 = vsel %vm1067, %v990, 0
        %v2542 = vsel %vm1067, %v991, 0
        %v2545 = vsel %vm1067, %v992, 0
        %v2548 = vsel %vm1067, %v993, 0
        %v2551 = vsel %vm1067, %v994, 0
        %2553 = vmatprep.subr.mxu0 0.0
        %2554 = vmatpush1.msra.mxu0 %v868
        %2555 = vmatprep.subr.mxu0 0.0
        %2556 = vmatpush1.msra.mxu0 0.0
        %2557 = vmatprep.subr.mxu0 0.0
        %2558 = vmatpush1.msra.mxu0 0.0
        %2559 = vmatprep.subr.mxu0 0.0
        %2560 = vmatpush1.msra.mxu0 0.0
        %2561 = vmatprep.subr.mxu0 0.0
        %2562 = vmatpush1.msra.mxu0 0.0
        %2563 = vmatprep.subr.mxu0 0.0
        %2564 = vmatpush1.msra.mxu0 0.0
        %2565 = vmatprep.subr.mxu0 0.0
        %2566 = vmatpush1.msra.mxu0 0.0
        %2567 = vmatprep.subr.mxu0 0.0
        %2568 = vmatpush1.msra.mxu0 0.0
        %2569 = vmatprep.subr.mxu0 0.0
        %2570 = vmatpush1.msra.mxu0 0.0
        %2571 = vmatprep.subr.mxu0 0.0
        %2572 = vmatpush1.msra.mxu0 0.0
        %2573 = vmatprep.subr.mxu0 0.0
        %2574 = vmatpush1.msra.mxu0 0.0
        %2575 = vmatprep.subr.mxu0 0.0
        %2576 = vmatpush1.msra.mxu0 0.0
        %2577 = vmatprep.subr.mxu0 0.0
        %2578 = vmatpush1.msra.mxu0 0.0
        %2579 = vmatprep.subr.mxu0 0.0
        %2580 = vmatpush1.msra.mxu0 0.0
        %2581 = vmatprep.subr.mxu0 0.0
        %2582 = vmatpush1.msra.mxu0 0.0
        %2583 = vmatprep.subr.mxu0 0.0
        %2584 = vmatpush1.msra.mxu0 0.0
        %2585 = vmatprep.subr.mxu0 0.0
        %2586 = vmatpush1.msra.mxu0 0.0
        %2587 = vmatprep.subr.mxu0 0.0
        %2588 = vmatpush1.msra.mxu0 0.0
        %2589 = vmatprep.subr.mxu0 0.0
        %2590 = vmatpush1.msra.mxu0 0.0
        %2591 = vmatprep.subr.mxu0 0.0
        %2592 = vmatpush1.msra.mxu0 0.0
        %2593 = vmatprep.subr.mxu0 0.0
        %2594 = vmatpush1.msra.mxu0 0.0
        %2595 = vmatprep.subr.mxu0 0.0
        %2596 = vmatpush1.msra.mxu0 0.0
        %2597 = vmatprep.subr.mxu0 0.0
        %2598 = vmatpush1.msra.mxu0 0.0
        %2599 = vmatprep.subr.mxu0 0.0
        %2600 = vmatpush1.msra.mxu0 0.0
        %2601 = vmatprep.subr.mxu0 0.0
        %2602 = vmatpush1.msra.mxu0 0.0
        %2603 = vmatprep.subr.mxu0 0.0
        %2604 = vmatpush1.msra.mxu0 0.0
        %2605 = vmatprep.subr.mxu0 0.0
        %2606 = vmatpush1.msra.mxu0 0.0
        %2607 = vmatprep.subr.mxu0 0.0
        %2608 = vmatpush1.msra.mxu0 0.0
        %2609 = vmatprep.subr.mxu0 0.0
        %2610 = vmatpush1.msra.mxu0 0.0
        %2611 = vmatprep.subr.mxu0 0.0
        %2612 = vmatpush1.msra.mxu0 0.0
        %2613 = vmatprep.subr.mxu0 0.0
        %2614 = vmatpush1.msra.mxu0 0.0
        %2615 = vmatprep.subr.mxu0 0.0
        %2616 = vmatpush1.msra.mxu0 0.0
        %2617 = vmatprep.mubr.f32.mxu0 0.0
        %2618 = vmatmul.mubr.f32.gmra.mrb[0].mxu0 %v2518
        %v2619 = vpop.f32.mrb[0].mxu0
        %v2620 = vadd.f32 0.0, %v2619
        %v2621 = vpop.f32.mrb[0].mxu0
        %2622 = vmatprep.mubr.f32.mxu0 0.0
        %2623 = vmatmul.mubr.f32.gmra.mrb[0].mxu0 %v2521
        %v2624 = vpop.f32.mrb[0].mxu0
        %v2625 = vadd.f32 0.0, %v2624
        %v2626 = vpop.f32.mrb[0].mxu0
        %2627 = vmatprep.mubr.f32.mxu0 0.0
        %2628 = vmatmul.mubr.f32.gmra.mrb[0].mxu0 %v2524
        %v2629 = vpop.f32.mrb[0].mxu0
        %v2630 = vadd.f32 0.0, %v2629
        %v2631 = vpop.f32.mrb[0].mxu0
        %2632 = vmatprep.mubr.f32.mxu0 0.0
        %2633 = vmatmul.mubr.f32.gmra.mrb[0].mxu0 %v2527
        %v2634 = vpop.f32.mrb[0].mxu0
        %v2635 = vadd.f32 0.0, %v2634
        %v2636 = vpop.f32.mrb[0].mxu0
        %2637 = vmatprep.mubr.f32.mxu0 0.0
        %2638 = vmatmul.mubr.f32.gmra.mrb[0].mxu0 %v2530
        %v2639 = vpop.f32.mrb[0].mxu0
        %v2640 = vadd.f32 0.0, %v2639
        %v2641 = vpop.f32.mrb[0].mxu0
        %2642 = vmatprep.mubr.f32.mxu0 0.0
        %2643 = vmatmul.mubr.f32.gmra.mrb[0].mxu0 %v2533
        %v2644 = vpop.f32.mrb[0].mxu0
        %v2645 = vadd.f32 0.0, %v2644
        %v2646 = vpop.f32.mrb[0].mxu0
        %2647 = vmatprep.mubr.f32.mxu0 0.0
        %2648 = vmatmul.mubr.f32.gmra.mrb[0].mxu0 %v2536
        %v2649 = vpop.f32.mrb[0].mxu0
        %v2650 = vadd.f32 0.0, %v2649
        %v2651 = vpop.f32.mrb[0].mxu0
        %2652 = vmatprep.mubr.f32.mxu0 0.0
        %2653 = vmatmul.mubr.f32.gmra.mrb[0].mxu0 %v2539
        %v2654 = vpop.f32.mrb[0].mxu0
        %v2655 = vadd.f32 0.0, %v2654
        %v2656 = vpop.f32.mrb[0].mxu0
        %2657 = vmatprep.mubr.f32.mxu0 0.0
        %2658 = vmatmul.mubr.f32.gmra.mrb[0].mxu0 %v2542
        %v2659 = vpop.f32.mrb[0].mxu0
        %v2660 = vadd.f32 0.0, %v2659
        %v2661 = vpop.f32.mrb[0].mxu0
        %2662 = vmatprep.mubr.f32.mxu0 0.0
        %2663 = vmatmul.mubr.f32.gmra.mrb[0].mxu0 %v2545
        %v2664 = vpop.f32.mrb[0].mxu0
        %v2665 = vadd.f32 0.0, %v2664
        %v2666 = vpop.f32.mrb[0].mxu0
        %2667 = vmatprep.mubr.f32.mxu0 0.0
        %2668 = vmatmul.mubr.f32.gmra.mrb[0].mxu0 %v2548
        %v2669 = vpop.f32.mrb[0].mxu0
        %v2670 = vadd.f32 0.0, %v2669
        %v2671 = vpop.f32.mrb[0].mxu0
        %2672 = vmatprep.mubr.f32.mxu0 0.0
        %2673 = vmatmul.mubr.f32.gmra.mrb[0].mxu0 %v2551
        %v2674 = vpop.f32.mrb[0].mxu0
        %v2675 = vadd.f32 0.0, %v2674
        %v2676 = vpop.f32.mrb[0].mxu0
        %2677 = vdwg.mxu0
        %v2679 = vsel %vm1067, %v995, 0
        %v2682 = vsel %vm1067, %v996, 0
        %v2685 = vsel %vm1067, %v997, 0
        %v2688 = vsel %vm1067, %v998, 0
        %v2691 = vsel %vm1067, %v999, 0
        %v2694 = vsel %vm1067, %v1000, 0
        %v2697 = vsel %vm1067, %v1001, 0
        %v2700 = vsel %vm1067, %v1002, 0
        %v2703 = vsel %vm1067, %v1003, 0
        %v2706 = vsel %vm1067, %v1004, 0
        %v2709 = vsel %vm1067, %v1005, 0
        %v2712 = vsel %vm1067, %v1006, 0
        %2714 = vmatprep.subr.mxu0 0.0
        %2715 = vmatpush1.msra.mxu0 %v869
        %2716 = vmatprep.subr.mxu0 0.0
        %2717 = vmatpush1.msra.mxu0 0.0
        %2718 = vmatprep.subr.mxu0 0.0
        %2719 = vmatpush1.msra.mxu0 0.0
        %2720 = vmatprep.subr.mxu0 0.0
        %2721 = vmatpush1.msra.mxu0 0.0
        %2722 = vmatprep.subr.mxu0 0.0
        %2723 = vmatpush1.msra.mxu0 0.0
        %2724 = vmatprep.subr.mxu0 0.0
        %2725 = vmatpush1.msra.mxu0 0.0
        %2726 = vmatprep.subr.mxu0 0.0
        %2727 = vmatpush1.msra.mxu0 0.0
        %2728 = vmatprep.subr.mxu0 0.0
        %2729 = vmatpush1.msra.mxu0 0.0
        %2730 = vmatprep.subr.mxu0 0.0
        %2731 = vmatpush1.msra.mxu0 0.0
        %2732 = vmatprep.subr.mxu0 0.0
        %2733 = vmatpush1.msra.mxu0 0.0
        %2734 = vmatprep.subr.mxu0 0.0
        %2735 = vmatpush1.msra.mxu0 0.0
        %2736 = vmatprep.subr.mxu0 0.0
        %2737 = vmatpush1.msra.mxu0 0.0
        %2738 = vmatprep.subr.mxu0 0.0
        %2739 = vmatpush1.msra.mxu0 0.0
        %2740 = vmatprep.subr.mxu0 0.0
        %2741 = vmatpush1.msra.mxu0 0.0
        %2742 = vmatprep.subr.mxu0 0.0
        %2743 = vmatpush1.msra.mxu0 0.0
        %2744 = vmatprep.subr.mxu0 0.0
        %2745 = vmatpush1.msra.mxu0 0.0
        %2746 = vmatprep.subr.mxu0 0.0
        %2747 = vmatpush1.msra.mxu0 0.0
        %2748 = vmatprep.subr.mxu0 0.0
        %2749 = vmatpush1.msra.mxu0 0.0
        %2750 = vmatprep.subr.mxu0 0.0
        %2751 = vmatpush1.msra.mxu0 0.0
        %2752 = vmatprep.subr.mxu0 0.0
        %2753 = vmatpush1.msra.mxu0 0.0
        %2754 = vmatprep.subr.mxu0 0.0
        %2755 = vmatpush1.msra.mxu0 0.0
        %2756 = vmatprep.subr.mxu0 0.0
        %2757 = vmatpush1.msra.mxu0 0.0
        %2758 = vmatprep.subr.mxu0 0.0
        %2759 = vmatpush1.msra.mxu0 0.0
        %2760 = vmatprep.subr.mxu0 0.0
        %2761 = vmatpush1.msra.mxu0 0.0
        %2762 = vmatprep.subr.mxu0 0.0
        %2763 = vmatpush1.msra.mxu0 0.0
        %2764 = vmatprep.subr.mxu0 0.0
        %2765 = vmatpush1.msra.mxu0 0.0
        %2766 = vmatprep.subr.mxu0 0.0
        %2767 = vmatpush1.msra.mxu0 0.0
        %2768 = vmatprep.subr.mxu0 0.0
        %2769 = vmatpush1.msra.mxu0 0.0
        %2770 = vmatprep.subr.mxu0 0.0
        %2771 = vmatpush1.msra.mxu0 0.0
        %2772 = vmatprep.subr.mxu0 0.0
        %2773 = vmatpush1.msra.mxu0 0.0
        %2774 = vmatprep.subr.mxu0 0.0
        %2775 = vmatpush1.msra.mxu0 0.0
        %2776 = vmatprep.subr.mxu0 0.0
        %2777 = vmatpush1.msra.mxu0 0.0
        %2778 = vmatprep.mubr.f32.mxu0 0.0
        %2779 = vmatmul.mubr.f32.gmra.mrb[0].mxu0 %v2679
        %v2780 = vpop.f32.mrb[0].mxu0
        %v2781 = vadd.f32 0.0, %v2780
        %v2782 = vpop.f32.mrb[0].mxu0
        %2783 = vmatprep.mubr.f32.mxu0 0.0
        %2784 = vmatmul.mubr.f32.gmra.mrb[0].mxu0 %v2682
        %v2785 = vpop.f32.mrb[0].mxu0
        %v2786 = vadd.f32 0.0, %v2785
        %v2787 = vpop.f32.mrb[0].mxu0
        %2788 = vmatprep.mubr.f32.mxu0 0.0
        %2789 = vmatmul.mubr.f32.gmra.mrb[0].mxu0 %v2685
        %v2790 = vpop.f32.mrb[0].mxu0
        %v2791 = vadd.f32 0.0, %v2790
        %v2792 = vpop.f32.mrb[0].mxu0
        %2793 = vmatprep.mubr.f32.mxu0 0.0
        %2794 = vmatmul.mubr.f32.gmra.mrb[0].mxu0 %v2688
        %v2795 = vpop.f32.mrb[0].mxu0
        %v2796 = vadd.f32 0.0, %v2795
        %v2797 = vpop.f32.mrb[0].mxu0
        %2798 = vmatprep.mubr.f32.mxu0 0.0
        %2799 = vmatmul.mubr.f32.gmra.mrb[0].mxu0 %v2691
        %v2800 = vpop.f32.mrb[0].mxu0
        %v2801 = vadd.f32 0.0, %v2800
        %v2802 = vpop.f32.mrb[0].mxu0
        %2803 = vmatprep.mubr.f32.mxu0 0.0
        %2804 = vmatmul.mubr.f32.gmra.mrb[0].mxu0 %v2694
        %v2805 = vpop.f32.mrb[0].mxu0
        %v2806 = vadd.f32 0.0, %v2805
        %v2807 = vpop.f32.mrb[0].mxu0
        %2808 = vmatprep.mubr.f32.mxu0 0.0
        %2809 = vmatmul.mubr.f32.gmra.mrb[0].mxu0 %v2697
        %v2810 = vpop.f32.mrb[0].mxu0
        %v2811 = vadd.f32 0.0, %v2810
        %v2812 = vpop.f32.mrb[0].mxu0
        %2813 = vmatprep.mubr.f32.mxu0 0.0
        %2814 = vmatmul.mubr.f32.gmra.mrb[0].mxu0 %v2700
        %v2815 = vpop.f32.mrb[0].mxu0
        %v2816 = vadd.f32 0.0, %v2815
        %v2817 = vpop.f32.mrb[0].mxu0
        %2818 = vmatprep.mubr.f32.mxu0 0.0
        %2819 = vmatmul.mubr.f32.gmra.mrb[0].mxu0 %v2703
        %v2820 = vpop.f32.mrb[0].mxu0
        %v2821 = vadd.f32 0.0, %v2820
        %v2822 = vpop.f32.mrb[0].mxu0
        %2823 = vmatprep.mubr.f32.mxu0 0.0
        %2824 = vmatmul.mubr.f32.gmra.mrb[0].mxu0 %v2706
        %v2825 = vpop.f32.mrb[0].mxu0
        %v2826 = vadd.f32 0.0, %v2825
        %v2827 = vpop.f32.mrb[0].mxu0
        %2828 = vmatprep.mubr.f32.mxu0 0.0
        %2829 = vmatmul.mubr.f32.gmra.mrb[0].mxu0 %v2709
        %v2830 = vpop.f32.mrb[0].mxu0
        %v2831 = vadd.f32 0.0, %v2830
        %v2832 = vpop.f32.mrb[0].mxu0
        %2833 = vmatprep.mubr.f32.mxu0 0.0
        %2834 = vmatmul.mubr.f32.gmra.mrb[0].mxu0 %v2712
        %v2835 = vpop.f32.mrb[0].mxu0
        %v2836 = vadd.f32 0.0, %v2835
        %v2837 = vpop.f32.mrb[0].mxu0
        %2838 = vdwg.mxu0
        %v2840 = vsel %vm1067, %v1007, 0
        %v2843 = vsel %vm1067, %v1008, 0
        %v2846 = vsel %vm1067, %v1009, 0
        %v2849 = vsel %vm1067, %v1010, 0
        %v2852 = vsel %vm1067, %v1011, 0
        %v2855 = vsel %vm1067, %v1012, 0
        %v2858 = vsel %vm1067, %v1013, 0
        %v2861 = vsel %vm1067, %v1014, 0
        %v2864 = vsel %vm1067, %v1015, 0
        %v2867 = vsel %vm1067, %v1016, 0
        %v2870 = vsel %vm1067, %v1017, 0
        %v2873 = vsel %vm1067, %v1018, 0
        %2875 = vmatprep.subr.mxu0 0.0
        %2876 = vmatpush1.msra.mxu0 %v870
        %2877 = vmatprep.subr.mxu0 0.0
        %2878 = vmatpush1.msra.mxu0 0.0
        %2879 = vmatprep.subr.mxu0 0.0
        %2880 = vmatpush1.msra.mxu0 0.0
        %2881 = vmatprep.subr.mxu0 0.0
        %2882 = vmatpush1.msra.mxu0 0.0
        %2883 = vmatprep.subr.mxu0 0.0
        %2884 = vmatpush1.msra.mxu0 0.0
        %2885 = vmatprep.subr.mxu0 0.0
        %2886 = vmatpush1.msra.mxu0 0.0
        %2887 = vmatprep.subr.mxu0 0.0
        %2888 = vmatpush1.msra.mxu0 0.0
        %2889 = vmatprep.subr.mxu0 0.0
        %2890 = vmatpush1.msra.mxu0 0.0
        %2891 = vmatprep.subr.mxu0 0.0
        %2892 = vmatpush1.msra.mxu0 0.0
        %2893 = vmatprep.subr.mxu0 0.0
        %2894 = vmatpush1.msra.mxu0 0.0
        %2895 = vmatprep.subr.mxu0 0.0
        %2896 = vmatpush1.msra.mxu0 0.0
        %2897 = vmatprep.subr.mxu0 0.0
        %2898 = vmatpush1.msra.mxu0 0.0
        %2899 = vmatprep.subr.mxu0 0.0
        %2900 = vmatpush1.msra.mxu0 0.0
        %2901 = vmatprep.subr.mxu0 0.0
        %2902 = vmatpush1.msra.mxu0 0.0
        %2903 = vmatprep.subr.mxu0 0.0
        %2904 = vmatpush1.msra.mxu0 0.0
        %2905 = vmatprep.subr.mxu0 0.0
        %2906 = vmatpush1.msra.mxu0 0.0
        %2907 = vmatprep.subr.mxu0 0.0
        %2908 = vmatpush1.msra.mxu0 0.0
        %2909 = vmatprep.subr.mxu0 0.0
        %2910 = vmatpush1.msra.mxu0 0.0
        %2911 = vmatprep.subr.mxu0 0.0
        %2912 = vmatpush1.msra.mxu0 0.0
        %2913 = vmatprep.subr.mxu0 0.0
        %2914 = vmatpush1.msra.mxu0 0.0
        %2915 = vmatprep.subr.mxu0 0.0
        %2916 = vmatpush1.msra.mxu0 0.0
        %2917 = vmatprep.subr.mxu0 0.0
        %2918 = vmatpush1.msra.mxu0 0.0
        %2919 = vmatprep.subr.mxu0 0.0
        %2920 = vmatpush1.msra.mxu0 0.0
        %2921 = vmatprep.subr.mxu0 0.0
        %2922 = vmatpush1.msra.mxu0 0.0
        %2923 = vmatprep.subr.mxu0 0.0
        %2924 = vmatpush1.msra.mxu0 0.0
        %2925 = vmatprep.subr.mxu0 0.0
        %2926 = vmatpush1.msra.mxu0 0.0
        %2927 = vmatprep.subr.mxu0 0.0
        %2928 = vmatpush1.msra.mxu0 0.0
        %2929 = vmatprep.subr.mxu0 0.0
        %2930 = vmatpush1.msra.mxu0 0.0
        %2931 = vmatprep.subr.mxu0 0.0
        %2932 = vmatpush1.msra.mxu0 0.0
        %2933 = vmatprep.subr.mxu0 0.0
        %2934 = vmatpush1.msra.mxu0 0.0
        %2935 = vmatprep.subr.mxu0 0.0
        %2936 = vmatpush1.msra.mxu0 0.0
        %2937 = vmatprep.subr.mxu0 0.0
        %2938 = vmatpush1.msra.mxu0 0.0
        %2939 = vmatprep.mubr.f32.mxu0 0.0
        %2940 = vmatmul.mubr.f32.gmra.mrb[0].mxu0 %v2840
        %v2941 = vpop.f32.mrb[0].mxu0
        %v2942 = vadd.f32 0.0, %v2941
        %v2943 = vpop.f32.mrb[0].mxu0
        %2944 = vmatprep.mubr.f32.mxu0 0.0
        %2945 = vmatmul.mubr.f32.gmra.mrb[0].mxu0 %v2843
        %v2946 = vpop.f32.mrb[0].mxu0
        %v2947 = vadd.f32 0.0, %v2946
        %v2948 = vpop.f32.mrb[0].mxu0
        %2949 = vmatprep.mubr.f32.mxu0 0.0
        %2950 = vmatmul.mubr.f32.gmra.mrb[0].mxu0 %v2846
        %v2951 = vpop.f32.mrb[0].mxu0
        %v2952 = vadd.f32 0.0, %v2951
        %v2953 = vpop.f32.mrb[0].mxu0
        %2954 = vmatprep.mubr.f32.mxu0 0.0
        %2955 = vmatmul.mubr.f32.gmra.mrb[0].mxu0 %v2849
        %v2956 = vpop.f32.mrb[0].mxu0
        %v2957 = vadd.f32 0.0, %v2956
        %v2958 = vpop.f32.mrb[0].mxu0
        %2959 = vmatprep.mubr.f32.mxu0 0.0
        %2960 = vmatmul.mubr.f32.gmra.mrb[0].mxu0 %v2852
        %v2961 = vpop.f32.mrb[0].mxu0
        %v2962 = vadd.f32 0.0, %v2961
        %v2963 = vpop.f32.mrb[0].mxu0
        %2964 = vmatprep.mubr.f32.mxu0 0.0
        %2965 = vmatmul.mubr.f32.gmra.mrb[0].mxu0 %v2855
        %v2966 = vpop.f32.mrb[0].mxu0
        %v2967 = vadd.f32 0.0, %v2966
        %v2968 = vpop.f32.mrb[0].mxu0
        %2969 = vmatprep.mubr.f32.mxu0 0.0
        %2970 = vmatmul.mubr.f32.gmra.mrb[0].mxu0 %v2858
        %v2971 = vpop.f32.mrb[0].mxu0
        %v2972 = vadd.f32 0.0, %v2971
        %v2973 = vpop.f32.mrb[0].mxu0
        %2974 = vmatprep.mubr.f32.mxu0 0.0
        %2975 = vmatmul.mubr.f32.gmra.mrb[0].mxu0 %v2861
        %v2976 = vpop.f32.mrb[0].mxu0
        %v2977 = vadd.f32 0.0, %v2976
        %v2978 = vpop.f32.mrb[0].mxu0
        %2979 = vmatprep.mubr.f32.mxu0 0.0
        %2980 = vmatmul.mubr.f32.gmra.mrb[0].mxu0 %v2864
        %v2981 = vpop.f32.mrb[0].mxu0
        %v2982 = vadd.f32 0.0, %v2981
        %v2983 = vpop.f32.mrb[0].mxu0
        %2984 = vmatprep.mubr.f32.mxu0 0.0
        %2985 = vmatmul.mubr.f32.gmra.mrb[0].mxu0 %v2867
        %v2986 = vpop.f32.mrb[0].mxu0
        %v2987 = vadd.f32 0.0, %v2986
        %v2988 = vpop.f32.mrb[0].mxu0
        %2989 = vmatprep.mubr.f32.mxu0 0.0
        %2990 = vmatmul.mubr.f32.gmra.mrb[0].mxu0 %v2870
        %v2991 = vpop.f32.mrb[0].mxu0
        %v2992 = vadd.f32 0.0, %v2991
        %v2993 = vpop.f32.mrb[0].mxu0
        %2994 = vmatprep.mubr.f32.mxu0 0.0
        %2995 = vmatmul.mubr.f32.gmra.mrb[0].mxu0 %v2873
        %v2996 = vpop.f32.mrb[0].mxu0
        %v2997 = vadd.f32 0.0, %v2996
        %v2998 = vpop.f32.mrb[0].mxu0
        %2999 = vdwg.mxu0
        %v3001 = vsel %vm1067, %v1019, 0
        %v3004 = vsel %vm1067, %v1020, 0
        %v3007 = vsel %vm1067, %v1021, 0
        %v3010 = vsel %vm1067, %v1022, 0
        %v3013 = vsel %vm1067, %v1023, 0
        %v3016 = vsel %vm1067, %v1024, 0
        %v3019 = vsel %vm1067, %v1025, 0
        %v3022 = vsel %vm1067, %v1026, 0
        %v3025 = vsel %vm1067, %v1027, 0
        %v3028 = vsel %vm1067, %v1028, 0
        %v3031 = vsel %vm1067, %v1029, 0
        %v3034 = vsel %vm1067, %v1030, 0
        %3036 = vmatprep.subr.mxu0 0.0
        %3037 = vmatpush1.msra.mxu0 %v871
        %3038 = vmatprep.subr.mxu0 0.0
        %3039 = vmatpush1.msra.mxu0 0.0
        %3040 = vmatprep.subr.mxu0 0.0
        %3041 = vmatpush1.msra.mxu0 0.0
        %3042 = vmatprep.subr.mxu0 0.0
        %3043 = vmatpush1.msra.mxu0 0.0
        %3044 = vmatprep.subr.mxu0 0.0
        %3045 = vmatpush1.msra.mxu0 0.0
        %3046 = vmatprep.subr.mxu0 0.0
        %3047 = vmatpush1.msra.mxu0 0.0
        %3048 = vmatprep.subr.mxu0 0.0
        %3049 = vmatpush1.msra.mxu0 0.0
        %3050 = vmatprep.subr.mxu0 0.0
        %3051 = vmatpush1.msra.mxu0 0.0
        %3052 = vmatprep.subr.mxu0 0.0
        %3053 = vmatpush1.msra.mxu0 0.0
        %3054 = vmatprep.subr.mxu0 0.0
        %3055 = vmatpush1.msra.mxu0 0.0
        %3056 = vmatprep.subr.mxu0 0.0
        %3057 = vmatpush1.msra.mxu0 0.0
        %3058 = vmatprep.subr.mxu0 0.0
        %3059 = vmatpush1.msra.mxu0 0.0
        %3060 = vmatprep.subr.mxu0 0.0
        %3061 = vmatpush1.msra.mxu0 0.0
        %3062 = vmatprep.subr.mxu0 0.0
        %3063 = vmatpush1.msra.mxu0 0.0
        %3064 = vmatprep.subr.mxu0 0.0
        %3065 = vmatpush1.msra.mxu0 0.0
        %3066 = vmatprep.subr.mxu0 0.0
        %3067 = vmatpush1.msra.mxu0 0.0
        %3068 = vmatprep.subr.mxu0 0.0
        %3069 = vmatpush1.msra.mxu0 0.0
        %3070 = vmatprep.subr.mxu0 0.0
        %3071 = vmatpush1.msra.mxu0 0.0
        %3072 = vmatprep.subr.mxu0 0.0
        %3073 = vmatpush1.msra.mxu0 0.0
        %3074 = vmatprep.subr.mxu0 0.0
        %3075 = vmatpush1.msra.mxu0 0.0
        %3076 = vmatprep.subr.mxu0 0.0
        %3077 = vmatpush1.msra.mxu0 0.0
        %3078 = vmatprep.subr.mxu0 0.0
        %3079 = vmatpush1.msra.mxu0 0.0
        %3080 = vmatprep.subr.mxu0 0.0
        %3081 = vmatpush1.msra.mxu0 0.0
        %3082 = vmatprep.subr.mxu0 0.0
        %3083 = vmatpush1.msra.mxu0 0.0
        %3084 = vmatprep.subr.mxu0 0.0
        %3085 = vmatpush1.msra.mxu0 0.0
        %3086 = vmatprep.subr.mxu0 0.0
        %3087 = vmatpush1.msra.mxu0 0.0
        %3088 = vmatprep.subr.mxu0 0.0
        %3089 = vmatpush1.msra.mxu0 0.0
        %3090 = vmatprep.subr.mxu0 0.0
        %3091 = vmatpush1.msra.mxu0 0.0
        %3092 = vmatprep.subr.mxu0 0.0
        %3093 = vmatpush1.msra.mxu0 0.0
        %3094 = vmatprep.subr.mxu0 0.0
        %3095 = vmatpush1.msra.mxu0 0.0
        %3096 = vmatprep.subr.mxu0 0.0
        %3097 = vmatpush1.msra.mxu0 0.0
        %3098 = vmatprep.subr.mxu0 0.0
        %3099 = vmatpush1.msra.mxu0 0.0
        %3100 = vmatprep.mubr.f32.mxu0 0.0
        %3101 = vmatmul.mubr.f32.gmra.mrb[0].mxu0 %v3001
        %v3102 = vpop.f32.mrb[0].mxu0
        %v3103 = vadd.f32 0.0, %v3102
        %v3104 = vpop.f32.mrb[0].mxu0
        %3105 = vmatprep.mubr.f32.mxu0 0.0
        %3106 = vmatmul.mubr.f32.gmra.mrb[0].mxu0 %v3004
        %v3107 = vpop.f32.mrb[0].mxu0
        %v3108 = vadd.f32 0.0, %v3107
        %v3109 = vpop.f32.mrb[0].mxu0
        %3110 = vmatprep.mubr.f32.mxu0 0.0
        %3111 = vmatmul.mubr.f32.gmra.mrb[0].mxu0 %v3007
        %v3112 = vpop.f32.mrb[0].mxu0
        %v3113 = vadd.f32 0.0, %v3112
        %v3114 = vpop.f32.mrb[0].mxu0
        %3115 = vmatprep.mubr.f32.mxu0 0.0
        %3116 = vmatmul.mubr.f32.gmra.mrb[0].mxu0 %v3010
        %v3117 = vpop.f32.mrb[0].mxu0
        %v3118 = vadd.f32 0.0, %v3117
        %v3119 = vpop.f32.mrb[0].mxu0
        %3120 = vmatprep.mubr.f32.mxu0 0.0
        %3121 = vmatmul.mubr.f32.gmra.mrb[0].mxu0 %v3013
        %v3122 = vpop.f32.mrb[0].mxu0
        %v3123 = vadd.f32 0.0, %v3122
        %v3124 = vpop.f32.mrb[0].mxu0
        %3125 = vmatprep.mubr.f32.mxu0 0.0
        %3126 = vmatmul.mubr.f32.gmra.mrb[0].mxu0 %v3016
        %v3127 = vpop.f32.mrb[0].mxu0
        %v3128 = vadd.f32 0.0, %v3127
        %v3129 = vpop.f32.mrb[0].mxu0
        %3130 = vmatprep.mubr.f32.mxu0 0.0
        %3131 = vmatmul.mubr.f32.gmra.mrb[0].mxu0 %v3019
        %v3132 = vpop.f32.mrb[0].mxu0
        %v3133 = vadd.f32 0.0, %v3132
        %v3134 = vpop.f32.mrb[0].mxu0
        %3135 = vmatprep.mubr.f32.mxu0 0.0
        %3136 = vmatmul.mubr.f32.gmra.mrb[0].mxu0 %v3022
        %v3137 = vpop.f32.mrb[0].mxu0
        %v3138 = vadd.f32 0.0, %v3137
        %v3139 = vpop.f32.mrb[0].mxu0
        %3140 = vmatprep.mubr.f32.mxu0 0.0
        %3141 = vmatmul.mubr.f32.gmra.mrb[0].mxu0 %v3025
        %v3142 = vpop.f32.mrb[0].mxu0
        %v3143 = vadd.f32 0.0, %v3142
        %v3144 = vpop.f32.mrb[0].mxu0
        %3145 = vmatprep.mubr.f32.mxu0 0.0
        %3146 = vmatmul.mubr.f32.gmra.mrb[0].mxu0 %v3028
        %v3147 = vpop.f32.mrb[0].mxu0
        %v3148 = vadd.f32 0.0, %v3147
        %v3149 = vpop.f32.mrb[0].mxu0
        %3150 = vmatprep.mubr.f32.mxu0 0.0
        %3151 = vmatmul.mubr.f32.gmra.mrb[0].mxu0 %v3031
        %v3152 = vpop.f32.mrb[0].mxu0
        %v3153 = vadd.f32 0.0, %v3152
        %v3154 = vpop.f32.mrb[0].mxu0
        %3155 = vmatprep.mubr.f32.mxu0 0.0
        %3156 = vmatmul.mubr.f32.gmra.mrb[0].mxu0 %v3034
        %v3157 = vpop.f32.mrb[0].mxu0
        %v3158 = vadd.f32 0.0, %v3157
        %v3159 = vpop.f32.mrb[0].mxu0
        %3160 = vdwg.mxu0
        %v3162 = vsel %vm1067, %v1031, 0
        %v3165 = vsel %vm1067, %v1032, 0
        %v3168 = vsel %vm1067, %v1033, 0
        %v3171 = vsel %vm1067, %v1034, 0
        %v3174 = vsel %vm1067, %v1035, 0
        %v3177 = vsel %vm1067, %v1036, 0
        %v3180 = vsel %vm1067, %v1037, 0
        %v3183 = vsel %vm1067, %v1038, 0
        %v3186 = vsel %vm1067, %v1039, 0
        %v3189 = vsel %vm1067, %v1040, 0
        %v3192 = vsel %vm1067, %v1041, 0
        %v3195 = vsel %vm1067, %v1042, 0
        %3197 = vmatprep.subr.mxu0 0.0
        %3198 = vmatpush1.msra.mxu0 %v872
        %3199 = vmatprep.subr.mxu0 0.0
        %3200 = vmatpush1.msra.mxu0 0.0
        %3201 = vmatprep.subr.mxu0 0.0
        %3202 = vmatpush1.msra.mxu0 0.0
        %3203 = vmatprep.subr.mxu0 0.0
        %3204 = vmatpush1.msra.mxu0 0.0
        %3205 = vmatprep.subr.mxu0 0.0
        %3206 = vmatpush1.msra.mxu0 0.0
        %3207 = vmatprep.subr.mxu0 0.0
        %3208 = vmatpush1.msra.mxu0 0.0
        %3209 = vmatprep.subr.mxu0 0.0
        %3210 = vmatpush1.msra.mxu0 0.0
        %3211 = vmatprep.subr.mxu0 0.0
        %3212 = vmatpush1.msra.mxu0 0.0
        %3213 = vmatprep.subr.mxu0 0.0
        %3214 = vmatpush1.msra.mxu0 0.0
        %3215 = vmatprep.subr.mxu0 0.0
        %3216 = vmatpush1.msra.mxu0 0.0
        %3217 = vmatprep.subr.mxu0 0.0
        %3218 = vmatpush1.msra.mxu0 0.0
        %3219 = vmatprep.subr.mxu0 0.0
        %3220 = vmatpush1.msra.mxu0 0.0
        %3221 = vmatprep.subr.mxu0 0.0
        %3222 = vmatpush1.msra.mxu0 0.0
        %3223 = vmatprep.subr.mxu0 0.0
        %3224 = vmatpush1.msra.mxu0 0.0
        %3225 = vmatprep.subr.mxu0 0.0
        %3226 = vmatpush1.msra.mxu0 0.0
        %3227 = vmatprep.subr.mxu0 0.0
        %3228 = vmatpush1.msra.mxu0 0.0
        %3229 = vmatprep.subr.mxu0 0.0
        %3230 = vmatpush1.msra.mxu0 0.0
        %3231 = vmatprep.subr.mxu0 0.0
        %3232 = vmatpush1.msra.mxu0 0.0
        %3233 = vmatprep.subr.mxu0 0.0
        %3234 = vmatpush1.msra.mxu0 0.0
        %3235 = vmatprep.subr.mxu0 0.0
        %3236 = vmatpush1.msra.mxu0 0.0
        %3237 = vmatprep.subr.mxu0 0.0
        %3238 = vmatpush1.msra.mxu0 0.0
        %3239 = vmatprep.subr.mxu0 0.0
        %3240 = vmatpush1.msra.mxu0 0.0
        %3241 = vmatprep.subr.mxu0 0.0
        %3242 = vmatpush1.msra.mxu0 0.0
        %3243 = vmatprep.subr.mxu0 0.0
        %3244 = vmatpush1.msra.mxu0 0.0
        %3245 = vmatprep.subr.mxu0 0.0
        %3246 = vmatpush1.msra.mxu0 0.0
        %3247 = vmatprep.subr.mxu0 0.0
        %3248 = vmatpush1.msra.mxu0 0.0
        %3249 = vmatprep.subr.mxu0 0.0
        %3250 = vmatpush1.msra.mxu0 0.0
        %3251 = vmatprep.subr.mxu0 0.0
        %3252 = vmatpush1.msra.mxu0 0.0
        %3253 = vmatprep.subr.mxu0 0.0
        %3254 = vmatpush1.msra.mxu0 0.0
        %3255 = vmatprep.subr.mxu0 0.0
        %3256 = vmatpush1.msra.mxu0 0.0
        %3257 = vmatprep.subr.mxu0 0.0
        %3258 = vmatpush1.msra.mxu0 0.0
        %3259 = vmatprep.subr.mxu0 0.0
        %3260 = vmatpush1.msra.mxu0 0.0
        %3261 = vmatprep.mubr.f32.mxu0 0.0
        %3262 = vmatmul.mubr.f32.gmra.mrb[0].mxu0 %v3162
        %v3263 = vpop.f32.mrb[0].mxu0
        %v3264 = vadd.f32 0.0, %v3263
        %v3265 = vpop.f32.mrb[0].mxu0
        %3266 = vmatprep.mubr.f32.mxu0 0.0
        %3267 = vmatmul.mubr.f32.gmra.mrb[0].mxu0 %v3165
        %v3268 = vpop.f32.mrb[0].mxu0
        %v3269 = vadd.f32 0.0, %v3268
        %v3270 = vpop.f32.mrb[0].mxu0
        %3271 = vmatprep.mubr.f32.mxu0 0.0
        %3272 = vmatmul.mubr.f32.gmra.mrb[0].mxu0 %v3168
        %v3273 = vpop.f32.mrb[0].mxu0
        %v3274 = vadd.f32 0.0, %v3273
        %v3275 = vpop.f32.mrb[0].mxu0
        %3276 = vmatprep.mubr.f32.mxu0 0.0
        %3277 = vmatmul.mubr.f32.gmra.mrb[0].mxu0 %v3171
        %v3278 = vpop.f32.mrb[0].mxu0
        %v3279 = vadd.f32 0.0, %v3278
        %v3280 = vpop.f32.mrb[0].mxu0
        %3281 = vmatprep.mubr.f32.mxu0 0.0
        %3282 = vmatmul.mubr.f32.gmra.mrb[0].mxu0 %v3174
        %v3283 = vpop.f32.mrb[0].mxu0
        %v3284 = vadd.f32 0.0, %v3283
        %v3285 = vpop.f32.mrb[0].mxu0
        %3286 = vmatprep.mubr.f32.mxu0 0.0
        %3287 = vmatmul.mubr.f32.gmra.mrb[0].mxu0 %v3177
        %v3288 = vpop.f32.mrb[0].mxu0
        %v3289 = vadd.f32 0.0, %v3288
        %v3290 = vpop.f32.mrb[0].mxu0
        %3291 = vmatprep.mubr.f32.mxu0 0.0
        %3292 = vmatmul.mubr.f32.gmra.mrb[0].mxu0 %v3180
        %v3293 = vpop.f32.mrb[0].mxu0
        %v3294 = vadd.f32 0.0, %v3293
        %v3295 = vpop.f32.mrb[0].mxu0
        %3296 = vmatprep.mubr.f32.mxu0 0.0
        %3297 = vmatmul.mubr.f32.gmra.mrb[0].mxu0 %v3183
        %v3298 = vpop.f32.mrb[0].mxu0
        %v3299 = vadd.f32 0.0, %v3298
        %v3300 = vpop.f32.mrb[0].mxu0
        %3301 = vmatprep.mubr.f32.mxu0 0.0
        %3302 = vmatmul.mubr.f32.gmra.mrb[0].mxu0 %v3186
        %v3303 = vpop.f32.mrb[0].mxu0
        %v3304 = vadd.f32 0.0, %v3303
        %v3305 = vpop.f32.mrb[0].mxu0
        %3306 = vmatprep.mubr.f32.mxu0 0.0
        %3307 = vmatmul.mubr.f32.gmra.mrb[0].mxu0 %v3189
        %v3308 = vpop.f32.mrb[0].mxu0
        %v3309 = vadd.f32 0.0, %v3308
        %v3310 = vpop.f32.mrb[0].mxu0
        %3311 = vmatprep.mubr.f32.mxu0 0.0
        %3312 = vmatmul.mubr.f32.gmra.mrb[0].mxu0 %v3192
        %v3313 = vpop.f32.mrb[0].mxu0
        %v3314 = vadd.f32 0.0, %v3313
        %v3315 = vpop.f32.mrb[0].mxu0
        %3316 = vmatprep.mubr.f32.mxu0 0.0
        %3317 = vmatmul.mubr.f32.gmra.mrb[0].mxu0 %v3195
        %v3318 = vpop.f32.mrb[0].mxu0
        %v3319 = vadd.f32 0.0, %v3318
        %v3320 = vpop.f32.mrb[0].mxu0
        %3321 = vdwg.mxu0
        %v3323 = vsel %vm1067, %v1043, 0
        %v3326 = vsel %vm1067, %v1044, 0
        %v3329 = vsel %vm1067, %v1045, 0
        %v3332 = vsel %vm1067, %v1046, 0
        %v3335 = vsel %vm1067, %v1047, 0
        %v3338 = vsel %vm1067, %v1048, 0
        %v3341 = vsel %vm1067, %v1049, 0
        %v3344 = vsel %vm1067, %v1050, 0
        %v3347 = vsel %vm1067, %v1051, 0
        %v3350 = vsel %vm1067, %v1052, 0
        %v3353 = vsel %vm1067, %v1053, 0
        %v3356 = vsel %vm1067, %v1054, 0
        %3358 = vmatprep.subr.mxu0 0.0
        %3359 = vmatpush1.msra.mxu0 %v873
        %3360 = vmatprep.subr.mxu0 0.0
        %3361 = vmatpush1.msra.mxu0 0.0
        %3362 = vmatprep.subr.mxu0 0.0
        %3363 = vmatpush1.msra.mxu0 0.0
        %3364 = vmatprep.subr.mxu0 0.0
        %3365 = vmatpush1.msra.mxu0 0.0
        %3366 = vmatprep.subr.mxu0 0.0
        %3367 = vmatpush1.msra.mxu0 0.0
        %3368 = vmatprep.subr.mxu0 0.0
        %3369 = vmatpush1.msra.mxu0 0.0
        %3370 = vmatprep.subr.mxu0 0.0
        %3371 = vmatpush1.msra.mxu0 0.0
        %3372 = vmatprep.subr.mxu0 0.0
        %3373 = vmatpush1.msra.mxu0 0.0
        %3374 = vmatprep.subr.mxu0 0.0
        %3375 = vmatpush1.msra.mxu0 0.0
        %3376 = vmatprep.subr.mxu0 0.0
        %3377 = vmatpush1.msra.mxu0 0.0
        %3378 = vmatprep.subr.mxu0 0.0
        %3379 = vmatpush1.msra.mxu0 0.0
        %3380 = vmatprep.subr.mxu0 0.0
        %3381 = vmatpush1.msra.mxu0 0.0
        %3382 = vmatprep.subr.mxu0 0.0
        %3383 = vmatpush1.msra.mxu0 0.0
        %3384 = vmatprep.subr.mxu0 0.0
        %3385 = vmatpush1.msra.mxu0 0.0
        %3386 = vmatprep.subr.mxu0 0.0
        %3387 = vmatpush1.msra.mxu0 0.0
        %3388 = vmatprep.subr.mxu0 0.0
        %3389 = vmatpush1.msra.mxu0 0.0
        %3390 = vmatprep.subr.mxu0 0.0
        %3391 = vmatpush1.msra.mxu0 0.0
        %3392 = vmatprep.subr.mxu0 0.0
        %3393 = vmatpush1.msra.mxu0 0.0
        %3394 = vmatprep.subr.mxu0 0.0
        %3395 = vmatpush1.msra.mxu0 0.0
        %3396 = vmatprep.subr.mxu0 0.0
        %3397 = vmatpush1.msra.mxu0 0.0
        %3398 = vmatprep.subr.mxu0 0.0
        %3399 = vmatpush1.msra.mxu0 0.0
        %3400 = vmatprep.subr.mxu0 0.0
        %3401 = vmatpush1.msra.mxu0 0.0
        %3402 = vmatprep.subr.mxu0 0.0
        %3403 = vmatpush1.msra.mxu0 0.0
        %3404 = vmatprep.subr.mxu0 0.0
        %3405 = vmatpush1.msra.mxu0 0.0
        %3406 = vmatprep.subr.mxu0 0.0
        %3407 = vmatpush1.msra.mxu0 0.0
        %3408 = vmatprep.subr.mxu0 0.0
        %3409 = vmatpush1.msra.mxu0 0.0
        %3410 = vmatprep.subr.mxu0 0.0
        %3411 = vmatpush1.msra.mxu0 0.0
        %3412 = vmatprep.subr.mxu0 0.0
        %3413 = vmatpush1.msra.mxu0 0.0
        %3414 = vmatprep.subr.mxu0 0.0
        %3415 = vmatpush1.msra.mxu0 0.0
        %3416 = vmatprep.subr.mxu0 0.0
        %3417 = vmatpush1.msra.mxu0 0.0
        %3418 = vmatprep.subr.mxu0 0.0
        %3419 = vmatpush1.msra.mxu0 0.0
        %3420 = vmatprep.subr.mxu0 0.0
        %3421 = vmatpush1.msra.mxu0 0.0
        %3422 = vmatprep.mubr.f32.mxu0 0.0
        %3423 = vmatmul.mubr.f32.gmra.mrb[0].mxu0 %v3323
        %v3424 = vpop.f32.mrb[0].mxu0
        %v3425 = vadd.f32 0.0, %v3424
        %v3426 = vpop.f32.mrb[0].mxu0
        %3427 = vmatprep.mubr.f32.mxu0 0.0
        %3428 = vmatmul.mubr.f32.gmra.mrb[0].mxu0 %v3326
        %v3429 = vpop.f32.mrb[0].mxu0
        %v3430 = vadd.f32 0.0, %v3429
        %v3431 = vpop.f32.mrb[0].mxu0
        %3432 = vmatprep.mubr.f32.mxu0 0.0
        %3433 = vmatmul.mubr.f32.gmra.mrb[0].mxu0 %v3329
        %v3434 = vpop.f32.mrb[0].mxu0
        %v3435 = vadd.f32 0.0, %v3434
        %v3436 = vpop.f32.mrb[0].mxu0
        %3437 = vmatprep.mubr.f32.mxu0 0.0
        %3438 = vmatmul.mubr.f32.gmra.mrb[0].mxu0 %v3332
        %v3439 = vpop.f32.mrb[0].mxu0
        %v3440 = vadd.f32 0.0, %v3439
        %v3441 = vpop.f32.mrb[0].mxu0
        %3442 = vmatprep.mubr.f32.mxu0 0.0
        %3443 = vmatmul.mubr.f32.gmra.mrb[0].mxu0 %v3335
        %v3444 = vpop.f32.mrb[0].mxu0
        %v3445 = vadd.f32 0.0, %v3444
        %v3446 = vpop.f32.mrb[0].mxu0
        %3447 = vmatprep.mubr.f32.mxu0 0.0
        %3448 = vmatmul.mubr.f32.gmra.mrb[0].mxu0 %v3338
        %v3449 = vpop.f32.mrb[0].mxu0
        %v3450 = vadd.f32 0.0, %v3449
        %v3451 = vpop.f32.mrb[0].mxu0
        %3452 = vmatprep.mubr.f32.mxu0 0.0
        %3453 = vmatmul.mubr.f32.gmra.mrb[0].mxu0 %v3341
        %v3454 = vpop.f32.mrb[0].mxu0
        %v3455 = vadd.f32 0.0, %v3454
        %v3456 = vpop.f32.mrb[0].mxu0
        %3457 = vmatprep.mubr.f32.mxu0 0.0
        %3458 = vmatmul.mubr.f32.gmra.mrb[0].mxu0 %v3344
        %v3459 = vpop.f32.mrb[0].mxu0
        %v3460 = vadd.f32 0.0, %v3459
        %v3461 = vpop.f32.mrb[0].mxu0
        %3462 = vmatprep.mubr.f32.mxu0 0.0
        %3463 = vmatmul.mubr.f32.gmra.mrb[0].mxu0 %v3347
        %v3464 = vpop.f32.mrb[0].mxu0
        %v3465 = vadd.f32 0.0, %v3464
        %v3466 = vpop.f32.mrb[0].mxu0
        %3467 = vmatprep.mubr.f32.mxu0 0.0
        %3468 = vmatmul.mubr.f32.gmra.mrb[0].mxu0 %v3350
        %v3469 = vpop.f32.mrb[0].mxu0
        %v3470 = vadd.f32 0.0, %v3469
        %v3471 = vpop.f32.mrb[0].mxu0
        %3472 = vmatprep.mubr.f32.mxu0 0.0
        %3473 = vmatmul.mubr.f32.gmra.mrb[0].mxu0 %v3353
        %v3474 = vpop.f32.mrb[0].mxu0
        %v3475 = vadd.f32 0.0, %v3474
        %v3476 = vpop.f32.mrb[0].mxu0
        %3477 = vmatprep.mubr.f32.mxu0 0.0
        %3478 = vmatmul.mubr.f32.gmra.mrb[0].mxu0 %v3356
        %v3479 = vpop.f32.mrb[0].mxu0
        %v3480 = vadd.f32 0.0, %v3479
        %v3481 = vpop.f32.mrb[0].mxu0
        %3482 = vdwg.mxu0
        %v3484 = vsel %vm1067, %v1055, 0
        %v3487 = vsel %vm1067, %v1056, 0
        %v3490 = vsel %vm1067, %v1057, 0
        %v3493 = vsel %vm1067, %v1058, 0
        %v3496 = vsel %vm1067, %v1059, 0
        %v3499 = vsel %vm1067, %v1060, 0
        %v3502 = vsel %vm1067, %v1061, 0
        %v3505 = vsel %vm1067, %v1062, 0
        %v3508 = vsel %vm1067, %v1063, 0
        %v3511 = vsel %vm1067, %v1064, 0
        %v3514 = vsel %vm1067, %v1065, 0
        %v3517 = vsel %vm1067, %v1066, 0
        %3519 = vmatprep.subr.mxu0 0.0
        %3520 = vmatpush1.msra.mxu0 %v874
        %3521 = vmatprep.subr.mxu0 0.0
        %3522 = vmatpush1.msra.mxu0 0.0
        %3523 = vmatprep.subr.mxu0 0.0
        %3524 = vmatpush1.msra.mxu0 0.0
        %3525 = vmatprep.subr.mxu0 0.0
        %3526 = vmatpush1.msra.mxu0 0.0
        %3527 = vmatprep.subr.mxu0 0.0
        %3528 = vmatpush1.msra.mxu0 0.0
        %3529 = vmatprep.subr.mxu0 0.0
        %3530 = vmatpush1.msra.mxu0 0.0
        %3531 = vmatprep.subr.mxu0 0.0
        %3532 = vmatpush1.msra.mxu0 0.0
        %3533 = vmatprep.subr.mxu0 0.0
        %3534 = vmatpush1.msra.mxu0 0.0
        %3535 = vmatprep.subr.mxu0 0.0
        %3536 = vmatpush1.msra.mxu0 0.0
        %3537 = vmatprep.subr.mxu0 0.0
        %3538 = vmatpush1.msra.mxu0 0.0
        %3539 = vmatprep.subr.mxu0 0.0
        %3540 = vmatpush1.msra.mxu0 0.0
        %3541 = vmatprep.subr.mxu0 0.0
        %3542 = vmatpush1.msra.mxu0 0.0
        %3543 = vmatprep.subr.mxu0 0.0
        %3544 = vmatpush1.msra.mxu0 0.0
        %3545 = vmatprep.subr.mxu0 0.0
        %3546 = vmatpush1.msra.mxu0 0.0
        %3547 = vmatprep.subr.mxu0 0.0
        %3548 = vmatpush1.msra.mxu0 0.0
        %3549 = vmatprep.subr.mxu0 0.0
        %3550 = vmatpush1.msra.mxu0 0.0
        %3551 = vmatprep.subr.mxu0 0.0
        %3552 = vmatpush1.msra.mxu0 0.0
        %3553 = vmatprep.subr.mxu0 0.0
        %3554 = vmatpush1.msra.mxu0 0.0
        %3555 = vmatprep.subr.mxu0 0.0
        %3556 = vmatpush1.msra.mxu0 0.0
        %3557 = vmatprep.subr.mxu0 0.0
        %3558 = vmatpush1.msra.mxu0 0.0
        %3559 = vmatprep.subr.mxu0 0.0
        %3560 = vmatpush1.msra.mxu0 0.0
        %3561 = vmatprep.subr.mxu0 0.0
        %3562 = vmatpush1.msra.mxu0 0.0
        %3563 = vmatprep.subr.mxu0 0.0
        %3564 = vmatpush1.msra.mxu0 0.0
        %3565 = vmatprep.subr.mxu0 0.0
        %3566 = vmatpush1.msra.mxu0 0.0
        %3567 = vmatprep.subr.mxu0 0.0
        %3568 = vmatpush1.msra.mxu0 0.0
        %3569 = vmatprep.subr.mxu0 0.0
        %3570 = vmatpush1.msra.mxu0 0.0
        %3571 = vmatprep.subr.mxu0 0.0
        %3572 = vmatpush1.msra.mxu0 0.0
        %3573 = vmatprep.subr.mxu0 0.0
        %3574 = vmatpush1.msra.mxu0 0.0
        %3575 = vmatprep.subr.mxu0 0.0
        %3576 = vmatpush1.msra.mxu0 0.0
        %3577 = vmatprep.subr.mxu0 0.0
        %3578 = vmatpush1.msra.mxu0 0.0
        %3579 = vmatprep.subr.mxu0 0.0
        %3580 = vmatpush1.msra.mxu0 0.0
        %3581 = vmatprep.subr.mxu0 0.0
        %3582 = vmatpush1.msra.mxu0 0.0
        %3583 = vmatprep.mubr.f32.mxu0 0.0
        %3584 = vmatmul.mubr.f32.gmra.mrb[0].mxu0 %v3484
        %v3585 = vpop.f32.mrb[0].mxu0
        %v3586 = vadd.f32 0.0, %v3585
        %v3587 = vpop.f32.mrb[0].mxu0
        %3588 = vmatprep.mubr.f32.mxu0 0.0
        %3589 = vmatmul.mubr.f32.gmra.mrb[0].mxu0 %v3487
        %v3590 = vpop.f32.mrb[0].mxu0
        %v3591 = vadd.f32 0.0, %v3590
        %v3592 = vpop.f32.mrb[0].mxu0
        %3593 = vmatprep.mubr.f32.mxu0 0.0
        %3594 = vmatmul.mubr.f32.gmra.mrb[0].mxu0 %v3490
        %v3595 = vpop.f32.mrb[0].mxu0
        %v3596 = vadd.f32 0.0, %v3595
        %v3597 = vpop.f32.mrb[0].mxu0
        %3598 = vmatprep.mubr.f32.mxu0 0.0
        %3599 = vmatmul.mubr.f32.gmra.mrb[0].mxu0 %v3493
        %v3600 = vpop.f32.mrb[0].mxu0
        %v3601 = vadd.f32 0.0, %v3600
        %v3602 = vpop.f32.mrb[0].mxu0
        %3603 = vmatprep.mubr.f32.mxu0 0.0
        %3604 = vmatmul.mubr.f32.gmra.mrb[0].mxu0 %v3496
        %v3605 = vpop.f32.mrb[0].mxu0
        %v3606 = vadd.f32 0.0, %v3605
        %v3607 = vpop.f32.mrb[0].mxu0
        %3608 = vmatprep.mubr.f32.mxu0 0.0
        %3609 = vmatmul.mubr.f32.gmra.mrb[0].mxu0 %v3499
        %v3610 = vpop.f32.mrb[0].mxu0
        %v3611 = vadd.f32 0.0, %v3610
        %v3612 = vpop.f32.mrb[0].mxu0
        %3613 = vmatprep.mubr.f32.mxu0 0.0
        %3614 = vmatmul.mubr.f32.gmra.mrb[0].mxu0 %v3502
        %v3615 = vpop.f32.mrb[0].mxu0
        %v3616 = vadd.f32 0.0, %v3615
        %v3617 = vpop.f32.mrb[0].mxu0
        %3618 = vmatprep.mubr.f32.mxu0 0.0
        %3619 = vmatmul.mubr.f32.gmra.mrb[0].mxu0 %v3505
        %v3620 = vpop.f32.mrb[0].mxu0
        %v3621 = vadd.f32 0.0, %v3620
        %v3622 = vpop.f32.mrb[0].mxu0
        %3623 = vmatprep.mubr.f32.mxu0 0.0
        %3624 = vmatmul.mubr.f32.gmra.mrb[0].mxu0 %v3508
        %v3625 = vpop.f32.mrb[0].mxu0
        %v3626 = vadd.f32 0.0, %v3625
        %v3627 = vpop.f32.mrb[0].mxu0
        %3628 = vmatprep.mubr.f32.mxu0 0.0
        %3629 = vmatmul.mubr.f32.gmra.mrb[0].mxu0 %v3511
        %v3630 = vpop.f32.mrb[0].mxu0
        %v3631 = vadd.f32 0.0, %v3630
        %v3632 = vpop.f32.mrb[0].mxu0
        %3633 = vmatprep.mubr.f32.mxu0 0.0
        %3634 = vmatmul.mubr.f32.gmra.mrb[0].mxu0 %v3514
        %v3635 = vpop.f32.mrb[0].mxu0
        %v3636 = vadd.f32 0.0, %v3635
        %v3637 = vpop.f32.mrb[0].mxu0
        %3638 = vmatprep.mubr.f32.mxu0 0.0
        %3639 = vmatmul.mubr.f32.gmra.mrb[0].mxu0 %v3517
        %v3640 = vpop.f32.mrb[0].mxu0
        %v3641 = vadd.f32 0.0, %v3640
        %v3642 = vpop.f32.mrb[0].mxu0
        %3643 = vdwg.mxu0
        %v3644 = vld [vmem:[%s2 + $0x308] sm:$0xff]
        %v3645 = vld [vmem:[%s2 + $0x310] sm:$0xff]
        %v3646 = vld [vmem:[%s2 + $0x318] sm:$0xff]
        %v3647 = vld [vmem:[%s2 + $0x320] sm:$0xff]
        %v3648 = vld [vmem:[%s2 + $0x328] sm:$0xff]
        %v3649 = vld [vmem:[%s2 + $0x330] sm:$0xff]
        %v3650 = vld [vmem:[%s2 + $0x338] sm:$0xff]
        %v3651 = vld [vmem:[%s2 + $0x340] sm:$0xff]
        %vm3652 = vcmask 261120
        %v3654 = vsel %vm3652, %v1191, 0
        %v3657 = vsel %vm3652, %v1196, 0
        %v3660 = vsel %vm3652, %v1201, 0
        %v3663 = vsel %vm3652, %v1206, 0
        %v3666 = vsel %vm3652, %v1352, 0
        %v3669 = vsel %vm3652, %v1357, 0
        %v3672 = vsel %vm3652, %v1362, 0
        %v3675 = vsel %vm3652, %v1367, 0
        %v3678 = vsel %vm3652, %v1513, 0
        %v3681 = vsel %vm3652, %v1518, 0
        %v3684 = vsel %vm3652, %v1523, 0
        %v3687 = vsel %vm3652, %v1528, 0
        %v3690 = vsel %vm3652, %v1674, 0
        %v3693 = vsel %vm3652, %v1679, 0
        %v3696 = vsel %vm3652, %v1684, 0
        %v3699 = vsel %vm3652, %v1689, 0
        %v3702 = vsel %vm3652, %v1835, 0
        %v3705 = vsel %vm3652, %v1840, 0
        %v3708 = vsel %vm3652, %v1845, 0
        %v3711 = vsel %vm3652, %v1850, 0
        %v3714 = vsel %vm3652, %v1996, 0
        %v3717 = vsel %vm3652, %v2001, 0
        %v3720 = vsel %vm3652, %v2006, 0
        %v3723 = vsel %vm3652, %v2011, 0
        %v3726 = vsel %vm3652, %v2157, 0
        %v3729 = vsel %vm3652, %v2162, 0
        %v3732 = vsel %vm3652, %v2167, 0
        %v3735 = vsel %vm3652, %v2172, 0
        %v3738 = vsel %vm3652, %v2318, 0
        %v3741 = vsel %vm3652, %v2323, 0
        %v3744 = vsel %vm3652, %v2328, 0
        %v3747 = vsel %vm3652, %v2333, 0
        %v3750 = vsel %vm3652, %v2479, 0
        %v3753 = vsel %vm3652, %v2484, 0
        %v3756 = vsel %vm3652, %v2489, 0
        %v3759 = vsel %vm3652, %v2494, 0
        %v3762 = vsel %vm3652, %v2640, 0
        %v3765 = vsel %vm3652, %v2645, 0
        %v3768 = vsel %vm3652, %v2650, 0
        %v3771 = vsel %vm3652, %v2655, 0
        %v3774 = vsel %vm3652, %v2801, 0
        %v3777 = vsel %vm3652, %v2806, 0
        %v3780 = vsel %vm3652, %v2811, 0
        %v3783 = vsel %vm3652, %v2816, 0
        %v3786 = vsel %vm3652, %v2962, 0
        %v3789 = vsel %vm3652, %v2967, 0
        %v3792 = vsel %vm3652, %v2972, 0
        %v3795 = vsel %vm3652, %v2977, 0
        %v3798 = vsel %vm3652, %v3123, 0
        %v3801 = vsel %vm3652, %v3128, 0
        %v3804 = vsel %vm3652, %v3133, 0
        %v3807 = vsel %vm3652, %v3138, 0
        %v3810 = vsel %vm3652, %v3284, 0
        %v3813 = vsel %vm3652, %v3289, 0
        %v3816 = vsel %vm3652, %v3294, 0
        %v3819 = vsel %vm3652, %v3299, 0
        %v3822 = vsel %vm3652, %v3445, 0
        %v3825 = vsel %vm3652, %v3450, 0
        %v3828 = vsel %vm3652, %v3455, 0
        %v3831 = vsel %vm3652, %v3460, 0
        %v3834 = vsel %vm3652, %v3606, 0
        %v3837 = vsel %vm3652, %v3611, 0
        %v3840 = vsel %vm3652, %v3616, 0
        %v3843 = vsel %vm3652, %v3621, 0
        %3845 = vmatprep.subr.mxu0 0.0
        %3846 = vmatpush1.msra.mxu0 %v3648
        %3847 = vmatprep.subr.mxu0 0.0
        %3848 = vmatpush1.msra.mxu0 %v3649
        %3849 = vmatprep.subr.mxu0 0.0
        %3850 = vmatpush1.msra.mxu0 %v3650
        %3851 = vmatprep.subr.mxu0 0.0
        %3852 = vmatpush1.msra.mxu0 %v3651
        %3853 = vmatprep.subr.mxu0 0.0
        %3854 = vmatpush1.msra.mxu0 0.0
        %3855 = vmatprep.subr.mxu0 0.0
        %3856 = vmatpush1.msra.mxu0 0.0
        %3857 = vmatprep.subr.mxu0 0.0
        %3858 = vmatpush1.msra.mxu0 0.0
        %3859 = vmatprep.subr.mxu0 0.0
        %3860 = vmatpush1.msra.mxu0 0.0
        %3861 = vmatprep.subr.mxu0 0.0
        %3862 = vmatpush1.msra.mxu0 0.0
        %3863 = vmatprep.subr.mxu0 0.0
        %3864 = vmatpush1.msra.mxu0 0.0
        %3865 = vmatprep.subr.mxu0 0.0
        %3866 = vmatpush1.msra.mxu0 0.0
        %3867 = vmatprep.subr.mxu0 0.0
        %3868 = vmatpush1.msra.mxu0 0.0
        %3869 = vmatprep.subr.mxu0 0.0
        %3870 = vmatpush1.msra.mxu0 0.0
        %3871 = vmatprep.subr.mxu0 0.0
        %3872 = vmatpush1.msra.mxu0 0.0
        %3873 = vmatprep.subr.mxu0 0.0
        %3874 = vmatpush1.msra.mxu0 0.0
        %3875 = vmatprep.subr.mxu0 0.0
        %3876 = vmatpush1.msra.mxu0 0.0
        %3877 = vmatprep.subr.mxu0 0.0
        %3878 = vmatpush1.msra.mxu0 0.0
        %3879 = vmatprep.subr.mxu0 0.0
        %3880 = vmatpush1.msra.mxu0 0.0
        %3881 = vmatprep.subr.mxu0 0.0
        %3882 = vmatpush1.msra.mxu0 0.0
        %3883 = vmatprep.subr.mxu0 0.0
        %3884 = vmatpush1.msra.mxu0 0.0
        %3885 = vmatprep.subr.mxu0 0.0
        %3886 = vmatpush1.msra.mxu0 0.0
        %3887 = vmatprep.subr.mxu0 0.0
        %3888 = vmatpush1.msra.mxu0 0.0
        %3889 = vmatprep.subr.mxu0 0.0
        %3890 = vmatpush1.msra.mxu0 0.0
        %3891 = vmatprep.subr.mxu0 0.0
        %3892 = vmatpush1.msra.mxu0 0.0
        %3893 = vmatprep.subr.mxu0 0.0
        %3894 = vmatpush1.msra.mxu0 0.0
        %3895 = vmatprep.subr.mxu0 0.0
        %3896 = vmatpush1.msra.mxu0 0.0
        %3897 = vmatprep.subr.mxu0 0.0
        %3898 = vmatpush1.msra.mxu0 0.0
        %3899 = vmatprep.subr.mxu0 0.0
        %3900 = vmatpush1.msra.mxu0 0.0
        %3901 = vmatprep.subr.mxu0 0.0
        %3902 = vmatpush1.msra.mxu0 0.0
        %3903 = vmatprep.subr.mxu0 0.0
        %3904 = vmatpush1.msra.mxu0 0.0
        %3905 = vmatprep.subr.mxu0 0.0
        %3906 = vmatpush1.msra.mxu0 0.0
        %3907 = vmatprep.subr.mxu0 0.0
        %3908 = vmatpush1.msra.mxu0 0.0
        %3909 = vmatprep.mubr.f32.mxu0 0.0
        %3910 = vmatmul.mubr.f32.gmra.mrb[0].mxu0 %v3654
        %v3911 = vpop.f32.mrb[0].mxu0
        %v3912 = vadd.f32 0.0, %v3911
        %v3913 = vpop.f32.mrb[0].mxu0
        %3914 = vmatprep.mubr.f32.mxu0 0.0
        %3915 = vmatmul.mubr.f32.gmra.mrb[0].mxu0 %v3657
        %v3916 = vpop.f32.mrb[0].mxu0
        %v3917 = vadd.f32 0.0, %v3916
        %v3918 = vpop.f32.mrb[0].mxu0
        %3919 = vmatprep.mubr.f32.mxu0 0.0
        %3920 = vmatmul.mubr.f32.gmra.mrb[0].mxu0 %v3660
        %v3921 = vpop.f32.mrb[0].mxu0
        %v3922 = vadd.f32 0.0, %v3921
        %v3923 = vpop.f32.mrb[0].mxu0
        %3924 = vmatprep.mubr.f32.mxu0 0.0
        %3925 = vmatmul.mubr.f32.gmra.mrb[0].mxu0 %v3663
        %v3926 = vpop.f32.mrb[0].mxu0
        %v3927 = vadd.f32 0.0, %v3926
        %v3928 = vpop.f32.mrb[0].mxu0
        %3929 = vmatprep.mubr.f32.mxu0 0.0
        %3930 = vmatmul.mubr.f32.gmra.mrb[0].mxu0 %v3666
        %v3931 = vpop.f32.mrb[0].mxu0
        %v3932 = vadd.f32 0.0, %v3931
        %v3933 = vpop.f32.mrb[0].mxu0
        %3934 = vmatprep.mubr.f32.mxu0 0.0
        %3935 = vmatmul.mubr.f32.gmra.mrb[0].mxu0 %v3669
        %v3936 = vpop.f32.mrb[0].mxu0
        %v3937 = vadd.f32 0.0, %v3936
        %v3938 = vpop.f32.mrb[0].mxu0
        %3939 = vmatprep.mubr.f32.mxu0 0.0
        %3940 = vmatmul.mubr.f32.gmra.mrb[0].mxu0 %v3672
        %v3941 = vpop.f32.mrb[0].mxu0
        %v3942 = vadd.f32 0.0, %v3941
        %v3943 = vpop.f32.mrb[0].mxu0
        %3944 = vmatprep.mubr.f32.mxu0 0.0
        %3945 = vmatmul.mubr.f32.gmra.mrb[0].mxu0 %v3675
        %v3946 = vpop.f32.mrb[0].mxu0
        %v3947 = vadd.f32 0.0, %v3946
        %v3948 = vpop.f32.mrb[0].mxu0
        %3949 = vmatprep.mubr.f32.mxu0 0.0
        %3950 = vmatmul.mubr.f32.gmra.mrb[0].mxu0 %v3678
        %v3951 = vpop.f32.mrb[0].mxu0
        %v3952 = vadd.f32 0.0, %v3951
        %v3953 = vpop.f32.mrb[0].mxu0
        %3954 = vmatprep.mubr.f32.mxu0 0.0
        %3955 = vmatmul.mubr.f32.gmra.mrb[0].mxu0 %v3681
        %v3956 = vpop.f32.mrb[0].mxu0
        %v3957 = vadd.f32 0.0, %v3956
        %v3958 = vpop.f32.mrb[0].mxu0
        %3959 = vmatprep.mubr.f32.mxu0 0.0
        %3960 = vmatmul.mubr.f32.gmra.mrb[0].mxu0 %v3684
        %v3961 = vpop.f32.mrb[0].mxu0
        %v3962 = vadd.f32 0.0, %v3961
        %v3963 = vpop.f32.mrb[0].mxu0
        %3964 = vmatprep.mubr.f32.mxu0 0.0
        %3965 = vmatmul.mubr.f32.gmra.mrb[0].mxu0 %v3687
        %v3966 = vpop.f32.mrb[0].mxu0
        %v3967 = vadd.f32 0.0, %v3966
        %v3968 = vpop.f32.mrb[0].mxu0
        %3969 = vmatprep.mubr.f32.mxu0 0.0
        %3970 = vmatmul.mubr.f32.gmra.mrb[0].mxu0 %v3690
        %v3971 = vpop.f32.mrb[0].mxu0
        %v3972 = vadd.f32 0.0, %v3971
        %v3973 = vpop.f32.mrb[0].mxu0
        %3974 = vmatprep.mubr.f32.mxu0 0.0
        %3975 = vmatmul.mubr.f32.gmra.mrb[0].mxu0 %v3693
        %v3976 = vpop.f32.mrb[0].mxu0
        %v3977 = vadd.f32 0.0, %v3976
        %v3978 = vpop.f32.mrb[0].mxu0
        %3979 = vmatprep.mubr.f32.mxu0 0.0
        %3980 = vmatmul.mubr.f32.gmra.mrb[0].mxu0 %v3696
        %v3981 = vpop.f32.mrb[0].mxu0
        %v3982 = vadd.f32 0.0, %v3981
        %v3983 = vpop.f32.mrb[0].mxu0
        %3984 = vmatprep.mubr.f32.mxu0 0.0
        %3985 = vmatmul.mubr.f32.gmra.mrb[0].mxu0 %v3699
        %v3986 = vpop.f32.mrb[0].mxu0
        %v3987 = vadd.f32 0.0, %v3986
        %v3988 = vpop.f32.mrb[0].mxu0
        %3989 = vmatprep.mubr.f32.mxu0 0.0
        %3990 = vmatmul.mubr.f32.gmra.mrb[0].mxu0 %v3702
        %v3991 = vpop.f32.mrb[0].mxu0
        %v3992 = vadd.f32 0.0, %v3991
        %v3993 = vpop.f32.mrb[0].mxu0
        %3994 = vmatprep.mubr.f32.mxu0 0.0
        %3995 = vmatmul.mubr.f32.gmra.mrb[0].mxu0 %v3705
        %v3996 = vpop.f32.mrb[0].mxu0
        %v3997 = vadd.f32 0.0, %v3996
        %v3998 = vpop.f32.mrb[0].mxu0
        %3999 = vmatprep.mubr.f32.mxu0 0.0
        %4000 = vmatmul.mubr.f32.gmra.mrb[0].mxu0 %v3708
        %v4001 = vpop.f32.mrb[0].mxu0
        %v4002 = vadd.f32 0.0, %v4001
        %v4003 = vpop.f32.mrb[0].mxu0
        %4004 = vmatprep.mubr.f32.mxu0 0.0
        %4005 = vmatmul.mubr.f32.gmra.mrb[0].mxu0 %v3711
        %v4006 = vpop.f32.mrb[0].mxu0
        %v4007 = vadd.f32 0.0, %v4006
        %v4008 = vpop.f32.mrb[0].mxu0
        %4009 = vmatprep.mubr.f32.mxu0 0.0
        %4010 = vmatmul.mubr.f32.gmra.mrb[0].mxu0 %v3714
        %v4011 = vpop.f32.mrb[0].mxu0
        %v4012 = vadd.f32 0.0, %v4011
        %v4013 = vpop.f32.mrb[0].mxu0
        %4014 = vmatprep.mubr.f32.mxu0 0.0
        %4015 = vmatmul.mubr.f32.gmra.mrb[0].mxu0 %v3717
        %v4016 = vpop.f32.mrb[0].mxu0
        %v4017 = vadd.f32 0.0, %v4016
        %v4018 = vpop.f32.mrb[0].mxu0
        %4019 = vmatprep.mubr.f32.mxu0 0.0
        %4020 = vmatmul.mubr.f32.gmra.mrb[0].mxu0 %v3720
        %v4021 = vpop.f32.mrb[0].mxu0
        %v4022 = vadd.f32 0.0, %v4021
        %v4023 = vpop.f32.mrb[0].mxu0
        %4024 = vmatprep.mubr.f32.mxu0 0.0
        %4025 = vmatmul.mubr.f32.gmra.mrb[0].mxu0 %v3723
        %v4026 = vpop.f32.mrb[0].mxu0
        %v4027 = vadd.f32 0.0, %v4026
        %v4028 = vpop.f32.mrb[0].mxu0
        %4029 = vmatprep.mubr.f32.mxu0 0.0
        %4030 = vmatmul.mubr.f32.gmra.mrb[0].mxu0 %v3726
        %v4031 = vpop.f32.mrb[0].mxu0
        %v4032 = vadd.f32 0.0, %v4031
        %v4033 = vpop.f32.mrb[0].mxu0
        %4034 = vmatprep.mubr.f32.mxu0 0.0
        %4035 = vmatmul.mubr.f32.gmra.mrb[0].mxu0 %v3729
        %v4036 = vpop.f32.mrb[0].mxu0
        %v4037 = vadd.f32 0.0, %v4036
        %v4038 = vpop.f32.mrb[0].mxu0
        %4039 = vmatprep.mubr.f32.mxu0 0.0
        %4040 = vmatmul.mubr.f32.gmra.mrb[0].mxu0 %v3732
        %v4041 = vpop.f32.mrb[0].mxu0
        %v4042 = vadd.f32 0.0, %v4041
        %v4043 = vpop.f32.mrb[0].mxu0
        %4044 = vmatprep.mubr.f32.mxu0 0.0
        %4045 = vmatmul.mubr.f32.gmra.mrb[0].mxu0 %v3735
        %v4046 = vpop.f32.mrb[0].mxu0
        %v4047 = vadd.f32 0.0, %v4046
        %v4048 = vpop.f32.mrb[0].mxu0
        %4049 = vmatprep.mubr.f32.mxu0 0.0
        %4050 = vmatmul.mubr.f32.gmra.mrb[0].mxu0 %v3738
        %v4051 = vpop.f32.mrb[0].mxu0
        %v4052 = vadd.f32 0.0, %v4051
        %v4053 = vpop.f32.mrb[0].mxu0
        %4054 = vmatprep.mubr.f32.mxu0 0.0
        %4055 = vmatmul.mubr.f32.gmra.mrb[0].mxu0 %v3741
        %v4056 = vpop.f32.mrb[0].mxu0
        %v4057 = vadd.f32 0.0, %v4056
        %v4058 = vpop.f32.mrb[0].mxu0
        %4059 = vmatprep.mubr.f32.mxu0 0.0
        %4060 = vmatmul.mubr.f32.gmra.mrb[0].mxu0 %v3744
        %v4061 = vpop.f32.mrb[0].mxu0
        %v4062 = vadd.f32 0.0, %v4061
        %v4063 = vpop.f32.mrb[0].mxu0
        %4064 = vmatprep.mubr.f32.mxu0 0.0
        %4065 = vmatmul.mubr.f32.gmra.mrb[0].mxu0 %v3747
        %v4066 = vpop.f32.mrb[0].mxu0
        %v4067 = vadd.f32 0.0, %v4066
        %v4068 = vpop.f32.mrb[0].mxu0
        %4069 = vmatprep.mubr.f32.mxu0 0.0
        %4070 = vmatmul.mubr.f32.gmra.mrb[0].mxu0 %v3750
        %v4071 = vpop.f32.mrb[0].mxu0
        %v4072 = vadd.f32 0.0, %v4071
        %v4073 = vpop.f32.mrb[0].mxu0
        %4074 = vmatprep.mubr.f32.mxu0 0.0
        %4075 = vmatmul.mubr.f32.gmra.mrb[0].mxu0 %v3753
        %v4076 = vpop.f32.mrb[0].mxu0
        %v4077 = vadd.f32 0.0, %v4076
        %v4078 = vpop.f32.mrb[0].mxu0
        %4079 = vmatprep.mubr.f32.mxu0 0.0
        %4080 = vmatmul.mubr.f32.gmra.mrb[0].mxu0 %v3756
        %v4081 = vpop.f32.mrb[0].mxu0
        %v4082 = vadd.f32 0.0, %v4081
        %v4083 = vpop.f32.mrb[0].mxu0
        %4084 = vmatprep.mubr.f32.mxu0 0.0
        %4085 = vmatmul.mubr.f32.gmra.mrb[0].mxu0 %v3759
        %v4086 = vpop.f32.mrb[0].mxu0
        %v4087 = vadd.f32 0.0, %v4086
        %v4088 = vpop.f32.mrb[0].mxu0
        %4089 = vmatprep.mubr.f32.mxu0 0.0
        %4090 = vmatmul.mubr.f32.gmra.mrb[0].mxu0 %v3762
        %v4091 = vpop.f32.mrb[0].mxu0
        %v4092 = vadd.f32 0.0, %v4091
        %v4093 = vpop.f32.mrb[0].mxu0
        %4094 = vmatprep.mubr.f32.mxu0 0.0
        %4095 = vmatmul.mubr.f32.gmra.mrb[0].mxu0 %v3765
        %v4096 = vpop.f32.mrb[0].mxu0
        %v4097 = vadd.f32 0.0, %v4096
        %v4098 = vpop.f32.mrb[0].mxu0
        %4099 = vmatprep.mubr.f32.mxu0 0.0
        %4100 = vmatmul.mubr.f32.gmra.mrb[0].mxu0 %v3768
        %v4101 = vpop.f32.mrb[0].mxu0
        %v4102 = vadd.f32 0.0, %v4101
        %v4103 = vpop.f32.mrb[0].mxu0
        %4104 = vmatprep.mubr.f32.mxu0 0.0
        %4105 = vmatmul.mubr.f32.gmra.mrb[0].mxu0 %v3771
        %v4106 = vpop.f32.mrb[0].mxu0
        %v4107 = vadd.f32 0.0, %v4106
        %v4108 = vpop.f32.mrb[0].mxu0
        %4109 = vmatprep.mubr.f32.mxu0 0.0
        %4110 = vmatmul.mubr.f32.gmra.mrb[0].mxu0 %v3774
        %v4111 = vpop.f32.mrb[0].mxu0
        %v4112 = vadd.f32 0.0, %v4111
        %v4113 = vpop.f32.mrb[0].mxu0
        %4114 = vmatprep.mubr.f32.mxu0 0.0
        %4115 = vmatmul.mubr.f32.gmra.mrb[0].mxu0 %v3777
        %v4116 = vpop.f32.mrb[0].mxu0
        %v4117 = vadd.f32 0.0, %v4116
        %v4118 = vpop.f32.mrb[0].mxu0
        %4119 = vmatprep.mubr.f32.mxu0 0.0
        %4120 = vmatmul.mubr.f32.gmra.mrb[0].mxu0 %v3780
        %v4121 = vpop.f32.mrb[0].mxu0
        %v4122 = vadd.f32 0.0, %v4121
        %v4123 = vpop.f32.mrb[0].mxu0
        %4124 = vmatprep.mubr.f32.mxu0 0.0
        %4125 = vmatmul.mubr.f32.gmra.mrb[0].mxu0 %v3783
        %v4126 = vpop.f32.mrb[0].mxu0
        %v4127 = vadd.f32 0.0, %v4126
        %v4128 = vpop.f32.mrb[0].mxu0
        %4129 = vmatprep.mubr.f32.mxu0 0.0
        %4130 = vmatmul.mubr.f32.gmra.mrb[0].mxu0 %v3786
        %v4131 = vpop.f32.mrb[0].mxu0
        %v4132 = vadd.f32 0.0, %v4131
        %v4133 = vpop.f32.mrb[0].mxu0
        %4134 = vmatprep.mubr.f32.mxu0 0.0
        %4135 = vmatmul.mubr.f32.gmra.mrb[0].mxu0 %v3789
        %v4136 = vpop.f32.mrb[0].mxu0
        %v4137 = vadd.f32 0.0, %v4136
        %v4138 = vpop.f32.mrb[0].mxu0
        %4139 = vmatprep.mubr.f32.mxu0 0.0
        %4140 = vmatmul.mubr.f32.gmra.mrb[0].mxu0 %v3792
        %v4141 = vpop.f32.mrb[0].mxu0
        %v4142 = vadd.f32 0.0, %v4141
        %v4143 = vpop.f32.mrb[0].mxu0
        %4144 = vmatprep.mubr.f32.mxu0 0.0
        %4145 = vmatmul.mubr.f32.gmra.mrb[0].mxu0 %v3795
        %v4146 = vpop.f32.mrb[0].mxu0
        %v4147 = vadd.f32 0.0, %v4146
        %v4148 = vpop.f32.mrb[0].mxu0
        %4149 = vmatprep.mubr.f32.mxu0 0.0
        %4150 = vmatmul.mubr.f32.gmra.mrb[0].mxu0 %v3798
        %v4151 = vpop.f32.mrb[0].mxu0
        %v4152 = vadd.f32 0.0, %v4151
        %v4153 = vpop.f32.mrb[0].mxu0
        %4154 = vmatprep.mubr.f32.mxu0 0.0
        %4155 = vmatmul.mubr.f32.gmra.mrb[0].mxu0 %v3801
        %v4156 = vpop.f32.mrb[0].mxu0
        %v4157 = vadd.f32 0.0, %v4156
        %v4158 = vpop.f32.mrb[0].mxu0
        %4159 = vmatprep.mubr.f32.mxu0 0.0
        %4160 = vmatmul.mubr.f32.gmra.mrb[0].mxu0 %v3804
        %v4161 = vpop.f32.mrb[0].mxu0
        %v4162 = vadd.f32 0.0, %v4161
        %v4163 = vpop.f32.mrb[0].mxu0
        %4164 = vmatprep.mubr.f32.mxu0 0.0
        %4165 = vmatmul.mubr.f32.gmra.mrb[0].mxu0 %v3807
        %v4166 = vpop.f32.mrb[0].mxu0
        %v4167 = vadd.f32 0.0, %v4166
        %v4168 = vpop.f32.mrb[0].mxu0
        %4169 = vmatprep.mubr.f32.mxu0 0.0
        %4170 = vmatmul.mubr.f32.gmra.mrb[0].mxu0 %v3810
        %v4171 = vpop.f32.mrb[0].mxu0
        %v4172 = vadd.f32 0.0, %v4171
        %v4173 = vpop.f32.mrb[0].mxu0
        %4174 = vmatprep.mubr.f32.mxu0 0.0
        %4175 = vmatmul.mubr.f32.gmra.mrb[0].mxu0 %v3813
        %v4176 = vpop.f32.mrb[0].mxu0
        %v4177 = vadd.f32 0.0, %v4176
        %v4178 = vpop.f32.mrb[0].mxu0
        %4179 = vmatprep.mubr.f32.mxu0 0.0
        %4180 = vmatmul.mubr.f32.gmra.mrb[0].mxu0 %v3816
        %v4181 = vpop.f32.mrb[0].mxu0
        %v4182 = vadd.f32 0.0, %v4181
        %v4183 = vpop.f32.mrb[0].mxu0
        %4184 = vmatprep.mubr.f32.mxu0 0.0
        %4185 = vmatmul.mubr.f32.gmra.mrb[0].mxu0 %v3819
        %v4186 = vpop.f32.mrb[0].mxu0
        %v4187 = vadd.f32 0.0, %v4186
        %v4188 = vpop.f32.mrb[0].mxu0
        %4189 = vmatprep.mubr.f32.mxu0 0.0
        %4190 = vmatmul.mubr.f32.gmra.mrb[0].mxu0 %v3822
        %v4191 = vpop.f32.mrb[0].mxu0
        %v4192 = vadd.f32 0.0, %v4191
        %v4193 = vpop.f32.mrb[0].mxu0
        %4194 = vmatprep.mubr.f32.mxu0 0.0
        %4195 = vmatmul.mubr.f32.gmra.mrb[0].mxu0 %v3825
        %v4196 = vpop.f32.mrb[0].mxu0
        %v4197 = vadd.f32 0.0, %v4196
        %v4198 = vpop.f32.mrb[0].mxu0
        %4199 = vmatprep.mubr.f32.mxu0 0.0
        %4200 = vmatmul.mubr.f32.gmra.mrb[0].mxu0 %v3828
        %v4201 = vpop.f32.mrb[0].mxu0
        %v4202 = vadd.f32 0.0, %v4201
        %v4203 = vpop.f32.mrb[0].mxu0
        %4204 = vmatprep.mubr.f32.mxu0 0.0
        %4205 = vmatmul.mubr.f32.gmra.mrb[0].mxu0 %v3831
        %v4206 = vpop.f32.mrb[0].mxu0
        %v4207 = vadd.f32 0.0, %v4206
        %v4208 = vpop.f32.mrb[0].mxu0
        %4209 = vmatprep.mubr.f32.mxu0 0.0
        %4210 = vmatmul.mubr.f32.gmra.mrb[0].mxu0 %v3834
        %v4211 = vpop.f32.mrb[0].mxu0
        %v4212 = vadd.f32 0.0, %v4211
        %v4213 = vpop.f32.mrb[0].mxu0
        %4214 = vmatprep.mubr.f32.mxu0 0.0
        %4215 = vmatmul.mubr.f32.gmra.mrb[0].mxu0 %v3837
        %v4216 = vpop.f32.mrb[0].mxu0
        %v4217 = vadd.f32 0.0, %v4216
        %v4218 = vpop.f32.mrb[0].mxu0
        %4219 = vmatprep.mubr.f32.mxu0 0.0
        %4220 = vmatmul.mubr.f32.gmra.mrb[0].mxu0 %v3840
        %v4221 = vpop.f32.mrb[0].mxu0
        %v4222 = vadd.f32 0.0, %v4221
        %v4223 = vpop.f32.mrb[0].mxu0
        %4224 = vmatprep.mubr.f32.mxu0 0.0
        %4225 = vmatmul.mubr.f32.gmra.mrb[0].mxu0 %v3843
        %v4226 = vpop.f32.mrb[0].mxu0
        %v4227 = vadd.f32 0.0, %v4226
        %v4228 = vpop.f32.mrb[0].mxu0
        %4229 = vdwg.mxu0
        %v4231 = vsel %vm3652, %v1171, 0
        %v4234 = vsel %vm3652, %v1176, 0
        %v4237 = vsel %vm3652, %v1181, 0
        %v4240 = vsel %vm3652, %v1186, 0
        %v4243 = vsel %vm3652, %v1332, 0
        %v4246 = vsel %vm3652, %v1337, 0
        %v4249 = vsel %vm3652, %v1342, 0
        %v4252 = vsel %vm3652, %v1347, 0
        %v4255 = vsel %vm3652, %v1493, 0
        %v4258 = vsel %vm3652, %v1498, 0
        %v4261 = vsel %vm3652, %v1503, 0
        %v4264 = vsel %vm3652, %v1508, 0
        %v4267 = vsel %vm3652, %v1654, 0
        %v4270 = vsel %vm3652, %v1659, 0
        %v4273 = vsel %vm3652, %v1664, 0
        %v4276 = vsel %vm3652, %v1669, 0
        %v4279 = vsel %vm3652, %v1815, 0
        %v4282 = vsel %vm3652, %v1820, 0
        %v4285 = vsel %vm3652, %v1825, 0
        %v4288 = vsel %vm3652, %v1830, 0
        %v4291 = vsel %vm3652, %v1976, 0
        %v4294 = vsel %vm3652, %v1981, 0
        %v4297 = vsel %vm3652, %v1986, 0
        %v4300 = vsel %vm3652, %v1991, 0
        %v4303 = vsel %vm3652, %v2137, 0
        %v4306 = vsel %vm3652, %v2142, 0
        %v4309 = vsel %vm3652, %v2147, 0
        %v4312 = vsel %vm3652, %v2152, 0
        %v4315 = vsel %vm3652, %v2298, 0
        %v4318 = vsel %vm3652, %v2303, 0
        %v4321 = vsel %vm3652, %v2308, 0
        %v4324 = vsel %vm3652, %v2313, 0
        %v4327 = vsel %vm3652, %v2459, 0
        %v4330 = vsel %vm3652, %v2464, 0
        %v4333 = vsel %vm3652, %v2469, 0
        %v4336 = vsel %vm3652, %v2474, 0
        %v4339 = vsel %vm3652, %v2620, 0
        %v4342 = vsel %vm3652, %v2625, 0
        %v4345 = vsel %vm3652, %v2630, 0
        %v4348 = vsel %vm3652, %v2635, 0
        %v4351 = vsel %vm3652, %v2781, 0
        %v4354 = vsel %vm3652, %v2786, 0
        %v4357 = vsel %vm3652, %v2791, 0
        %v4360 = vsel %vm3652, %v2796, 0
        %v4363 = vsel %vm3652, %v2942, 0
        %v4366 = vsel %vm3652, %v2947, 0
        %v4369 = vsel %vm3652, %v2952, 0
        %v4372 = vsel %vm3652, %v2957, 0
        %v4375 = vsel %vm3652, %v3103, 0
        %v4378 = vsel %vm3652, %v3108, 0
        %v4381 = vsel %vm3652, %v3113, 0
        %v4384 = vsel %vm3652, %v3118, 0
        %v4387 = vsel %vm3652, %v3264, 0
        %v4390 = vsel %vm3652, %v3269, 0
        %v4393 = vsel %vm3652, %v3274, 0
        %v4396 = vsel %vm3652, %v3279, 0
        %v4399 = vsel %vm3652, %v3425, 0
        %v4402 = vsel %vm3652, %v3430, 0
        %v4405 = vsel %vm3652, %v3435, 0
        %v4408 = vsel %vm3652, %v3440, 0
        %v4411 = vsel %vm3652, %v3586, 0
        %v4414 = vsel %vm3652, %v3591, 0
        %v4417 = vsel %vm3652, %v3596, 0
        %v4420 = vsel %vm3652, %v3601, 0
        %4422 = vmatprep.subr.mxu0 0.0
        %4423 = vmatpush1.msra.mxu0 %v3644
        %4424 = vmatprep.subr.mxu0 0.0
        %4425 = vmatpush1.msra.mxu0 %v3645
        %4426 = vmatprep.subr.mxu0 0.0
        %4427 = vmatpush1.msra.mxu0 %v3646
        %4428 = vmatprep.subr.mxu0 0.0
        %4429 = vmatpush1.msra.mxu0 %v3647
        %4430 = vmatprep.subr.mxu0 0.0
        %4431 = vmatpush1.msra.mxu0 0.0
        %4432 = vmatprep.subr.mxu0 0.0
        %4433 = vmatpush1.msra.mxu0 0.0
        %4434 = vmatprep.subr.mxu0 0.0
        %4435 = vmatpush1.msra.mxu0 0.0
        %4436 = vmatprep.subr.mxu0 0.0
        %4437 = vmatpush1.msra.mxu0 0.0
        %4438 = vmatprep.subr.mxu0 0.0
        %4439 = vmatpush1.msra.mxu0 0.0
        %4440 = vmatprep.subr.mxu0 0.0
        %4441 = vmatpush1.msra.mxu0 0.0
        %4442 = vmatprep.subr.mxu0 0.0
        %4443 = vmatpush1.msra.mxu0 0.0
        %4444 = vmatprep.subr.mxu0 0.0
        %4445 = vmatpush1.msra.mxu0 0.0
        %4446 = vmatprep.subr.mxu0 0.0
        %4447 = vmatpush1.msra.mxu0 0.0
        %4448 = vmatprep.subr.mxu0 0.0
        %4449 = vmatpush1.msra.mxu0 0.0
        %4450 = vmatprep.subr.mxu0 0.0
        %4451 = vmatpush1.msra.mxu0 0.0
        %4452 = vmatprep.subr.mxu0 0.0
        %4453 = vmatpush1.msra.mxu0 0.0
        %4454 = vmatprep.subr.mxu0 0.0
        %4455 = vmatpush1.msra.mxu0 0.0
        %4456 = vmatprep.subr.mxu0 0.0
        %4457 = vmatpush1.msra.mxu0 0.0
        %4458 = vmatprep.subr.mxu0 0.0
        %4459 = vmatpush1.msra.mxu0 0.0
        %4460 = vmatprep.subr.mxu0 0.0
        %4461 = vmatpush1.msra.mxu0 0.0
        %4462 = vmatprep.subr.mxu0 0.0
        %4463 = vmatpush1.msra.mxu0 0.0
        %4464 = vmatprep.subr.mxu0 0.0
        %4465 = vmatpush1.msra.mxu0 0.0
        %4466 = vmatprep.subr.mxu0 0.0
        %4467 = vmatpush1.msra.mxu0 0.0
        %4468 = vmatprep.subr.mxu0 0.0
        %4469 = vmatpush1.msra.mxu0 0.0
        %4470 = vmatprep.subr.mxu0 0.0
        %4471 = vmatpush1.msra.mxu0 0.0
        %4472 = vmatprep.subr.mxu0 0.0
        %4473 = vmatpush1.msra.mxu0 0.0
        %4474 = vmatprep.subr.mxu0 0.0
        %4475 = vmatpush1.msra.mxu0 0.0
        %4476 = vmatprep.subr.mxu0 0.0
        %4477 = vmatpush1.msra.mxu0 0.0
        %4478 = vmatprep.subr.mxu0 0.0
        %4479 = vmatpush1.msra.mxu0 0.0
        %4480 = vmatprep.subr.mxu0 0.0
        %4481 = vmatpush1.msra.mxu0 0.0
        %4482 = vmatprep.subr.mxu0 0.0
        %4483 = vmatpush1.msra.mxu0 0.0
        %4484 = vmatprep.subr.mxu0 0.0
        %4485 = vmatpush1.msra.mxu0 0.0
        %4486 = vmatprep.mubr.f32.mxu0 0.0
        %4487 = vmatmul.mubr.f32.gmra.mrb[0].mxu0 %v4231
        %v4488 = vpop.f32.mrb[0].mxu0
        %v4489 = vadd.f32 %v3912, %v4488
        %v4490 = vpop.f32.mrb[0].mxu0
        %4491 = vmatprep.mubr.f32.mxu0 0.0
        %4492 = vmatmul.mubr.f32.gmra.mrb[0].mxu0 %v4234
        %v4493 = vpop.f32.mrb[0].mxu0
        %v4494 = vadd.f32 %v3917, %v4493
        %v4495 = vpop.f32.mrb[0].mxu0
        %4496 = vmatprep.mubr.f32.mxu0 0.0
        %4497 = vmatmul.mubr.f32.gmra.mrb[0].mxu0 %v4237
        %v4498 = vpop.f32.mrb[0].mxu0
        %v4499 = vadd.f32 %v3922, %v4498
        %v4500 = vpop.f32.mrb[0].mxu0
        %4501 = vmatprep.mubr.f32.mxu0 0.0
        %4502 = vmatmul.mubr.f32.gmra.mrb[0].mxu0 %v4240
        %v4503 = vpop.f32.mrb[0].mxu0
        %v4504 = vadd.f32 %v3927, %v4503
        %v4505 = vpop.f32.mrb[0].mxu0
        %4506 = vmatprep.mubr.f32.mxu0 0.0
        %4507 = vmatmul.mubr.f32.gmra.mrb[0].mxu0 %v4243
        %v4508 = vpop.f32.mrb[0].mxu0
        %v4509 = vadd.f32 %v3932, %v4508
        %v4510 = vpop.f32.mrb[0].mxu0
        %4511 = vmatprep.mubr.f32.mxu0 0.0
        %4512 = vmatmul.mubr.f32.gmra.mrb[0].mxu0 %v4246
        %v4513 = vpop.f32.mrb[0].mxu0
        %v4514 = vadd.f32 %v3937, %v4513
        %v4515 = vpop.f32.mrb[0].mxu0
        %4516 = vmatprep.mubr.f32.mxu0 0.0
        %4517 = vmatmul.mubr.f32.gmra.mrb[0].mxu0 %v4249
        %v4518 = vpop.f32.mrb[0].mxu0
        %v4519 = vadd.f32 %v3942, %v4518
        %v4520 = vpop.f32.mrb[0].mxu0
        %4521 = vmatprep.mubr.f32.mxu0 0.0
        %4522 = vmatmul.mubr.f32.gmra.mrb[0].mxu0 %v4252
        %v4523 = vpop.f32.mrb[0].mxu0
        %v4524 = vadd.f32 %v3947, %v4523
        %v4525 = vpop.f32.mrb[0].mxu0
        %4526 = vmatprep.mubr.f32.mxu0 0.0
        %4527 = vmatmul.mubr.f32.gmra.mrb[0].mxu0 %v4255
        %v4528 = vpop.f32.mrb[0].mxu0
        %v4529 = vadd.f32 %v3952, %v4528
        %v4530 = vpop.f32.mrb[0].mxu0
        %4531 = vmatprep.mubr.f32.mxu0 0.0
        %4532 = vmatmul.mubr.f32.gmra.mrb[0].mxu0 %v4258
        %v4533 = vpop.f32.mrb[0].mxu0
        %v4534 = vadd.f32 %v3957, %v4533
        %v4535 = vpop.f32.mrb[0].mxu0
        %4536 = vmatprep.mubr.f32.mxu0 0.0
        %4537 = vmatmul.mubr.f32.gmra.mrb[0].mxu0 %v4261
        %v4538 = vpop.f32.mrb[0].mxu0
        %v4539 = vadd.f32 %v3962, %v4538
        %v4540 = vpop.f32.mrb[0].mxu0
        %4541 = vmatprep.mubr.f32.mxu0 0.0
        %4542 = vmatmul.mubr.f32.gmra.mrb[0].mxu0 %v4264
        %v4543 = vpop.f32.mrb[0].mxu0
        %v4544 = vadd.f32 %v3967, %v4543
        %v4545 = vpop.f32.mrb[0].mxu0
        %4546 = vmatprep.mubr.f32.mxu0 0.0
        %4547 = vmatmul.mubr.f32.gmra.mrb[0].mxu0 %v4267
        %v4548 = vpop.f32.mrb[0].mxu0
        %v4549 = vadd.f32 %v3972, %v4548
        %v4550 = vpop.f32.mrb[0].mxu0
        %4551 = vmatprep.mubr.f32.mxu0 0.0
        %4552 = vmatmul.mubr.f32.gmra.mrb[0].mxu0 %v4270
        %v4553 = vpop.f32.mrb[0].mxu0
        %v4554 = vadd.f32 %v3977, %v4553
        %v4555 = vpop.f32.mrb[0].mxu0
        %4556 = vmatprep.mubr.f32.mxu0 0.0
        %4557 = vmatmul.mubr.f32.gmra.mrb[0].mxu0 %v4273
        %v4558 = vpop.f32.mrb[0].mxu0
        %v4559 = vadd.f32 %v3982, %v4558
        %v4560 = vpop.f32.mrb[0].mxu0
        %4561 = vmatprep.mubr.f32.mxu0 0.0
        %4562 = vmatmul.mubr.f32.gmra.mrb[0].mxu0 %v4276
        %v4563 = vpop.f32.mrb[0].mxu0
        %v4564 = vadd.f32 %v3987, %v4563
        %v4565 = vpop.f32.mrb[0].mxu0
        %4566 = vmatprep.mubr.f32.mxu0 0.0
        %4567 = vmatmul.mubr.f32.gmra.mrb[0].mxu0 %v4279
        %v4568 = vpop.f32.mrb[0].mxu0
        %v4569 = vadd.f32 %v3992, %v4568
        %v4570 = vpop.f32.mrb[0].mxu0
        %4571 = vmatprep.mubr.f32.mxu0 0.0
        %4572 = vmatmul.mubr.f32.gmra.mrb[0].mxu0 %v4282
        %v4573 = vpop.f32.mrb[0].mxu0
        %v4574 = vadd.f32 %v3997, %v4573
        %v4575 = vpop.f32.mrb[0].mxu0
        %4576 = vmatprep.mubr.f32.mxu0 0.0
        %4577 = vmatmul.mubr.f32.gmra.mrb[0].mxu0 %v4285
        %v4578 = vpop.f32.mrb[0].mxu0
        %v4579 = vadd.f32 %v4002, %v4578
        %v4580 = vpop.f32.mrb[0].mxu0
        %4581 = vmatprep.mubr.f32.mxu0 0.0
        %4582 = vmatmul.mubr.f32.gmra.mrb[0].mxu0 %v4288
        %v4583 = vpop.f32.mrb[0].mxu0
        %v4584 = vadd.f32 %v4007, %v4583
        %v4585 = vpop.f32.mrb[0].mxu0
        %4586 = vmatprep.mubr.f32.mxu0 0.0
        %4587 = vmatmul.mubr.f32.gmra.mrb[0].mxu0 %v4291
        %v4588 = vpop.f32.mrb[0].mxu0
        %v4589 = vadd.f32 %v4012, %v4588
        %v4590 = vpop.f32.mrb[0].mxu0
        %4591 = vmatprep.mubr.f32.mxu0 0.0
        %4592 = vmatmul.mubr.f32.gmra.mrb[0].mxu0 %v4294
        %v4593 = vpop.f32.mrb[0].mxu0
        %v4594 = vadd.f32 %v4017, %v4593
        %v4595 = vpop.f32.mrb[0].mxu0
        %4596 = vmatprep.mubr.f32.mxu0 0.0
        %4597 = vmatmul.mubr.f32.gmra.mrb[0].mxu0 %v4297
        %v4598 = vpop.f32.mrb[0].mxu0
        %v4599 = vadd.f32 %v4022, %v4598
        %v4600 = vpop.f32.mrb[0].mxu0
        %4601 = vmatprep.mubr.f32.mxu0 0.0
        %4602 = vmatmul.mubr.f32.gmra.mrb[0].mxu0 %v4300
        %v4603 = vpop.f32.mrb[0].mxu0
        %v4604 = vadd.f32 %v4027, %v4603
        %v4605 = vpop.f32.mrb[0].mxu0
        %4606 = vmatprep.mubr.f32.mxu0 0.0
        %4607 = vmatmul.mubr.f32.gmra.mrb[0].mxu0 %v4303
        %v4608 = vpop.f32.mrb[0].mxu0
        %v4609 = vadd.f32 %v4032, %v4608
        %v4610 = vpop.f32.mrb[0].mxu0
        %4611 = vmatprep.mubr.f32.mxu0 0.0
        %4612 = vmatmul.mubr.f32.gmra.mrb[0].mxu0 %v4306
        %v4613 = vpop.f32.mrb[0].mxu0
        %v4614 = vadd.f32 %v4037, %v4613
        %v4615 = vpop.f32.mrb[0].mxu0
        %4616 = vmatprep.mubr.f32.mxu0 0.0
        %4617 = vmatmul.mubr.f32.gmra.mrb[0].mxu0 %v4309
        %v4618 = vpop.f32.mrb[0].mxu0
        %v4619 = vadd.f32 %v4042, %v4618
        %v4620 = vpop.f32.mrb[0].mxu0
        %4621 = vmatprep.mubr.f32.mxu0 0.0
        %4622 = vmatmul.mubr.f32.gmra.mrb[0].mxu0 %v4312
        %v4623 = vpop.f32.mrb[0].mxu0
        %v4624 = vadd.f32 %v4047, %v4623
        %v4625 = vpop.f32.mrb[0].mxu0
        %4626 = vmatprep.mubr.f32.mxu0 0.0
        %4627 = vmatmul.mubr.f32.gmra.mrb[0].mxu0 %v4315
        %v4628 = vpop.f32.mrb[0].mxu0
        %v4629 = vadd.f32 %v4052, %v4628
        %v4630 = vpop.f32.mrb[0].mxu0
        %4631 = vmatprep.mubr.f32.mxu0 0.0
        %4632 = vmatmul.mubr.f32.gmra.mrb[0].mxu0 %v4318
        %v4633 = vpop.f32.mrb[0].mxu0
        %v4634 = vadd.f32 %v4057, %v4633
        %v4635 = vpop.f32.mrb[0].mxu0
        %4636 = vmatprep.mubr.f32.mxu0 0.0
        %4637 = vmatmul.mubr.f32.gmra.mrb[0].mxu0 %v4321
        %v4638 = vpop.f32.mrb[0].mxu0
        %v4639 = vadd.f32 %v4062, %v4638
        %v4640 = vpop.f32.mrb[0].mxu0
        %4641 = vmatprep.mubr.f32.mxu0 0.0
        %4642 = vmatmul.mubr.f32.gmra.mrb[0].mxu0 %v4324
        %v4643 = vpop.f32.mrb[0].mxu0
        %v4644 = vadd.f32 %v4067, %v4643
        %v4645 = vpop.f32.mrb[0].mxu0
        %4646 = vmatprep.mubr.f32.mxu0 0.0
        %4647 = vmatmul.mubr.f32.gmra.mrb[0].mxu0 %v4327
        %v4648 = vpop.f32.mrb[0].mxu0
        %v4649 = vadd.f32 %v4072, %v4648
        %v4650 = vpop.f32.mrb[0].mxu0
        %4651 = vmatprep.mubr.f32.mxu0 0.0
        %4652 = vmatmul.mubr.f32.gmra.mrb[0].mxu0 %v4330
        %v4653 = vpop.f32.mrb[0].mxu0
        %v4654 = vadd.f32 %v4077, %v4653
        %v4655 = vpop.f32.mrb[0].mxu0
        %4656 = vmatprep.mubr.f32.mxu0 0.0
        %4657 = vmatmul.mubr.f32.gmra.mrb[0].mxu0 %v4333
        %v4658 = vpop.f32.mrb[0].mxu0
        %v4659 = vadd.f32 %v4082, %v4658
        %v4660 = vpop.f32.mrb[0].mxu0
        %4661 = vmatprep.mubr.f32.mxu0 0.0
        %4662 = vmatmul.mubr.f32.gmra.mrb[0].mxu0 %v4336
        %v4663 = vpop.f32.mrb[0].mxu0
        %v4664 = vadd.f32 %v4087, %v4663
        %v4665 = vpop.f32.mrb[0].mxu0
        %4666 = vmatprep.mubr.f32.mxu0 0.0
        %4667 = vmatmul.mubr.f32.gmra.mrb[0].mxu0 %v4339
        %v4668 = vpop.f32.mrb[0].mxu0
        %v4669 = vadd.f32 %v4092, %v4668
        %v4670 = vpop.f32.mrb[0].mxu0
        %4671 = vmatprep.mubr.f32.mxu0 0.0
        %4672 = vmatmul.mubr.f32.gmra.mrb[0].mxu0 %v4342
        %v4673 = vpop.f32.mrb[0].mxu0
        %v4674 = vadd.f32 %v4097, %v4673
        %v4675 = vpop.f32.mrb[0].mxu0
        %4676 = vmatprep.mubr.f32.mxu0 0.0
        %4677 = vmatmul.mubr.f32.gmra.mrb[0].mxu0 %v4345
        %v4678 = vpop.f32.mrb[0].mxu0
        %v4679 = vadd.f32 %v4102, %v4678
        %v4680 = vpop.f32.mrb[0].mxu0
        %4681 = vmatprep.mubr.f32.mxu0 0.0
        %4682 = vmatmul.mubr.f32.gmra.mrb[0].mxu0 %v4348
        %v4683 = vpop.f32.mrb[0].mxu0
        %v4684 = vadd.f32 %v4107, %v4683
        %v4685 = vpop.f32.mrb[0].mxu0
        %4686 = vmatprep.mubr.f32.mxu0 0.0
        %4687 = vmatmul.mubr.f32.gmra.mrb[0].mxu0 %v4351
        %v4688 = vpop.f32.mrb[0].mxu0
        %v4689 = vadd.f32 %v4112, %v4688
        %v4690 = vpop.f32.mrb[0].mxu0
        %4691 = vmatprep.mubr.f32.mxu0 0.0
        %4692 = vmatmul.mubr.f32.gmra.mrb[0].mxu0 %v4354
        %v4693 = vpop.f32.mrb[0].mxu0
        %v4694 = vadd.f32 %v4117, %v4693
        %v4695 = vpop.f32.mrb[0].mxu0
        %4696 = vmatprep.mubr.f32.mxu0 0.0
        %4697 = vmatmul.mubr.f32.gmra.mrb[0].mxu0 %v4357
        %v4698 = vpop.f32.mrb[0].mxu0
        %v4699 = vadd.f32 %v4122, %v4698
        %v4700 = vpop.f32.mrb[0].mxu0
        %4701 = vmatprep.mubr.f32.mxu0 0.0
        %4702 = vmatmul.mubr.f32.gmra.mrb[0].mxu0 %v4360
        %v4703 = vpop.f32.mrb[0].mxu0
        %v4704 = vadd.f32 %v4127, %v4703
        %v4705 = vpop.f32.mrb[0].mxu0
        %4706 = vmatprep.mubr.f32.mxu0 0.0
        %4707 = vmatmul.mubr.f32.gmra.mrb[0].mxu0 %v4363
        %v4708 = vpop.f32.mrb[0].mxu0
        %v4709 = vadd.f32 %v4132, %v4708
        %v4710 = vpop.f32.mrb[0].mxu0
        %4711 = vmatprep.mubr.f32.mxu0 0.0
        %4712 = vmatmul.mubr.f32.gmra.mrb[0].mxu0 %v4366
        %v4713 = vpop.f32.mrb[0].mxu0
        %v4714 = vadd.f32 %v4137, %v4713
        %v4715 = vpop.f32.mrb[0].mxu0
        %4716 = vmatprep.mubr.f32.mxu0 0.0
        %4717 = vmatmul.mubr.f32.gmra.mrb[0].mxu0 %v4369
        %v4718 = vpop.f32.mrb[0].mxu0
        %v4719 = vadd.f32 %v4142, %v4718
        %v4720 = vpop.f32.mrb[0].mxu0
        %4721 = vmatprep.mubr.f32.mxu0 0.0
        %4722 = vmatmul.mubr.f32.gmra.mrb[0].mxu0 %v4372
        %v4723 = vpop.f32.mrb[0].mxu0
        %v4724 = vadd.f32 %v4147, %v4723
        %v4725 = vpop.f32.mrb[0].mxu0
        %4726 = vmatprep.mubr.f32.mxu0 0.0
        %4727 = vmatmul.mubr.f32.gmra.mrb[0].mxu0 %v4375
        %v4728 = vpop.f32.mrb[0].mxu0
        %v4729 = vadd.f32 %v4152, %v4728
        %v4730 = vpop.f32.mrb[0].mxu0
        %4731 = vmatprep.mubr.f32.mxu0 0.0
        %4732 = vmatmul.mubr.f32.gmra.mrb[0].mxu0 %v4378
        %v4733 = vpop.f32.mrb[0].mxu0
        %v4734 = vadd.f32 %v4157, %v4733
        %v4735 = vpop.f32.mrb[0].mxu0
        %4736 = vmatprep.mubr.f32.mxu0 0.0
        %4737 = vmatmul.mubr.f32.gmra.mrb[0].mxu0 %v4381
        %v4738 = vpop.f32.mrb[0].mxu0
        %v4739 = vadd.f32 %v4162, %v4738
        %v4740 = vpop.f32.mrb[0].mxu0
        %4741 = vmatprep.mubr.f32.mxu0 0.0
        %4742 = vmatmul.mubr.f32.gmra.mrb[0].mxu0 %v4384
        %v4743 = vpop.f32.mrb[0].mxu0
        %v4744 = vadd.f32 %v4167, %v4743
        %v4745 = vpop.f32.mrb[0].mxu0
        %4746 = vmatprep.mubr.f32.mxu0 0.0
        %4747 = vmatmul.mubr.f32.gmra.mrb[0].mxu0 %v4387
        %v4748 = vpop.f32.mrb[0].mxu0
        %v4749 = vadd.f32 %v4172, %v4748
        %v4750 = vpop.f32.mrb[0].mxu0
        %4751 = vmatprep.mubr.f32.mxu0 0.0
        %4752 = vmatmul.mubr.f32.gmra.mrb[0].mxu0 %v4390
        %v4753 = vpop.f32.mrb[0].mxu0
        %v4754 = vadd.f32 %v4177, %v4753
        %v4755 = vpop.f32.mrb[0].mxu0
        %4756 = vmatprep.mubr.f32.mxu0 0.0
        %4757 = vmatmul.mubr.f32.gmra.mrb[0].mxu0 %v4393
        %v4758 = vpop.f32.mrb[0].mxu0
        %v4759 = vadd.f32 %v4182, %v4758
        %v4760 = vpop.f32.mrb[0].mxu0
        %4761 = vmatprep.mubr.f32.mxu0 0.0
        %4762 = vmatmul.mubr.f32.gmra.mrb[0].mxu0 %v4396
        %v4763 = vpop.f32.mrb[0].mxu0
        %v4764 = vadd.f32 %v4187, %v4763
        %v4765 = vpop.f32.mrb[0].mxu0
        %4766 = vmatprep.mubr.f32.mxu0 0.0
        %4767 = vmatmul.mubr.f32.gmra.mrb[0].mxu0 %v4399
        %v4768 = vpop.f32.mrb[0].mxu0
        %v4769 = vadd.f32 %v4192, %v4768
        %v4770 = vpop.f32.mrb[0].mxu0
        %4771 = vmatprep.mubr.f32.mxu0 0.0
        %4772 = vmatmul.mubr.f32.gmra.mrb[0].mxu0 %v4402
        %v4773 = vpop.f32.mrb[0].mxu0
        %v4774 = vadd.f32 %v4197, %v4773
        %v4775 = vpop.f32.mrb[0].mxu0
        %4776 = vmatprep.mubr.f32.mxu0 0.0
        %4777 = vmatmul.mubr.f32.gmra.mrb[0].mxu0 %v4405
        %v4778 = vpop.f32.mrb[0].mxu0
        %v4779 = vadd.f32 %v4202, %v4778
        %v4780 = vpop.f32.mrb[0].mxu0
        %4781 = vmatprep.mubr.f32.mxu0 0.0
        %4782 = vmatmul.mubr.f32.gmra.mrb[0].mxu0 %v4408
        %v4783 = vpop.f32.mrb[0].mxu0
        %v4784 = vadd.f32 %v4207, %v4783
        %v4785 = vpop.f32.mrb[0].mxu0
        %4786 = vmatprep.mubr.f32.mxu0 0.0
        %4787 = vmatmul.mubr.f32.gmra.mrb[0].mxu0 %v4411
        %v4788 = vpop.f32.mrb[0].mxu0
        %v4789 = vadd.f32 %v4212, %v4788
        %v4790 = vpop.f32.mrb[0].mxu0
        %4791 = vmatprep.mubr.f32.mxu0 0.0
        %4792 = vmatmul.mubr.f32.gmra.mrb[0].mxu0 %v4414
        %v4793 = vpop.f32.mrb[0].mxu0
        %v4794 = vadd.f32 %v4217, %v4793
        %v4795 = vpop.f32.mrb[0].mxu0
        %4796 = vmatprep.mubr.f32.mxu0 0.0
        %4797 = vmatmul.mubr.f32.gmra.mrb[0].mxu0 %v4417
        %v4798 = vpop.f32.mrb[0].mxu0
        %v4799 = vadd.f32 %v4222, %v4798
        %v4800 = vpop.f32.mrb[0].mxu0
        %4801 = vmatprep.mubr.f32.mxu0 0.0
        %4802 = vmatmul.mubr.f32.gmra.mrb[0].mxu0 %v4420
        %v4803 = vpop.f32.mrb[0].mxu0
        %v4804 = vadd.f32 %v4227, %v4803
        %v4805 = vpop.f32.mrb[0].mxu0
        %4806 = vdwg.mxu0
        %v4807 = vld [vmem:[%s2 + $0x348] sm:$0xff]
        %v4808 = vld [vmem:[%s2 + $0x350] sm:$0xff]
        %v4809 = vld [vmem:[%s2 + $0x358] sm:$0xff]
        %v4810 = vld [vmem:[%s2 + $0x360] sm:$0xff]
        %v4812 = vsel %vm3652, %v1211, 0
        %v4815 = vsel %vm3652, %v1216, 0
        %v4818 = vsel %vm3652, %v1221, 0
        %v4821 = vsel %vm3652, %v1226, 0
        %v4824 = vsel %vm3652, %v1372, 0
        %v4827 = vsel %vm3652, %v1377, 0
        %v4830 = vsel %vm3652, %v1382, 0
        %v4833 = vsel %vm3652, %v1387, 0
        %v4836 = vsel %vm3652, %v1533, 0
        %v4839 = vsel %vm3652, %v1538, 0
        %v4842 = vsel %vm3652, %v1543, 0
        %v4845 = vsel %vm3652, %v1548, 0
        %v4848 = vsel %vm3652, %v1694, 0
        %v4851 = vsel %vm3652, %v1699, 0
        %v4854 = vsel %vm3652, %v1704, 0
        %v4857 = vsel %vm3652, %v1709, 0
        %v4860 = vsel %vm3652, %v1855, 0
        %v4863 = vsel %vm3652, %v1860, 0
        %v4866 = vsel %vm3652, %v1865, 0
        %v4869 = vsel %vm3652, %v1870, 0
        %v4872 = vsel %vm3652, %v2016, 0
        %v4875 = vsel %vm3652, %v2021, 0
        %v4878 = vsel %vm3652, %v2026, 0
        %v4881 = vsel %vm3652, %v2031, 0
        %v4884 = vsel %vm3652, %v2177, 0
        %v4887 = vsel %vm3652, %v2182, 0
        %v4890 = vsel %vm3652, %v2187, 0
        %v4893 = vsel %vm3652, %v2192, 0
        %v4896 = vsel %vm3652, %v2338, 0
        %v4899 = vsel %vm3652, %v2343, 0
        %v4902 = vsel %vm3652, %v2348, 0
        %v4905 = vsel %vm3652, %v2353, 0
        %v4908 = vsel %vm3652, %v2499, 0
        %v4911 = vsel %vm3652, %v2504, 0
        %v4914 = vsel %vm3652, %v2509, 0
        %v4917 = vsel %vm3652, %v2514, 0
        %v4920 = vsel %vm3652, %v2660, 0
        %v4923 = vsel %vm3652, %v2665, 0
        %v4926 = vsel %vm3652, %v2670, 0
        %v4929 = vsel %vm3652, %v2675, 0
        %v4932 = vsel %vm3652, %v2821, 0
        %v4935 = vsel %vm3652, %v2826, 0
        %v4938 = vsel %vm3652, %v2831, 0
        %v4941 = vsel %vm3652, %v2836, 0
        %v4944 = vsel %vm3652, %v2982, 0
        %v4947 = vsel %vm3652, %v2987, 0
        %v4950 = vsel %vm3652, %v2992, 0
        %v4953 = vsel %vm3652, %v2997, 0
        %v4956 = vsel %vm3652, %v3143, 0
        %v4959 = vsel %vm3652, %v3148, 0
        %v4962 = vsel %vm3652, %v3153, 0
        %v4965 = vsel %vm3652, %v3158, 0
        %v4968 = vsel %vm3652, %v3304, 0
        %v4971 = vsel %vm3652, %v3309, 0
        %v4974 = vsel %vm3652, %v3314, 0
        %v4977 = vsel %vm3652, %v3319, 0
        %v4980 = vsel %vm3652, %v3465, 0
        %v4983 = vsel %vm3652, %v3470, 0
        %v4986 = vsel %vm3652, %v3475, 0
        %v4989 = vsel %vm3652, %v3480, 0
        %v4992 = vsel %vm3652, %v3626, 0
        %v4995 = vsel %vm3652, %v3631, 0
        %v4998 = vsel %vm3652, %v3636, 0
        %v5001 = vsel %vm3652, %v3641, 0
        %5003 = vmatprep.subr.mxu0 0.0
        %5004 = vmatpush1.msra.mxu0 %v4807
        %5005 = vmatprep.subr.mxu0 0.0
        %5006 = vmatpush1.msra.mxu0 %v4808
        %5007 = vmatprep.subr.mxu0 0.0
        %5008 = vmatpush1.msra.mxu0 %v4809
        %5009 = vmatprep.subr.mxu0 0.0
        %5010 = vmatpush1.msra.mxu0 %v4810
        %5011 = vmatprep.subr.mxu0 0.0
        %5012 = vmatpush1.msra.mxu0 0.0
        %5013 = vmatprep.subr.mxu0 0.0
        %5014 = vmatpush1.msra.mxu0 0.0
        %5015 = vmatprep.subr.mxu0 0.0
        %5016 = vmatpush1.msra.mxu0 0.0
        %5017 = vmatprep.subr.mxu0 0.0
        %5018 = vmatpush1.msra.mxu0 0.0
        %5019 = vmatprep.subr.mxu0 0.0
        %5020 = vmatpush1.msra.mxu0 0.0
        %5021 = vmatprep.subr.mxu0 0.0
        %5022 = vmatpush1.msra.mxu0 0.0
        %5023 = vmatprep.subr.mxu0 0.0
        %5024 = vmatpush1.msra.mxu0 0.0
        %5025 = vmatprep.subr.mxu0 0.0
        %5026 = vmatpush1.msra.mxu0 0.0
        %5027 = vmatprep.subr.mxu0 0.0
        %5028 = vmatpush1.msra.mxu0 0.0
        %5029 = vmatprep.subr.mxu0 0.0
        %5030 = vmatpush1.msra.mxu0 0.0
        %5031 = vmatprep.subr.mxu0 0.0
        %5032 = vmatpush1.msra.mxu0 0.0
        %5033 = vmatprep.subr.mxu0 0.0
        %5034 = vmatpush1.msra.mxu0 0.0
        %5035 = vmatprep.subr.mxu0 0.0
        %5036 = vmatpush1.msra.mxu0 0.0
        %5037 = vmatprep.subr.mxu0 0.0
        %5038 = vmatpush1.msra.mxu0 0.0
        %5039 = vmatprep.subr.mxu0 0.0
        %5040 = vmatpush1.msra.mxu0 0.0
        %5041 = vmatprep.subr.mxu0 0.0
        %5042 = vmatpush1.msra.mxu0 0.0
        %5043 = vmatprep.subr.mxu0 0.0
        %5044 = vmatpush1.msra.mxu0 0.0
        %5045 = vmatprep.subr.mxu0 0.0
        %5046 = vmatpush1.msra.mxu0 0.0
        %5047 = vmatprep.subr.mxu0 0.0
        %5048 = vmatpush1.msra.mxu0 0.0
        %5049 = vmatprep.subr.mxu0 0.0
        %5050 = vmatpush1.msra.mxu0 0.0
        %5051 = vmatprep.subr.mxu0 0.0
        %5052 = vmatpush1.msra.mxu0 0.0
        %5053 = vmatprep.subr.mxu0 0.0
        %5054 = vmatpush1.msra.mxu0 0.0
        %5055 = vmatprep.subr.mxu0 0.0
        %5056 = vmatpush1.msra.mxu0 0.0
        %5057 = vmatprep.subr.mxu0 0.0
        %5058 = vmatpush1.msra.mxu0 0.0
        %5059 = vmatprep.subr.mxu0 0.0
        %5060 = vmatpush1.msra.mxu0 0.0
        %5061 = vmatprep.subr.mxu0 0.0
        %5062 = vmatpush1.msra.mxu0 0.0
        %5063 = vmatprep.subr.mxu0 0.0
        %5064 = vmatpush1.msra.mxu0 0.0
        %5065 = vmatprep.subr.mxu0 0.0
        %5066 = vmatpush1.msra.mxu0 0.0
        %5067 = vmatprep.mubr.f32.mxu0 0.0
        %5068 = vmatmul.mubr.f32.gmra.mrb[0].mxu0 %v4812
        %v5069 = vpop.f32.mrb[0].mxu0
        %v5070 = vadd.f32 0.0, %v5069
        %v5071 = vpop.f32.mrb[0].mxu0
        %5072 = vmatprep.mubr.f32.mxu0 0.0
        %5073 = vmatmul.mubr.f32.gmra.mrb[0].mxu0 %v4815
        %v5074 = vpop.f32.mrb[0].mxu0
        %v5075 = vadd.f32 0.0, %v5074
        %v5076 = vpop.f32.mrb[0].mxu0
        %5077 = vmatprep.mubr.f32.mxu0 0.0
        %5078 = vmatmul.mubr.f32.gmra.mrb[0].mxu0 %v4818
        %v5079 = vpop.f32.mrb[0].mxu0
        %v5080 = vadd.f32 0.0, %v5079
        %v5081 = vpop.f32.mrb[0].mxu0
        %5082 = vmatprep.mubr.f32.mxu0 0.0
        %5083 = vmatmul.mubr.f32.gmra.mrb[0].mxu0 %v4821
        %v5084 = vpop.f32.mrb[0].mxu0
        %v5085 = vadd.f32 0.0, %v5084
        %v5086 = vpop.f32.mrb[0].mxu0
        %5087 = vmatprep.mubr.f32.mxu0 0.0
        %5088 = vmatmul.mubr.f32.gmra.mrb[0].mxu0 %v4824
        %v5089 = vpop.f32.mrb[0].mxu0
        %v5090 = vadd.f32 0.0, %v5089
        %v5091 = vpop.f32.mrb[0].mxu0
        %5092 = vmatprep.mubr.f32.mxu0 0.0
        %5093 = vmatmul.mubr.f32.gmra.mrb[0].mxu0 %v4827
        %v5094 = vpop.f32.mrb[0].mxu0
        %v5095 = vadd.f32 0.0, %v5094
        %v5096 = vpop.f32.mrb[0].mxu0
        %5097 = vmatprep.mubr.f32.mxu0 0.0
        %5098 = vmatmul.mubr.f32.gmra.mrb[0].mxu0 %v4830
        %v5099 = vpop.f32.mrb[0].mxu0
        %v5100 = vadd.f32 0.0, %v5099
        %v5101 = vpop.f32.mrb[0].mxu0
        %5102 = vmatprep.mubr.f32.mxu0 0.0
        %5103 = vmatmul.mubr.f32.gmra.mrb[0].mxu0 %v4833
        %v5104 = vpop.f32.mrb[0].mxu0
        %v5105 = vadd.f32 0.0, %v5104
        %v5106 = vpop.f32.mrb[0].mxu0
        %5107 = vmatprep.mubr.f32.mxu0 0.0
        %5108 = vmatmul.mubr.f32.gmra.mrb[0].mxu0 %v4836
        %v5109 = vpop.f32.mrb[0].mxu0
        %v5110 = vadd.f32 0.0, %v5109
        %v5111 = vpop.f32.mrb[0].mxu0
        %5112 = vmatprep.mubr.f32.mxu0 0.0
        %5113 = vmatmul.mubr.f32.gmra.mrb[0].mxu0 %v4839
        %v5114 = vpop.f32.mrb[0].mxu0
        %v5115 = vadd.f32 0.0, %v5114
        %v5116 = vpop.f32.mrb[0].mxu0
        %5117 = vmatprep.mubr.f32.mxu0 0.0
        %5118 = vmatmul.mubr.f32.gmra.mrb[0].mxu0 %v4842
        %v5119 = vpop.f32.mrb[0].mxu0
        %v5120 = vadd.f32 0.0, %v5119
        %v5121 = vpop.f32.mrb[0].mxu0
        %5122 = vmatprep.mubr.f32.mxu0 0.0
        %5123 = vmatmul.mubr.f32.gmra.mrb[0].mxu0 %v4845
        %v5124 = vpop.f32.mrb[0].mxu0
        %v5125 = vadd.f32 0.0, %v5124
        %v5126 = vpop.f32.mrb[0].mxu0
        %5127 = vmatprep.mubr.f32.mxu0 0.0
        %5128 = vmatmul.mubr.f32.gmra.mrb[0].mxu0 %v4848
        %v5129 = vpop.f32.mrb[0].mxu0
        %v5130 = vadd.f32 0.0, %v5129
        %v5131 = vpop.f32.mrb[0].mxu0
        %5132 = vmatprep.mubr.f32.mxu0 0.0
        %5133 = vmatmul.mubr.f32.gmra.mrb[0].mxu0 %v4851
        %v5134 = vpop.f32.mrb[0].mxu0
        %v5135 = vadd.f32 0.0, %v5134
        %v5136 = vpop.f32.mrb[0].mxu0
        %5137 = vmatprep.mubr.f32.mxu0 0.0
        %5138 = vmatmul.mubr.f32.gmra.mrb[0].mxu0 %v4854
        %v5139 = vpop.f32.mrb[0].mxu0
        %v5140 = vadd.f32 0.0, %v5139
        %v5141 = vpop.f32.mrb[0].mxu0
        %5142 = vmatprep.mubr.f32.mxu0 0.0
        %5143 = vmatmul.mubr.f32.gmra.mrb[0].mxu0 %v4857
        %v5144 = vpop.f32.mrb[0].mxu0
        %v5145 = vadd.f32 0.0, %v5144
        %v5146 = vpop.f32.mrb[0].mxu0
        %5147 = vmatprep.mubr.f32.mxu0 0.0
        %5148 = vmatmul.mubr.f32.gmra.mrb[0].mxu0 %v4860
        %v5149 = vpop.f32.mrb[0].mxu0
        %v5150 = vadd.f32 0.0, %v5149
        %v5151 = vpop.f32.mrb[0].mxu0
        %5152 = vmatprep.mubr.f32.mxu0 0.0
        %5153 = vmatmul.mubr.f32.gmra.mrb[0].mxu0 %v4863
        %v5154 = vpop.f32.mrb[0].mxu0
        %v5155 = vadd.f32 0.0, %v5154
        %v5156 = vpop.f32.mrb[0].mxu0
        %5157 = vmatprep.mubr.f32.mxu0 0.0
        %5158 = vmatmul.mubr.f32.gmra.mrb[0].mxu0 %v4866
        %v5159 = vpop.f32.mrb[0].mxu0
        %v5160 = vadd.f32 0.0, %v5159
        %v5161 = vpop.f32.mrb[0].mxu0
        %5162 = vmatprep.mubr.f32.mxu0 0.0
        %5163 = vmatmul.mubr.f32.gmra.mrb[0].mxu0 %v4869
        %v5164 = vpop.f32.mrb[0].mxu0
        %v5165 = vadd.f32 0.0, %v5164
        %v5166 = vpop.f32.mrb[0].mxu0
        %5167 = vmatprep.mubr.f32.mxu0 0.0
        %5168 = vmatmul.mubr.f32.gmra.mrb[0].mxu0 %v4872
        %v5169 = vpop.f32.mrb[0].mxu0
        %v5170 = vadd.f32 0.0, %v5169
        %v5171 = vpop.f32.mrb[0].mxu0
        %5172 = vmatprep.mubr.f32.mxu0 0.0
        %5173 = vmatmul.mubr.f32.gmra.mrb[0].mxu0 %v4875
        %v5174 = vpop.f32.mrb[0].mxu0
        %v5175 = vadd.f32 0.0, %v5174
        %v5176 = vpop.f32.mrb[0].mxu0
        %5177 = vmatprep.mubr.f32.mxu0 0.0
        %5178 = vmatmul.mubr.f32.gmra.mrb[0].mxu0 %v4878
        %v5179 = vpop.f32.mrb[0].mxu0
        %v5180 = vadd.f32 0.0, %v5179
        %v5181 = vpop.f32.mrb[0].mxu0
        %5182 = vmatprep.mubr.f32.mxu0 0.0
        %5183 = vmatmul.mubr.f32.gmra.mrb[0].mxu0 %v4881
        %v5184 = vpop.f32.mrb[0].mxu0
        %v5185 = vadd.f32 0.0, %v5184
        %v5186 = vpop.f32.mrb[0].mxu0
        %5187 = vmatprep.mubr.f32.mxu0 0.0
        %5188 = vmatmul.mubr.f32.gmra.mrb[0].mxu0 %v4884
        %v5189 = vpop.f32.mrb[0].mxu0
        %v5190 = vadd.f32 0.0, %v5189
        %v5191 = vpop.f32.mrb[0].mxu0
        %5192 = vmatprep.mubr.f32.mxu0 0.0
        %5193 = vmatmul.mubr.f32.gmra.mrb[0].mxu0 %v4887
        %v5194 = vpop.f32.mrb[0].mxu0
        %v5195 = vadd.f32 0.0, %v5194
        %v5196 = vpop.f32.mrb[0].mxu0
        %5197 = vmatprep.mubr.f32.mxu0 0.0
        %5198 = vmatmul.mubr.f32.gmra.mrb[0].mxu0 %v4890
        %v5199 = vpop.f32.mrb[0].mxu0
        %v5200 = vadd.f32 0.0, %v5199
        %v5201 = vpop.f32.mrb[0].mxu0
        %5202 = vmatprep.mubr.f32.mxu0 0.0
        %5203 = vmatmul.mubr.f32.gmra.mrb[0].mxu0 %v4893
        %v5204 = vpop.f32.mrb[0].mxu0
        %v5205 = vadd.f32 0.0, %v5204
        %v5206 = vpop.f32.mrb[0].mxu0
        %5207 = vmatprep.mubr.f32.mxu0 0.0
        %5208 = vmatmul.mubr.f32.gmra.mrb[0].mxu0 %v4896
        %v5209 = vpop.f32.mrb[0].mxu0
        %v5210 = vadd.f32 0.0, %v5209
        %v5211 = vpop.f32.mrb[0].mxu0
        %5212 = vmatprep.mubr.f32.mxu0 0.0
        %5213 = vmatmul.mubr.f32.gmra.mrb[0].mxu0 %v4899
        %v5214 = vpop.f32.mrb[0].mxu0
        %v5215 = vadd.f32 0.0, %v5214
        %v5216 = vpop.f32.mrb[0].mxu0
        %5217 = vmatprep.mubr.f32.mxu0 0.0
        %5218 = vmatmul.mubr.f32.gmra.mrb[0].mxu0 %v4902
        %v5219 = vpop.f32.mrb[0].mxu0
        %v5220 = vadd.f32 0.0, %v5219
        %v5221 = vpop.f32.mrb[0].mxu0
        %5222 = vmatprep.mubr.f32.mxu0 0.0
        %5223 = vmatmul.mubr.f32.gmra.mrb[0].mxu0 %v4905
        %v5224 = vpop.f32.mrb[0].mxu0
        %v5225 = vadd.f32 0.0, %v5224
        %v5226 = vpop.f32.mrb[0].mxu0
        %5227 = vmatprep.mubr.f32.mxu0 0.0
        %5228 = vmatmul.mubr.f32.gmra.mrb[0].mxu0 %v4908
        %v5229 = vpop.f32.mrb[0].mxu0
        %v5230 = vadd.f32 0.0, %v5229
        %v5231 = vpop.f32.mrb[0].mxu0
        %5232 = vmatprep.mubr.f32.mxu0 0.0
        %5233 = vmatmul.mubr.f32.gmra.mrb[0].mxu0 %v4911
        %v5234 = vpop.f32.mrb[0].mxu0
        %v5235 = vadd.f32 0.0, %v5234
        %v5236 = vpop.f32.mrb[0].mxu0
        %5237 = vmatprep.mubr.f32.mxu0 0.0
        %5238 = vmatmul.mubr.f32.gmra.mrb[0].mxu0 %v4914
        %v5239 = vpop.f32.mrb[0].mxu0
        %v5240 = vadd.f32 0.0, %v5239
        %v5241 = vpop.f32.mrb[0].mxu0
        %5242 = vmatprep.mubr.f32.mxu0 0.0
        %5243 = vmatmul.mubr.f32.gmra.mrb[0].mxu0 %v4917
        %v5244 = vpop.f32.mrb[0].mxu0
        %v5245 = vadd.f32 0.0, %v5244
        %v5246 = vpop.f32.mrb[0].mxu0
        %5247 = vmatprep.mubr.f32.mxu0 0.0
        %5248 = vmatmul.mubr.f32.gmra.mrb[0].mxu0 %v4920
        %v5249 = vpop.f32.mrb[0].mxu0
        %v5250 = vadd.f32 0.0, %v5249
        %v5251 = vpop.f32.mrb[0].mxu0
        %5252 = vmatprep.mubr.f32.mxu0 0.0
        %5253 = vmatmul.mubr.f32.gmra.mrb[0].mxu0 %v4923
        %v5254 = vpop.f32.mrb[0].mxu0
        %v5255 = vadd.f32 0.0, %v5254
        %v5256 = vpop.f32.mrb[0].mxu0
        %5257 = vmatprep.mubr.f32.mxu0 0.0
        %5258 = vmatmul.mubr.f32.gmra.mrb[0].mxu0 %v4926
        %v5259 = vpop.f32.mrb[0].mxu0
        %v5260 = vadd.f32 0.0, %v5259
        %v5261 = vpop.f32.mrb[0].mxu0
        %5262 = vmatprep.mubr.f32.mxu0 0.0
        %5263 = vmatmul.mubr.f32.gmra.mrb[0].mxu0 %v4929
        %v5264 = vpop.f32.mrb[0].mxu0
        %v5265 = vadd.f32 0.0, %v5264
        %v5266 = vpop.f32.mrb[0].mxu0
        %5267 = vmatprep.mubr.f32.mxu0 0.0
        %5268 = vmatmul.mubr.f32.gmra.mrb[0].mxu0 %v4932
        %v5269 = vpop.f32.mrb[0].mxu0
        %v5270 = vadd.f32 0.0, %v5269
        %v5271 = vpop.f32.mrb[0].mxu0
        %5272 = vmatprep.mubr.f32.mxu0 0.0
        %5273 = vmatmul.mubr.f32.gmra.mrb[0].mxu0 %v4935
        %v5274 = vpop.f32.mrb[0].mxu0
        %v5275 = vadd.f32 0.0, %v5274
        %v5276 = vpop.f32.mrb[0].mxu0
        %5277 = vmatprep.mubr.f32.mxu0 0.0
        %5278 = vmatmul.mubr.f32.gmra.mrb[0].mxu0 %v4938
        %v5279 = vpop.f32.mrb[0].mxu0
        %v5280 = vadd.f32 0.0, %v5279
        %v5281 = vpop.f32.mrb[0].mxu0
        %5282 = vmatprep.mubr.f32.mxu0 0.0
        %5283 = vmatmul.mubr.f32.gmra.mrb[0].mxu0 %v4941
        %v5284 = vpop.f32.mrb[0].mxu0
        %v5285 = vadd.f32 0.0, %v5284
        %v5286 = vpop.f32.mrb[0].mxu0
        %5287 = vmatprep.mubr.f32.mxu0 0.0
        %5288 = vmatmul.mubr.f32.gmra.mrb[0].mxu0 %v4944
        %v5289 = vpop.f32.mrb[0].mxu0
        %v5290 = vadd.f32 0.0, %v5289
        %v5291 = vpop.f32.mrb[0].mxu0
        %5292 = vmatprep.mubr.f32.mxu0 0.0
        %5293 = vmatmul.mubr.f32.gmra.mrb[0].mxu0 %v4947
        %v5294 = vpop.f32.mrb[0].mxu0
        %v5295 = vadd.f32 0.0, %v5294
        %v5296 = vpop.f32.mrb[0].mxu0
        %5297 = vmatprep.mubr.f32.mxu0 0.0
        %5298 = vmatmul.mubr.f32.gmra.mrb[0].mxu0 %v4950
        %v5299 = vpop.f32.mrb[0].mxu0
        %v5300 = vadd.f32 0.0, %v5299
        %v5301 = vpop.f32.mrb[0].mxu0
        %5302 = vmatprep.mubr.f32.mxu0 0.0
        %5303 = vmatmul.mubr.f32.gmra.mrb[0].mxu0 %v4953
        %v5304 = vpop.f32.mrb[0].mxu0
        %v5305 = vadd.f32 0.0, %v5304
        %v5306 = vpop.f32.mrb[0].mxu0
        %5307 = vmatprep.mubr.f32.mxu0 0.0
        %5308 = vmatmul.mubr.f32.gmra.mrb[0].mxu0 %v4956
        %v5309 = vpop.f32.mrb[0].mxu0
        %v5310 = vadd.f32 0.0, %v5309
        %v5311 = vpop.f32.mrb[0].mxu0
        %5312 = vmatprep.mubr.f32.mxu0 0.0
        %5313 = vmatmul.mubr.f32.gmra.mrb[0].mxu0 %v4959
        %v5314 = vpop.f32.mrb[0].mxu0
        %v5315 = vadd.f32 0.0, %v5314
        %v5316 = vpop.f32.mrb[0].mxu0
        %5317 = vmatprep.mubr.f32.mxu0 0.0
        %5318 = vmatmul.mubr.f32.gmra.mrb[0].mxu0 %v4962
        %v5319 = vpop.f32.mrb[0].mxu0
        %v5320 = vadd.f32 0.0, %v5319
        %v5321 = vpop.f32.mrb[0].mxu0
        %5322 = vmatprep.mubr.f32.mxu0 0.0
        %5323 = vmatmul.mubr.f32.gmra.mrb[0].mxu0 %v4965
        %v5324 = vpop.f32.mrb[0].mxu0
        %v5325 = vadd.f32 0.0, %v5324
        %v5326 = vpop.f32.mrb[0].mxu0
        %5327 = vmatprep.mubr.f32.mxu0 0.0
        %5328 = vmatmul.mubr.f32.gmra.mrb[0].mxu0 %v4968
        %v5329 = vpop.f32.mrb[0].mxu0
        %v5330 = vadd.f32 0.0, %v5329
        %v5331 = vpop.f32.mrb[0].mxu0
        %5332 = vmatprep.mubr.f32.mxu0 0.0
        %5333 = vmatmul.mubr.f32.gmra.mrb[0].mxu0 %v4971
        %v5334 = vpop.f32.mrb[0].mxu0
        %v5335 = vadd.f32 0.0, %v5334
        %v5336 = vpop.f32.mrb[0].mxu0
        %5337 = vmatprep.mubr.f32.mxu0 0.0
        %5338 = vmatmul.mubr.f32.gmra.mrb[0].mxu0 %v4974
        %v5339 = vpop.f32.mrb[0].mxu0
        %v5340 = vadd.f32 0.0, %v5339
        %v5341 = vpop.f32.mrb[0].mxu0
        %5342 = vmatprep.mubr.f32.mxu0 0.0
        %5343 = vmatmul.mubr.f32.gmra.mrb[0].mxu0 %v4977
        %v5344 = vpop.f32.mrb[0].mxu0
        %v5345 = vadd.f32 0.0, %v5344
        %v5346 = vpop.f32.mrb[0].mxu0
        %5347 = vmatprep.mubr.f32.mxu0 0.0
        %5348 = vmatmul.mubr.f32.gmra.mrb[0].mxu0 %v4980
        %v5349 = vpop.f32.mrb[0].mxu0
        %v5350 = vadd.f32 0.0, %v5349
        %v5351 = vpop.f32.mrb[0].mxu0
        %5352 = vmatprep.mubr.f32.mxu0 0.0
        %5353 = vmatmul.mubr.f32.gmra.mrb[0].mxu0 %v4983
        %v5354 = vpop.f32.mrb[0].mxu0
        %v5355 = vadd.f32 0.0, %v5354
        %v5356 = vpop.f32.mrb[0].mxu0
        %5357 = vmatprep.mubr.f32.mxu0 0.0
        %5358 = vmatmul.mubr.f32.gmra.mrb[0].mxu0 %v4986
        %v5359 = vpop.f32.mrb[0].mxu0
        %v5360 = vadd.f32 0.0, %v5359
        %v5361 = vpop.f32.mrb[0].mxu0
        %5362 = vmatprep.mubr.f32.mxu0 0.0
        %5363 = vmatmul.mubr.f32.gmra.mrb[0].mxu0 %v4989
        %v5364 = vpop.f32.mrb[0].mxu0
        %v5365 = vadd.f32 0.0, %v5364
        %v5366 = vpop.f32.mrb[0].mxu0
        %5367 = vmatprep.mubr.f32.mxu0 0.0
        %5368 = vmatmul.mubr.f32.gmra.mrb[0].mxu0 %v4992
        %v5369 = vpop.f32.mrb[0].mxu0
        %v5370 = vadd.f32 0.0, %v5369
        %v5371 = vpop.f32.mrb[0].mxu0
        %5372 = vmatprep.mubr.f32.mxu0 0.0
        %5373 = vmatmul.mubr.f32.gmra.mrb[0].mxu0 %v4995
        %v5374 = vpop.f32.mrb[0].mxu0
        %v5375 = vadd.f32 0.0, %v5374
        %v5376 = vpop.f32.mrb[0].mxu0
        %5377 = vmatprep.mubr.f32.mxu0 0.0
        %5378 = vmatmul.mubr.f32.gmra.mrb[0].mxu0 %v4998
        %v5379 = vpop.f32.mrb[0].mxu0
        %v5380 = vadd.f32 0.0, %v5379
        %v5381 = vpop.f32.mrb[0].mxu0
        %5382 = vmatprep.mubr.f32.mxu0 0.0
        %5383 = vmatmul.mubr.f32.gmra.mrb[0].mxu0 %v5001
        %v5384 = vpop.f32.mrb[0].mxu0
        %v5385 = vadd.f32 0.0, %v5384
        %v5386 = vpop.f32.mrb[0].mxu0
        %5387 = vdwg.mxu0
        %v5388 = vadd.f32 %v4489, %v5070
        %v5389 = vadd.f32 %v4494, %v5075
        %v5390 = vadd.f32 %v4499, %v5080
        %v5391 = vadd.f32 %v4504, %v5085
        %v5392 = vadd.f32 %v4509, %v5090
        %v5393 = vadd.f32 %v4514, %v5095
        %v5394 = vadd.f32 %v4519, %v5100
        %v5395 = vadd.f32 %v4524, %v5105
        %v5396 = vadd.f32 %v4529, %v5110
        %v5397 = vadd.f32 %v4534, %v5115
        %v5398 = vadd.f32 %v4539, %v5120
        %v5399 = vadd.f32 %v4544, %v5125
        %v5400 = vadd.f32 %v4549, %v5130
        %v5401 = vadd.f32 %v4554, %v5135
        %v5402 = vadd.f32 %v4559, %v5140
        %v5403 = vadd.f32 %v4564, %v5145
        %v5404 = vadd.f32 %v4569, %v5150
        %v5405 = vadd.f32 %v4574, %v5155
        %v5406 = vadd.f32 %v4579, %v5160
        %v5407 = vadd.f32 %v4584, %v5165
        %v5408 = vadd.f32 %v4589, %v5170
        %v5409 = vadd.f32 %v4594, %v5175
        %v5410 = vadd.f32 %v4599, %v5180
        %v5411 = vadd.f32 %v4604, %v5185
        %v5412 = vadd.f32 %v4609, %v5190
        %v5413 = vadd.f32 %v4614, %v5195
        %v5414 = vadd.f32 %v4619, %v5200
        %v5415 = vadd.f32 %v4624, %v5205
        %v5416 = vadd.f32 %v4629, %v5210
        %v5417 = vadd.f32 %v4634, %v5215
        %v5418 = vadd.f32 %v4639, %v5220
        %v5419 = vadd.f32 %v4644, %v5225
        %v5420 = vadd.f32 %v4649, %v5230
        %v5421 = vadd.f32 %v4654, %v5235
        %v5422 = vadd.f32 %v4659, %v5240
        %v5423 = vadd.f32 %v4664, %v5245
        %v5424 = vadd.f32 %v4669, %v5250
        %v5425 = vadd.f32 %v4674, %v5255
        %v5426 = vadd.f32 %v4679, %v5260
        %v5427 = vadd.f32 %v4684, %v5265
        %v5428 = vadd.f32 %v4689, %v5270
        %v5429 = vadd.f32 %v4694, %v5275
        %v5430 = vadd.f32 %v4699, %v5280
        %v5431 = vadd.f32 %v4704, %v5285
        %v5432 = vadd.f32 %v4709, %v5290
        %v5433 = vadd.f32 %v4714, %v5295
        %v5434 = vadd.f32 %v4719, %v5300
        %v5435 = vadd.f32 %v4724, %v5305
        %v5436 = vadd.f32 %v4729, %v5310
        %v5437 = vadd.f32 %v4734, %v5315
        %v5438 = vadd.f32 %v4739, %v5320
        %v5439 = vadd.f32 %v4744, %v5325
        %v5440 = vadd.f32 %v4749, %v5330
        %v5441 = vadd.f32 %v4754, %v5335
        %v5442 = vadd.f32 %v4759, %v5340
        %v5443 = vadd.f32 %v4764, %v5345
        %v5444 = vadd.f32 %v4769, %v5350
        %v5445 = vadd.f32 %v4774, %v5355
        %v5446 = vadd.f32 %v4779, %v5360
        %v5447 = vadd.f32 %v4784, %v5365
        %v5448 = vadd.f32 %v4789, %v5370
        %v5449 = vadd.f32 %v4794, %v5375
        %v5450 = vadd.f32 %v4799, %v5380
        %v5451 = vadd.f32 %v4804, %v5385
        %v5452 = vtanh.pop %v5388
        %v5453 = vtanh.pop %v5389
        %v5454 = vtanh.pop %v5390
        %v5455 = vtanh.pop %v5391
        %v5456 = vtanh.pop %v5392
        %v5457 = vtanh.pop %v5393
        %v5458 = vtanh.pop %v5394
        %v5459 = vtanh.pop %v5395
        %v5460 = vtanh.pop %v5396
        %v5461 = vtanh.pop %v5397
        %v5462 = vtanh.pop %v5398
        %v5463 = vtanh.pop %v5399
        %v5464 = vtanh.pop %v5400
        %v5465 = vtanh.pop %v5401
        %v5466 = vtanh.pop %v5402
        %v5467 = vtanh.pop %v5403
        %v5468 = vtanh.pop %v5404
        %v5469 = vtanh.pop %v5405
        %v5470 = vtanh.pop %v5406
        %v5471 = vtanh.pop %v5407
        %v5472 = vtanh.pop %v5408
        %v5473 = vtanh.pop %v5409
        %v5474 = vtanh.pop %v5410
        %v5475 = vtanh.pop %v5411
        %v5476 = vtanh.pop %v5412
        %v5477 = vtanh.pop %v5413
        %v5478 = vtanh.pop %v5414
        %v5479 = vtanh.pop %v5415
        %v5480 = vtanh.pop %v5416
        %v5481 = vtanh.pop %v5417
        %v5482 = vtanh.pop %v5418
        %v5483 = vtanh.pop %v5419
        %v5484 = vtanh.pop %v5420
        %v5485 = vtanh.pop %v5421
        %v5486 = vtanh.pop %v5422
        %v5487 = vtanh.pop %v5423
        %v5488 = vtanh.pop %v5424
        %v5489 = vtanh.pop %v5425
        %v5490 = vtanh.pop %v5426
        %v5491 = vtanh.pop %v5427
        %v5492 = vtanh.pop %v5428
        %v5493 = vtanh.pop %v5429
        %v5494 = vtanh.pop %v5430
        %v5495 = vtanh.pop %v5431
        %v5496 = vtanh.pop %v5432
        %v5497 = vtanh.pop %v5433
        %v5498 = vtanh.pop %v5434
        %v5499 = vtanh.pop %v5435
        %v5500 = vtanh.pop %v5436
        %v5501 = vtanh.pop %v5437
        %v5502 = vtanh.pop %v5438
        %v5503 = vtanh.pop %v5439
        %v5504 = vtanh.pop %v5440
        %v5505 = vtanh.pop %v5441
        %v5506 = vtanh.pop %v5442
        %v5507 = vtanh.pop %v5443
        %v5508 = vtanh.pop %v5444
        %v5509 = vtanh.pop %v5445
        %v5510 = vtanh.pop %v5446
        %v5511 = vtanh.pop %v5447
        %v5512 = vtanh.pop %v5448
        %v5513 = vtanh.pop %v5449
        %v5514 = vtanh.pop %v5450
        %v5515 = vtanh.pop %v5451
        %v5516 = vld [vmem:[%s2 + $0x368] sm:$0xff]
        %v5517 = vld [vmem:[%s2 + $0x370] sm:$0xff]
        %v5518 = vld [vmem:[%s2 + $0x378] sm:$0xff]
        %v5519 = vld [vmem:[%s2 + $0x380] sm:$0xff]
        %v5520 = vld [vmem:[%s2 + $0x388] sm:$0xff]
        %v5521 = vld [vmem:[%s2 + $0x390] sm:$0xff]
        %v5522 = vld [vmem:[%s2 + $0x398] sm:$0xff]
        %v5523 = vld [vmem:[%s2 + $0x3a0] sm:$0xff]
        %5524 = vmatprep.subr.mxu0 0.0
        %5525 = vmatpush1.msra.mxu0 %v5520
        %5526 = vmatprep.subr.mxu0 0.0
        %5527 = vmatpush1.msra.mxu0 %v5521
        %5528 = vmatprep.subr.mxu0 0.0
        %5529 = vmatpush1.msra.mxu0 %v5522
        %5530 = vmatprep.subr.mxu0 0.0
        %5531 = vmatpush1.msra.mxu0 %v5523
        %5532 = vmatprep.subr.mxu0 0.0
        %5533 = vmatpush1.msra.mxu0 0.0
        %5534 = vmatprep.subr.mxu0 0.0
        %5535 = vmatpush1.msra.mxu0 0.0
        %5536 = vmatprep.subr.mxu0 0.0
        %5537 = vmatpush1.msra.mxu0 0.0
        %5538 = vmatprep.subr.mxu0 0.0
        %5539 = vmatpush1.msra.mxu0 0.0
        %5540 = vmatprep.subr.mxu0 0.0
        %5541 = vmatpush1.msra.mxu0 0.0
        %5542 = vmatprep.subr.mxu0 0.0
        %5543 = vmatpush1.msra.mxu0 0.0
        %5544 = vmatprep.subr.mxu0 0.0
        %5545 = vmatpush1.msra.mxu0 0.0
        %5546 = vmatprep.subr.mxu0 0.0
        %5547 = vmatpush1.msra.mxu0 0.0
        %5548 = vmatprep.subr.mxu0 0.0
        %5549 = vmatpush1.msra.mxu0 0.0
        %5550 = vmatprep.subr.mxu0 0.0
        %5551 = vmatpush1.msra.mxu0 0.0
        %5552 = vmatprep.subr.mxu0 0.0
        %5553 = vmatpush1.msra.mxu0 0.0
        %5554 = vmatprep.subr.mxu0 0.0
        %5555 = vmatpush1.msra.mxu0 0.0
        %5556 = vmatprep.subr.mxu0 0.0
        %5557 = vmatpush1.msra.mxu0 0.0
        %5558 = vmatprep.subr.mxu0 0.0
        %5559 = vmatpush1.msra.mxu0 0.0
        %5560 = vmatprep.subr.mxu0 0.0
        %5561 = vmatpush1.msra.mxu0 0.0
        %5562 = vmatprep.subr.mxu0 0.0
        %5563 = vmatpush1.msra.mxu0 0.0
        %5564 = vmatprep.subr.mxu0 0.0
        %5565 = vmatpush1.msra.mxu0 0.0
        %5566 = vmatprep.subr.mxu0 0.0
        %5567 = vmatpush1.msra.mxu0 0.0
        %5568 = vmatprep.subr.mxu0 0.0
        %5569 = vmatpush1.msra.mxu0 0.0
        %5570 = vmatprep.subr.mxu0 0.0
        %5571 = vmatpush1.msra.mxu0 0.0
        %5572 = vmatprep.subr.mxu0 0.0
        %5573 = vmatpush1.msra.mxu0 0.0
        %5574 = vmatprep.subr.mxu0 0.0
        %5575 = vmatpush1.msra.mxu0 0.0
        %5576 = vmatprep.subr.mxu0 0.0
        %5577 = vmatpush1.msra.mxu0 0.0
        %5578 = vmatprep.subr.mxu0 0.0
        %5579 = vmatpush1.msra.mxu0 0.0
        %5580 = vmatprep.subr.mxu0 0.0
        %5581 = vmatpush1.msra.mxu0 0.0
        %5582 = vmatprep.subr.mxu0 0.0
        %5583 = vmatpush1.msra.mxu0 0.0
        %5584 = vmatprep.subr.mxu0 0.0
        %5585 = vmatpush1.msra.mxu0 0.0
        %5586 = vmatprep.subr.mxu0 0.0
        %5587 = vmatpush1.msra.mxu0 0.0
        %5588 = vmatprep.mubr.f32.mxu0 0.0
        %5589 = vmatmul.mubr.f32.gmra.mrb[0].mxu0 %v3654
        %v5590 = vpop.f32.mrb[0].mxu0
        %v5591 = vadd.f32 0.0, %v5590
        %v5592 = vpop.f32.mrb[0].mxu0
        %5593 = vmatprep.mubr.f32.mxu0 0.0
        %5594 = vmatmul.mubr.f32.gmra.mrb[0].mxu0 %v3657
        %v5595 = vpop.f32.mrb[0].mxu0
        %v5596 = vadd.f32 0.0, %v5595
        %v5597 = vpop.f32.mrb[0].mxu0
        %5598 = vmatprep.mubr.f32.mxu0 0.0
        %5599 = vmatmul.mubr.f32.gmra.mrb[0].mxu0 %v3660
        %v5600 = vpop.f32.mrb[0].mxu0
        %v5601 = vadd.f32 0.0, %v5600
        %v5602 = vpop.f32.mrb[0].mxu0
        %5603 = vmatprep.mubr.f32.mxu0 0.0
        %5604 = vmatmul.mubr.f32.gmra.mrb[0].mxu0 %v3663
        %v5605 = vpop.f32.mrb[0].mxu0
        %v5606 = vadd.f32 0.0, %v5605
        %v5607 = vpop.f32.mrb[0].mxu0
        %5608 = vmatprep.mubr.f32.mxu0 0.0
        %5609 = vmatmul.mubr.f32.gmra.mrb[0].mxu0 %v3666
        %v5610 = vpop.f32.mrb[0].mxu0
        %v5611 = vadd.f32 0.0, %v5610
        %v5612 = vpop.f32.mrb[0].mxu0
        %5613 = vmatprep.mubr.f32.mxu0 0.0
        %5614 = vmatmul.mubr.f32.gmra.mrb[0].mxu0 %v3669
        %v5615 = vpop.f32.mrb[0].mxu0
        %v5616 = vadd.f32 0.0, %v5615
        %v5617 = vpop.f32.mrb[0].mxu0
        %5618 = vmatprep.mubr.f32.mxu0 0.0
        %5619 = vmatmul.mubr.f32.gmra.mrb[0].mxu0 %v3672
        %v5620 = vpop.f32.mrb[0].mxu0
        %v5621 = vadd.f32 0.0, %v5620
        %v5622 = vpop.f32.mrb[0].mxu0
        %5623 = vmatprep.mubr.f32.mxu0 0.0
        %5624 = vmatmul.mubr.f32.gmra.mrb[0].mxu0 %v3675
        %v5625 = vpop.f32.mrb[0].mxu0
        %v5626 = vadd.f32 0.0, %v5625
        %v5627 = vpop.f32.mrb[0].mxu0
        %5628 = vmatprep.mubr.f32.mxu0 0.0
        %5629 = vmatmul.mubr.f32.gmra.mrb[0].mxu0 %v3678
        %v5630 = vpop.f32.mrb[0].mxu0
        %v5631 = vadd.f32 0.0, %v5630
        %v5632 = vpop.f32.mrb[0].mxu0
        %5633 = vmatprep.mubr.f32.mxu0 0.0
        %5634 = vmatmul.mubr.f32.gmra.mrb[0].mxu0 %v3681
        %v5635 = vpop.f32.mrb[0].mxu0
        %v5636 = vadd.f32 0.0, %v5635
        %v5637 = vpop.f32.mrb[0].mxu0
        %5638 = vmatprep.mubr.f32.mxu0 0.0
        %5639 = vmatmul.mubr.f32.gmra.mrb[0].mxu0 %v3684
        %v5640 = vpop.f32.mrb[0].mxu0
        %v5641 = vadd.f32 0.0, %v5640
        %v5642 = vpop.f32.mrb[0].mxu0
        %5643 = vmatprep.mubr.f32.mxu0 0.0
        %5644 = vmatmul.mubr.f32.gmra.mrb[0].mxu0 %v3687
        %v5645 = vpop.f32.mrb[0].mxu0
        %v5646 = vadd.f32 0.0, %v5645
        %v5647 = vpop.f32.mrb[0].mxu0
        %5648 = vmatprep.mubr.f32.mxu0 0.0
        %5649 = vmatmul.mubr.f32.gmra.mrb[0].mxu0 %v3690
        %v5650 = vpop.f32.mrb[0].mxu0
        %v5651 = vadd.f32 0.0, %v5650
        %v5652 = vpop.f32.mrb[0].mxu0
        %5653 = vmatprep.mubr.f32.mxu0 0.0
        %5654 = vmatmul.mubr.f32.gmra.mrb[0].mxu0 %v3693
        %v5655 = vpop.f32.mrb[0].mxu0
        %v5656 = vadd.f32 0.0, %v5655
        %v5657 = vpop.f32.mrb[0].mxu0
        %5658 = vmatprep.mubr.f32.mxu0 0.0
        %5659 = vmatmul.mubr.f32.gmra.mrb[0].mxu0 %v3696
        %v5660 = vpop.f32.mrb[0].mxu0
        %v5661 = vadd.f32 0.0, %v5660
        %v5662 = vpop.f32.mrb[0].mxu0
        %5663 = vmatprep.mubr.f32.mxu0 0.0
        %5664 = vmatmul.mubr.f32.gmra.mrb[0].mxu0 %v3699
        %v5665 = vpop.f32.mrb[0].mxu0
        %v5666 = vadd.f32 0.0, %v5665
        %v5667 = vpop.f32.mrb[0].mxu0
        %5668 = vmatprep.mubr.f32.mxu0 0.0
        %5669 = vmatmul.mubr.f32.gmra.mrb[0].mxu0 %v3702
        %v5670 = vpop.f32.mrb[0].mxu0
        %v5671 = vadd.f32 0.0, %v5670
        %v5672 = vpop.f32.mrb[0].mxu0
        %5673 = vmatprep.mubr.f32.mxu0 0.0
        %5674 = vmatmul.mubr.f32.gmra.mrb[0].mxu0 %v3705
        %v5675 = vpop.f32.mrb[0].mxu0
        %v5676 = vadd.f32 0.0, %v5675
        %v5677 = vpop.f32.mrb[0].mxu0
        %5678 = vmatprep.mubr.f32.mxu0 0.0
        %5679 = vmatmul.mubr.f32.gmra.mrb[0].mxu0 %v3708
        %v5680 = vpop.f32.mrb[0].mxu0
        %v5681 = vadd.f32 0.0, %v5680
        %v5682 = vpop.f32.mrb[0].mxu0
        %5683 = vmatprep.mubr.f32.mxu0 0.0
        %5684 = vmatmul.mubr.f32.gmra.mrb[0].mxu0 %v3711
        %v5685 = vpop.f32.mrb[0].mxu0
        %v5686 = vadd.f32 0.0, %v5685
        %v5687 = vpop.f32.mrb[0].mxu0
        %5688 = vmatprep.mubr.f32.mxu0 0.0
        %5689 = vmatmul.mubr.f32.gmra.mrb[0].mxu0 %v3714
        %v5690 = vpop.f32.mrb[0].mxu0
        %v5691 = vadd.f32 0.0, %v5690
        %v5692 = vpop.f32.mrb[0].mxu0
        %5693 = vmatprep.mubr.f32.mxu0 0.0
        %5694 = vmatmul.mubr.f32.gmra.mrb[0].mxu0 %v3717
        %v5695 = vpop.f32.mrb[0].mxu0
        %v5696 = vadd.f32 0.0, %v5695
        %v5697 = vpop.f32.mrb[0].mxu0
        %5698 = vmatprep.mubr.f32.mxu0 0.0
        %5699 = vmatmul.mubr.f32.gmra.mrb[0].mxu0 %v3720
        %v5700 = vpop.f32.mrb[0].mxu0
        %v5701 = vadd.f32 0.0, %v5700
        %v5702 = vpop.f32.mrb[0].mxu0
        %5703 = vmatprep.mubr.f32.mxu0 0.0
        %5704 = vmatmul.mubr.f32.gmra.mrb[0].mxu0 %v3723
        %v5705 = vpop.f32.mrb[0].mxu0
        %v5706 = vadd.f32 0.0, %v5705
        %v5707 = vpop.f32.mrb[0].mxu0
        %5708 = vmatprep.mubr.f32.mxu0 0.0
        %5709 = vmatmul.mubr.f32.gmra.mrb[0].mxu0 %v3726
        %v5710 = vpop.f32.mrb[0].mxu0
        %v5711 = vadd.f32 0.0, %v5710
        %v5712 = vpop.f32.mrb[0].mxu0
        %5713 = vmatprep.mubr.f32.mxu0 0.0
        %5714 = vmatmul.mubr.f32.gmra.mrb[0].mxu0 %v3729
        %v5715 = vpop.f32.mrb[0].mxu0
        %v5716 = vadd.f32 0.0, %v5715
        %v5717 = vpop.f32.mrb[0].mxu0
        %5718 = vmatprep.mubr.f32.mxu0 0.0
        %5719 = vmatmul.mubr.f32.gmra.mrb[0].mxu0 %v3732
        %v5720 = vpop.f32.mrb[0].mxu0
        %v5721 = vadd.f32 0.0, %v5720
        %v5722 = vpop.f32.mrb[0].mxu0
        %5723 = vmatprep.mubr.f32.mxu0 0.0
        %5724 = vmatmul.mubr.f32.gmra.mrb[0].mxu0 %v3735
        %v5725 = vpop.f32.mrb[0].mxu0
        %v5726 = vadd.f32 0.0, %v5725
        %v5727 = vpop.f32.mrb[0].mxu0
        %5728 = vmatprep.mubr.f32.mxu0 0.0
        %5729 = vmatmul.mubr.f32.gmra.mrb[0].mxu0 %v3738
        %v5730 = vpop.f32.mrb[0].mxu0
        %v5731 = vadd.f32 0.0, %v5730
        %v5732 = vpop.f32.mrb[0].mxu0
        %5733 = vmatprep.mubr.f32.mxu0 0.0
        %5734 = vmatmul.mubr.f32.gmra.mrb[0].mxu0 %v3741
        %v5735 = vpop.f32.mrb[0].mxu0
        %v5736 = vadd.f32 0.0, %v5735
        %v5737 = vpop.f32.mrb[0].mxu0
        %5738 = vmatprep.mubr.f32.mxu0 0.0
        %5739 = vmatmul.mubr.f32.gmra.mrb[0].mxu0 %v3744
        %v5740 = vpop.f32.mrb[0].mxu0
        %v5741 = vadd.f32 0.0, %v5740
        %v5742 = vpop.f32.mrb[0].mxu0
        %5743 = vmatprep.mubr.f32.mxu0 0.0
        %5744 = vmatmul.mubr.f32.gmra.mrb[0].mxu0 %v3747
        %v5745 = vpop.f32.mrb[0].mxu0
        %v5746 = vadd.f32 0.0, %v5745
        %v5747 = vpop.f32.mrb[0].mxu0
        %5748 = vmatprep.mubr.f32.mxu0 0.0
        %5749 = vmatmul.mubr.f32.gmra.mrb[0].mxu0 %v3750
        %v5750 = vpop.f32.mrb[0].mxu0
        %v5751 = vadd.f32 0.0, %v5750
        %v5752 = vpop.f32.mrb[0].mxu0
        %5753 = vmatprep.mubr.f32.mxu0 0.0
        %5754 = vmatmul.mubr.f32.gmra.mrb[0].mxu0 %v3753
        %v5755 = vpop.f32.mrb[0].mxu0
        %v5756 = vadd.f32 0.0, %v5755
        %v5757 = vpop.f32.mrb[0].mxu0
        %5758 = vmatprep.mubr.f32.mxu0 0.0
        %5759 = vmatmul.mubr.f32.gmra.mrb[0].mxu0 %v3756
        %v5760 = vpop.f32.mrb[0].mxu0
        %v5761 = vadd.f32 0.0, %v5760
        %v5762 = vpop.f32.mrb[0].mxu0
        %5763 = vmatprep.mubr.f32.mxu0 0.0
        %5764 = vmatmul.mubr.f32.gmra.mrb[0].mxu0 %v3759
        %v5765 = vpop.f32.mrb[0].mxu0
        %v5766 = vadd.f32 0.0, %v5765
        %v5767 = vpop.f32.mrb[0].mxu0
        %5768 = vmatprep.mubr.f32.mxu0 0.0
        %5769 = vmatmul.mubr.f32.gmra.mrb[0].mxu0 %v3762
        %v5770 = vpop.f32.mrb[0].mxu0
        %v5771 = vadd.f32 0.0, %v5770
        %v5772 = vpop.f32.mrb[0].mxu0
        %5773 = vmatprep.mubr.f32.mxu0 0.0
        %5774 = vmatmul.mubr.f32.gmra.mrb[0].mxu0 %v3765
        %v5775 = vpop.f32.mrb[0].mxu0
        %v5776 = vadd.f32 0.0, %v5775
        %v5777 = vpop.f32.mrb[0].mxu0
        %5778 = vmatprep.mubr.f32.mxu0 0.0
        %5779 = vmatmul.mubr.f32.gmra.mrb[0].mxu0 %v3768
        %v5780 = vpop.f32.mrb[0].mxu0
        %v5781 = vadd.f32 0.0, %v5780
        %v5782 = vpop.f32.mrb[0].mxu0
        %5783 = vmatprep.mubr.f32.mxu0 0.0
        %5784 = vmatmul.mubr.f32.gmra.mrb[0].mxu0 %v3771
        %v5785 = vpop.f32.mrb[0].mxu0
        %v5786 = vadd.f32 0.0, %v5785
        %v5787 = vpop.f32.mrb[0].mxu0
        %5788 = vmatprep.mubr.f32.mxu0 0.0
        %5789 = vmatmul.mubr.f32.gmra.mrb[0].mxu0 %v3774
        %v5790 = vpop.f32.mrb[0].mxu0
        %v5791 = vadd.f32 0.0, %v5790
        %v5792 = vpop.f32.mrb[0].mxu0
        %5793 = vmatprep.mubr.f32.mxu0 0.0
        %5794 = vmatmul.mubr.f32.gmra.mrb[0].mxu0 %v3777
        %v5795 = vpop.f32.mrb[0].mxu0
        %v5796 = vadd.f32 0.0, %v5795
        %v5797 = vpop.f32.mrb[0].mxu0
        %5798 = vmatprep.mubr.f32.mxu0 0.0
        %5799 = vmatmul.mubr.f32.gmra.mrb[0].mxu0 %v3780
        %v5800 = vpop.f32.mrb[0].mxu0
        %v5801 = vadd.f32 0.0, %v5800
        %v5802 = vpop.f32.mrb[0].mxu0
        %5803 = vmatprep.mubr.f32.mxu0 0.0
        %5804 = vmatmul.mubr.f32.gmra.mrb[0].mxu0 %v3783
        %v5805 = vpop.f32.mrb[0].mxu0
        %v5806 = vadd.f32 0.0, %v5805
        %v5807 = vpop.f32.mrb[0].mxu0
        %5808 = vmatprep.mubr.f32.mxu0 0.0
        %5809 = vmatmul.mubr.f32.gmra.mrb[0].mxu0 %v3786
        %v5810 = vpop.f32.mrb[0].mxu0
        %v5811 = vadd.f32 0.0, %v5810
        %v5812 = vpop.f32.mrb[0].mxu0
        %5813 = vmatprep.mubr.f32.mxu0 0.0
        %5814 = vmatmul.mubr.f32.gmra.mrb[0].mxu0 %v3789
        %v5815 = vpop.f32.mrb[0].mxu0
        %v5816 = vadd.f32 0.0, %v5815
        %v5817 = vpop.f32.mrb[0].mxu0
        %5818 = vmatprep.mubr.f32.mxu0 0.0
        %5819 = vmatmul.mubr.f32.gmra.mrb[0].mxu0 %v3792
        %v5820 = vpop.f32.mrb[0].mxu0
        %v5821 = vadd.f32 0.0, %v5820
        %v5822 = vpop.f32.mrb[0].mxu0
        %5823 = vmatprep.mubr.f32.mxu0 0.0
        %5824 = vmatmul.mubr.f32.gmra.mrb[0].mxu0 %v3795
        %v5825 = vpop.f32.mrb[0].mxu0
        %v5826 = vadd.f32 0.0, %v5825
        %v5827 = vpop.f32.mrb[0].mxu0
        %5828 = vmatprep.mubr.f32.mxu0 0.0
        %5829 = vmatmul.mubr.f32.gmra.mrb[0].mxu0 %v3798
        %v5830 = vpop.f32.mrb[0].mxu0
        %v5831 = vadd.f32 0.0, %v5830
        %v5832 = vpop.f32.mrb[0].mxu0
        %5833 = vmatprep.mubr.f32.mxu0 0.0
        %5834 = vmatmul.mubr.f32.gmra.mrb[0].mxu0 %v3801
        %v5835 = vpop.f32.mrb[0].mxu0
        %v5836 = vadd.f32 0.0, %v5835
        %v5837 = vpop.f32.mrb[0].mxu0
        %5838 = vmatprep.mubr.f32.mxu0 0.0
        %5839 = vmatmul.mubr.f32.gmra.mrb[0].mxu0 %v3804
        %v5840 = vpop.f32.mrb[0].mxu0
        %v5841 = vadd.f32 0.0, %v5840
        %v5842 = vpop.f32.mrb[0].mxu0
        %5843 = vmatprep.mubr.f32.mxu0 0.0
        %5844 = vmatmul.mubr.f32.gmra.mrb[0].mxu0 %v3807
        %v5845 = vpop.f32.mrb[0].mxu0
        %v5846 = vadd.f32 0.0, %v5845
        %v5847 = vpop.f32.mrb[0].mxu0
        %5848 = vmatprep.mubr.f32.mxu0 0.0
        %5849 = vmatmul.mubr.f32.gmra.mrb[0].mxu0 %v3810
        %v5850 = vpop.f32.mrb[0].mxu0
        %v5851 = vadd.f32 0.0, %v5850
        %v5852 = vpop.f32.mrb[0].mxu0
        %5853 = vmatprep.mubr.f32.mxu0 0.0
        %5854 = vmatmul.mubr.f32.gmra.mrb[0].mxu0 %v3813
        %v5855 = vpop.f32.mrb[0].mxu0
        %v5856 = vadd.f32 0.0, %v5855
        %v5857 = vpop.f32.mrb[0].mxu0
        %5858 = vmatprep.mubr.f32.mxu0 0.0
        %5859 = vmatmul.mubr.f32.gmra.mrb[0].mxu0 %v3816
        %v5860 = vpop.f32.mrb[0].mxu0
        %v5861 = vadd.f32 0.0, %v5860
        %v5862 = vpop.f32.mrb[0].mxu0
        %5863 = vmatprep.mubr.f32.mxu0 0.0
        %5864 = vmatmul.mubr.f32.gmra.mrb[0].mxu0 %v3819
        %v5865 = vpop.f32.mrb[0].mxu0
        %v5866 = vadd.f32 0.0, %v5865
        %v5867 = vpop.f32.mrb[0].mxu0
        %5868 = vmatprep.mubr.f32.mxu0 0.0
        %5869 = vmatmul.mubr.f32.gmra.mrb[0].mxu0 %v3822
        %v5870 = vpop.f32.mrb[0].mxu0
        %v5871 = vadd.f32 0.0, %v5870
        %v5872 = vpop.f32.mrb[0].mxu0
        %5873 = vmatprep.mubr.f32.mxu0 0.0
        %5874 = vmatmul.mubr.f32.gmra.mrb[0].mxu0 %v3825
        %v5875 = vpop.f32.mrb[0].mxu0
        %v5876 = vadd.f32 0.0, %v5875
        %v5877 = vpop.f32.mrb[0].mxu0
        %5878 = vmatprep.mubr.f32.mxu0 0.0
        %5879 = vmatmul.mubr.f32.gmra.mrb[0].mxu0 %v3828
        %v5880 = vpop.f32.mrb[0].mxu0
        %v5881 = vadd.f32 0.0, %v5880
        %v5882 = vpop.f32.mrb[0].mxu0
        %5883 = vmatprep.mubr.f32.mxu0 0.0
        %5884 = vmatmul.mubr.f32.gmra.mrb[0].mxu0 %v3831
        %v5885 = vpop.f32.mrb[0].mxu0
        %v5886 = vadd.f32 0.0, %v5885
        %v5887 = vpop.f32.mrb[0].mxu0
        %5888 = vmatprep.mubr.f32.mxu0 0.0
        %5889 = vmatmul.mubr.f32.gmra.mrb[0].mxu0 %v3834
        %v5890 = vpop.f32.mrb[0].mxu0
        %v5891 = vadd.f32 0.0, %v5890
        %v5892 = vpop.f32.mrb[0].mxu0
        %5893 = vmatprep.mubr.f32.mxu0 0.0
        %5894 = vmatmul.mubr.f32.gmra.mrb[0].mxu0 %v3837
        %v5895 = vpop.f32.mrb[0].mxu0
        %v5896 = vadd.f32 0.0, %v5895
        %v5897 = vpop.f32.mrb[0].mxu0
        %5898 = vmatprep.mubr.f32.mxu0 0.0
        %5899 = vmatmul.mubr.f32.gmra.mrb[0].mxu0 %v3840
        %v5900 = vpop.f32.mrb[0].mxu0
        %v5901 = vadd.f32 0.0, %v5900
        %v5902 = vpop.f32.mrb[0].mxu0
        %5903 = vmatprep.mubr.f32.mxu0 0.0
        %5904 = vmatmul.mubr.f32.gmra.mrb[0].mxu0 %v3843
        %v5905 = vpop.f32.mrb[0].mxu0
        %v5906 = vadd.f32 0.0, %v5905
        %v5907 = vpop.f32.mrb[0].mxu0
        %5908 = vdwg.mxu0
        %5909 = vmatprep.subr.mxu0 0.0
        %5910 = vmatpush1.msra.mxu0 %v5516
        %5911 = vmatprep.subr.mxu0 0.0
        %5912 = vmatpush1.msra.mxu0 %v5517
        %5913 = vmatprep.subr.mxu0 0.0
        %5914 = vmatpush1.msra.mxu0 %v5518
        %5915 = vmatprep.subr.mxu0 0.0
        %5916 = vmatpush1.msra.mxu0 %v5519
        %5917 = vmatprep.subr.mxu0 0.0
        %5918 = vmatpush1.msra.mxu0 0.0
        %5919 = vmatprep.subr.mxu0 0.0
        %5920 = vmatpush1.msra.mxu0 0.0
        %5921 = vmatprep.subr.mxu0 0.0
        %5922 = vmatpush1.msra.mxu0 0.0
        %5923 = vmatprep.subr.mxu0 0.0
        %5924 = vmatpush1.msra.mxu0 0.0
        %5925 = vmatprep.subr.mxu0 0.0
        %5926 = vmatpush1.msra.mxu0 0.0
        %5927 = vmatprep.subr.mxu0 0.0
        %5928 = vmatpush1.msra.mxu0 0.0
        %5929 = vmatprep.subr.mxu0 0.0
        %5930 = vmatpush1.msra.mxu0 0.0
        %5931 = vmatprep.subr.mxu0 0.0
        %5932 = vmatpush1.msra.mxu0 0.0
        %5933 = vmatprep.subr.mxu0 0.0
        %5934 = vmatpush1.msra.mxu0 0.0
        %5935 = vmatprep.subr.mxu0 0.0
        %5936 = vmatpush1.msra.mxu0 0.0
        %5937 = vmatprep.subr.mxu0 0.0
        %5938 = vmatpush1.msra.mxu0 0.0
        %5939 = vmatprep.subr.mxu0 0.0
        %5940 = vmatpush1.msra.mxu0 0.0
        %5941 = vmatprep.subr.mxu0 0.0
        %5942 = vmatpush1.msra.mxu0 0.0
        %5943 = vmatprep.subr.mxu0 0.0
        %5944 = vmatpush1.msra.mxu0 0.0
        %5945 = vmatprep.subr.mxu0 0.0
        %5946 = vmatpush1.msra.mxu0 0.0
        %5947 = vmatprep.subr.mxu0 0.0
        %5948 = vmatpush1.msra.mxu0 0.0
        %5949 = vmatprep.subr.mxu0 0.0
        %5950 = vmatpush1.msra.mxu0 0.0
        %5951 = vmatprep.subr.mxu0 0.0
        %5952 = vmatpush1.msra.mxu0 0.0
        %5953 = vmatprep.subr.mxu0 0.0
        %5954 = vmatpush1.msra.mxu0 0.0
        %5955 = vmatprep.subr.mxu0 0.0
        %5956 = vmatpush1.msra.mxu0 0.0
        %5957 = vmatprep.subr.mxu0 0.0
        %5958 = vmatpush1.msra.mxu0 0.0
        %5959 = vmatprep.subr.mxu0 0.0
        %5960 = vmatpush1.msra.mxu0 0.0
        %5961 = vmatprep.subr.mxu0 0.0
        %5962 = vmatpush1.msra.mxu0 0.0
        %5963 = vmatprep.subr.mxu0 0.0
        %5964 = vmatpush1.msra.mxu0 0.0
        %5965 = vmatprep.subr.mxu0 0.0
        %5966 = vmatpush1.msra.mxu0 0.0
        %5967 = vmatprep.subr.mxu0 0.0
        %5968 = vmatpush1.msra.mxu0 0.0
        %5969 = vmatprep.subr.mxu0 0.0
        %5970 = vmatpush1.msra.mxu0 0.0
        %5971 = vmatprep.subr.mxu0 0.0
        %5972 = vmatpush1.msra.mxu0 0.0
        %5973 = vmatprep.mubr.f32.mxu0 0.0
        %5974 = vmatmul.mubr.f32.gmra.mrb[0].mxu0 %v4231
        %v5975 = vpop.f32.mrb[0].mxu0
        %v5976 = vadd.f32 %v5591, %v5975
        %v5977 = vpop.f32.mrb[0].mxu0
        %5978 = vmatprep.mubr.f32.mxu0 0.0
        %5979 = vmatmul.mubr.f32.gmra.mrb[0].mxu0 %v4234
        %v5980 = vpop.f32.mrb[0].mxu0
        %v5981 = vadd.f32 %v5596, %v5980
        %v5982 = vpop.f32.mrb[0].mxu0
        %5983 = vmatprep.mubr.f32.mxu0 0.0
        %5984 = vmatmul.mubr.f32.gmra.mrb[0].mxu0 %v4237
        %v5985 = vpop.f32.mrb[0].mxu0
        %v5986 = vadd.f32 %v5601, %v5985
        %v5987 = vpop.f32.mrb[0].mxu0
        %5988 = vmatprep.mubr.f32.mxu0 0.0
        %5989 = vmatmul.mubr.f32.gmra.mrb[0].mxu0 %v4240
        %v5990 = vpop.f32.mrb[0].mxu0
        %v5991 = vadd.f32 %v5606, %v5990
        %v5992 = vpop.f32.mrb[0].mxu0
        %5993 = vmatprep.mubr.f32.mxu0 0.0
        %5994 = vmatmul.mubr.f32.gmra.mrb[0].mxu0 %v4243
        %v5995 = vpop.f32.mrb[0].mxu0
        %v5996 = vadd.f32 %v5611, %v5995
        %v5997 = vpop.f32.mrb[0].mxu0
        %5998 = vmatprep.mubr.f32.mxu0 0.0
        %5999 = vmatmul.mubr.f32.gmra.mrb[0].mxu0 %v4246
        %v6000 = vpop.f32.mrb[0].mxu0
        %v6001 = vadd.f32 %v5616, %v6000
        %v6002 = vpop.f32.mrb[0].mxu0
        %6003 = vmatprep.mubr.f32.mxu0 0.0
        %6004 = vmatmul.mubr.f32.gmra.mrb[0].mxu0 %v4249
        %v6005 = vpop.f32.mrb[0].mxu0
        %v6006 = vadd.f32 %v5621, %v6005
        %v6007 = vpop.f32.mrb[0].mxu0
        %6008 = vmatprep.mubr.f32.mxu0 0.0
        %6009 = vmatmul.mubr.f32.gmra.mrb[0].mxu0 %v4252
        %v6010 = vpop.f32.mrb[0].mxu0
        %v6011 = vadd.f32 %v5626, %v6010
        %v6012 = vpop.f32.mrb[0].mxu0
        %6013 = vmatprep.mubr.f32.mxu0 0.0
        %6014 = vmatmul.mubr.f32.gmra.mrb[0].mxu0 %v4255
        %v6015 = vpop.f32.mrb[0].mxu0
        %v6016 = vadd.f32 %v5631, %v6015
        %v6017 = vpop.f32.mrb[0].mxu0
        %6018 = vmatprep.mubr.f32.mxu0 0.0
        %6019 = vmatmul.mubr.f32.gmra.mrb[0].mxu0 %v4258
        %v6020 = vpop.f32.mrb[0].mxu0
        %v6021 = vadd.f32 %v5636, %v6020
        %v6022 = vpop.f32.mrb[0].mxu0
        %6023 = vmatprep.mubr.f32.mxu0 0.0
        %6024 = vmatmul.mubr.f32.gmra.mrb[0].mxu0 %v4261
        %v6025 = vpop.f32.mrb[0].mxu0
        %v6026 = vadd.f32 %v5641, %v6025
        %v6027 = vpop.f32.mrb[0].mxu0
        %6028 = vmatprep.mubr.f32.mxu0 0.0
        %6029 = vmatmul.mubr.f32.gmra.mrb[0].mxu0 %v4264
        %v6030 = vpop.f32.mrb[0].mxu0
        %v6031 = vadd.f32 %v5646, %v6030
        %v6032 = vpop.f32.mrb[0].mxu0
        %6033 = vmatprep.mubr.f32.mxu0 0.0
        %6034 = vmatmul.mubr.f32.gmra.mrb[0].mxu0 %v4267
        %v6035 = vpop.f32.mrb[0].mxu0
        %v6036 = vadd.f32 %v5651, %v6035
        %v6037 = vpop.f32.mrb[0].mxu0
        %6038 = vmatprep.mubr.f32.mxu0 0.0
        %6039 = vmatmul.mubr.f32.gmra.mrb[0].mxu0 %v4270
        %v6040 = vpop.f32.mrb[0].mxu0
        %v6041 = vadd.f32 %v5656, %v6040
        %v6042 = vpop.f32.mrb[0].mxu0
        %6043 = vmatprep.mubr.f32.mxu0 0.0
        %6044 = vmatmul.mubr.f32.gmra.mrb[0].mxu0 %v4273
        %v6045 = vpop.f32.mrb[0].mxu0
        %v6046 = vadd.f32 %v5661, %v6045
        %v6047 = vpop.f32.mrb[0].mxu0
        %6048 = vmatprep.mubr.f32.mxu0 0.0
        %6049 = vmatmul.mubr.f32.gmra.mrb[0].mxu0 %v4276
        %v6050 = vpop.f32.mrb[0].mxu0
        %v6051 = vadd.f32 %v5666, %v6050
        %v6052 = vpop.f32.mrb[0].mxu0
        %6053 = vmatprep.mubr.f32.mxu0 0.0
        %6054 = vmatmul.mubr.f32.gmra.mrb[0].mxu0 %v4279
        %v6055 = vpop.f32.mrb[0].mxu0
        %v6056 = vadd.f32 %v5671, %v6055
        %v6057 = vpop.f32.mrb[0].mxu0
        %6058 = vmatprep.mubr.f32.mxu0 0.0
        %6059 = vmatmul.mubr.f32.gmra.mrb[0].mxu0 %v4282
        %v6060 = vpop.f32.mrb[0].mxu0
        %v6061 = vadd.f32 %v5676, %v6060
        %v6062 = vpop.f32.mrb[0].mxu0
        %6063 = vmatprep.mubr.f32.mxu0 0.0
        %6064 = vmatmul.mubr.f32.gmra.mrb[0].mxu0 %v4285
        %v6065 = vpop.f32.mrb[0].mxu0
        %v6066 = vadd.f32 %v5681, %v6065
        %v6067 = vpop.f32.mrb[0].mxu0
        %6068 = vmatprep.mubr.f32.mxu0 0.0
        %6069 = vmatmul.mubr.f32.gmra.mrb[0].mxu0 %v4288
        %v6070 = vpop.f32.mrb[0].mxu0
        %v6071 = vadd.f32 %v5686, %v6070
        %v6072 = vpop.f32.mrb[0].mxu0
        %6073 = vmatprep.mubr.f32.mxu0 0.0
        %6074 = vmatmul.mubr.f32.gmra.mrb[0].mxu0 %v4291
        %v6075 = vpop.f32.mrb[0].mxu0
        %v6076 = vadd.f32 %v5691, %v6075
        %v6077 = vpop.f32.mrb[0].mxu0
        %6078 = vmatprep.mubr.f32.mxu0 0.0
        %6079 = vmatmul.mubr.f32.gmra.mrb[0].mxu0 %v4294
        %v6080 = vpop.f32.mrb[0].mxu0
        %v6081 = vadd.f32 %v5696, %v6080
        %v6082 = vpop.f32.mrb[0].mxu0
        %6083 = vmatprep.mubr.f32.mxu0 0.0
        %6084 = vmatmul.mubr.f32.gmra.mrb[0].mxu0 %v4297
        %v6085 = vpop.f32.mrb[0].mxu0
        %v6086 = vadd.f32 %v5701, %v6085
        %v6087 = vpop.f32.mrb[0].mxu0
        %6088 = vmatprep.mubr.f32.mxu0 0.0
        %6089 = vmatmul.mubr.f32.gmra.mrb[0].mxu0 %v4300
        %v6090 = vpop.f32.mrb[0].mxu0
        %v6091 = vadd.f32 %v5706, %v6090
        %v6092 = vpop.f32.mrb[0].mxu0
        %6093 = vmatprep.mubr.f32.mxu0 0.0
        %6094 = vmatmul.mubr.f32.gmra.mrb[0].mxu0 %v4303
        %v6095 = vpop.f32.mrb[0].mxu0
        %v6096 = vadd.f32 %v5711, %v6095
        %v6097 = vpop.f32.mrb[0].mxu0
        %6098 = vmatprep.mubr.f32.mxu0 0.0
        %6099 = vmatmul.mubr.f32.gmra.mrb[0].mxu0 %v4306
        %v6100 = vpop.f32.mrb[0].mxu0
        %v6101 = vadd.f32 %v5716, %v6100
        %v6102 = vpop.f32.mrb[0].mxu0
        %6103 = vmatprep.mubr.f32.mxu0 0.0
        %6104 = vmatmul.mubr.f32.gmra.mrb[0].mxu0 %v4309
        %v6105 = vpop.f32.mrb[0].mxu0
        %v6106 = vadd.f32 %v5721, %v6105
        %v6107 = vpop.f32.mrb[0].mxu0
        %6108 = vmatprep.mubr.f32.mxu0 0.0
        %6109 = vmatmul.mubr.f32.gmra.mrb[0].mxu0 %v4312
        %v6110 = vpop.f32.mrb[0].mxu0
        %v6111 = vadd.f32 %v5726, %v6110
        %v6112 = vpop.f32.mrb[0].mxu0
        %6113 = vmatprep.mubr.f32.mxu0 0.0
        %6114 = vmatmul.mubr.f32.gmra.mrb[0].mxu0 %v4315
        %v6115 = vpop.f32.mrb[0].mxu0
        %v6116 = vadd.f32 %v5731, %v6115
        %v6117 = vpop.f32.mrb[0].mxu0
        %6118 = vmatprep.mubr.f32.mxu0 0.0
        %6119 = vmatmul.mubr.f32.gmra.mrb[0].mxu0 %v4318
        %v6120 = vpop.f32.mrb[0].mxu0
        %v6121 = vadd.f32 %v5736, %v6120
        %v6122 = vpop.f32.mrb[0].mxu0
        %6123 = vmatprep.mubr.f32.mxu0 0.0
        %6124 = vmatmul.mubr.f32.gmra.mrb[0].mxu0 %v4321
        %v6125 = vpop.f32.mrb[0].mxu0
        %v6126 = vadd.f32 %v5741, %v6125
        %v6127 = vpop.f32.mrb[0].mxu0
        %6128 = vmatprep.mubr.f32.mxu0 0.0
        %6129 = vmatmul.mubr.f32.gmra.mrb[0].mxu0 %v4324
        %v6130 = vpop.f32.mrb[0].mxu0
        %v6131 = vadd.f32 %v5746, %v6130
        %v6132 = vpop.f32.mrb[0].mxu0
        %6133 = vmatprep.mubr.f32.mxu0 0.0
        %6134 = vmatmul.mubr.f32.gmra.mrb[0].mxu0 %v4327
        %v6135 = vpop.f32.mrb[0].mxu0
        %v6136 = vadd.f32 %v5751, %v6135
        %v6137 = vpop.f32.mrb[0].mxu0
        %6138 = vmatprep.mubr.f32.mxu0 0.0
        %6139 = vmatmul.mubr.f32.gmra.mrb[0].mxu0 %v4330
        %v6140 = vpop.f32.mrb[0].mxu0
        %v6141 = vadd.f32 %v5756, %v6140
        %v6142 = vpop.f32.mrb[0].mxu0
        %6143 = vmatprep.mubr.f32.mxu0 0.0
        %6144 = vmatmul.mubr.f32.gmra.mrb[0].mxu0 %v4333
        %v6145 = vpop.f32.mrb[0].mxu0
        %v6146 = vadd.f32 %v5761, %v6145
        %v6147 = vpop.f32.mrb[0].mxu0
        %6148 = vmatprep.mubr.f32.mxu0 0.0
        %6149 = vmatmul.mubr.f32.gmra.mrb[0].mxu0 %v4336
        %v6150 = vpop.f32.mrb[0].mxu0
        %v6151 = vadd.f32 %v5766, %v6150
        %v6152 = vpop.f32.mrb[0].mxu0
        %6153 = vmatprep.mubr.f32.mxu0 0.0
        %6154 = vmatmul.mubr.f32.gmra.mrb[0].mxu0 %v4339
        %v6155 = vpop.f32.mrb[0].mxu0
        %v6156 = vadd.f32 %v5771, %v6155
        %v6157 = vpop.f32.mrb[0].mxu0
        %6158 = vmatprep.mubr.f32.mxu0 0.0
        %6159 = vmatmul.mubr.f32.gmra.mrb[0].mxu0 %v4342
        %v6160 = vpop.f32.mrb[0].mxu0
        %v6161 = vadd.f32 %v5776, %v6160
        %v6162 = vpop.f32.mrb[0].mxu0
        %6163 = vmatprep.mubr.f32.mxu0 0.0
        %6164 = vmatmul.mubr.f32.gmra.mrb[0].mxu0 %v4345
        %v6165 = vpop.f32.mrb[0].mxu0
        %v6166 = vadd.f32 %v5781, %v6165
        %v6167 = vpop.f32.mrb[0].mxu0
        %6168 = vmatprep.mubr.f32.mxu0 0.0
        %6169 = vmatmul.mubr.f32.gmra.mrb[0].mxu0 %v4348
        %v6170 = vpop.f32.mrb[0].mxu0
        %v6171 = vadd.f32 %v5786, %v6170
        %v6172 = vpop.f32.mrb[0].mxu0
        %6173 = vmatprep.mubr.f32.mxu0 0.0
        %6174 = vmatmul.mubr.f32.gmra.mrb[0].mxu0 %v4351
        %v6175 = vpop.f32.mrb[0].mxu0
        %v6176 = vadd.f32 %v5791, %v6175
        %v6177 = vpop.f32.mrb[0].mxu0
        %6178 = vmatprep.mubr.f32.mxu0 0.0
        %6179 = vmatmul.mubr.f32.gmra.mrb[0].mxu0 %v4354
        %v6180 = vpop.f32.mrb[0].mxu0
        %v6181 = vadd.f32 %v5796, %v6180
        %v6182 = vpop.f32.mrb[0].mxu0
        %6183 = vmatprep.mubr.f32.mxu0 0.0
        %6184 = vmatmul.mubr.f32.gmra.mrb[0].mxu0 %v4357
        %v6185 = vpop.f32.mrb[0].mxu0
        %v6186 = vadd.f32 %v5801, %v6185
        %v6187 = vpop.f32.mrb[0].mxu0
        %6188 = vmatprep.mubr.f32.mxu0 0.0
        %6189 = vmatmul.mubr.f32.gmra.mrb[0].mxu0 %v4360
        %v6190 = vpop.f32.mrb[0].mxu0
        %v6191 = vadd.f32 %v5806, %v6190
        %v6192 = vpop.f32.mrb[0].mxu0
        %6193 = vmatprep.mubr.f32.mxu0 0.0
        %6194 = vmatmul.mubr.f32.gmra.mrb[0].mxu0 %v4363
        %v6195 = vpop.f32.mrb[0].mxu0
        %v6196 = vadd.f32 %v5811, %v6195
        %v6197 = vpop.f32.mrb[0].mxu0
        %6198 = vmatprep.mubr.f32.mxu0 0.0
        %6199 = vmatmul.mubr.f32.gmra.mrb[0].mxu0 %v4366
        %v6200 = vpop.f32.mrb[0].mxu0
        %v6201 = vadd.f32 %v5816, %v6200
        %v6202 = vpop.f32.mrb[0].mxu0
        %6203 = vmatprep.mubr.f32.mxu0 0.0
        %6204 = vmatmul.mubr.f32.gmra.mrb[0].mxu0 %v4369
        %v6205 = vpop.f32.mrb[0].mxu0
        %v6206 = vadd.f32 %v5821, %v6205
        %v6207 = vpop.f32.mrb[0].mxu0
        %6208 = vmatprep.mubr.f32.mxu0 0.0
        %6209 = vmatmul.mubr.f32.gmra.mrb[0].mxu0 %v4372
        %v6210 = vpop.f32.mrb[0].mxu0
        %v6211 = vadd.f32 %v5826, %v6210
        %v6212 = vpop.f32.mrb[0].mxu0
        %6213 = vmatprep.mubr.f32.mxu0 0.0
        %6214 = vmatmul.mubr.f32.gmra.mrb[0].mxu0 %v4375
        %v6215 = vpop.f32.mrb[0].mxu0
        %v6216 = vadd.f32 %v5831, %v6215
        %v6217 = vpop.f32.mrb[0].mxu0
        %6218 = vmatprep.mubr.f32.mxu0 0.0
        %6219 = vmatmul.mubr.f32.gmra.mrb[0].mxu0 %v4378
        %v6220 = vpop.f32.mrb[0].mxu0
        %v6221 = vadd.f32 %v5836, %v6220
        %v6222 = vpop.f32.mrb[0].mxu0
        %6223 = vmatprep.mubr.f32.mxu0 0.0
        %6224 = vmatmul.mubr.f32.gmra.mrb[0].mxu0 %v4381
        %v6225 = vpop.f32.mrb[0].mxu0
        %v6226 = vadd.f32 %v5841, %v6225
        %v6227 = vpop.f32.mrb[0].mxu0
        %6228 = vmatprep.mubr.f32.mxu0 0.0
        %6229 = vmatmul.mubr.f32.gmra.mrb[0].mxu0 %v4384
        %v6230 = vpop.f32.mrb[0].mxu0
        %v6231 = vadd.f32 %v5846, %v6230
        %v6232 = vpop.f32.mrb[0].mxu0
        %6233 = vmatprep.mubr.f32.mxu0 0.0
        %6234 = vmatmul.mubr.f32.gmra.mrb[0].mxu0 %v4387
        %v6235 = vpop.f32.mrb[0].mxu0
        %v6236 = vadd.f32 %v5851, %v6235
        %v6237 = vpop.f32.mrb[0].mxu0
        %6238 = vmatprep.mubr.f32.mxu0 0.0
        %6239 = vmatmul.mubr.f32.gmra.mrb[0].mxu0 %v4390
        %v6240 = vpop.f32.mrb[0].mxu0
        %v6241 = vadd.f32 %v5856, %v6240
        %v6242 = vpop.f32.mrb[0].mxu0
        %6243 = vmatprep.mubr.f32.mxu0 0.0
        %6244 = vmatmul.mubr.f32.gmra.mrb[0].mxu0 %v4393
        %v6245 = vpop.f32.mrb[0].mxu0
        %v6246 = vadd.f32 %v5861, %v6245
        %v6247 = vpop.f32.mrb[0].mxu0
        %6248 = vmatprep.mubr.f32.mxu0 0.0
        %6249 = vmatmul.mubr.f32.gmra.mrb[0].mxu0 %v4396
        %v6250 = vpop.f32.mrb[0].mxu0
        %v6251 = vadd.f32 %v5866, %v6250
        %v6252 = vpop.f32.mrb[0].mxu0
        %6253 = vmatprep.mubr.f32.mxu0 0.0
        %6254 = vmatmul.mubr.f32.gmra.mrb[0].mxu0 %v4399
        %v6255 = vpop.f32.mrb[0].mxu0
        %v6256 = vadd.f32 %v5871, %v6255
        %v6257 = vpop.f32.mrb[0].mxu0
        %6258 = vmatprep.mubr.f32.mxu0 0.0
        %6259 = vmatmul.mubr.f32.gmra.mrb[0].mxu0 %v4402
        %v6260 = vpop.f32.mrb[0].mxu0
        %v6261 = vadd.f32 %v5876, %v6260
        %v6262 = vpop.f32.mrb[0].mxu0
        %6263 = vmatprep.mubr.f32.mxu0 0.0
        %6264 = vmatmul.mubr.f32.gmra.mrb[0].mxu0 %v4405
        %v6265 = vpop.f32.mrb[0].mxu0
        %v6266 = vadd.f32 %v5881, %v6265
        %v6267 = vpop.f32.mrb[0].mxu0
        %6268 = vmatprep.mubr.f32.mxu0 0.0
        %6269 = vmatmul.mubr.f32.gmra.mrb[0].mxu0 %v4408
        %v6270 = vpop.f32.mrb[0].mxu0
        %v6271 = vadd.f32 %v5886, %v6270
        %v6272 = vpop.f32.mrb[0].mxu0
        %6273 = vmatprep.mubr.f32.mxu0 0.0
        %6274 = vmatmul.mubr.f32.gmra.mrb[0].mxu0 %v4411
        %v6275 = vpop.f32.mrb[0].mxu0
        %v6276 = vadd.f32 %v5891, %v6275
        %v6277 = vpop.f32.mrb[0].mxu0
        %6278 = vmatprep.mubr.f32.mxu0 0.0
        %6279 = vmatmul.mubr.f32.gmra.mrb[0].mxu0 %v4414
        %v6280 = vpop.f32.mrb[0].mxu0
        %v6281 = vadd.f32 %v5896, %v6280
        %v6282 = vpop.f32.mrb[0].mxu0
        %6283 = vmatprep.mubr.f32.mxu0 0.0
        %6284 = vmatmul.mubr.f32.gmra.mrb[0].mxu0 %v4417
        %v6285 = vpop.f32.mrb[0].mxu0
        %v6286 = vadd.f32 %v5901, %v6285
        %v6287 = vpop.f32.mrb[0].mxu0
        %6288 = vmatprep.mubr.f32.mxu0 0.0
        %6289 = vmatmul.mubr.f32.gmra.mrb[0].mxu0 %v4420
        %v6290 = vpop.f32.mrb[0].mxu0
        %v6291 = vadd.f32 %v5906, %v6290
        %v6292 = vpop.f32.mrb[0].mxu0
        %6293 = vdwg.mxu0
        %v6294 = vld [vmem:[%s2 + $0x3a8] sm:$0xff]
        %v6295 = vld [vmem:[%s2 + $0x3b0] sm:$0xff]
        %v6296 = vld [vmem:[%s2 + $0x3b8] sm:$0xff]
        %v6297 = vld [vmem:[%s2 + $0x3c0] sm:$0xff]
        %6298 = vmatprep.subr.mxu0 0.0
        %6299 = vmatpush1.msra.mxu0 %v6294
        %6300 = vmatprep.subr.mxu0 0.0
        %6301 = vmatpush1.msra.mxu0 %v6295
        %6302 = vmatprep.subr.mxu0 0.0
        %6303 = vmatpush1.msra.mxu0 %v6296
        %6304 = vmatprep.subr.mxu0 0.0
        %6305 = vmatpush1.msra.mxu0 %v6297
        %6306 = vmatprep.subr.mxu0 0.0
        %6307 = vmatpush1.msra.mxu0 0.0
        %6308 = vmatprep.subr.mxu0 0.0
        %6309 = vmatpush1.msra.mxu0 0.0
        %6310 = vmatprep.subr.mxu0 0.0
        %6311 = vmatpush1.msra.mxu0 0.0
        %6312 = vmatprep.subr.mxu0 0.0
        %6313 = vmatpush1.msra.mxu0 0.0
        %6314 = vmatprep.subr.mxu0 0.0
        %6315 = vmatpush1.msra.mxu0 0.0
        %6316 = vmatprep.subr.mxu0 0.0
        %6317 = vmatpush1.msra.mxu0 0.0
        %6318 = vmatprep.subr.mxu0 0.0
        %6319 = vmatpush1.msra.mxu0 0.0
        %6320 = vmatprep.subr.mxu0 0.0
        %6321 = vmatpush1.msra.mxu0 0.0
        %6322 = vmatprep.subr.mxu0 0.0
        %6323 = vmatpush1.msra.mxu0 0.0
        %6324 = vmatprep.subr.mxu0 0.0
        %6325 = vmatpush1.msra.mxu0 0.0
        %6326 = vmatprep.subr.mxu0 0.0
        %6327 = vmatpush1.msra.mxu0 0.0
        %6328 = vmatprep.subr.mxu0 0.0
        %6329 = vmatpush1.msra.mxu0 0.0
        %6330 = vmatprep.subr.mxu0 0.0
        %6331 = vmatpush1.msra.mxu0 0.0
        %6332 = vmatprep.subr.mxu0 0.0
        %6333 = vmatpush1.msra.mxu0 0.0
        %6334 = vmatprep.subr.mxu0 0.0
        %6335 = vmatpush1.msra.mxu0 0.0
        %6336 = vmatprep.subr.mxu0 0.0
        %6337 = vmatpush1.msra.mxu0 0.0
        %6338 = vmatprep.subr.mxu0 0.0
        %6339 = vmatpush1.msra.mxu0 0.0
        %6340 = vmatprep.subr.mxu0 0.0
        %6341 = vmatpush1.msra.mxu0 0.0
        %6342 = vmatprep.subr.mxu0 0.0
        %6343 = vmatpush1.msra.mxu0 0.0
        %6344 = vmatprep.subr.mxu0 0.0
        %6345 = vmatpush1.msra.mxu0 0.0
        %6346 = vmatprep.subr.mxu0 0.0
        %6347 = vmatpush1.msra.mxu0 0.0
        %6348 = vmatprep.subr.mxu0 0.0
        %6349 = vmatpush1.msra.mxu0 0.0
        %6350 = vmatprep.subr.mxu0 0.0
        %6351 = vmatpush1.msra.mxu0 0.0
        %6352 = vmatprep.subr.mxu0 0.0
        %6353 = vmatpush1.msra.mxu0 0.0
        %6354 = vmatprep.subr.mxu0 0.0
        %6355 = vmatpush1.msra.mxu0 0.0
        %6356 = vmatprep.subr.mxu0 0.0
        %6357 = vmatpush1.msra.mxu0 0.0
        %6358 = vmatprep.subr.mxu0 0.0
        %6359 = vmatpush1.msra.mxu0 0.0
        %6360 = vmatprep.subr.mxu0 0.0
        %6361 = vmatpush1.msra.mxu0 0.0
        %6362 = vmatprep.mubr.f32.mxu0 0.0
        %6363 = vmatmul.mubr.f32.gmra.mrb[0].mxu0 %v4812
        %v6364 = vpop.f32.mrb[0].mxu0
        %v6365 = vadd.f32 0.0, %v6364
        %v6366 = vpop.f32.mrb[0].mxu0
        %6367 = vmatprep.mubr.f32.mxu0 0.0
        %6368 = vmatmul.mubr.f32.gmra.mrb[0].mxu0 %v4815
        %v6369 = vpop.f32.mrb[0].mxu0
        %v6370 = vadd.f32 0.0, %v6369
        %v6371 = vpop.f32.mrb[0].mxu0
        %6372 = vmatprep.mubr.f32.mxu0 0.0
        %6373 = vmatmul.mubr.f32.gmra.mrb[0].mxu0 %v4818
        %v6374 = vpop.f32.mrb[0].mxu0
        %v6375 = vadd.f32 0.0, %v6374
        %v6376 = vpop.f32.mrb[0].mxu0
        %6377 = vmatprep.mubr.f32.mxu0 0.0
        %6378 = vmatmul.mubr.f32.gmra.mrb[0].mxu0 %v4821
        %v6379 = vpop.f32.mrb[0].mxu0
        %v6380 = vadd.f32 0.0, %v6379
        %v6381 = vpop.f32.mrb[0].mxu0
        %6382 = vmatprep.mubr.f32.mxu0 0.0
        %6383 = vmatmul.mubr.f32.gmra.mrb[0].mxu0 %v4824
        %v6384 = vpop.f32.mrb[0].mxu0
        %v6385 = vadd.f32 0.0, %v6384
        %v6386 = vpop.f32.mrb[0].mxu0
        %6387 = vmatprep.mubr.f32.mxu0 0.0
        %6388 = vmatmul.mubr.f32.gmra.mrb[0].mxu0 %v4827
        %v6389 = vpop.f32.mrb[0].mxu0
        %v6390 = vadd.f32 0.0, %v6389
        %v6391 = vpop.f32.mrb[0].mxu0
        %6392 = vmatprep.mubr.f32.mxu0 0.0
        %6393 = vmatmul.mubr.f32.gmra.mrb[0].mxu0 %v4830
        %v6394 = vpop.f32.mrb[0].mxu0
        %v6395 = vadd.f32 0.0, %v6394
        %v6396 = vpop.f32.mrb[0].mxu0
        %6397 = vmatprep.mubr.f32.mxu0 0.0
        %6398 = vmatmul.mubr.f32.gmra.mrb[0].mxu0 %v4833
        %v6399 = vpop.f32.mrb[0].mxu0
        %v6400 = vadd.f32 0.0, %v6399
        %v6401 = vpop.f32.mrb[0].mxu0
        %6402 = vmatprep.mubr.f32.mxu0 0.0
        %6403 = vmatmul.mubr.f32.gmra.mrb[0].mxu0 %v4836
        %v6404 = vpop.f32.mrb[0].mxu0
        %v6405 = vadd.f32 0.0, %v6404
        %v6406 = vpop.f32.mrb[0].mxu0
        %6407 = vmatprep.mubr.f32.mxu0 0.0
        %6408 = vmatmul.mubr.f32.gmra.mrb[0].mxu0 %v4839
        %v6409 = vpop.f32.mrb[0].mxu0
        %v6410 = vadd.f32 0.0, %v6409
        %v6411 = vpop.f32.mrb[0].mxu0
        %6412 = vmatprep.mubr.f32.mxu0 0.0
        %6413 = vmatmul.mubr.f32.gmra.mrb[0].mxu0 %v4842
        %v6414 = vpop.f32.mrb[0].mxu0
        %v6415 = vadd.f32 0.0, %v6414
        %v6416 = vpop.f32.mrb[0].mxu0
        %6417 = vmatprep.mubr.f32.mxu0 0.0
        %6418 = vmatmul.mubr.f32.gmra.mrb[0].mxu0 %v4845
        %v6419 = vpop.f32.mrb[0].mxu0
        %v6420 = vadd.f32 0.0, %v6419
        %v6421 = vpop.f32.mrb[0].mxu0
        %6422 = vmatprep.mubr.f32.mxu0 0.0
        %6423 = vmatmul.mubr.f32.gmra.mrb[0].mxu0 %v4848
        %v6424 = vpop.f32.mrb[0].mxu0
        %v6425 = vadd.f32 0.0, %v6424
        %v6426 = vpop.f32.mrb[0].mxu0
        %6427 = vmatprep.mubr.f32.mxu0 0.0
        %6428 = vmatmul.mubr.f32.gmra.mrb[0].mxu0 %v4851
        %v6429 = vpop.f32.mrb[0].mxu0
        %v6430 = vadd.f32 0.0, %v6429
        %v6431 = vpop.f32.mrb[0].mxu0
        %6432 = vmatprep.mubr.f32.mxu0 0.0
        %6433 = vmatmul.mubr.f32.gmra.mrb[0].mxu0 %v4854
        %v6434 = vpop.f32.mrb[0].mxu0
        %v6435 = vadd.f32 0.0, %v6434
        %v6436 = vpop.f32.mrb[0].mxu0
        %6437 = vmatprep.mubr.f32.mxu0 0.0
        %6438 = vmatmul.mubr.f32.gmra.mrb[0].mxu0 %v4857
        %v6439 = vpop.f32.mrb[0].mxu0
        %v6440 = vadd.f32 0.0, %v6439
        %v6441 = vpop.f32.mrb[0].mxu0
        %6442 = vmatprep.mubr.f32.mxu0 0.0
        %6443 = vmatmul.mubr.f32.gmra.mrb[0].mxu0 %v4860
        %v6444 = vpop.f32.mrb[0].mxu0
        %v6445 = vadd.f32 0.0, %v6444
        %v6446 = vpop.f32.mrb[0].mxu0
        %6447 = vmatprep.mubr.f32.mxu0 0.0
        %6448 = vmatmul.mubr.f32.gmra.mrb[0].mxu0 %v4863
        %v6449 = vpop.f32.mrb[0].mxu0
        %v6450 = vadd.f32 0.0, %v6449
        %v6451 = vpop.f32.mrb[0].mxu0
        %6452 = vmatprep.mubr.f32.mxu0 0.0
        %6453 = vmatmul.mubr.f32.gmra.mrb[0].mxu0 %v4866
        %v6454 = vpop.f32.mrb[0].mxu0
        %v6455 = vadd.f32 0.0, %v6454
        %v6456 = vpop.f32.mrb[0].mxu0
        %6457 = vmatprep.mubr.f32.mxu0 0.0
        %6458 = vmatmul.mubr.f32.gmra.mrb[0].mxu0 %v4869
        %v6459 = vpop.f32.mrb[0].mxu0
        %v6460 = vadd.f32 0.0, %v6459
        %v6461 = vpop.f32.mrb[0].mxu0
        %6462 = vmatprep.mubr.f32.mxu0 0.0
        %6463 = vmatmul.mubr.f32.gmra.mrb[0].mxu0 %v4872
        %v6464 = vpop.f32.mrb[0].mxu0
        %v6465 = vadd.f32 0.0, %v6464
        %v6466 = vpop.f32.mrb[0].mxu0
        %6467 = vmatprep.mubr.f32.mxu0 0.0
        %6468 = vmatmul.mubr.f32.gmra.mrb[0].mxu0 %v4875
        %v6469 = vpop.f32.mrb[0].mxu0
        %v6470 = vadd.f32 0.0, %v6469
        %v6471 = vpop.f32.mrb[0].mxu0
        %6472 = vmatprep.mubr.f32.mxu0 0.0
        %6473 = vmatmul.mubr.f32.gmra.mrb[0].mxu0 %v4878
        %v6474 = vpop.f32.mrb[0].mxu0
        %v6475 = vadd.f32 0.0, %v6474
        %v6476 = vpop.f32.mrb[0].mxu0
        %6477 = vmatprep.mubr.f32.mxu0 0.0
        %6478 = vmatmul.mubr.f32.gmra.mrb[0].mxu0 %v4881
        %v6479 = vpop.f32.mrb[0].mxu0
        %v6480 = vadd.f32 0.0, %v6479
        %v6481 = vpop.f32.mrb[0].mxu0
        %6482 = vmatprep.mubr.f32.mxu0 0.0
        %6483 = vmatmul.mubr.f32.gmra.mrb[0].mxu0 %v4884
        %v6484 = vpop.f32.mrb[0].mxu0
        %v6485 = vadd.f32 0.0, %v6484
        %v6486 = vpop.f32.mrb[0].mxu0
        %6487 = vmatprep.mubr.f32.mxu0 0.0
        %6488 = vmatmul.mubr.f32.gmra.mrb[0].mxu0 %v4887
        %v6489 = vpop.f32.mrb[0].mxu0
        %v6490 = vadd.f32 0.0, %v6489
        %v6491 = vpop.f32.mrb[0].mxu0
        %6492 = vmatprep.mubr.f32.mxu0 0.0
        %6493 = vmatmul.mubr.f32.gmra.mrb[0].mxu0 %v4890
        %v6494 = vpop.f32.mrb[0].mxu0
        %v6495 = vadd.f32 0.0, %v6494
        %v6496 = vpop.f32.mrb[0].mxu0
        %6497 = vmatprep.mubr.f32.mxu0 0.0
        %6498 = vmatmul.mubr.f32.gmra.mrb[0].mxu0 %v4893
        %v6499 = vpop.f32.mrb[0].mxu0
        %v6500 = vadd.f32 0.0, %v6499
        %v6501 = vpop.f32.mrb[0].mxu0
        %6502 = vmatprep.mubr.f32.mxu0 0.0
        %6503 = vmatmul.mubr.f32.gmra.mrb[0].mxu0 %v4896
        %v6504 = vpop.f32.mrb[0].mxu0
        %v6505 = vadd.f32 0.0, %v6504
        %v6506 = vpop.f32.mrb[0].mxu0
        %6507 = vmatprep.mubr.f32.mxu0 0.0
        %6508 = vmatmul.mubr.f32.gmra.mrb[0].mxu0 %v4899
        %v6509 = vpop.f32.mrb[0].mxu0
        %v6510 = vadd.f32 0.0, %v6509
        %v6511 = vpop.f32.mrb[0].mxu0
        %6512 = vmatprep.mubr.f32.mxu0 0.0
        %6513 = vmatmul.mubr.f32.gmra.mrb[0].mxu0 %v4902
        %v6514 = vpop.f32.mrb[0].mxu0
        %v6515 = vadd.f32 0.0, %v6514
        %v6516 = vpop.f32.mrb[0].mxu0
        %6517 = vmatprep.mubr.f32.mxu0 0.0
        %6518 = vmatmul.mubr.f32.gmra.mrb[0].mxu0 %v4905
        %v6519 = vpop.f32.mrb[0].mxu0
        %v6520 = vadd.f32 0.0, %v6519
        %v6521 = vpop.f32.mrb[0].mxu0
        %6522 = vmatprep.mubr.f32.mxu0 0.0
        %6523 = vmatmul.mubr.f32.gmra.mrb[0].mxu0 %v4908
        %v6524 = vpop.f32.mrb[0].mxu0
        %v6525 = vadd.f32 0.0, %v6524
        %v6526 = vpop.f32.mrb[0].mxu0
        %6527 = vmatprep.mubr.f32.mxu0 0.0
        %6528 = vmatmul.mubr.f32.gmra.mrb[0].mxu0 %v4911
        %v6529 = vpop.f32.mrb[0].mxu0
        %v6530 = vadd.f32 0.0, %v6529
        %v6531 = vpop.f32.mrb[0].mxu0
        %6532 = vmatprep.mubr.f32.mxu0 0.0
        %6533 = vmatmul.mubr.f32.gmra.mrb[0].mxu0 %v4914
        %v6534 = vpop.f32.mrb[0].mxu0
        %v6535 = vadd.f32 0.0, %v6534
        %v6536 = vpop.f32.mrb[0].mxu0
        %6537 = vmatprep.mubr.f32.mxu0 0.0
        %6538 = vmatmul.mubr.f32.gmra.mrb[0].mxu0 %v4917
        %v6539 = vpop.f32.mrb[0].mxu0
        %v6540 = vadd.f32 0.0, %v6539
        %v6541 = vpop.f32.mrb[0].mxu0
        %6542 = vmatprep.mubr.f32.mxu0 0.0
        %6543 = vmatmul.mubr.f32.gmra.mrb[0].mxu0 %v4920
        %v6544 = vpop.f32.mrb[0].mxu0
        %v6545 = vadd.f32 0.0, %v6544
        %v6546 = vpop.f32.mrb[0].mxu0
        %6547 = vmatprep.mubr.f32.mxu0 0.0
        %6548 = vmatmul.mubr.f32.gmra.mrb[0].mxu0 %v4923
        %v6549 = vpop.f32.mrb[0].mxu0
        %v6550 = vadd.f32 0.0, %v6549
        %v6551 = vpop.f32.mrb[0].mxu0
        %6552 = vmatprep.mubr.f32.mxu0 0.0
        %6553 = vmatmul.mubr.f32.gmra.mrb[0].mxu0 %v4926
        %v6554 = vpop.f32.mrb[0].mxu0
        %v6555 = vadd.f32 0.0, %v6554
        %v6556 = vpop.f32.mrb[0].mxu0
        %6557 = vmatprep.mubr.f32.mxu0 0.0
        %6558 = vmatmul.mubr.f32.gmra.mrb[0].mxu0 %v4929
        %v6559 = vpop.f32.mrb[0].mxu0
        %v6560 = vadd.f32 0.0, %v6559
        %v6561 = vpop.f32.mrb[0].mxu0
        %6562 = vmatprep.mubr.f32.mxu0 0.0
        %6563 = vmatmul.mubr.f32.gmra.mrb[0].mxu0 %v4932
        %v6564 = vpop.f32.mrb[0].mxu0
        %v6565 = vadd.f32 0.0, %v6564
        %v6566 = vpop.f32.mrb[0].mxu0
        %6567 = vmatprep.mubr.f32.mxu0 0.0
        %6568 = vmatmul.mubr.f32.gmra.mrb[0].mxu0 %v4935
        %v6569 = vpop.f32.mrb[0].mxu0
        %v6570 = vadd.f32 0.0, %v6569
        %v6571 = vpop.f32.mrb[0].mxu0
        %6572 = vmatprep.mubr.f32.mxu0 0.0
        %6573 = vmatmul.mubr.f32.gmra.mrb[0].mxu0 %v4938
        %v6574 = vpop.f32.mrb[0].mxu0
        %v6575 = vadd.f32 0.0, %v6574
        %v6576 = vpop.f32.mrb[0].mxu0
        %6577 = vmatprep.mubr.f32.mxu0 0.0
        %6578 = vmatmul.mubr.f32.gmra.mrb[0].mxu0 %v4941
        %v6579 = vpop.f32.mrb[0].mxu0
        %v6580 = vadd.f32 0.0, %v6579
        %v6581 = vpop.f32.mrb[0].mxu0
        %6582 = vmatprep.mubr.f32.mxu0 0.0
        %6583 = vmatmul.mubr.f32.gmra.mrb[0].mxu0 %v4944
        %v6584 = vpop.f32.mrb[0].mxu0
        %v6585 = vadd.f32 0.0, %v6584
        %v6586 = vpop.f32.mrb[0].mxu0
        %6587 = vmatprep.mubr.f32.mxu0 0.0
        %6588 = vmatmul.mubr.f32.gmra.mrb[0].mxu0 %v4947
        %v6589 = vpop.f32.mrb[0].mxu0
        %v6590 = vadd.f32 0.0, %v6589
        %v6591 = vpop.f32.mrb[0].mxu0
        %6592 = vmatprep.mubr.f32.mxu0 0.0
        %6593 = vmatmul.mubr.f32.gmra.mrb[0].mxu0 %v4950
        %v6594 = vpop.f32.mrb[0].mxu0
        %v6595 = vadd.f32 0.0, %v6594
        %v6596 = vpop.f32.mrb[0].mxu0
        %6597 = vmatprep.mubr.f32.mxu0 0.0
        %6598 = vmatmul.mubr.f32.gmra.mrb[0].mxu0 %v4953
        %v6599 = vpop.f32.mrb[0].mxu0
        %v6600 = vadd.f32 0.0, %v6599
        %v6601 = vpop.f32.mrb[0].mxu0
        %6602 = vmatprep.mubr.f32.mxu0 0.0
        %6603 = vmatmul.mubr.f32.gmra.mrb[0].mxu0 %v4956
        %v6604 = vpop.f32.mrb[0].mxu0
        %v6605 = vadd.f32 0.0, %v6604
        %v6606 = vpop.f32.mrb[0].mxu0
        %6607 = vmatprep.mubr.f32.mxu0 0.0
        %6608 = vmatmul.mubr.f32.gmra.mrb[0].mxu0 %v4959
        %v6609 = vpop.f32.mrb[0].mxu0
        %v6610 = vadd.f32 0.0, %v6609
        %v6611 = vpop.f32.mrb[0].mxu0
        %6612 = vmatprep.mubr.f32.mxu0 0.0
        %6613 = vmatmul.mubr.f32.gmra.mrb[0].mxu0 %v4962
        %v6614 = vpop.f32.mrb[0].mxu0
        %v6615 = vadd.f32 0.0, %v6614
        %v6616 = vpop.f32.mrb[0].mxu0
        %6617 = vmatprep.mubr.f32.mxu0 0.0
        %6618 = vmatmul.mubr.f32.gmra.mrb[0].mxu0 %v4965
        %v6619 = vpop.f32.mrb[0].mxu0
        %v6620 = vadd.f32 0.0, %v6619
        %v6621 = vpop.f32.mrb[0].mxu0
        %6622 = vmatprep.mubr.f32.mxu0 0.0
        %6623 = vmatmul.mubr.f32.gmra.mrb[0].mxu0 %v4968
        %v6624 = vpop.f32.mrb[0].mxu0
        %v6625 = vadd.f32 0.0, %v6624
        %v6626 = vpop.f32.mrb[0].mxu0
        %6627 = vmatprep.mubr.f32.mxu0 0.0
        %6628 = vmatmul.mubr.f32.gmra.mrb[0].mxu0 %v4971
        %v6629 = vpop.f32.mrb[0].mxu0
        %v6630 = vadd.f32 0.0, %v6629
        %v6631 = vpop.f32.mrb[0].mxu0
        %6632 = vmatprep.mubr.f32.mxu0 0.0
        %6633 = vmatmul.mubr.f32.gmra.mrb[0].mxu0 %v4974
        %v6634 = vpop.f32.mrb[0].mxu0
        %v6635 = vadd.f32 0.0, %v6634
        %v6636 = vpop.f32.mrb[0].mxu0
        %6637 = vmatprep.mubr.f32.mxu0 0.0
        %6638 = vmatmul.mubr.f32.gmra.mrb[0].mxu0 %v4977
        %v6639 = vpop.f32.mrb[0].mxu0
        %v6640 = vadd.f32 0.0, %v6639
        %v6641 = vpop.f32.mrb[0].mxu0
        %6642 = vmatprep.mubr.f32.mxu0 0.0
        %6643 = vmatmul.mubr.f32.gmra.mrb[0].mxu0 %v4980
        %v6644 = vpop.f32.mrb[0].mxu0
        %v6645 = vadd.f32 0.0, %v6644
        %v6646 = vpop.f32.mrb[0].mxu0
        %6647 = vmatprep.mubr.f32.mxu0 0.0
        %6648 = vmatmul.mubr.f32.gmra.mrb[0].mxu0 %v4983
        %v6649 = vpop.f32.mrb[0].mxu0
        %v6650 = vadd.f32 0.0, %v6649
        %v6651 = vpop.f32.mrb[0].mxu0
        %6652 = vmatprep.mubr.f32.mxu0 0.0
        %6653 = vmatmul.mubr.f32.gmra.mrb[0].mxu0 %v4986
        %v6654 = vpop.f32.mrb[0].mxu0
        %v6655 = vadd.f32 0.0, %v6654
        %v6656 = vpop.f32.mrb[0].mxu0
        %6657 = vmatprep.mubr.f32.mxu0 0.0
        %6658 = vmatmul.mubr.f32.gmra.mrb[0].mxu0 %v4989
        %v6659 = vpop.f32.mrb[0].mxu0
        %v6660 = vadd.f32 0.0, %v6659
        %v6661 = vpop.f32.mrb[0].mxu0
        %6662 = vmatprep.mubr.f32.mxu0 0.0
        %6663 = vmatmul.mubr.f32.gmra.mrb[0].mxu0 %v4992
        %v6664 = vpop.f32.mrb[0].mxu0
        %v6665 = vadd.f32 0.0, %v6664
        %v6666 = vpop.f32.mrb[0].mxu0
        %6667 = vmatprep.mubr.f32.mxu0 0.0
        %6668 = vmatmul.mubr.f32.gmra.mrb[0].mxu0 %v4995
        %v6669 = vpop.f32.mrb[0].mxu0
        %v6670 = vadd.f32 0.0, %v6669
        %v6671 = vpop.f32.mrb[0].mxu0
        %6672 = vmatprep.mubr.f32.mxu0 0.0
        %6673 = vmatmul.mubr.f32.gmra.mrb[0].mxu0 %v4998
        %v6674 = vpop.f32.mrb[0].mxu0
        %v6675 = vadd.f32 0.0, %v6674
        %v6676 = vpop.f32.mrb[0].mxu0
        %6677 = vmatprep.mubr.f32.mxu0 0.0
        %6678 = vmatmul.mubr.f32.gmra.mrb[0].mxu0 %v5001
        %v6679 = vpop.f32.mrb[0].mxu0
        %v6680 = vadd.f32 0.0, %v6679
        %v6681 = vpop.f32.mrb[0].mxu0
        %6682 = vdwg.mxu0
        %v6683 = vadd.f32 %v5976, %v6365
        %v6684 = vadd.f32 %v5981, %v6370
        %v6685 = vadd.f32 %v5986, %v6375
        %v6686 = vadd.f32 %v5991, %v6380
        %v6687 = vadd.f32 %v5996, %v6385
        %v6688 = vadd.f32 %v6001, %v6390
        %v6689 = vadd.f32 %v6006, %v6395
        %v6690 = vadd.f32 %v6011, %v6400
        %v6691 = vadd.f32 %v6016, %v6405
        %v6692 = vadd.f32 %v6021, %v6410
        %v6693 = vadd.f32 %v6026, %v6415
        %v6694 = vadd.f32 %v6031, %v6420
        %v6695 = vadd.f32 %v6036, %v6425
        %v6696 = vadd.f32 %v6041, %v6430
        %v6697 = vadd.f32 %v6046, %v6435
        %v6698 = vadd.f32 %v6051, %v6440
        %v6699 = vadd.f32 %v6056, %v6445
        %v6700 = vadd.f32 %v6061, %v6450
        %v6701 = vadd.f32 %v6066, %v6455
        %v6702 = vadd.f32 %v6071, %v6460
        %v6703 = vadd.f32 %v6076, %v6465
        %v6704 = vadd.f32 %v6081, %v6470
        %v6705 = vadd.f32 %v6086, %v6475
        %v6706 = vadd.f32 %v6091, %v6480
        %v6707 = vadd.f32 %v6096, %v6485
        %v6708 = vadd.f32 %v6101, %v6490
        %v6709 = vadd.f32 %v6106, %v6495
        %v6710 = vadd.f32 %v6111, %v6500
        %v6711 = vadd.f32 %v6116, %v6505
        %v6712 = vadd.f32 %v6121, %v6510
        %v6713 = vadd.f32 %v6126, %v6515
        %v6714 = vadd.f32 %v6131, %v6520
        %v6715 = vadd.f32 %v6136, %v6525
        %v6716 = vadd.f32 %v6141, %v6530
        %v6717 = vadd.f32 %v6146, %v6535
        %v6718 = vadd.f32 %v6151, %v6540
        %v6719 = vadd.f32 %v6156, %v6545
        %v6720 = vadd.f32 %v6161, %v6550
        %v6721 = vadd.f32 %v6166, %v6555
        %v6722 = vadd.f32 %v6171, %v6560
        %v6723 = vadd.f32 %v6176, %v6565
        %v6724 = vadd.f32 %v6181, %v6570
        %v6725 = vadd.f32 %v6186, %v6575
        %v6726 = vadd.f32 %v6191, %v6580
        %v6727 = vadd.f32 %v6196, %v6585
        %v6728 = vadd.f32 %v6201, %v6590
        %v6729 = vadd.f32 %v6206, %v6595
        %v6730 = vadd.f32 %v6211, %v6600
        %v6731 = vadd.f32 %v6216, %v6605
        %v6732 = vadd.f32 %v6221, %v6610
        %v6733 = vadd.f32 %v6226, %v6615
        %v6734 = vadd.f32 %v6231, %v6620
        %v6735 = vadd.f32 %v6236, %v6625
        %v6736 = vadd.f32 %v6241, %v6630
        %v6737 = vadd.f32 %v6246, %v6635
        %v6738 = vadd.f32 %v6251, %v6640
        %v6739 = vadd.f32 %v6256, %v6645
        %v6740 = vadd.f32 %v6261, %v6650
        %v6741 = vadd.f32 %v6266, %v6655
        %v6742 = vadd.f32 %v6271, %v6660
        %v6743 = vadd.f32 %v6276, %v6665
        %v6744 = vadd.f32 %v6281, %v6670
        %v6745 = vadd.f32 %v6286, %v6675
        %v6746 = vadd.f32 %v6291, %v6680
        %v6747 = vtanh.pop %v6683
        %v6748 = vtanh.pop %v6684
        %v6749 = vtanh.pop %v6685
        %v6750 = vtanh.pop %v6686
        %v6751 = vtanh.pop %v6687
        %v6752 = vtanh.pop %v6688
        %v6753 = vtanh.pop %v6689
        %v6754 = vtanh.pop %v6690
        %v6755 = vtanh.pop %v6691
        %v6756 = vtanh.pop %v6692
        %v6757 = vtanh.pop %v6693
        %v6758 = vtanh.pop %v6694
        %v6759 = vtanh.pop %v6695
        %v6760 = vtanh.pop %v6696
        %v6761 = vtanh.pop %v6697
        %v6762 = vtanh.pop %v6698
        %v6763 = vtanh.pop %v6699
        %v6764 = vtanh.pop %v6700
        %v6765 = vtanh.pop %v6701
        %v6766 = vtanh.pop %v6702
        %v6767 = vtanh.pop %v6703
        %v6768 = vtanh.pop %v6704
        %v6769 = vtanh.pop %v6705
        %v6770 = vtanh.pop %v6706
        %v6771 = vtanh.pop %v6707
        %v6772 = vtanh.pop %v6708
        %v6773 = vtanh.pop %v6709
        %v6774 = vtanh.pop %v6710
        %v6775 = vtanh.pop %v6711
        %v6776 = vtanh.pop %v6712
        %v6777 = vtanh.pop %v6713
        %v6778 = vtanh.pop %v6714
        %v6779 = vtanh.pop %v6715
        %v6780 = vtanh.pop %v6716
        %v6781 = vtanh.pop %v6717
        %v6782 = vtanh.pop %v6718
        %v6783 = vtanh.pop %v6719
        %v6784 = vtanh.pop %v6720
        %v6785 = vtanh.pop %v6721
        %v6786 = vtanh.pop %v6722
        %v6787 = vtanh.pop %v6723
        %v6788 = vtanh.pop %v6724
        %v6789 = vtanh.pop %v6725
        %v6790 = vtanh.pop %v6726
        %v6791 = vtanh.pop %v6727
        %v6792 = vtanh.pop %v6728
        %v6793 = vtanh.pop %v6729
        %v6794 = vtanh.pop %v6730
        %v6795 = vtanh.pop %v6731
        %v6796 = vtanh.pop %v6732
        %v6797 = vtanh.pop %v6733
        %v6798 = vtanh.pop %v6734
        %v6799 = vtanh.pop %v6735
        %v6800 = vtanh.pop %v6736
        %v6801 = vtanh.pop %v6737
        %v6802 = vtanh.pop %v6738
        %v6803 = vtanh.pop %v6739
        %v6804 = vtanh.pop %v6740
        %v6805 = vtanh.pop %v6741
        %v6806 = vtanh.pop %v6742
        %v6807 = vtanh.pop %v6743
        %v6808 = vtanh.pop %v6744
        %v6809 = vtanh.pop %v6745
        %v6810 = vtanh.pop %v6746
        %v6811 = vlaneseq
        %v6812 = vshrl.u32 %v6811, 7
        %v6813 = vadd.s32 %v6812, 8
        %v6814 = vadd.s32 %v6812, 16
        %v6815 = vadd.s32 %v6812, 24
        %vm6816 = vcmp.lt.s32.totalorder %v6812, 28
        %vm6817 = vcmp.lt.s32.totalorder %v6813, 28
        %vm6818 = vcmp.lt.s32.totalorder %v6814, 28
        %vm6819 = vcmp.lt.s32.totalorder %v6815, 28
        %v6820 = vsel %vm6816, %v5452, -2.0
        %v6821 = vsel %vm6817, %v5453, -2.0
        %v6822 = vsel %vm6818, %v5454, -2.0
        %v6823 = vsel %vm6819, %v5455, -2.0
        %v6824 = vsel %vm6816, %v5456, -2.0
        %v6825 = vsel %vm6817, %v5457, -2.0
        %v6826 = vsel %vm6818, %v5458, -2.0
        %v6827 = vsel %vm6819, %v5459, -2.0
        %v6828 = vsel %vm6816, %v5460, -2.0
        %v6829 = vsel %vm6817, %v5461, -2.0
        %v6830 = vsel %vm6818, %v5462, -2.0
        %v6831 = vsel %vm6819, %v5463, -2.0
        %v6832 = vsel %vm6816, %v5464, -2.0
        %v6833 = vsel %vm6817, %v5465, -2.0
        %v6834 = vsel %vm6818, %v5466, -2.0
        %v6835 = vsel %vm6819, %v5467, -2.0
        %v6836 = vsel %vm6816, %v5468, -2.0
        %v6837 = vsel %vm6817, %v5469, -2.0
        %v6838 = vsel %vm6818, %v5470, -2.0
        %v6839 = vsel %vm6819, %v5471, -2.0
        %v6840 = vsel %vm6816, %v5472, -2.0
        %v6841 = vsel %vm6817, %v5473, -2.0
        %v6842 = vsel %vm6818, %v5474, -2.0
        %v6843 = vsel %vm6819, %v5475, -2.0
        %v6844 = vsel %vm6816, %v5476, -2.0
        %v6845 = vsel %vm6817, %v5477, -2.0
        %v6846 = vsel %vm6818, %v5478, -2.0
        %v6847 = vsel %vm6819, %v5479, -2.0
        %v6848 = vsel %vm6816, %v5480, -2.0
        %v6849 = vsel %vm6817, %v5481, -2.0
        %v6850 = vsel %vm6818, %v5482, -2.0
        %v6851 = vsel %vm6819, %v5483, -2.0
        %v6852 = vsel %vm6816, %v5484, -2.0
        %v6853 = vsel %vm6817, %v5485, -2.0
        %v6854 = vsel %vm6818, %v5486, -2.0
        %v6855 = vsel %vm6819, %v5487, -2.0
        %v6856 = vsel %vm6816, %v5488, -2.0
        %v6857 = vsel %vm6817, %v5489, -2.0
        %v6858 = vsel %vm6818, %v5490, -2.0
        %v6859 = vsel %vm6819, %v5491, -2.0
        %v6860 = vsel %vm6816, %v5492, -2.0
        %v6861 = vsel %vm6817, %v5493, -2.0
        %v6862 = vsel %vm6818, %v5494, -2.0
        %v6863 = vsel %vm6819, %v5495, -2.0
        %v6864 = vsel %vm6816, %v5496, -2.0
        %v6865 = vsel %vm6817, %v5497, -2.0
        %v6866 = vsel %vm6818, %v5498, -2.0
        %v6867 = vsel %vm6819, %v5499, -2.0
        %v6868 = vsel %vm6816, %v5500, -2.0
        %v6869 = vsel %vm6817, %v5501, -2.0
        %v6870 = vsel %vm6818, %v5502, -2.0
        %v6871 = vsel %vm6819, %v5503, -2.0
        %v6872 = vsel %vm6816, %v5504, -2.0
        %v6873 = vsel %vm6817, %v5505, -2.0
        %v6874 = vsel %vm6818, %v5506, -2.0
        %v6875 = vsel %vm6819, %v5507, -2.0
        %v6876 = vsel %vm6816, %v5508, -2.0
        %v6877 = vsel %vm6817, %v5509, -2.0
        %v6878 = vsel %vm6818, %v5510, -2.0
        %v6879 = vsel %vm6819, %v5511, -2.0
        %v6880 = vsel %vm6816, %v5512, -2.0
        %v6881 = vsel %vm6817, %v5513, -2.0
        %v6882 = vsel %vm6818, %v5514, -2.0
        %v6883 = vsel %vm6819, %v5515, -2.0
        %v6884 = vsel %vm3652, %v6820, -inf
        %v6885 = vsel %vm3652, %v6821, -inf
        %v6886 = vmax.f32 %v6884, %v6885
        %v6887 = vsel %vm3652, %v6822, -inf
        %v6888 = vmax.f32 %v6886, %v6887
        %v6889 = vsel %vm3652, %v6823, -inf
        %v6890 = vmax.f32 %v6888, %v6889
        %v6891 = vrot.slane %v6890, 4
        %v6892 = vmax.f32 %v6890, %v6891
        %v6893 = vrot.slane %v6892, 2
        %v6894 = vmax.f32 %v6892, %v6893
        %v6895 = vrot.slane %v6894, 1
        %v6896 = vmax.f32 %v6894, %v6895
        %v6897 = vsel %vm3652, %v6824, -inf
        %v6898 = vsel %vm3652, %v6825, -inf
        %v6899 = vmax.f32 %v6897, %v6898
        %v6900 = vsel %vm3652, %v6826, -inf
        %v6901 = vmax.f32 %v6899, %v6900
        %v6902 = vsel %vm3652, %v6827, -inf
        %v6903 = vmax.f32 %v6901, %v6902
        %v6904 = vrot.slane %v6903, 4
        %v6905 = vmax.f32 %v6903, %v6904
        %v6906 = vrot.slane %v6905, 2
        %v6907 = vmax.f32 %v6905, %v6906
        %v6908 = vrot.slane %v6907, 1
        %v6909 = vmax.f32 %v6907, %v6908
        %v6910 = vsel %vm3652, %v6828, -inf
        %v6911 = vsel %vm3652, %v6829, -inf
        %v6912 = vmax.f32 %v6910, %v6911
        %v6913 = vsel %vm3652, %v6830, -inf
        %v6914 = vmax.f32 %v6912, %v6913
        %v6915 = vsel %vm3652, %v6831, -inf
        %v6916 = vmax.f32 %v6914, %v6915
        %v6917 = vrot.slane %v6916, 4
        %v6918 = vmax.f32 %v6916, %v6917
        %v6919 = vrot.slane %v6918, 2
        %v6920 = vmax.f32 %v6918, %v6919
        %v6921 = vrot.slane %v6920, 1
        %v6922 = vmax.f32 %v6920, %v6921
        %v6923 = vsel %vm3652, %v6832, -inf
        %v6924 = vsel %vm3652, %v6833, -inf
        %v6925 = vmax.f32 %v6923, %v6924
        %v6926 = vsel %vm3652, %v6834, -inf
        %v6927 = vmax.f32 %v6925, %v6926
        %v6928 = vsel %vm3652, %v6835, -inf
        %v6929 = vmax.f32 %v6927, %v6928
        %v6930 = vrot.slane %v6929, 4
        %v6931 = vmax.f32 %v6929, %v6930
        %v6932 = vrot.slane %v6931, 2
        %v6933 = vmax.f32 %v6931, %v6932
        %v6934 = vrot.slane %v6933, 1
        %v6935 = vmax.f32 %v6933, %v6934
        %v6936 = vsel %vm3652, %v6836, -inf
        %v6937 = vsel %vm3652, %v6837, -inf
        %v6938 = vmax.f32 %v6936, %v6937
        %v6939 = vsel %vm3652, %v6838, -inf
        %v6940 = vmax.f32 %v6938, %v6939
        %v6941 = vsel %vm3652, %v6839, -inf
        %v6942 = vmax.f32 %v6940, %v6941
        %v6943 = vrot.slane %v6942, 4
        %v6944 = vmax.f32 %v6942, %v6943
        %v6945 = vrot.slane %v6944, 2
        %v6946 = vmax.f32 %v6944, %v6945
        %v6947 = vrot.slane %v6946, 1
        %v6948 = vmax.f32 %v6946, %v6947
        %v6949 = vsel %vm3652, %v6840, -inf
        %v6950 = vsel %vm3652, %v6841, -inf
        %v6951 = vmax.f32 %v6949, %v6950
        %v6952 = vsel %vm3652, %v6842, -inf
        %v6953 = vmax.f32 %v6951, %v6952
        %v6954 = vsel %vm3652, %v6843, -inf
        %v6955 = vmax.f32 %v6953, %v6954
        %v6956 = vrot.slane %v6955, 4
        %v6957 = vmax.f32 %v6955, %v6956
        %v6958 = vrot.slane %v6957, 2
        %v6959 = vmax.f32 %v6957, %v6958
        %v6960 = vrot.slane %v6959, 1
        %v6961 = vmax.f32 %v6959, %v6960
        %v6962 = vsel %vm3652, %v6844, -inf
        %v6963 = vsel %vm3652, %v6845, -inf
        %v6964 = vmax.f32 %v6962, %v6963
        %v6965 = vsel %vm3652, %v6846, -inf
        %v6966 = vmax.f32 %v6964, %v6965
        %v6967 = vsel %vm3652, %v6847, -inf
        %v6968 = vmax.f32 %v6966, %v6967
        %v6969 = vrot.slane %v6968, 4
        %v6970 = vmax.f32 %v6968, %v6969
        %v6971 = vrot.slane %v6970, 2
        %v6972 = vmax.f32 %v6970, %v6971
        %v6973 = vrot.slane %v6972, 1
        %v6974 = vmax.f32 %v6972, %v6973
        %v6975 = vsel %vm3652, %v6848, -inf
        %v6976 = vsel %vm3652, %v6849, -inf
        %v6977 = vmax.f32 %v6975, %v6976
        %v6978 = vsel %vm3652, %v6850, -inf
        %v6979 = vmax.f32 %v6977, %v6978
        %v6980 = vsel %vm3652, %v6851, -inf
        %v6981 = vmax.f32 %v6979, %v6980
        %v6982 = vrot.slane %v6981, 4
        %v6983 = vmax.f32 %v6981, %v6982
        %v6984 = vrot.slane %v6983, 2
        %v6985 = vmax.f32 %v6983, %v6984
        %v6986 = vrot.slane %v6985, 1
        %v6987 = vmax.f32 %v6985, %v6986
        %v6988 = vsel %vm3652, %v6852, -inf
        %v6989 = vsel %vm3652, %v6853, -inf
        %v6990 = vmax.f32 %v6988, %v6989
        %v6991 = vsel %vm3652, %v6854, -inf
        %v6992 = vmax.f32 %v6990, %v6991
        %v6993 = vsel %vm3652, %v6855, -inf
        %v6994 = vmax.f32 %v6992, %v6993
        %v6995 = vrot.slane %v6994, 4
        %v6996 = vmax.f32 %v6994, %v6995
        %v6997 = vrot.slane %v6996, 2
        %v6998 = vmax.f32 %v6996, %v6997
        %v6999 = vrot.slane %v6998, 1
        %v7000 = vmax.f32 %v6998, %v6999
        %v7001 = vsel %vm3652, %v6856, -inf
        %v7002 = vsel %vm3652, %v6857, -inf
        %v7003 = vmax.f32 %v7001, %v7002
        %v7004 = vsel %vm3652, %v6858, -inf
        %v7005 = vmax.f32 %v7003, %v7004
        %v7006 = vsel %vm3652, %v6859, -inf
        %v7007 = vmax.f32 %v7005, %v7006
        %v7008 = vrot.slane %v7007, 4
        %v7009 = vmax.f32 %v7007, %v7008
        %v7010 = vrot.slane %v7009, 2
        %v7011 = vmax.f32 %v7009, %v7010
        %v7012 = vrot.slane %v7011, 1
        %v7013 = vmax.f32 %v7011, %v7012
        %v7014 = vsel %vm3652, %v6860, -inf
        %v7015 = vsel %vm3652, %v6861, -inf
        %v7016 = vmax.f32 %v7014, %v7015
        %v7017 = vsel %vm3652, %v6862, -inf
        %v7018 = vmax.f32 %v7016, %v7017
        %v7019 = vsel %vm3652, %v6863, -inf
        %v7020 = vmax.f32 %v7018, %v7019
        %v7021 = vrot.slane %v7020, 4
        %v7022 = vmax.f32 %v7020, %v7021
        %v7023 = vrot.slane %v7022, 2
        %v7024 = vmax.f32 %v7022, %v7023
        %v7025 = vrot.slane %v7024, 1
        %v7026 = vmax.f32 %v7024, %v7025
        %v7027 = vsel %vm3652, %v6864, -inf
        %v7028 = vsel %vm3652, %v6865, -inf
        %v7029 = vmax.f32 %v7027, %v7028
        %v7030 = vsel %vm3652, %v6866, -inf
        %v7031 = vmax.f32 %v7029, %v7030
        %v7032 = vsel %vm3652, %v6867, -inf
        %v7033 = vmax.f32 %v7031, %v7032
        %v7034 = vrot.slane %v7033, 4
        %v7035 = vmax.f32 %v7033, %v7034
        %v7036 = vrot.slane %v7035, 2
        %v7037 = vmax.f32 %v7035, %v7036
        %v7038 = vrot.slane %v7037, 1
        %v7039 = vmax.f32 %v7037, %v7038
        %v7040 = vsel %vm3652, %v6868, -inf
        %v7041 = vsel %vm3652, %v6869, -inf
        %v7042 = vmax.f32 %v7040, %v7041
        %v7043 = vsel %vm3652, %v6870, -inf
        %v7044 = vmax.f32 %v7042, %v7043
        %v7045 = vsel %vm3652, %v6871, -inf
        %v7046 = vmax.f32 %v7044, %v7045
        %v7047 = vrot.slane %v7046, 4
        %v7048 = vmax.f32 %v7046, %v7047
        %v7049 = vrot.slane %v7048, 2
        %v7050 = vmax.f32 %v7048, %v7049
        %v7051 = vrot.slane %v7050, 1
        %v7052 = vmax.f32 %v7050, %v7051
        %v7053 = vsel %vm3652, %v6872, -inf
        %v7054 = vsel %vm3652, %v6873, -inf
        %v7055 = vmax.f32 %v7053, %v7054
        %v7056 = vsel %vm3652, %v6874, -inf
        %v7057 = vmax.f32 %v7055, %v7056
        %v7058 = vsel %vm3652, %v6875, -inf
        %v7059 = vmax.f32 %v7057, %v7058
        %v7060 = vrot.slane %v7059, 4
        %v7061 = vmax.f32 %v7059, %v7060
        %v7062 = vrot.slane %v7061, 2
        %v7063 = vmax.f32 %v7061, %v7062
        %v7064 = vrot.slane %v7063, 1
        %v7065 = vmax.f32 %v7063, %v7064
        %v7066 = vsel %vm3652, %v6876, -inf
        %v7067 = vsel %vm3652, %v6877, -inf
        %v7068 = vmax.f32 %v7066, %v7067
        %v7069 = vsel %vm3652, %v6878, -inf
        %v7070 = vmax.f32 %v7068, %v7069
        %v7071 = vsel %vm3652, %v6879, -inf
        %v7072 = vmax.f32 %v7070, %v7071
        %v7073 = vrot.slane %v7072, 4
        %v7074 = vmax.f32 %v7072, %v7073
        %v7075 = vrot.slane %v7074, 2
        %v7076 = vmax.f32 %v7074, %v7075
        %v7077 = vrot.slane %v7076, 1
        %v7078 = vmax.f32 %v7076, %v7077
        %v7079 = vsel %vm3652, %v6880, -inf
        %v7080 = vsel %vm3652, %v6881, -inf
        %v7081 = vmax.f32 %v7079, %v7080
        %v7082 = vsel %vm3652, %v6882, -inf
        %v7083 = vmax.f32 %v7081, %v7082
        %v7084 = vsel %vm3652, %v6883, -inf
        %v7085 = vmax.f32 %v7083, %v7084
        %v7086 = vrot.slane %v7085, 4
        %v7087 = vmax.f32 %v7085, %v7086
        %v7088 = vrot.slane %v7087, 2
        %v7089 = vmax.f32 %v7087, %v7088
        %v7090 = vrot.slane %v7089, 1
        %v7091 = vmax.f32 %v7089, %v7090
        %vm7092 = vcmp.ge.s32.totalorder %v6812, 23
        %vm7093 = vcmp.ge.s32.totalorder %v6813, 23
        %vm7094 = vcmp.ge.s32.totalorder %v6814, 23
        %vm7095 = vcmp.ge.s32.totalorder %v6815, 23
        %vm7096 = vmand %vm7092, %vm6816
        %vm7097 = vmand %vm7093, %vm6817
        %vm7098 = vmand %vm7094, %vm6818
        %vm7099 = vmand %vm7095, %vm6819
        %v7100 = vsel %vm7096, %v6747, -2.0
        %v7101 = vsel %vm7097, %v6748, -2.0
        %v7102 = vsel %vm7098, %v6749, -2.0
        %v7103 = vsel %vm7099, %v6750, -2.0
        %v7104 = vsel %vm7096, %v6751, -2.0
        %v7105 = vsel %vm7097, %v6752, -2.0
        %v7106 = vsel %vm7098, %v6753, -2.0
        %v7107 = vsel %vm7099, %v6754, -2.0
        %v7108 = vsel %vm7096, %v6755, -2.0
        %v7109 = vsel %vm7097, %v6756, -2.0
        %v7110 = vsel %vm7098, %v6757, -2.0
        %v7111 = vsel %vm7099, %v6758, -2.0
        %v7112 = vsel %vm7096, %v6759, -2.0
        %v7113 = vsel %vm7097, %v6760, -2.0
        %v7114 = vsel %vm7098, %v6761, -2.0
        %v7115 = vsel %vm7099, %v6762, -2.0
        %v7116 = vsel %vm7096, %v6763, -2.0
        %v7117 = vsel %vm7097, %v6764, -2.0
        %v7118 = vsel %vm7098, %v6765, -2.0
        %v7119 = vsel %vm7099, %v6766, -2.0
        %v7120 = vsel %vm7096, %v6767, -2.0
        %v7121 = vsel %vm7097, %v6768, -2.0
        %v7122 = vsel %vm7098, %v6769, -2.0
        %v7123 = vsel %vm7099, %v6770, -2.0
        %v7124 = vsel %vm7096, %v6771, -2.0
        %v7125 = vsel %vm7097, %v6772, -2.0
        %v7126 = vsel %vm7098, %v6773, -2.0
        %v7127 = vsel %vm7099, %v6774, -2.0
        %v7128 = vsel %vm7096, %v6775, -2.0
        %v7129 = vsel %vm7097, %v6776, -2.0
        %v7130 = vsel %vm7098, %v6777, -2.0
        %v7131 = vsel %vm7099, %v6778, -2.0
        %v7132 = vsel %vm7096, %v6779, -2.0
        %v7133 = vsel %vm7097, %v6780, -2.0
        %v7134 = vsel %vm7098, %v6781, -2.0
        %v7135 = vsel %vm7099, %v6782, -2.0
        %v7136 = vsel %vm7096, %v6783, -2.0
        %v7137 = vsel %vm7097, %v6784, -2.0
        %v7138 = vsel %vm7098, %v6785, -2.0
        %v7139 = vsel %vm7099, %v6786, -2.0
        %v7140 = vsel %vm7096, %v6787, -2.0
        %v7141 = vsel %vm7097, %v6788, -2.0
        %v7142 = vsel %vm7098, %v6789, -2.0
        %v7143 = vsel %vm7099, %v6790, -2.0
        %v7144 = vsel %vm7096, %v6791, -2.0
        %v7145 = vsel %vm7097, %v6792, -2.0
        %v7146 = vsel %vm7098, %v6793, -2.0
        %v7147 = vsel %vm7099, %v6794, -2.0
        %v7148 = vsel %vm7096, %v6795, -2.0
        %v7149 = vsel %vm7097, %v6796, -2.0
        %v7150 = vsel %vm7098, %v6797, -2.0
        %v7151 = vsel %vm7099, %v6798, -2.0
        %v7152 = vsel %vm7096, %v6799, -2.0
        %v7153 = vsel %vm7097, %v6800, -2.0
        %v7154 = vsel %vm7098, %v6801, -2.0
        %v7155 = vsel %vm7099, %v6802, -2.0
        %v7156 = vsel %vm7096, %v6803, -2.0
        %v7157 = vsel %vm7097, %v6804, -2.0
        %v7158 = vsel %vm7098, %v6805, -2.0
        %v7159 = vsel %vm7099, %v6806, -2.0
        %v7160 = vsel %vm7096, %v6807, -2.0
        %v7161 = vsel %vm7097, %v6808, -2.0
        %v7162 = vsel %vm7098, %v6809, -2.0
        %v7163 = vsel %vm7099, %v6810, -2.0
        %v7164 = vsel %vm3652, %v7100, -inf
        %v7165 = vsel %vm3652, %v7101, -inf
        %v7166 = vmax.f32 %v7164, %v7165
        %v7167 = vsel %vm3652, %v7102, -inf
        %v7168 = vmax.f32 %v7166, %v7167
        %v7169 = vsel %vm3652, %v7103, -inf
        %v7170 = vmax.f32 %v7168, %v7169
        %v7171 = vrot.slane %v7170, 4
        %v7172 = vmax.f32 %v7170, %v7171
        %v7173 = vrot.slane %v7172, 2
        %v7174 = vmax.f32 %v7172, %v7173
        %v7175 = vrot.slane %v7174, 1
        %v7176 = vmax.f32 %v7174, %v7175
        %v7177 = vsel %vm3652, %v7104, -inf
        %v7178 = vsel %vm3652, %v7105, -inf
        %v7179 = vmax.f32 %v7177, %v7178
        %v7180 = vsel %vm3652, %v7106, -inf
        %v7181 = vmax.f32 %v7179, %v7180
        %v7182 = vsel %vm3652, %v7107, -inf
        %v7183 = vmax.f32 %v7181, %v7182
        %v7184 = vrot.slane %v7183, 4
        %v7185 = vmax.f32 %v7183, %v7184
        %v7186 = vrot.slane %v7185, 2
        %v7187 = vmax.f32 %v7185, %v7186
        %v7188 = vrot.slane %v7187, 1
        %v7189 = vmax.f32 %v7187, %v7188
        %v7190 = vsel %vm3652, %v7108, -inf
        %v7191 = vsel %vm3652, %v7109, -inf
        %v7192 = vmax.f32 %v7190, %v7191
        %v7193 = vsel %vm3652, %v7110, -inf
        %v7194 = vmax.f32 %v7192, %v7193
        %v7195 = vsel %vm3652, %v7111, -inf
        %v7196 = vmax.f32 %v7194, %v7195
        %v7197 = vrot.slane %v7196, 4
        %v7198 = vmax.f32 %v7196, %v7197
        %v7199 = vrot.slane %v7198, 2
        %v7200 = vmax.f32 %v7198, %v7199
        %v7201 = vrot.slane %v7200, 1
        %v7202 = vmax.f32 %v7200, %v7201
        %v7203 = vsel %vm3652, %v7112, -inf
        %v7204 = vsel %vm3652, %v7113, -inf
        %v7205 = vmax.f32 %v7203, %v7204
        %v7206 = vsel %vm3652, %v7114, -inf
        %v7207 = vmax.f32 %v7205, %v7206
        %v7208 = vsel %vm3652, %v7115, -inf
        %v7209 = vmax.f32 %v7207, %v7208
        %v7210 = vrot.slane %v7209, 4
        %v7211 = vmax.f32 %v7209, %v7210
        %v7212 = vrot.slane %v7211, 2
        %v7213 = vmax.f32 %v7211, %v7212
        %v7214 = vrot.slane %v7213, 1
        %v7215 = vmax.f32 %v7213, %v7214
        %v7216 = vsel %vm3652, %v7116, -inf
        %v7217 = vsel %vm3652, %v7117, -inf
        %v7218 = vmax.f32 %v7216, %v7217
        %v7219 = vsel %vm3652, %v7118, -inf
        %v7220 = vmax.f32 %v7218, %v7219
        %v7221 = vsel %vm3652, %v7119, -inf
        %v7222 = vmax.f32 %v7220, %v7221
        %v7223 = vrot.slane %v7222, 4
        %v7224 = vmax.f32 %v7222, %v7223
        %v7225 = vrot.slane %v7224, 2
        %v7226 = vmax.f32 %v7224, %v7225
        %v7227 = vrot.slane %v7226, 1
        %v7228 = vmax.f32 %v7226, %v7227
        %v7229 = vsel %vm3652, %v7120, -inf
        %v7230 = vsel %vm3652, %v7121, -inf
        %v7231 = vmax.f32 %v7229, %v7230
        %v7232 = vsel %vm3652, %v7122, -inf
        %v7233 = vmax.f32 %v7231, %v7232
        %v7234 = vsel %vm3652, %v7123, -inf
        %v7235 = vmax.f32 %v7233, %v7234
        %v7236 = vrot.slane %v7235, 4
        %v7237 = vmax.f32 %v7235, %v7236
        %v7238 = vrot.slane %v7237, 2
        %v7239 = vmax.f32 %v7237, %v7238
        %v7240 = vrot.slane %v7239, 1
        %v7241 = vmax.f32 %v7239, %v7240
        %v7242 = vsel %vm3652, %v7124, -inf
        %v7243 = vsel %vm3652, %v7125, -inf
        %v7244 = vmax.f32 %v7242, %v7243
        %v7245 = vsel %vm3652, %v7126, -inf
        %v7246 = vmax.f32 %v7244, %v7245
        %v7247 = vsel %vm3652, %v7127, -inf
        %v7248 = vmax.f32 %v7246, %v7247
        %v7249 = vrot.slane %v7248, 4
        %v7250 = vmax.f32 %v7248, %v7249
        %v7251 = vrot.slane %v7250, 2
        %v7252 = vmax.f32 %v7250, %v7251
        %v7253 = vrot.slane %v7252, 1
        %v7254 = vmax.f32 %v7252, %v7253
        %v7255 = vsel %vm3652, %v7128, -inf
        %v7256 = vsel %vm3652, %v7129, -inf
        %v7257 = vmax.f32 %v7255, %v7256
        %v7258 = vsel %vm3652, %v7130, -inf
        %v7259 = vmax.f32 %v7257, %v7258
        %v7260 = vsel %vm3652, %v7131, -inf
        %v7261 = vmax.f32 %v7259, %v7260
        %v7262 = vrot.slane %v7261, 4
        %v7263 = vmax.f32 %v7261, %v7262
        %v7264 = vrot.slane %v7263, 2
        %v7265 = vmax.f32 %v7263, %v7264
        %v7266 = vrot.slane %v7265, 1
        %v7267 = vmax.f32 %v7265, %v7266
        %v7268 = vsel %vm3652, %v7132, -inf
        %v7269 = vsel %vm3652, %v7133, -inf
        %v7270 = vmax.f32 %v7268, %v7269
        %v7271 = vsel %vm3652, %v7134, -inf
        %v7272 = vmax.f32 %v7270, %v7271
        %v7273 = vsel %vm3652, %v7135, -inf
        %v7274 = vmax.f32 %v7272, %v7273
        %v7275 = vrot.slane %v7274, 4
        %v7276 = vmax.f32 %v7274, %v7275
        %v7277 = vrot.slane %v7276, 2
        %v7278 = vmax.f32 %v7276, %v7277
        %v7279 = vrot.slane %v7278, 1
        %v7280 = vmax.f32 %v7278, %v7279
        %v7281 = vsel %vm3652, %v7136, -inf
        %v7282 = vsel %vm3652, %v7137, -inf
        %v7283 = vmax.f32 %v7281, %v7282
        %v7284 = vsel %vm3652, %v7138, -inf
        %v7285 = vmax.f32 %v7283, %v7284
        %v7286 = vsel %vm3652, %v7139, -inf
        %v7287 = vmax.f32 %v7285, %v7286
        %v7288 = vrot.slane %v7287, 4
        %v7289 = vmax.f32 %v7287, %v7288
        %v7290 = vrot.slane %v7289, 2
        %v7291 = vmax.f32 %v7289, %v7290
        %v7292 = vrot.slane %v7291, 1
        %v7293 = vmax.f32 %v7291, %v7292
        %v7294 = vsel %vm3652, %v7140, -inf
        %v7295 = vsel %vm3652, %v7141, -inf
        %v7296 = vmax.f32 %v7294, %v7295
        %v7297 = vsel %vm3652, %v7142, -inf
        %v7298 = vmax.f32 %v7296, %v7297
        %v7299 = vsel %vm3652, %v7143, -inf
        %v7300 = vmax.f32 %v7298, %v7299
        %v7301 = vrot.slane %v7300, 4
        %v7302 = vmax.f32 %v7300, %v7301
        %v7303 = vrot.slane %v7302, 2
        %v7304 = vmax.f32 %v7302, %v7303
        %v7305 = vrot.slane %v7304, 1
        %v7306 = vmax.f32 %v7304, %v7305
        %v7307 = vsel %vm3652, %v7144, -inf
        %v7308 = vsel %vm3652, %v7145, -inf
        %v7309 = vmax.f32 %v7307, %v7308
        %v7310 = vsel %vm3652, %v7146, -inf
        %v7311 = vmax.f32 %v7309, %v7310
        %v7312 = vsel %vm3652, %v7147, -inf
        %v7313 = vmax.f32 %v7311, %v7312
        %v7314 = vrot.slane %v7313, 4
        %v7315 = vmax.f32 %v7313, %v7314
        %v7316 = vrot.slane %v7315, 2
        %v7317 = vmax.f32 %v7315, %v7316
        %v7318 = vrot.slane %v7317, 1
        %v7319 = vmax.f32 %v7317, %v7318
        %v7320 = vsel %vm3652, %v7148, -inf
        %v7321 = vsel %vm3652, %v7149, -inf
        %v7322 = vmax.f32 %v7320, %v7321
        %v7323 = vsel %vm3652, %v7150, -inf
        %v7324 = vmax.f32 %v7322, %v7323
        %v7325 = vsel %vm3652, %v7151, -inf
        %v7326 = vmax.f32 %v7324, %v7325
        %v7327 = vrot.slane %v7326, 4
        %v7328 = vmax.f32 %v7326, %v7327
        %v7329 = vrot.slane %v7328, 2
        %v7330 = vmax.f32 %v7328, %v7329
        %v7331 = vrot.slane %v7330, 1
        %v7332 = vmax.f32 %v7330, %v7331
        %v7333 = vsel %vm3652, %v7152, -inf
        %v7334 = vsel %vm3652, %v7153, -inf
        %v7335 = vmax.f32 %v7333, %v7334
        %v7336 = vsel %vm3652, %v7154, -inf
        %v7337 = vmax.f32 %v7335, %v7336
        %v7338 = vsel %vm3652, %v7155, -inf
        %v7339 = vmax.f32 %v7337, %v7338
        %v7340 = vrot.slane %v7339, 4
        %v7341 = vmax.f32 %v7339, %v7340
        %v7342 = vrot.slane %v7341, 2
        %v7343 = vmax.f32 %v7341, %v7342
        %v7344 = vrot.slane %v7343, 1
        %v7345 = vmax.f32 %v7343, %v7344
        %v7346 = vsel %vm3652, %v7156, -inf
        %v7347 = vsel %vm3652, %v7157, -inf
        %v7348 = vmax.f32 %v7346, %v7347
        %v7349 = vsel %vm3652, %v7158, -inf
        %v7350 = vmax.f32 %v7348, %v7349
        %v7351 = vsel %vm3652, %v7159, -inf
        %v7352 = vmax.f32 %v7350, %v7351
        %v7353 = vrot.slane %v7352, 4
        %v7354 = vmax.f32 %v7352, %v7353
        %v7355 = vrot.slane %v7354, 2
        %v7356 = vmax.f32 %v7354, %v7355
        %v7357 = vrot.slane %v7356, 1
        %v7358 = vmax.f32 %v7356, %v7357
        %v7359 = vsel %vm3652, %v7160, -inf
        %v7360 = vsel %vm3652, %v7161, -inf
        %v7361 = vmax.f32 %v7359, %v7360
        %v7362 = vsel %vm3652, %v7162, -inf
        %v7363 = vmax.f32 %v7361, %v7362
        %v7364 = vsel %vm3652, %v7163, -inf
        %v7365 = vmax.f32 %v7363, %v7364
        %v7366 = vrot.slane %v7365, 4
        %v7367 = vmax.f32 %v7365, %v7366
        %v7368 = vrot.slane %v7367, 2
        %v7369 = vmax.f32 %v7367, %v7368
        %v7370 = vrot.slane %v7369, 1
        %v7371 = vmax.f32 %v7369, %v7370
        %v7372 = vld [vmem:[%s2 + $0x3c8] sm:$0xff]
        %v7373 = vld [vmem:[%s2 + $0x3d0] sm:$0xff]
        %v7374 = vld [vmem:[%s2 + $0x3d8] sm:$0xff]
        %v7375 = vld [vmem:[%s2 + $0x3e0] sm:$0xff]
        %v7376 = vld [vmem:[%s2 + $0x3e8] sm:$0xff]
        %v7377 = vld [vmem:[%s2 + $0x3f0] sm:$0xff]
        %v7378 = vld [vmem:[%s2 + $0x3f8] sm:$0xff]
        %v7379 = vld [vmem:[%s2 + $0x400] sm:$0xff]
        %vm7396 = vcmask 1041409
        %v7397 = vsel %vm7396, %v7189, %v7176
        %vm7398 = vcmask 1042434
        %v7399 = vsel %vm7398, %v7202, %v7397
        %vm7400 = vcmask 1043459
        %v7401 = vsel %vm7400, %v7215, %v7399
        %vm7402 = vcmask 1044484
        %v7403 = vsel %vm7402, %v7228, %v7401
        %vm7404 = vcmask 1045509
        %v7405 = vsel %vm7404, %v7241, %v7403
        %vm7406 = vcmask 1046534
        %v7407 = vsel %vm7406, %v7254, %v7405
        %vm7408 = vcmask 1047559
        %v7409 = vsel %vm7408, %v7267, %v7407
        %v7410 = vsel %vm7396, %v7293, %v7280
        %v7411 = vsel %vm7398, %v7306, %v7410
        %v7412 = vsel %vm7400, %v7319, %v7411
        %v7413 = vsel %vm7402, %v7332, %v7412
        %v7414 = vsel %vm7404, %v7345, %v7413
        %v7415 = vsel %vm7406, %v7358, %v7414
        %v7416 = vsel %vm7408, %v7371, %v7415
        %v7417 = vsel %vm3652, %v7409, 0
        %v7419 = vsel %vm3652, %v7416, 0
        %7421 = vmatprep.subr.mxu0 0.0
        %7422 = vmatpush1.msra.mxu0 %v7376
        %7423 = vmatprep.subr.mxu0 0.0
        %7424 = vmatpush1.msra.mxu0 %v7377
        %7425 = vmatprep.subr.mxu0 0.0
        %7426 = vmatpush1.msra.mxu0 %v7378
        %7427 = vmatprep.subr.mxu0 0.0
        %7428 = vmatpush1.msra.mxu0 %v7379
        %7429 = vmatprep.subr.mxu0 0.0
        %7430 = vmatpush1.msra.mxu0 0.0
        %7431 = vmatprep.subr.mxu0 0.0
        %7432 = vmatpush1.msra.mxu0 0.0
        %7433 = vmatprep.subr.mxu0 0.0
        %7434 = vmatpush1.msra.mxu0 0.0
        %7435 = vmatprep.subr.mxu0 0.0
        %7436 = vmatpush1.msra.mxu0 0.0
        %7437 = vmatprep.subr.mxu0 0.0
        %7438 = vmatpush1.msra.mxu0 0.0
        %7439 = vmatprep.subr.mxu0 0.0
        %7440 = vmatpush1.msra.mxu0 0.0
        %7441 = vmatprep.subr.mxu0 0.0
        %7442 = vmatpush1.msra.mxu0 0.0
        %7443 = vmatprep.subr.mxu0 0.0
        %7444 = vmatpush1.msra.mxu0 0.0
        %7445 = vmatprep.subr.mxu0 0.0
        %7446 = vmatpush1.msra.mxu0 0.0
        %7447 = vmatprep.subr.mxu0 0.0
        %7448 = vmatpush1.msra.mxu0 0.0
        %7449 = vmatprep.subr.mxu0 0.0
        %7450 = vmatpush1.msra.mxu0 0.0
        %7451 = vmatprep.subr.mxu0 0.0
        %7452 = vmatpush1.msra.mxu0 0.0
        %7453 = vmatprep.subr.mxu0 0.0
        %7454 = vmatpush1.msra.mxu0 0.0
        %7455 = vmatprep.subr.mxu0 0.0
        %7456 = vmatpush1.msra.mxu0 0.0
        %7457 = vmatprep.subr.mxu0 0.0
        %7458 = vmatpush1.msra.mxu0 0.0
        %7459 = vmatprep.subr.mxu0 0.0
        %7460 = vmatpush1.msra.mxu0 0.0
        %7461 = vmatprep.subr.mxu0 0.0
        %7462 = vmatpush1.msra.mxu0 0.0
        %7463 = vmatprep.subr.mxu0 0.0
        %7464 = vmatpush1.msra.mxu0 0.0
        %7465 = vmatprep.subr.mxu0 0.0
        %7466 = vmatpush1.msra.mxu0 0.0
        %7467 = vmatprep.subr.mxu0 0.0
        %7468 = vmatpush1.msra.mxu0 0.0
        %7469 = vmatprep.subr.mxu0 0.0
        %7470 = vmatpush1.msra.mxu0 0.0
        %7471 = vmatprep.subr.mxu0 0.0
        %7472 = vmatpush1.msra.mxu0 0.0
        %7473 = vmatprep.subr.mxu0 0.0
        %7474 = vmatpush1.msra.mxu0 0.0
        %7475 = vmatprep.subr.mxu0 0.0
        %7476 = vmatpush1.msra.mxu0 0.0
        %7477 = vmatprep.subr.mxu0 0.0
        %7478 = vmatpush1.msra.mxu0 0.0
        %7479 = vmatprep.subr.mxu0 0.0
        %7480 = vmatpush1.msra.mxu0 0.0
        %7481 = vmatprep.subr.mxu0 0.0
        %7482 = vmatpush1.msra.mxu0 0.0
        %7483 = vmatprep.subr.mxu0 0.0
        %7484 = vmatpush1.msra.mxu0 0.0
        %7485 = vmatprep.mubr.f32.mxu0 0.0
        %7486 = vmatmul.mubr.f32.gmra.mrb[0].mxu0 %v7417
        %v7487 = vpop.f32.mrb[0].mxu0
        %v7488 = vadd.f32 0.0, %v7487
        %v7489 = vpop.f32.mrb[0].mxu0
        %7490 = vmatprep.mubr.f32.mxu0 0.0
        %7491 = vmatmul.mubr.f32.gmra.mrb[0].mxu0 %v7419
        %v7492 = vpop.f32.mrb[0].mxu0
        %v7493 = vadd.f32 0.0, %v7492
        %v7494 = vpop.f32.mrb[0].mxu0
        %7495 = vdwg.mxu0
        %v7512 = vsel %vm7396, %v6909, %v6896
        %v7513 = vsel %vm7398, %v6922, %v7512
        %v7514 = vsel %vm7400, %v6935, %v7513
        %v7515 = vsel %vm7402, %v6948, %v7514
        %v7516 = vsel %vm7404, %v6961, %v7515
        %v7517 = vsel %vm7406, %v6974, %v7516
        %v7518 = vsel %vm7408, %v6987, %v7517
        %v7519 = vsel %vm7396, %v7013, %v7000
        %v7520 = vsel %vm7398, %v7026, %v7519
        %v7521 = vsel %vm7400, %v7039, %v7520
        %v7522 = vsel %vm7402, %v7052, %v7521
        %v7523 = vsel %vm7404, %v7065, %v7522
        %v7524 = vsel %vm7406, %v7078, %v7523
        %v7525 = vsel %vm7408, %v7091, %v7524
        %v7526 = vsel %vm3652, %v7518, 0
        %v7528 = vsel %vm3652, %v7525, 0
        %7530 = vmatprep.subr.mxu0 0.0
        %7531 = vmatpush1.msra.mxu0 %v7372
        %7532 = vmatprep.subr.mxu0 0.0
        %7533 = vmatpush1.msra.mxu0 %v7373
        %7534 = vmatprep.subr.mxu0 0.0
        %7535 = vmatpush1.msra.mxu0 %v7374
        %7536 = vmatprep.subr.mxu0 0.0
        %7537 = vmatpush1.msra.mxu0 %v7375
        %7538 = vmatprep.subr.mxu0 0.0
        %7539 = vmatpush1.msra.mxu0 0.0
        %7540 = vmatprep.subr.mxu0 0.0
        %7541 = vmatpush1.msra.mxu0 0.0
        %7542 = vmatprep.subr.mxu0 0.0
        %7543 = vmatpush1.msra.mxu0 0.0
        %7544 = vmatprep.subr.mxu0 0.0
        %7545 = vmatpush1.msra.mxu0 0.0
        %7546 = vmatprep.subr.mxu0 0.0
        %7547 = vmatpush1.msra.mxu0 0.0
        %7548 = vmatprep.subr.mxu0 0.0
        %7549 = vmatpush1.msra.mxu0 0.0
        %7550 = vmatprep.subr.mxu0 0.0
        %7551 = vmatpush1.msra.mxu0 0.0
        %7552 = vmatprep.subr.mxu0 0.0
        %7553 = vmatpush1.msra.mxu0 0.0
        %7554 = vmatprep.subr.mxu0 0.0
        %7555 = vmatpush1.msra.mxu0 0.0
        %7556 = vmatprep.subr.mxu0 0.0
        %7557 = vmatpush1.msra.mxu0 0.0
        %7558 = vmatprep.subr.mxu0 0.0
        %7559 = vmatpush1.msra.mxu0 0.0
        %7560 = vmatprep.subr.mxu0 0.0
        %7561 = vmatpush1.msra.mxu0 0.0
        %7562 = vmatprep.subr.mxu0 0.0
        %7563 = vmatpush1.msra.mxu0 0.0
        %7564 = vmatprep.subr.mxu0 0.0
        %7565 = vmatpush1.msra.mxu0 0.0
        %7566 = vmatprep.subr.mxu0 0.0
        %7567 = vmatpush1.msra.mxu0 0.0
        %7568 = vmatprep.subr.mxu0 0.0
        %7569 = vmatpush1.msra.mxu0 0.0
        %7570 = vmatprep.subr.mxu0 0.0
        %7571 = vmatpush1.msra.mxu0 0.0
        %7572 = vmatprep.subr.mxu0 0.0
        %7573 = vmatpush1.msra.mxu0 0.0
        %7574 = vmatprep.subr.mxu0 0.0
        %7575 = vmatpush1.msra.mxu0 0.0
        %7576 = vmatprep.subr.mxu0 0.0
        %7577 = vmatpush1.msra.mxu0 0.0
        %7578 = vmatprep.subr.mxu0 0.0
        %7579 = vmatpush1.msra.mxu0 0.0
        %7580 = vmatprep.subr.mxu0 0.0
        %7581 = vmatpush1.msra.mxu0 0.0
        %7582 = vmatprep.subr.mxu0 0.0
        %7583 = vmatpush1.msra.mxu0 0.0
        %7584 = vmatprep.subr.mxu0 0.0
        %7585 = vmatpush1.msra.mxu0 0.0
        %7586 = vmatprep.subr.mxu0 0.0
        %7587 = vmatpush1.msra.mxu0 0.0
        %7588 = vmatprep.subr.mxu0 0.0
        %7589 = vmatpush1.msra.mxu0 0.0
        %7590 = vmatprep.subr.mxu0 0.0
        %7591 = vmatpush1.msra.mxu0 0.0
        %7592 = vmatprep.subr.mxu0 0.0
        %7593 = vmatpush1.msra.mxu0 0.0
        %7594 = vmatprep.mubr.f32.mxu0 0.0
        %7595 = vmatmul.mubr.f32.gmra.mrb[0].mxu0 %v7526
        %v7596 = vpop.f32.mrb[0].mxu0
        %v7597 = vadd.f32 %v7488, %v7596
        %v7598 = vpop.f32.mrb[0].mxu0
        %7599 = vmatprep.mubr.f32.mxu0 0.0
        %7600 = vmatmul.mubr.f32.gmra.mrb[0].mxu0 %v7528
        %v7601 = vpop.f32.mrb[0].mxu0
        %v7602 = vadd.f32 %v7493, %v7601
        %v7603 = vpop.f32.mrb[0].mxu0
        %7604 = vdwg.mxu0
        %v7605 = vld [vmem:[%s2 + $0x408] sm:$0xff]
        %v7606 = vld [vmem:[%s2 + $0x410] sm:$0xff]
        %v7607 = vld [vmem:[%s2 + $0x418] sm:$0xff]
        %v7608 = vld [vmem:[%s2 + $0x420] sm:$0xff]
        %v7609 = vrot.slane %v1332, 7
        %v7610 = vsel %vm7396, %v7609, %v1171
        %v7611 = vrot.slane %v1493, 6
        %v7612 = vsel %vm7398, %v7611, %v7610
        %v7613 = vrot.slane %v1654, 5
        %v7614 = vsel %vm7400, %v7613, %v7612
        %v7615 = vrot.slane %v1815, 4
        %v7616 = vsel %vm7402, %v7615, %v7614
        %v7617 = vrot.slane %v1976, 3
        %v7618 = vsel %vm7404, %v7617, %v7616
        %v7619 = vrot.slane %v2137, 2
        %v7620 = vsel %vm7406, %v7619, %v7618
        %v7621 = vrot.slane %v2298, 1
        %v7622 = vsel %vm7408, %v7621, %v7620
        %v7623 = vrot.slane %v2620, 7
        %v7624 = vsel %vm7396, %v7623, %v2459
        %v7625 = vrot.slane %v2781, 6
        %v7626 = vsel %vm7398, %v7625, %v7624
        %v7627 = vrot.slane %v2942, 5
        %v7628 = vsel %vm7400, %v7627, %v7626
        %v7629 = vrot.slane %v3103, 4
        %v7630 = vsel %vm7402, %v7629, %v7628
        %v7631 = vrot.slane %v3264, 3
        %v7632 = vsel %vm7404, %v7631, %v7630
        %v7633 = vrot.slane %v3425, 2
        %v7634 = vsel %vm7406, %v7633, %v7632
        %v7635 = vrot.slane %v3586, 1
        %v7636 = vsel %vm7408, %v7635, %v7634
        %v7637 = vsel %vm3652, %v7622, 0
        %v7639 = vsel %vm3652, %v7636, 0
        %7641 = vmatprep.subr.mxu0 0.0
        %7642 = vmatpush1.msra.mxu0 %v7605
        %7643 = vmatprep.subr.mxu0 0.0
        %7644 = vmatpush1.msra.mxu0 %v7606
        %7645 = vmatprep.subr.mxu0 0.0
        %7646 = vmatpush1.msra.mxu0 %v7607
        %7647 = vmatprep.subr.mxu0 0.0
        %7648 = vmatpush1.msra.mxu0 %v7608
        %7649 = vmatprep.subr.mxu0 0.0
        %7650 = vmatpush1.msra.mxu0 0.0
        %7651 = vmatprep.subr.mxu0 0.0
        %7652 = vmatpush1.msra.mxu0 0.0
        %7653 = vmatprep.subr.mxu0 0.0
        %7654 = vmatpush1.msra.mxu0 0.0
        %7655 = vmatprep.subr.mxu0 0.0
        %7656 = vmatpush1.msra.mxu0 0.0
        %7657 = vmatprep.subr.mxu0 0.0
        %7658 = vmatpush1.msra.mxu0 0.0
        %7659 = vmatprep.subr.mxu0 0.0
        %7660 = vmatpush1.msra.mxu0 0.0
        %7661 = vmatprep.subr.mxu0 0.0
        %7662 = vmatpush1.msra.mxu0 0.0
        %7663 = vmatprep.subr.mxu0 0.0
        %7664 = vmatpush1.msra.mxu0 0.0
        %7665 = vmatprep.subr.mxu0 0.0
        %7666 = vmatpush1.msra.mxu0 0.0
        %7667 = vmatprep.subr.mxu0 0.0
        %7668 = vmatpush1.msra.mxu0 0.0
        %7669 = vmatprep.subr.mxu0 0.0
        %7670 = vmatpush1.msra.mxu0 0.0
        %7671 = vmatprep.subr.mxu0 0.0
        %7672 = vmatpush1.msra.mxu0 0.0
        %7673 = vmatprep.subr.mxu0 0.0
        %7674 = vmatpush1.msra.mxu0 0.0
        %7675 = vmatprep.subr.mxu0 0.0
        %7676 = vmatpush1.msra.mxu0 0.0
        %7677 = vmatprep.subr.mxu0 0.0
        %7678 = vmatpush1.msra.mxu0 0.0
        %7679 = vmatprep.subr.mxu0 0.0
        %7680 = vmatpush1.msra.mxu0 0.0
        %7681 = vmatprep.subr.mxu0 0.0
        %7682 = vmatpush1.msra.mxu0 0.0
        %7683 = vmatprep.subr.mxu0 0.0
        %7684 = vmatpush1.msra.mxu0 0.0
        %7685 = vmatprep.subr.mxu0 0.0
        %7686 = vmatpush1.msra.mxu0 0.0
        %7687 = vmatprep.subr.mxu0 0.0
        %7688 = vmatpush1.msra.mxu0 0.0
        %7689 = vmatprep.subr.mxu0 0.0
        %7690 = vmatpush1.msra.mxu0 0.0
        %7691 = vmatprep.subr.mxu0 0.0
        %7692 = vmatpush1.msra.mxu0 0.0
        %7693 = vmatprep.subr.mxu0 0.0
        %7694 = vmatpush1.msra.mxu0 0.0
        %7695 = vmatprep.subr.mxu0 0.0
        %7696 = vmatpush1.msra.mxu0 0.0
        %7697 = vmatprep.subr.mxu0 0.0
        %7698 = vmatpush1.msra.mxu0 0.0
        %7699 = vmatprep.subr.mxu0 0.0
        %7700 = vmatpush1.msra.mxu0 0.0
        %7701 = vmatprep.subr.mxu0 0.0
        %7702 = vmatpush1.msra.mxu0 0.0
        %7703 = vmatprep.subr.mxu0 0.0
        %7704 = vmatpush1.msra.mxu0 0.0
        %7705 = vmatprep.mubr.f32.mxu0 0.0
        %7706 = vmatmul.mubr.f32.gmra.mrb[0].mxu0 %v7637
        %v7707 = vpop.f32.mrb[0].mxu0
        %v7708 = vadd.f32 0.0, %v7707
        %v7709 = vpop.f32.mrb[0].mxu0
        %7710 = vmatprep.mubr.f32.mxu0 0.0
        %7711 = vmatmul.mubr.f32.gmra.mrb[0].mxu0 %v7639
        %v7712 = vpop.f32.mrb[0].mxu0
        %v7713 = vadd.f32 0.0, %v7712
        %v7714 = vpop.f32.mrb[0].mxu0
        %7715 = vdwg.mxu0
        %v7716 = vadd.f32 %v7597, %v7708
        %v7717 = vadd.f32 %v7602, %v7713
        %v7718 = vld [vmem:[%s2 + $0x428] sm:$0x1]
        %v7719 = vlaneseq
        %v7720 = vshrl.u32 %v7719, 7
        %v7721 = vsub.s32 0, %v7720
        %v7722 = vrot.slane %v7718, %v7721
        %v7723 = vadd.f32 %v7716, %v7722
        %v7724 = vadd.f32 %v7717, %v7722
        %v7725 = vtanh.pop %v7723
        %v7726 = vtanh.pop %v7724
        %v7727 = vld [vmem:[%s3] sm:$0xff]
        %v7728 = vld [vmem:[%s3 + $0x8] sm:$0xff]
        %v7729 = vld [vmem:[%s3 + $0x10] sm:$0xff]
        %v7730 = vld [vmem:[%s3 + $0x18] sm:$0xff]
        %v7731 = vld [vmem:[%s3 + $0x20] sm:$0x1]
        %v7732 = vlaneseq
        %v7733 = vshrl.u32 %v7732, 7
        %v7734 = vsub.s32 0, %v7733
        %v7735 = vrot.slane %v7731, %v7734
        %v7737 = vsel %vm3652, %v7725, 0
        %v7740 = vsel %vm3652, %v7726, 0
        %7742 = vmatprep.subr.mxu0 0.0
        %7743 = vmatpush1.msra.mxu0 %v7727
        %7744 = vmatprep.subr.mxu0 0.0
        %7745 = vmatpush1.msra.mxu0 %v7728
        %7746 = vmatprep.subr.mxu0 0.0
        %7747 = vmatpush1.msra.mxu0 %v7729
        %7748 = vmatprep.subr.mxu0 0.0
        %7749 = vmatpush1.msra.mxu0 %v7730
        %7750 = vmatprep.subr.mxu0 0.0
        %7751 = vmatpush1.msra.mxu0 0.0
        %7752 = vmatprep.subr.mxu0 0.0
        %7753 = vmatpush1.msra.mxu0 0.0
        %7754 = vmatprep.subr.mxu0 0.0
        %7755 = vmatpush1.msra.mxu0 0.0
        %7756 = vmatprep.subr.mxu0 0.0
        %7757 = vmatpush1.msra.mxu0 0.0
        %7758 = vmatprep.subr.mxu0 0.0
        %7759 = vmatpush1.msra.mxu0 0.0
        %7760 = vmatprep.subr.mxu0 0.0
        %7761 = vmatpush1.msra.mxu0 0.0
        %7762 = vmatprep.subr.mxu0 0.0
        %7763 = vmatpush1.msra.mxu0 0.0
        %7764 = vmatprep.subr.mxu0 0.0
        %7765 = vmatpush1.msra.mxu0 0.0
        %7766 = vmatprep.subr.mxu0 0.0
        %7767 = vmatpush1.msra.mxu0 0.0
        %7768 = vmatprep.subr.mxu0 0.0
        %7769 = vmatpush1.msra.mxu0 0.0
        %7770 = vmatprep.subr.mxu0 0.0
        %7771 = vmatpush1.msra.mxu0 0.0
        %7772 = vmatprep.subr.mxu0 0.0
        %7773 = vmatpush1.msra.mxu0 0.0
        %7774 = vmatprep.subr.mxu0 0.0
        %7775 = vmatpush1.msra.mxu0 0.0
        %7776 = vmatprep.subr.mxu0 0.0
        %7777 = vmatpush1.msra.mxu0 0.0
        %7778 = vmatprep.subr.mxu0 0.0
        %7779 = vmatpush1.msra.mxu0 0.0
        %7780 = vmatprep.subr.mxu0 0.0
        %7781 = vmatpush1.msra.mxu0 0.0
        %7782 = vmatprep.subr.mxu0 0.0
        %7783 = vmatpush1.msra.mxu0 0.0
        %7784 = vmatprep.subr.mxu0 0.0
        %7785 = vmatpush1.msra.mxu0 0.0
        %7786 = vmatprep.subr.mxu0 0.0
        %7787 = vmatpush1.msra.mxu0 0.0
        %7788 = vmatprep.subr.mxu0 0.0
        %7789 = vmatpush1.msra.mxu0 0.0
        %7790 = vmatprep.subr.mxu0 0.0
        %7791 = vmatpush1.msra.mxu0 0.0
        %7792 = vmatprep.subr.mxu0 0.0
        %7793 = vmatpush1.msra.mxu0 0.0
        %7794 = vmatprep.subr.mxu0 0.0
        %7795 = vmatpush1.msra.mxu0 0.0
        %7796 = vmatprep.subr.mxu0 0.0
        %7797 = vmatpush1.msra.mxu0 0.0
        %7798 = vmatprep.subr.mxu0 0.0
        %7799 = vmatpush1.msra.mxu0 0.0
        %7800 = vmatprep.subr.mxu0 0.0
        %7801 = vmatpush1.msra.mxu0 0.0
        %7802 = vmatprep.subr.mxu0 0.0
        %7803 = vmatpush1.msra.mxu0 0.0
        %7804 = vmatprep.subr.mxu0 0.0
        %7805 = vmatpush1.msra.mxu0 0.0
        %7806 = vmatprep.mubr.f32.mxu0 0.0
        %7807 = vmatmul.mubr.f32.gmra.mrb[0].mxu0 %v7737
        %v7808 = vpop.f32.mrb[0].mxu0
        %v7809 = vadd.f32 %v7735, %v7808
        %v7810 = vpop.f32.mrb[0].mxu0
        %7811 = vmatprep.mubr.f32.mxu0 0.0
        %7812 = vmatmul.mubr.f32.gmra.mrb[0].mxu0 %v7740
        %v7813 = vpop.f32.mrb[0].mxu0
        %v7814 = vadd.f32 %v7735, %v7813
        %v7815 = vpop.f32.mrb[0].mxu0
        %7816 = vdwg.mxu0
        %7817 = vmax.xlane.f32.xlu0 %v7809
        %v7818 = vpop.xlane.xlu0 %7817
        %7819 = vmax.xlane.f32.xlu0 %v7814
        %v7820 = vpop.xlane.xlu0 %7819
        %v7821 = vsub.f32 %v7809, %v7818
        %v7822 = vsub.f32 %v7814, %v7820
        %v7823 = vmul.f32 %v7821, 1.442695
        %v7824 = vpow.pop %v7823
        %v7825 = vmul.f32 %v7822, 1.442695
        %v7826 = vpow.pop %v7825
        %7827 = vadd.xlane.f32.xlu0 %v7824
        %v7828 = vpop.xlane.xlu0 %7827
        %7829 = vadd.xlane.f32.xlu0 %v7826
        %v7830 = vpop.xlane.xlu0 %7829
        %v7831 = vrcp.pop %v7828
        %v7832 = vrcp.pop %v7830
        %v7833 = vmul.f32 %v7824, %v7831
        %v7834 = vmul.f32 %v7826, %v7832
        %7835 = vst [vmem:[%s211] sm:$0xff] %v7833
        %7836 = vst [vmem:[%s211 + $0x8] sm:$0xff] %v7834
        %s7837 = sand.u32 %s120, 1
        %s7838 = scalar_lea.sflag [#allocation3], %s7837
        %s7839 = sand.u32 %s120, 1
        %s7840 = smul.addr %s7839, 16
        %s7841 = scalar_lea.vmem [#allocation2], %s7840
        // Predicated region
        $region37: #{tpu_custom_call.1} parent=35 // pred_check
          %p7842 = pneg %p130
        $region38: #{tpu_custom_call.1} parent=35 // pred_check_branch
          %7844 = sbr.rel (%p7842) target = $region40
        $region39: #{tpu_custom_call.1} parent=35 // pred_region
          %s7845 = smul.u32 2, %s18
          %s7847 = ssub.s32 256, 256
          %7848 = vsyncadd %s7838, %s7847
          %s7849 = smul.addr %s7845, 128
          %s7850 = scalar_lea.hbm %s4, %s7849
          %s7851 = sshll.u32 %s7841, 4
          %s7852 = int_to_ptr.vmem [resolvable:$true] %s7851
          %7857 = dma.vmem_to_hbm [thread:$0]  %s7852, 256, %s7850, %s7838, 128, 128, 8
        $region40: #{tpu_custom_call.1} parent=35 // pred_fallthru
          _
      $region36: #{tpu_custom_call.1} parent=5 // pred_fallthru
        _
      %p7858 = scmp.le.s32.totalorder 2, %s13
      // Predicated region
      $region41: #{tpu_custom_call.1} parent=5 // pred_check
        %p7859 = pneg %p7858
      $region42: #{tpu_custom_call.1} parent=5 // pred_check_branch
        %7861 = sbr.rel (%p7859) target = $region44
      $region43: #{tpu_custom_call.1} parent=5 // pred_region
        %s7862 = ssub.s32 %s13, 2
        // Predicated region
        $region45: #{tpu_custom_call.1} parent=43 // pred_check
          %p7863 = pneg %p136
        $region46: #{tpu_custom_call.1} parent=43 // pred_check_branch
          %7865 = sbr.rel (%p7863) target = $region48
        $region47: #{tpu_custom_call.1} parent=43 // pred_region
          %s7866 = sand.u32 %s121, 1
          %s7867 = scalar_lea.sflag [#allocation3], %s7866
          %s7868 = sand.u32 %s121, 1
          %s7869 = smul.addr %s7868, 16
          %s7870 = scalar_lea.vmem [#allocation2], %s7869
          %7871 = dma.done %s7867, 256
        $region48: #{tpu_custom_call.1} parent=43 // pred_fallthru
          _
      $region44: #{tpu_custom_call.1} parent=5 // pred_fallthru
        _
    $region6: #{tpu_custom_call.1} parent=1 // loop_footer
      %s17 = sadd.s32 1, %s13
    $region7: #{tpu_custom_call.1} parent=1 // loop_footer_branch
      %12 = sbr.rel target = $region3
    $region8: #{tpu_custom_call.1} parent=1 // loop_exit
      _
    %7872 = vsyncpa [#allocation3], 1
    %s7873 = scalar_lea.sflag [#allocation3], 1
    %7874 = vsyncpa %s7873, 1

</llo_original>
